<compile_context>
chip_gen: v5e
topology: v5e:2x2
jax: 0.10.0
libtpu: 0.0.40
codegen_flags: <defaults>
</compile_context>

<pallas_src>
import math

import jax
import jax.numpy as jnp
import numpy as np
from jax import lax
from jax.experimental import pallas as pl
from jax.experimental.pallas import tpu as pltpu

LANE = 128


# ----------------------------------------------------------------------------- #
# Parameter init (mirrors GenBlock.__init__: xavier_uniform convs, zero biases).
# BatchNorm affine/running stats are randomized to exercise the folded path
# (a fresh PyTorch module would have gamma=1, beta=0, mean=0, var=1).
# ----------------------------------------------------------------------------- #
def xavier_uniform(key, shape, gain=1.0):
    cout, cin, kh, kw = shape
    fan_in, fan_out = cin * kh * kw, cout * kh * kw
    bound = gain * math.sqrt(6.0 / (fan_in + fan_out))
    return jax.random.uniform(key, shape, jnp.float32, -bound, bound)


def init_genblock_params(key, in_channels, out_channels, hidden_channels=None,
                         learnable_sc=True):
    hid = out_channels if hidden_channels is None else hidden_channels
    ks = jax.random.split(key, 12)
    p = {
        "c1_w": xavier_uniform(ks[0], (hid, in_channels, 3, 3), math.sqrt(2.0)),
        "c1_b": jnp.zeros((hid,), jnp.float32),
        "c2_w": xavier_uniform(ks[1], (out_channels, hid, 3, 3), math.sqrt(2.0)),
        "c2_b": jnp.zeros((out_channels,), jnp.float32),
        "b1_gamma": jax.random.uniform(ks[2], (in_channels,), jnp.float32, 0.5, 1.5),
        "b1_beta": 0.1 * jax.random.normal(ks[3], (in_channels,), jnp.float32),
        "b1_mean": 0.1 * jax.random.normal(ks[4], (in_channels,), jnp.float32),
        "b1_var": jax.random.uniform(ks[5], (in_channels,), jnp.float32, 0.5, 1.5),
        "b2_gamma": jax.random.uniform(ks[6], (hid,), jnp.float32, 0.5, 1.5),
        "b2_beta": 0.1 * jax.random.normal(ks[7], (hid,), jnp.float32),
        "b2_mean": 0.1 * jax.random.normal(ks[8], (hid,), jnp.float32),
        "b2_var": jax.random.uniform(ks[9], (hid,), jnp.float32, 0.5, 1.5),
    }
    if learnable_sc:
        p["c_sc_w"] = xavier_uniform(ks[10], (out_channels, in_channels, 1, 1), 1.0)
        p["c_sc_b"] = jnp.zeros((out_channels,), jnp.float32)
    return p


# ----------------------------------------------------------------------------- #
# Host-side precompute: pad channels to 128 lanes, fold BN + biases, reshape the
# conv weights to im2col (9*Cp, Cp) matrices.  Call ONCE and reuse (hoisted out
# of the forward path, per review).
# ----------------------------------------------------------------------------- #
def _round_up(x, m):
    return (x + m - 1) // m * m


def _pad_axis(a, axis, new_size):
    pad = [(0, 0)] * a.ndim
    pad[axis] = (0, new_size - a.shape[axis])
    return jnp.pad(a, pad)


def prepare_genblock(params, eps=1e-5, compute_dtype=jnp.bfloat16):
    c1w = params["c1_w"]
    hid, cin = int(c1w.shape[0]), int(c1w.shape[1])
    cout = int(params["c2_w"].shape[0])
    cp = max(_round_up(cin, LANE), _round_up(hid, LANE), _round_up(cout, LANE))

    # Fold BatchNorms (running stats) and the c1 bias into per-channel scale/shift.
    s1 = params["b1_gamma"] / jnp.sqrt(params["b1_var"] + eps)
    t1 = params["b1_beta"] - params["b1_mean"] * s1
    s2 = params["b2_gamma"] / jnp.sqrt(params["b2_var"] + eps)
    t2 = params["b2_beta"] - params["b2_mean"] * s2 + s2 * params["c1_b"]

    def conv_mat(w, ci, co):
        # (co, ci, 3, 3) -> (9, ci, co) -> zero-pad channels -> (9*cp, cp)
        m = jnp.transpose(w, (2, 3, 1, 0)).reshape(9, ci, co)
        m = _pad_axis(_pad_axis(m, 1, cp), 2, cp)
        return m.reshape(9 * cp, cp).astype(compute_dtype)

    w1 = conv_mat(params["c1_w"], cin, hid)
    w2 = conv_mat(params["c2_w"], hid, cout)

    if "c_sc_w" in params:                    # learnable 1x1 shortcut
        wsc = jnp.transpose(params["c_sc_w"][:, :, 0, 0], (1, 0))   # (cin, cout)
        wsc = _pad_axis(_pad_axis(wsc, 0, cp), 1, cp).astype(compute_dtype)
        bsc = params["c_sc_b"]
    else:                                     # identity shortcut (cin == cout)
        wsc = jnp.eye(cp, dtype=compute_dtype)
        bsc = jnp.zeros((cout,), jnp.float32)
    bout = params["c2_b"] + bsc               # combined output bias

    def vec(v):
        return _pad_axis(v.astype(jnp.float32), 0, cp).reshape(1, cp)

    return {
        "Cin": cin, "Cout": cout, "Cp": cp, "compute_dtype": compute_dtype,
        "s1": vec(s1), "t1": vec(t1), "s2": vec(s2), "t2": vec(t2),
        "bout": vec(bout), "w1": w1, "w2": w2, "wsc": wsc,
    }


# ----------------------------------------------------------------------------- #
# Pallas kernel: whole GenBlock for one batch element (NHWC, channels padded).
# ----------------------------------------------------------------------------- #
def genblock_kernel(x_ref, s1_ref, t1_ref, w1_ref, s2_ref, t2_ref, w2_ref,
                    wsc_ref, bo_ref, o_ref, hpad_ref, col_ref):
    Hp, Wp, Cp = hpad_ref.shape
    H, W = Hp - 2, Wp - 2
    HW = H * W
    cdt = col_ref.dtype                       # matmul compute dtype (bf16)

    x = x_ref[0]                              # (H, W, Cp), compute dtype

    # ---- BN1 (pre-folded scale/shift) + ReLU, f32 on the VPU ----
    h = jnp.maximum(x.astype(jnp.float32) * s1_ref[0] + t1_ref[0], 0.0)

    # Zero-padded halo buffer; the 1-pixel border stays 0, interior is overwritten
    # once per conv.  (Zeroed every step: scratch is per-core and must not rely on
    # program_id==0 having run on this core.)
    hpad_ref[...] = jnp.zeros_like(hpad_ref)
    hpad_ref[1:H + 1, 1:W + 1, :] = h

    def conv3x3(w_ref):
        # Pack the 9 shifted taps into a lane-dense (HW, 9*Cp) im2col slab, then
        # a single MXU matmul with K = 9*Cp and f32 accumulation.
        for k in range(9):
            dy, dx = divmod(k, 3)
            col_ref[:, k * Cp:(k + 1) * Cp] = (
                hpad_ref[dy:dy + H, dx:dx + W, :].reshape(HW, Cp).astype(cdt))
        return jnp.dot(col_ref[...], w_ref[...],
                       preferred_element_type=jnp.float32)

    # ---- c1 (3x3) -> BN2 (+ folded c1 bias) -> ReLU ----
    a1 = conv3x3(w1_ref)                                        # (HW, Cp) f32
    h2 = jnp.maximum(a1 * s2_ref[0] + t2_ref[0], 0.0)

    # ---- c2 (3x3), reusing the same halo buffer ----
    hpad_ref[1:H + 1, 1:W + 1, :] = h2.reshape(H, W, Cp)
    y = conv3x3(w2_ref)                                         # (HW, Cp) f32

    # ---- 1x1 shortcut on the raw input ----
    sc = jnp.dot(x.reshape(HW, Cp), wsc_ref[...],
                 preferred_element_type=jnp.float32)

    out = y + sc + bo_ref[0]                                    # combined bias
    o_ref[0] = out.reshape(H, W, Cp).astype(o_ref.dtype)


# ----------------------------------------------------------------------------- #
# Public wrapper: NCHW in / NCHW out.  `packed` comes from prepare_genblock().
# ----------------------------------------------------------------------------- #
def genblock_apply(x_nchw, packed, upsample=False):
    N = x_nchw.shape[0]
    Cp, Cout = packed["Cp"], packed["Cout"]
    cdt = packed["compute_dtype"]

    x = jnp.transpose(x_nchw, (0, 2, 3, 1))                     # NHWC
    if upsample:
        # nearest-neighbour 2x upsample commutes with the per-pixel BN1+ReLU,
        # so both residual and shortcut paths can start from the upsampled input.
        x = jnp.repeat(jnp.repeat(x, 2, axis=1), 2, axis=2)
    H, W = x.shape[1], x.shape[2]
    x = _pad_axis(x.astype(jnp.float32), 3, Cp).astype(cdt)     # (N, H, W, Cp)

    out = pl.pallas_call(
        genblock_kernel,
        out_shape=jax.ShapeDtypeStruct((N, H, W, Cp), jnp.float32),
        grid_spec=pltpu.PrefetchScalarGridSpec(
            num_scalar_prefetch=0,
            grid=(N,),
            in_specs=[
                pl.BlockSpec((1, H, W, Cp), lambda b: (b, 0, 0, 0)),   # x
                pl.BlockSpec((1, Cp), lambda b: (0, 0)),               # s1
                pl.BlockSpec((1, Cp), lambda b: (0, 0)),               # t1
                pl.BlockSpec((9 * Cp, Cp), lambda b: (0, 0)),          # w1
                pl.BlockSpec((1, Cp), lambda b: (0, 0)),               # s2
                pl.BlockSpec((1, Cp), lambda b: (0, 0)),               # t2
                pl.BlockSpec((9 * Cp, Cp), lambda b: (0, 0)),          # w2
                pl.BlockSpec((Cp, Cp), lambda b: (0, 0)),              # wsc
                pl.BlockSpec((1, Cp), lambda b: (0, 0)),               # bout
            ],
            out_specs=pl.BlockSpec((1, H, W, Cp), lambda b: (b, 0, 0, 0)),
            scratch_shapes=[
                pltpu.VMEM((H + 2, W + 2, Cp), jnp.float32),   # halo buffer (f32 epilogue)
                pltpu.VMEM((H * W, 9 * Cp), cdt),              # im2col slab (bf16)
            ],
        ),
        compiler_params=pltpu.CompilerParams(
            dimension_semantics=("parallel",),
            vmem_limit_bytes=32 * 1024 * 1024,
        ),
    )(x, packed["s1"], packed["t1"], packed["w1"],
      packed["s2"], packed["t2"], packed["w2"],
      packed["wsc"], packed["bout"])

    out = out[..., :Cout]                                       # drop channel padding
    return jnp.transpose(out, (0, 3, 1, 2))                     # back to NCHW


# ----------------------------------------------------------------------------- #
# Pure-JAX reference (for the correctness check).
# ----------------------------------------------------------------------------- #
def reference_forward(x, params, eps=1e-5, upsample=False):
    def bn(v, g, b, m, var):
        inv = g / jnp.sqrt(var + eps)
        return v * inv[None, :, None, None] + (b - m * inv)[None, :, None, None]

    def conv(v, w, b, pad):
        y = lax.conv_general_dilated(v, w, (1, 1), [(pad, pad), (pad, pad)],
                                     dimension_numbers=("NCHW", "OIHW", "NCHW"))
        return y + b[None, :, None, None]

    def up(v):
        return jnp.repeat(jnp.repeat(v, 2, axis=2), 2, axis=3)

    h = jnp.maximum(bn(x, params["b1_gamma"], params["b1_beta"],
                       params["b1_mean"], params["b1_var"]), 0.0)
    if upsample:
        h = up(h)
    h = conv(h, params["c1_w"], params["c1_b"], 1)
    h = jnp.maximum(bn(h, params["b2_gamma"], params["b2_beta"],
                       params["b2_mean"], params["b2_var"]), 0.0)
    h = conv(h, params["c2_w"], params["c2_b"], 1)

    if "c_sc_w" in params:
        xs = up(x) if upsample else x
        sc = conv(xs, params["c_sc_w"], params["c_sc_b"], 0)
    else:
        sc = x
    return h + sc


if __name__ == "__main__":
    key = jax.random.PRNGKey(0)
    k_x, k_p = jax.random.split(key)

    N, Cin, Cout, H, W = 2, 4, 8, 16, 16
    x = jax.random.normal(k_x, (N, Cin, H, W), jnp.float32)
    params = init_genblock_params(k_p, Cin, Cout)       # Cin != Cout -> learnable shortcut
    packed = prepare_genblock(params)                   # one-time precompute

    # Plain GenBlock (upsample=False).
    out = jax.block_until_ready(genblock_apply(x, packed, upsample=False))
    ref = reference_forward(x, params, upsample=False)
    # bf16 matmul operands with f32 accumulation -> loosened tolerance.
    np.testing.assert_allclose(np.asarray(out), np.asarray(ref), rtol=5e-2, atol=5e-2)

    # Upsampling GenBlock (same params, 2x spatial output).
    out_up = jax.block_until_ready(genblock_apply(x, packed, upsample=True))
    ref_up = reference_forward(x, params, upsample=True)
    np.testing.assert_allclose(np.asarray(out_up), np.asarray(ref_up), rtol=5e-2, atol=5e-2)

    print("KERNEL_OK")
</pallas_src>

<mosaic_0001>
module attributes {stable_mosaic.version = 11 : i64} {
  func.func @genblock_kernel(%arg0: i32, %arg1: memref<1x16x16x128xbf16, #tpu.memory_space<vmem>>, %arg2: memref<1x128xf32, #tpu.memory_space<vmem>>, %arg3: memref<1x128xf32, #tpu.memory_space<vmem>>, %arg4: memref<1152x128xbf16, #tpu.memory_space<vmem>>, %arg5: memref<1x128xf32, #tpu.memory_space<vmem>>, %arg6: memref<1x128xf32, #tpu.memory_space<vmem>>, %arg7: memref<1152x128xbf16, #tpu.memory_space<vmem>>, %arg8: memref<128x128xbf16, #tpu.memory_space<vmem>>, %arg9: memref<1x128xf32, #tpu.memory_space<vmem>>, %arg10: memref<1x16x16x128xf32, #tpu.memory_space<vmem>>, %arg11: memref<18x18x128xf32, #tpu.memory_space<vmem>>, %arg12: memref<256x1152xbf16, #tpu.memory_space<vmem>>) attributes {dimension_semantics = [#tpu.dimension_semantics<parallel>], iteration_bounds = array<i64: 2>, scalar_prefetch = 0 : i64, scratch_operands = 2 : i64, tpu.core_type = #tpu.core_type<tc>, window_params = [{transform_indices = @transform_0, window_bounds = array<i64: 1, 16, 16, 128>}, {pipeline_mode = #tpu.pipeline_mode<synchronous>, transform_indices = @transform_1, window_bounds = array<i64: 1, 128>}, {pipeline_mode = #tpu.pipeline_mode<synchronous>, transform_indices = @transform_2, window_bounds = array<i64: 1, 128>}, {pipeline_mode = #tpu.pipeline_mode<synchronous>, transform_indices = @transform_3, window_bounds = array<i64: 1152, 128>}, {pipeline_mode = #tpu.pipeline_mode<synchronous>, transform_indices = @transform_4, window_bounds = array<i64: 1, 128>}, {pipeline_mode = #tpu.pipeline_mode<synchronous>, transform_indices = @transform_5, window_bounds = array<i64: 1, 128>}, {pipeline_mode = #tpu.pipeline_mode<synchronous>, transform_indices = @transform_6, window_bounds = array<i64: 1152, 128>}, {pipeline_mode = #tpu.pipeline_mode<synchronous>, transform_indices = @transform_7, window_bounds = array<i64: 128, 128>}, {pipeline_mode = #tpu.pipeline_mode<synchronous>, transform_indices = @transform_8, window_bounds = array<i64: 1, 128>}, {transform_indices = @transform_9, window_bounds = array<i64: 1, 16, 16, 128>}]} {
    %c0 = arith.constant 0 : index
    %c0_0 = arith.constant 0 : index
    %c0_1 = arith.constant 0 : index
    %c0_2 = arith.constant 0 : index
    %0 = vector.load %arg1[%c0, %c0_0, %c0_1, %c0_2] : memref<1x16x16x128xbf16, #tpu.memory_space<vmem>>, vector<1x16x16x128xbf16>
    %1 = vector.shape_cast %0 : vector<1x16x16x128xbf16> to vector<16x16x128xbf16>
    %2 = arith.extf %1 : vector<16x16x128xbf16> to vector<16x16x128xf32>
    %c0_3 = arith.constant 0 : index
    %c0_4 = arith.constant 0 : index
    %3 = vector.load %arg2[%c0_3, %c0_4] : memref<1x128xf32, #tpu.memory_space<vmem>>, vector<1x128xf32>
    %4 = vector.shape_cast %3 : vector<1x128xf32> to vector<128xf32>
    %5 = vector.shape_cast %4 : vector<128xf32> to vector<1x1x128xf32>
    %6 = vector.broadcast %5 : vector<1x1x128xf32> to vector<16x16x128xf32>
    %7 = arith.mulf %2, %6 : vector<16x16x128xf32>
    %c0_5 = arith.constant 0 : index
    %c0_6 = arith.constant 0 : index
    %8 = vector.load %arg3[%c0_5, %c0_6] : memref<1x128xf32, #tpu.memory_space<vmem>>, vector<1x128xf32>
    %9 = vector.shape_cast %8 : vector<1x128xf32> to vector<128xf32>
    %10 = vector.shape_cast %9 : vector<128xf32> to vector<1x1x128xf32>
    %11 = vector.broadcast %10 : vector<1x1x128xf32> to vector<16x16x128xf32>
    %12 = arith.addf %7, %11 : vector<16x16x128xf32>
    %cst = arith.constant 0.000000e+00 : f32
    %13 = vector.broadcast %cst : f32 to vector<16x16x128xf32>
    %14 = arith.maximumf %12, %13 : vector<16x16x128xf32>
    %cst_7 = arith.constant 0.000000e+00 : f32
    %15 = vector.broadcast %cst_7 : f32 to vector<18x18x128xf32>
    %c0_8 = arith.constant 0 : index
    %c0_9 = arith.constant 0 : index
    %c0_10 = arith.constant 0 : index
    %16 = vector.load %arg11[%c0_8, %c0_9, %c0_10] : memref<18x18x128xf32, #tpu.memory_space<vmem>>, vector<18x18x128xf32>
    tpu.vector_store %arg11[%c0_8, %c0_9, %c0_10], %15 {strides = array<i32>} : memref<18x18x128xf32, #tpu.memory_space<vmem>>, vector<18x18x128xf32>,
    %c1 = arith.constant 1 : index
    %c1_11 = arith.constant 1 : index
    %c0_12 = arith.constant 0 : index
    %17 = vector.load %arg11[%c1, %c1_11, %c0_12] : memref<18x18x128xf32, #tpu.memory_space<vmem>>, vector<16x16x128xf32>
    tpu.vector_store %arg11[%c1, %c1_11, %c0_12], %14 {strides = array<i32>} : memref<18x18x128xf32, #tpu.memory_space<vmem>>, vector<16x16x128xf32>,
    %c0_13 = arith.constant 0 : index
    %c0_14 = arith.constant 0 : index
    %c0_15 = arith.constant 0 : index
    %18 = vector.load %arg11[%c0_13, %c0_14, %c0_15] : memref<18x18x128xf32, #tpu.memory_space<vmem>>, vector<16x16x128xf32>
    %19 = vector.shape_cast %18 : vector<16x16x128xf32> to vector<256x128xf32>
    %20 = arith.truncf %19 : vector<256x128xf32> to vector<256x128xbf16>
    %c0_16 = arith.constant 0 : index
    %c0_17 = arith.constant 0 : index
    %21 = vector.load %arg12[%c0_16, %c0_17] : memref<256x1152xbf16, #tpu.memory_space<vmem>>, vector<256x128xbf16>
    tpu.vector_store %arg12[%c0_16, %c0_17], %20 {strides = array<i32>} : memref<256x1152xbf16, #tpu.memory_space<vmem>>, vector<256x128xbf16>,
    %c0_18 = arith.constant 0 : index
    %c1_19 = arith.constant 1 : index
    %c0_20 = arith.constant 0 : index
    %22 = vector.load %arg11[%c0_18, %c1_19, %c0_20] : memref<18x18x128xf32, #tpu.memory_space<vmem>>, vector<16x16x128xf32>
    %23 = vector.shape_cast %22 : vector<16x16x128xf32> to vector<256x128xf32>
    %24 = arith.truncf %23 : vector<256x128xf32> to vector<256x128xbf16>
    %c0_21 = arith.constant 0 : index
    %c128 = arith.constant 128 : index
    %25 = vector.load %arg12[%c0_21, %c128] : memref<256x1152xbf16, #tpu.memory_space<vmem>>, vector<256x128xbf16>
    tpu.vector_store %arg12[%c0_21, %c128], %24 {strides = array<i32>} : memref<256x1152xbf16, #tpu.memory_space<vmem>>, vector<256x128xbf16>,
    %c0_22 = arith.constant 0 : index
    %c2 = arith.constant 2 : index
    %c0_23 = arith.constant 0 : index
    %26 = vector.load %arg11[%c0_22, %c2, %c0_23] : memref<18x18x128xf32, #tpu.memory_space<vmem>>, vector<16x16x128xf32>
    %27 = vector.shape_cast %26 : vector<16x16x128xf32> to vector<256x128xf32>
    %28 = arith.truncf %27 : vector<256x128xf32> to vector<256x128xbf16>
    %c0_24 = arith.constant 0 : index
    %c256 = arith.constant 256 : index
    %29 = vector.load %arg12[%c0_24, %c256] : memref<256x1152xbf16, #tpu.memory_space<vmem>>, vector<256x128xbf16>
    tpu.vector_store %arg12[%c0_24, %c256], %28 {strides = array<i32>} : memref<256x1152xbf16, #tpu.memory_space<vmem>>, vector<256x128xbf16>,
    %c1_25 = arith.constant 1 : index
    %c0_26 = arith.constant 0 : index
    %c0_27 = arith.constant 0 : index
    %30 = vector.load %arg11[%c1_25, %c0_26, %c0_27] : memref<18x18x128xf32, #tpu.memory_space<vmem>>, vector<16x16x128xf32>
    %31 = vector.shape_cast %30 : vector<16x16x128xf32> to vector<256x128xf32>
    %32 = arith.truncf %31 : vector<256x128xf32> to vector<256x128xbf16>
    %c0_28 = arith.constant 0 : index
    %c384 = arith.constant 384 : index
    %33 = vector.load %arg12[%c0_28, %c384] : memref<256x1152xbf16, #tpu.memory_space<vmem>>, vector<256x128xbf16>
    tpu.vector_store %arg12[%c0_28, %c384], %32 {strides = array<i32>} : memref<256x1152xbf16, #tpu.memory_space<vmem>>, vector<256x128xbf16>,
    %c1_29 = arith.constant 1 : index
    %c1_30 = arith.constant 1 : index
    %c0_31 = arith.constant 0 : index
    %34 = vector.load %arg11[%c1_29, %c1_30, %c0_31] : memref<18x18x128xf32, #tpu.memory_space<vmem>>, vector<16x16x128xf32>
    %35 = vector.shape_cast %34 : vector<16x16x128xf32> to vector<256x128xf32>
    %36 = arith.truncf %35 : vector<256x128xf32> to vector<256x128xbf16>
    %c0_32 = arith.constant 0 : index
    %c512 = arith.constant 512 : index
    %37 = vector.load %arg12[%c0_32, %c512] : memref<256x1152xbf16, #tpu.memory_space<vmem>>, vector<256x128xbf16>
    tpu.vector_store %arg12[%c0_32, %c512], %36 {strides = array<i32>} : memref<256x1152xbf16, #tpu.memory_space<vmem>>, vector<256x128xbf16>,
    %c1_33 = arith.constant 1 : index
    %c2_34 = arith.constant 2 : index
    %c0_35 = arith.constant 0 : index
    %38 = vector.load %arg11[%c1_33, %c2_34, %c0_35] : memref<18x18x128xf32, #tpu.memory_space<vmem>>, vector<16x16x128xf32>
    %39 = vector.shape_cast %38 : vector<16x16x128xf32> to vector<256x128xf32>
    %40 = arith.truncf %39 : vector<256x128xf32> to vector<256x128xbf16>
    %c0_36 = arith.constant 0 : index
    %c640 = arith.constant 640 : index
    %41 = vector.load %arg12[%c0_36, %c640] : memref<256x1152xbf16, #tpu.memory_space<vmem>>, vector<256x128xbf16>
    tpu.vector_store %arg12[%c0_36, %c640], %40 {strides = array<i32>} : memref<256x1152xbf16, #tpu.memory_space<vmem>>, vector<256x128xbf16>,
    %c2_37 = arith.constant 2 : index
    %c0_38 = arith.constant 0 : index
    %c0_39 = arith.constant 0 : index
    %42 = vector.load %arg11[%c2_37, %c0_38, %c0_39] : memref<18x18x128xf32, #tpu.memory_space<vmem>>, vector<16x16x128xf32>
    %43 = vector.shape_cast %42 : vector<16x16x128xf32> to vector<256x128xf32>
    %44 = arith.truncf %43 : vector<256x128xf32> to vector<256x128xbf16>
    %c0_40 = arith.constant 0 : index
    %c768 = arith.constant 768 : index
    %45 = vector.load %arg12[%c0_40, %c768] : memref<256x1152xbf16, #tpu.memory_space<vmem>>, vector<256x128xbf16>
    tpu.vector_store %arg12[%c0_40, %c768], %44 {strides = array<i32>} : memref<256x1152xbf16, #tpu.memory_space<vmem>>, vector<256x128xbf16>,
    %c2_41 = arith.constant 2 : index
    %c1_42 = arith.constant 1 : index
    %c0_43 = arith.constant 0 : index
    %46 = vector.load %arg11[%c2_41, %c1_42, %c0_43] : memref<18x18x128xf32, #tpu.memory_space<vmem>>, vector<16x16x128xf32>
    %47 = vector.shape_cast %46 : vector<16x16x128xf32> to vector<256x128xf32>
    %48 = arith.truncf %47 : vector<256x128xf32> to vector<256x128xbf16>
    %c0_44 = arith.constant 0 : index
    %c896 = arith.constant 896 : index
    %49 = vector.load %arg12[%c0_44, %c896] : memref<256x1152xbf16, #tpu.memory_space<vmem>>, vector<256x128xbf16>
    tpu.vector_store %arg12[%c0_44, %c896], %48 {strides = array<i32>} : memref<256x1152xbf16, #tpu.memory_space<vmem>>, vector<256x128xbf16>,
    %c2_45 = arith.constant 2 : index
    %c2_46 = arith.constant 2 : index
    %c0_47 = arith.constant 0 : index
    %50 = vector.load %arg11[%c2_45, %c2_46, %c0_47] : memref<18x18x128xf32, #tpu.memory_space<vmem>>, vector<16x16x128xf32>
    %51 = vector.shape_cast %50 : vector<16x16x128xf32> to vector<256x128xf32>
    %52 = arith.truncf %51 : vector<256x128xf32> to vector<256x128xbf16>
    %c0_48 = arith.constant 0 : index
    %c1024 = arith.constant 1024 : index
    %53 = vector.load %arg12[%c0_48, %c1024] : memref<256x1152xbf16, #tpu.memory_space<vmem>>, vector<256x128xbf16>
    tpu.vector_store %arg12[%c0_48, %c1024], %52 {strides = array<i32>} : memref<256x1152xbf16, #tpu.memory_space<vmem>>, vector<256x128xbf16>,
    %c0_49 = arith.constant 0 : index
    %c0_50 = arith.constant 0 : index
    %54 = vector.load %arg12[%c0_49, %c0_50] : memref<256x1152xbf16, #tpu.memory_space<vmem>>, vector<256x1152xbf16>
    %c0_51 = arith.constant 0 : index
    %c0_52 = arith.constant 0 : index
    %55 = vector.load %arg4[%c0_51, %c0_52] : memref<1152x128xbf16, #tpu.memory_space<vmem>>, vector<1152x128xbf16>
    %cst_53 = arith.constant dense<0.000000e+00> : vector<256x128xf32>
    %56 = tpu.matmul %54, %55, %cst_53 {dimension_numbers = #tpu.dot_dimension_numbers<[1], [0], [0], [1], [0, 0, 1, 1], [], []>} : vector<256x1152xbf16>, vector<1152x128xbf16>, vector<256x128xf32> -> vector<256x128xf32>
    %c0_54 = arith.constant 0 : index
    %c0_55 = arith.constant 0 : index
    %57 = vector.load %arg5[%c0_54, %c0_55] : memref<1x128xf32, #tpu.memory_space<vmem>>, vector<1x128xf32>
    %58 = vector.shape_cast %57 : vector<1x128xf32> to vector<128xf32>
    %59 = vector.shape_cast %58 : vector<128xf32> to vector<1x128xf32>
    %60 = vector.broadcast %59 : vector<1x128xf32> to vector<256x128xf32>
    %61 = arith.mulf %56, %60 : vector<256x128xf32>
    %c0_56 = arith.constant 0 : index
    %c0_57 = arith.constant 0 : index
    %62 = vector.load %arg6[%c0_56, %c0_57] : memref<1x128xf32, #tpu.memory_space<vmem>>, vector<1x128xf32>
    %63 = vector.shape_cast %62 : vector<1x128xf32> to vector<128xf32>
    %64 = vector.shape_cast %63 : vector<128xf32> to vector<1x128xf32>
    %65 = vector.broadcast %64 : vector<1x128xf32> to vector<256x128xf32>
    %66 = arith.addf %61, %65 : vector<256x128xf32>
    %cst_58 = arith.constant 0.000000e+00 : f32
    %67 = vector.broadcast %cst_58 : f32 to vector<256x128xf32>
    %68 = arith.maximumf %66, %67 : vector<256x128xf32>
    %69 = vector.shape_cast %68 : vector<256x128xf32> to vector<16x16x128xf32>
    %c1_59 = arith.constant 1 : index
    %c1_60 = arith.constant 1 : index
    %c0_61 = arith.constant 0 : index
    %70 = vector.load %arg11[%c1_59, %c1_60, %c0_61] : memref<18x18x128xf32, #tpu.memory_space<vmem>>, vector<16x16x128xf32>
    tpu.vector_store %arg11[%c1_59, %c1_60, %c0_61], %69 {strides = array<i32>} : memref<18x18x128xf32, #tpu.memory_space<vmem>>, vector<16x16x128xf32>,
    %c0_62 = arith.constant 0 : index
    %c0_63 = arith.constant 0 : index
    %c0_64 = arith.constant 0 : index
    %71 = vector.load %arg11[%c0_62, %c0_63, %c0_64] : memref<18x18x128xf32, #tpu.memory_space<vmem>>, vector<16x16x128xf32>
    %72 = vector.shape_cast %71 : vector<16x16x128xf32> to vector<256x128xf32>
    %73 = arith.truncf %72 : vector<256x128xf32> to vector<256x128xbf16>
    %c0_65 = arith.constant 0 : index
    %c0_66 = arith.constant 0 : index
    %74 = vector.load %arg12[%c0_65, %c0_66] : memref<256x1152xbf16, #tpu.memory_space<vmem>>, vector<256x128xbf16>
    tpu.vector_store %arg12[%c0_65, %c0_66], %73 {strides = array<i32>} : memref<256x1152xbf16, #tpu.memory_space<vmem>>, vector<256x128xbf16>,
    %c0_67 = arith.constant 0 : index
    %c1_68 = arith.constant 1 : index
    %c0_69 = arith.constant 0 : index
    %75 = vector.load %arg11[%c0_67, %c1_68, %c0_69] : memref<18x18x128xf32, #tpu.memory_space<vmem>>, vector<16x16x128xf32>
    %76 = vector.shape_cast %75 : vector<16x16x128xf32> to vector<256x128xf32>
    %77 = arith.truncf %76 : vector<256x128xf32> to vector<256x128xbf16>
    %c0_70 = arith.constant 0 : index
    %c128_71 = arith.constant 128 : index
    %78 = vector.load %arg12[%c0_70, %c128_71] : memref<256x1152xbf16, #tpu.memory_space<vmem>>, vector<256x128xbf16>
    tpu.vector_store %arg12[%c0_70, %c128_71], %77 {strides = array<i32>} : memref<256x1152xbf16, #tpu.memory_space<vmem>>, vector<256x128xbf16>,
    %c0_72 = arith.constant 0 : index
    %c2_73 = arith.constant 2 : index
    %c0_74 = arith.constant 0 : index
    %79 = vector.load %arg11[%c0_72, %c2_73, %c0_74] : memref<18x18x128xf32, #tpu.memory_space<vmem>>, vector<16x16x128xf32>
    %80 = vector.shape_cast %79 : vector<16x16x128xf32> to vector<256x128xf32>
    %81 = arith.truncf %80 : vector<256x128xf32> to vector<256x128xbf16>
    %c0_75 = arith.constant 0 : index
    %c256_76 = arith.constant 256 : index
    %82 = vector.load %arg12[%c0_75, %c256_76] : memref<256x1152xbf16, #tpu.memory_space<vmem>>, vector<256x128xbf16>
    tpu.vector_store %arg12[%c0_75, %c256_76], %81 {strides = array<i32>} : memref<256x1152xbf16, #tpu.memory_space<vmem>>, vector<256x128xbf16>,
    %c1_77 = arith.constant 1 : index
    %c0_78 = arith.constant 0 : index
    %c0_79 = arith.constant 0 : index
    %83 = vector.load %arg11[%c1_77, %c0_78, %c0_79] : memref<18x18x128xf32, #tpu.memory_space<vmem>>, vector<16x16x128xf32>
    %84 = vector.shape_cast %83 : vector<16x16x128xf32> to vector<256x128xf32>
    %85 = arith.truncf %84 : vector<256x128xf32> to vector<256x128xbf16>
    %c0_80 = arith.constant 0 : index
    %c384_81 = arith.constant 384 : index
    %86 = vector.load %arg12[%c0_80, %c384_81] : memref<256x1152xbf16, #tpu.memory_space<vmem>>, vector<256x128xbf16>
    tpu.vector_store %arg12[%c0_80, %c384_81], %85 {strides = array<i32>} : memref<256x1152xbf16, #tpu.memory_space<vmem>>, vector<256x128xbf16>,
    %c1_82 = arith.constant 1 : index
    %c1_83 = arith.constant 1 : index
    %c0_84 = arith.constant 0 : index
    %87 = vector.load %arg11[%c1_82, %c1_83, %c0_84] : memref<18x18x128xf32, #tpu.memory_space<vmem>>, vector<16x16x128xf32>
    %88 = vector.shape_cast %87 : vector<16x16x128xf32> to vector<256x128xf32>
    %89 = arith.truncf %88 : vector<256x128xf32> to vector<256x128xbf16>
    %c0_85 = arith.constant 0 : index
    %c512_86 = arith.constant 512 : index
    %90 = vector.load %arg12[%c0_85, %c512_86] : memref<256x1152xbf16, #tpu.memory_space<vmem>>, vector<256x128xbf16>
    tpu.vector_store %arg12[%c0_85, %c512_86], %89 {strides = array<i32>} : memref<256x1152xbf16, #tpu.memory_space<vmem>>, vector<256x128xbf16>,
    %c1_87 = arith.constant 1 : index
    %c2_88 = arith.constant 2 : index
    %c0_89 = arith.constant 0 : index
    %91 = vector.load %arg11[%c1_87, %c2_88, %c0_89] : memref<18x18x128xf32, #tpu.memory_space<vmem>>, vector<16x16x128xf32>
    %92 = vector.shape_cast %91 : vector<16x16x128xf32> to vector<256x128xf32>
    %93 = arith.truncf %92 : vector<256x128xf32> to vector<256x128xbf16>
    %c0_90 = arith.constant 0 : index
    %c640_91 = arith.constant 640 : index
    %94 = vector.load %arg12[%c0_90, %c640_91] : memref<256x1152xbf16, #tpu.memory_space<vmem>>, vector<256x128xbf16>
    tpu.vector_store %arg12[%c0_90, %c640_91], %93 {strides = array<i32>} : memref<256x1152xbf16, #tpu.memory_space<vmem>>, vector<256x128xbf16>,
    %c2_92 = arith.constant 2 : index
    %c0_93 = arith.constant 0 : index
    %c0_94 = arith.constant 0 : index
    %95 = vector.load %arg11[%c2_92, %c0_93, %c0_94] : memref<18x18x128xf32, #tpu.memory_space<vmem>>, vector<16x16x128xf32>
    %96 = vector.shape_cast %95 : vector<16x16x128xf32> to vector<256x128xf32>
    %97 = arith.truncf %96 : vector<256x128xf32> to vector<256x128xbf16>
    %c0_95 = arith.constant 0 : index
    %c768_96 = arith.constant 768 : index
    %98 = vector.load %arg12[%c0_95, %c768_96] : memref<256x1152xbf16, #tpu.memory_space<vmem>>, vector<256x128xbf16>
    tpu.vector_store %arg12[%c0_95, %c768_96], %97 {strides = array<i32>} : memref<256x1152xbf16, #tpu.memory_space<vmem>>, vector<256x128xbf16>,
    %c2_97 = arith.constant 2 : index
    %c1_98 = arith.constant 1 : index
    %c0_99 = arith.constant 0 : index
    %99 = vector.load %arg11[%c2_97, %c1_98, %c0_99] : memref<18x18x128xf32, #tpu.memory_space<vmem>>, vector<16x16x128xf32>
    %100 = vector.shape_cast %99 : vector<16x16x128xf32> to vector<256x128xf32>
    %101 = arith.truncf %100 : vector<256x128xf32> to vector<256x128xbf16>
    %c0_100 = arith.constant 0 : index
    %c896_101 = arith.constant 896 : index
    %102 = vector.load %arg12[%c0_100, %c896_101] : memref<256x1152xbf16, #tpu.memory_space<vmem>>, vector<256x128xbf16>
    tpu.vector_store %arg12[%c0_100, %c896_101], %101 {strides = array<i32>} : memref<256x1152xbf16, #tpu.memory_space<vmem>>, vector<256x128xbf16>,
    %c2_102 = arith.constant 2 : index
    %c2_103 = arith.constant 2 : index
    %c0_104 = arith.constant 0 : index
    %103 = vector.load %arg11[%c2_102, %c2_103, %c0_104] : memref<18x18x128xf32, #tpu.memory_space<vmem>>, vector<16x16x128xf32>
    %104 = vector.shape_cast %103 : vector<16x16x128xf32> to vector<256x128xf32>
    %105 = arith.truncf %104 : vector<256x128xf32> to vector<256x128xbf16>
    %c0_105 = arith.constant 0 : index
    %c1024_106 = arith.constant 1024 : index
    %106 = vector.load %arg12[%c0_105, %c1024_106] : memref<256x1152xbf16, #tpu.memory_space<vmem>>, vector<256x128xbf16>
    tpu.vector_store %arg12[%c0_105, %c1024_106], %105 {strides = array<i32>} : memref<256x1152xbf16, #tpu.memory_space<vmem>>, vector<256x128xbf16>,
    %c0_107 = arith.constant 0 : index
    %c0_108 = arith.constant 0 : index
    %107 = vector.load %arg12[%c0_107, %c0_108] : memref<256x1152xbf16, #tpu.memory_space<vmem>>, vector<256x1152xbf16>
    %c0_109 = arith.constant 0 : index
    %c0_110 = arith.constant 0 : index
    %108 = vector.load %arg7[%c0_109, %c0_110] : memref<1152x128xbf16, #tpu.memory_space<vmem>>, vector<1152x128xbf16>
    %cst_111 = arith.constant dense<0.000000e+00> : vector<256x128xf32>
    %109 = tpu.matmul %107, %108, %cst_111 {dimension_numbers = #tpu.dot_dimension_numbers<[1], [0], [0], [1], [0, 0, 1, 1], [], []>} : vector<256x1152xbf16>, vector<1152x128xbf16>, vector<256x128xf32> -> vector<256x128xf32>
    %110 = vector.shape_cast %1 : vector<16x16x128xbf16> to vector<256x128xbf16>
    %c0_112 = arith.constant 0 : index
    %c0_113 = arith.constant 0 : index
    %111 = vector.load %arg8[%c0_112, %c0_113] : memref<128x128xbf16, #tpu.memory_space<vmem>>, vector<128x128xbf16>
    %cst_114 = arith.constant dense<0.000000e+00> : vector<256x128xf32>
    %112 = tpu.matmul %110, %111, %cst_114 {dimension_numbers = #tpu.dot_dimension_numbers<[1], [0], [0], [1], [0, 0, 1, 1], [], []>} : vector<256x128xbf16>, vector<128x128xbf16>, vector<256x128xf32> -> vector<256x128xf32>
    %113 = arith.addf %109, %112 : vector<256x128xf32>
    %c0_115 = arith.constant 0 : index
    %c0_116 = arith.constant 0 : index
    %114 = vector.load %arg9[%c0_115, %c0_116] : memref<1x128xf32, #tpu.memory_space<vmem>>, vector<1x128xf32>
    %115 = vector.shape_cast %114 : vector<1x128xf32> to vector<128xf32>
    %116 = vector.shape_cast %115 : vector<128xf32> to vector<1x128xf32>
    %117 = vector.broadcast %116 : vector<1x128xf32> to vector<256x128xf32>
    %118 = arith.addf %113, %117 : vector<256x128xf32>
    %119 = vector.shape_cast %118 : vector<256x128xf32> to vector<16x16x128xf32>
    %c0_117 = arith.constant 0 : index
    %c0_118 = arith.constant 0 : index
    %c0_119 = arith.constant 0 : index
    %c0_120 = arith.constant 0 : index
    %120 = vector.load %arg10[%c0_117, %c0_118, %c0_119, %c0_120] : memref<1x16x16x128xf32, #tpu.memory_space<vmem>>, vector<1x16x16x128xf32>
    %121 = vector.shape_cast %120 : vector<1x16x16x128xf32> to vector<16x16x128xf32>
    %122 = vector.shape_cast %119 : vector<16x16x128xf32> to vector<1x16x16x128xf32>
    tpu.vector_store %arg10[%c0_117, %c0_118, %c0_119, %c0_120], %122 {strides = array<i32>} : memref<1x16x16x128xf32, #tpu.memory_space<vmem>>, vector<1x16x16x128xf32>,
    return
  }
  func.func @transform_0(%arg0: i32) -> (i32, i32, i32, i32) {
    %c0_i32 = arith.constant 0 : i32
    %c0_i32_0 = arith.constant 0 : i32
    %c0_i32_1 = arith.constant 0 : i32
    %c0_i32_2 = arith.constant 0 : i32
    return %arg0, %c0_i32, %c0_i32_0, %c0_i32_1 : i32, i32, i32, i32
  }
  func.func @transform_1(%arg0: i32) -> (i32, i32) {
    %c0_i32 = arith.constant 0 : i32
    %c0_i32_0 = arith.constant 0 : i32
    %c0_i32_1 = arith.constant 0 : i32
    return %c0_i32, %c0_i32_0 : i32, i32
  }
  func.func @transform_2(%arg0: i32) -> (i32, i32) {
    %c0_i32 = arith.constant 0 : i32
    %c0_i32_0 = arith.constant 0 : i32
    %c0_i32_1 = arith.constant 0 : i32
    return %c0_i32, %c0_i32_0 : i32, i32
  }
  func.func @transform_3(%arg0: i32) -> (i32, i32) {
    %c0_i32 = arith.constant 0 : i32
    %c0_i32_0 = arith.constant 0 : i32
    %c0_i32_1 = arith.constant 0 : i32
    return %c0_i32, %c0_i32_0 : i32, i32
  }
  func.func @transform_4(%arg0: i32) -> (i32, i32) {
    %c0_i32 = arith.constant 0 : i32
    %c0_i32_0 = arith.constant 0 : i32
    %c0_i32_1 = arith.constant 0 : i32
    return %c0_i32, %c0_i32_0 : i32, i32
  }
  func.func @transform_5(%arg0: i32) -> (i32, i32) {
    %c0_i32 = arith.constant 0 : i32
    %c0_i32_0 = arith.constant 0 : i32
    %c0_i32_1 = arith.constant 0 : i32
    return %c0_i32, %c0_i32_0 : i32, i32
  }
  func.func @transform_6(%arg0: i32) -> (i32, i32) {
    %c0_i32 = arith.constant 0 : i32
    %c0_i32_0 = arith.constant 0 : i32
    %c0_i32_1 = arith.constant 0 : i32
    return %c0_i32, %c0_i32_0 : i32, i32
  }
  func.func @transform_7(%arg0: i32) -> (i32, i32) {
    %c0_i32 = arith.constant 0 : i32
    %c0_i32_0 = arith.constant 0 : i32
    %c0_i32_1 = arith.constant 0 : i32
    return %c0_i32, %c0_i32_0 : i32, i32
  }
  func.func @transform_8(%arg0: i32) -> (i32, i32) {
    %c0_i32 = arith.constant 0 : i32
    %c0_i32_0 = arith.constant 0 : i32
    %c0_i32_1 = arith.constant 0 : i32
    return %c0_i32, %c0_i32_0 : i32, i32
  }
  func.func @transform_9(%arg0: i32) -> (i32, i32, i32, i32) {
    %c0_i32 = arith.constant 0 : i32
    %c0_i32_0 = arith.constant 0 : i32
    %c0_i32_1 = arith.constant 0 : i32
    %c0_i32_2 = arith.constant 0 : i32
    return %arg0, %c0_i32, %c0_i32_0, %c0_i32_1 : i32, i32, i32, i32
  }
}

</mosaic_0001>

<llo_original>
// kernel: tpu_custom_call.1
$region0: #{tpu_custom_call.1}
  #allocation0 [shape = 'u32[]', space=smem, size = 0x4, offset = 0x4, fixed_abs, tag = 'smem constant byte address 0x4 - core index']
  #allocation1 [shape = 'u32[72,128]{1,0:T(1,128)}', space=vmem, size = 0x9000, scoped, tag = 'internal scratch']
  #allocation2 [shape = 'f32[18,18,128]{2,1,0:T(8,128)}', space=vmem, size = 0x36000, scoped, tag = 'scratch operand']
  #allocation3 [shape = 'bf16[256,1152]{1,0:T(8,128)(2,1)}', space=vmem, size = 0x90000, scoped, tag = 'scratch operand']
  %s0 = inlined_call_operand.hbm [shape: bf16[2,16,16,128], index: 0, kind: input, shape index: {}]
  %s1 = inlined_call_operand.hbm [shape: f32[1,128], index: 1, kind: input, shape index: {}]
  %s2 = inlined_call_operand.vmem [shape: f32[1,128], index: 2, kind: input, shape index: {}]
  %s3 = inlined_call_operand.hbm [shape: bf16[1152,128], index: 3, kind: input, shape index: {}]
  %s4 = inlined_call_operand.vmem [shape: f32[1,128], index: 4, kind: input, shape index: {}]
  %s5 = inlined_call_operand.vmem [shape: f32[1,128], index: 5, kind: input, shape index: {}]
  %s6 = inlined_call_operand.hbm [shape: bf16[1152,128], index: 6, kind: input, shape index: {}]
  %s7 = inlined_call_operand.hbm [shape: bf16[128,128], index: 7, kind: input, shape index: {}]
  %s8 = inlined_call_operand.vmem [shape: f32[1,128], index: 8, kind: input, shape index: {}]
  %s9 = inlined_call_operand.hbm [shape: f32[2,16,16,128], index: 9, kind: output, shape index: {}]
  %s10 = sld [smem:[#allocation0]]
  $region89: #{tpu_custom_call.1} parent=0
    _
  %s12 = ssub.s32 1, %s10
  %s13 = scalar_select 0, %s12, %s10
  $region1: #{tpu_custom_call.1} parent=0
    #allocation4 [shape = 'u8[131072]{0}', space=vmem, size = 0x20000, scoped, tag = 'input window, operand 0']
    #allocation5 [shape = 's32[2]{0}', space=sflag, size = 0x8, scoped, tag = 'scoped memory for tpu_custom_call.1']
    #allocation6 [shape = 's32[2]{0}', space=sflag, size = 0x8, scoped, tag = 'scoped memory for tpu_custom_call.1']
    #allocation7 [shape = 'u8[512]{0}', space=vmem, size = 0x400, scoped, tag = 'input window, operand 1, single buffered']
    #allocation8 [shape = 's32[1]{0}', space=sflag, size = 0x4, scoped, tag = 'scoped memory for tpu_custom_call.1']
    #allocation9 [shape = 'u8[294912]{0}', space=vmem, size = 0x48000, scoped, tag = 'input window, operand 3, single buffered']
    #allocation10 [shape = 'u8[294912]{0}', space=vmem, size = 0x48000, scoped, tag = 'input window, operand 6, single buffered']
    #allocation11 [shape = 's32[1]{0}', space=sflag, size = 0x4, scoped, tag = 'scoped memory for tpu_custom_call.1']
    #allocation12 [shape = 'u8[32768]{0}', space=vmem, size = 0x8000, scoped, tag = 'input window, operand 7, single buffered']
    #allocation13 [shape = 'u8[262144]{0}', space=vmem, size = 0x40000, scoped, tag = 'output window, operand 0']
    %14 = vsyncpa [#allocation5], 0
    %s15 = scalar_lea.sflag [#allocation5], 1
    %16 = vsyncpa %s15, 0
    %17 = vsyncpa [#allocation8], 0
    %18 = vsyncpa [#allocation11], 0
    %19 = vsyncpa [#allocation6], 0
    %s20 = scalar_lea.sflag [#allocation6], 1
    %21 = vsyncpa %s20, 0
    loop: start=0, step=1, limit=4
    $region2: #{tpu_custom_call.1} parent=1 // loop_pre_header
      _
    $region3: #{tpu_custom_call.1} parent=1 // loop_header
      %s23 = sphi 0, %s27
      %p24 = scmp.ge.s32.totalorder %s23, 4
      %s33 = sphi 0, %s35
      %s36 = sphi 0, %s33
      %s37 = sphi 0, %s36
      %s53 = sphi 0, %s37
      %s57 = sphi 0, %s57
      %s59 = sphi 0, %s57
      %s60 = sphi 0, %s59
      %s74 = sphi 0, %s60
      %s78 = sphi 0, %s78
      %s80 = sphi 0, %s78
      %s81 = sphi 0, %s80
      %s95 = sphi 0, %s81
      %s99 = sphi 0, %s99
      %s101 = sphi 0, %s99
      %s102 = sphi 0, %s101
      %s116 = sphi 0, %s102
      %s120 = sphi 0, %s120
      %s122 = sphi 0, %s120
      %s123 = sphi 0, %s122
      %s137 = sphi 0, %s123
      %s141 = sphi 0, %s141
      %s143 = sphi 0, %s141
      %s144 = sphi 0, %s143
      %s158 = sphi 0, %s144
      %s162 = sphi 0, %s162
      %s164 = sphi 0, %s162
      %s165 = sphi 0, %s164
      %s179 = sphi 0, %s165
      %s183 = sphi 0, %s183
      %s185 = sphi 0, %s183
      %s186 = sphi 0, %s185
      %s200 = sphi 0, %s186
      %s204 = sphi 0, %s204
      %s206 = sphi 0, %s204
      %s207 = sphi 0, %s206
      %s221 = sphi 0, %s207
      %s227 = sphi 0, %s229
      %s230 = sphi 0, %s227
      %s231 = sphi 0, %s230
      %s247 = sphi 0, %s231
    $region4: #{tpu_custom_call.1} parent=1 // loop_header_branch
      %26 = sbr.rel (%p24) target = $region8
    $region5: #{tpu_custom_call.1} parent=1 // loop_body
      %s28 = ssub.s32 %s23, 1
      %s29 = ssub.s32 %s23, 2
      %s30 = sadd.s32 %s23, 1
      %s31 = ssub.s32 %s23, %s30
      %p32 = scmp.eq.s32.totalorder %s31, 0
      %s34 = sadd.s32 %s33, 1
      %s35 = scalar_select %p32, %s33, %s34
      %p38 = pneg %p32
      %p39 = scmp.eq.s32.totalorder %s23, 1
      %p40 = por %p38, %p39
      %p41 = scmp.ne.s32.totalorder %s33, %s36
      %p42 = scmp.eq.s32.totalorder %s23, 0
      %p43 = por %p41, %p42
      %p44 = scmp.ne.s32.totalorder %s33, %s36
      %p45 = scmp.eq.s32.totalorder %s28, 1
      %p46 = por %p44, %p45
      %p47 = scmp.ne.s32.totalorder %s36, %s37
      %p48 = scmp.eq.s32.totalorder %s28, 0
      %p49 = por %p47, %p48
      %p50 = scmp.ne.s32.totalorder %s36, %s37
      %p51 = scmp.eq.s32.totalorder %s29, 1
      %p52 = por %p50, %p51
      %p54 = scmp.ne.s32.totalorder %s37, %s53
      %p55 = scmp.eq.s32.totalorder %s29, 0
      %p56 = por %p54, %p55
      %s58 = sadd.s32 %s57, 1
      %p61 = scmp.eq.s32.totalorder %s23, 1
      %p62 = scmp.ne.s32.totalorder %s57, %s59
      %p63 = scmp.eq.s32.totalorder %s23, 0
      %p64 = por %p62, %p63
      %p65 = scmp.ne.s32.totalorder %s57, %s59
      %p66 = scmp.eq.s32.totalorder %s28, 1
      %p67 = por %p65, %p66
      %p68 = scmp.ne.s32.totalorder %s59, %s60
      %p69 = scmp.eq.s32.totalorder %s28, 0
      %p70 = por %p68, %p69
      %p71 = scmp.ne.s32.totalorder %s59, %s60
      %p72 = scmp.eq.s32.totalorder %s29, 1
      %p73 = por %p71, %p72
      %p75 = scmp.ne.s32.totalorder %s60, %s74
      %p76 = scmp.eq.s32.totalorder %s29, 0
      %p77 = por %p75, %p76
      %s79 = sadd.s32 %s78, 1
      %p82 = scmp.eq.s32.totalorder %s23, 1
      %p83 = scmp.ne.s32.totalorder %s78, %s80
      %p84 = scmp.eq.s32.totalorder %s23, 0
      %p85 = por %p83, %p84
      %p86 = scmp.ne.s32.totalorder %s78, %s80
      %p87 = scmp.eq.s32.totalorder %s28, 1
      %p88 = por %p86, %p87
      %p89 = scmp.ne.s32.totalorder %s80, %s81
      %p90 = scmp.eq.s32.totalorder %s28, 0
      %p91 = por %p89, %p90
      %p92 = scmp.ne.s32.totalorder %s80, %s81
      %p93 = scmp.eq.s32.totalorder %s29, 1
      %p94 = por %p92, %p93
      %p96 = scmp.ne.s32.totalorder %s81, %s95
      %p97 = scmp.eq.s32.totalorder %s29, 0
      %p98 = por %p96, %p97
      %s100 = sadd.s32 %s99, 1
      %p103 = scmp.eq.s32.totalorder %s23, 1
      %p104 = scmp.ne.s32.totalorder %s99, %s101
      %p105 = scmp.eq.s32.totalorder %s23, 0
      %p106 = por %p104, %p105
      %p107 = scmp.ne.s32.totalorder %s99, %s101
      %p108 = scmp.eq.s32.totalorder %s28, 1
      %p109 = por %p107, %p108
      %p110 = scmp.ne.s32.totalorder %s101, %s102
      %p111 = scmp.eq.s32.totalorder %s28, 0
      %p112 = por %p110, %p111
      %p113 = scmp.ne.s32.totalorder %s101, %s102
      %p114 = scmp.eq.s32.totalorder %s29, 1
      %p115 = por %p113, %p114
      %p117 = scmp.ne.s32.totalorder %s102, %s116
      %p118 = scmp.eq.s32.totalorder %s29, 0
      %p119 = por %p117, %p118
      %s121 = sadd.s32 %s120, 1
      %p124 = scmp.eq.s32.totalorder %s23, 1
      %p125 = scmp.ne.s32.totalorder %s120, %s122
      %p126 = scmp.eq.s32.totalorder %s23, 0
      %p127 = por %p125, %p126
      %p128 = scmp.ne.s32.totalorder %s120, %s122
      %p129 = scmp.eq.s32.totalorder %s28, 1
      %p130 = por %p128, %p129
      %p131 = scmp.ne.s32.totalorder %s122, %s123
      %p132 = scmp.eq.s32.totalorder %s28, 0
      %p133 = por %p131, %p132
      %p134 = scmp.ne.s32.totalorder %s122, %s123
      %p135 = scmp.eq.s32.totalorder %s29, 1
      %p136 = por %p134, %p135
      %p138 = scmp.ne.s32.totalorder %s123, %s137
      %p139 = scmp.eq.s32.totalorder %s29, 0
      %p140 = por %p138, %p139
      %s142 = sadd.s32 %s141, 1
      %p145 = scmp.eq.s32.totalorder %s23, 1
      %p146 = scmp.ne.s32.totalorder %s141, %s143
      %p147 = scmp.eq.s32.totalorder %s23, 0
      %p148 = por %p146, %p147
      %p149 = scmp.ne.s32.totalorder %s141, %s143
      %p150 = scmp.eq.s32.totalorder %s28, 1
      %p151 = por %p149, %p150
      %p152 = scmp.ne.s32.totalorder %s143, %s144
      %p153 = scmp.eq.s32.totalorder %s28, 0
      %p154 = por %p152, %p153
      %p155 = scmp.ne.s32.totalorder %s143, %s144
      %p156 = scmp.eq.s32.totalorder %s29, 1
      %p157 = por %p155, %p156
      %p159 = scmp.ne.s32.totalorder %s144, %s158
      %p160 = scmp.eq.s32.totalorder %s29, 0
      %p161 = por %p159, %p160
      %s163 = sadd.s32 %s162, 1
      %p166 = scmp.eq.s32.totalorder %s23, 1
      %p167 = scmp.ne.s32.totalorder %s162, %s164
      %p168 = scmp.eq.s32.totalorder %s23, 0
      %p169 = por %p167, %p168
      %p170 = scmp.ne.s32.totalorder %s162, %s164
      %p171 = scmp.eq.s32.totalorder %s28, 1
      %p172 = por %p170, %p171
      %p173 = scmp.ne.s32.totalorder %s164, %s165
      %p174 = scmp.eq.s32.totalorder %s28, 0
      %p175 = por %p173, %p174
      %p176 = scmp.ne.s32.totalorder %s164, %s165
      %p177 = scmp.eq.s32.totalorder %s29, 1
      %p178 = por %p176, %p177
      %p180 = scmp.ne.s32.totalorder %s165, %s179
      %p181 = scmp.eq.s32.totalorder %s29, 0
      %p182 = por %p180, %p181
      %s184 = sadd.s32 %s183, 1
      %p187 = scmp.eq.s32.totalorder %s23, 1
      %p188 = scmp.ne.s32.totalorder %s183, %s185
      %p189 = scmp.eq.s32.totalorder %s23, 0
      %p190 = por %p188, %p189
      %p191 = scmp.ne.s32.totalorder %s183, %s185
      %p192 = scmp.eq.s32.totalorder %s28, 1
      %p193 = por %p191, %p192
      %p194 = scmp.ne.s32.totalorder %s185, %s186
      %p195 = scmp.eq.s32.totalorder %s28, 0
      %p196 = por %p194, %p195
      %p197 = scmp.ne.s32.totalorder %s185, %s186
      %p198 = scmp.eq.s32.totalorder %s29, 1
      %p199 = por %p197, %p198
      %p201 = scmp.ne.s32.totalorder %s186, %s200
      %p202 = scmp.eq.s32.totalorder %s29, 0
      %p203 = por %p201, %p202
      %s205 = sadd.s32 %s204, 1
      %p208 = scmp.eq.s32.totalorder %s23, 1
      %p209 = scmp.ne.s32.totalorder %s204, %s206
      %p210 = scmp.eq.s32.totalorder %s23, 0
      %p211 = por %p209, %p210
      %p212 = scmp.ne.s32.totalorder %s204, %s206
      %p213 = scmp.eq.s32.totalorder %s28, 1
      %p214 = por %p212, %p213
      %p215 = scmp.ne.s32.totalorder %s206, %s207
      %p216 = scmp.eq.s32.totalorder %s28, 0
      %p217 = por %p215, %p216
      %p218 = scmp.ne.s32.totalorder %s206, %s207
      %p219 = scmp.eq.s32.totalorder %s29, 1
      %p220 = por %p218, %p219
      %p222 = scmp.ne.s32.totalorder %s207, %s221
      %p223 = scmp.eq.s32.totalorder %s29, 0
      %p224 = por %p222, %p223
      %s225 = ssub.s32 %s23, %s30
      %p226 = scmp.eq.s32.totalorder %s225, 0
      %s228 = sadd.s32 %s227, 1
      %s229 = scalar_select %p226, %s227, %s228
      %p232 = pneg %p226
      %p233 = scmp.eq.s32.totalorder %s23, 1
      %p234 = por %p232, %p233
      %p235 = scmp.ne.s32.totalorder %s227, %s230
      %p236 = scmp.eq.s32.totalorder %s23, 0
      %p237 = por %p235, %p236
      %p238 = scmp.ne.s32.totalorder %s227, %s230
      %p239 = scmp.eq.s32.totalorder %s28, 1
      %p240 = por %p238, %p239
      %p241 = scmp.ne.s32.totalorder %s230, %s231
      %p242 = scmp.eq.s32.totalorder %s28, 0
      %p243 = por %p241, %p242
      %p244 = scmp.ne.s32.totalorder %s230, %s231
      %p245 = scmp.eq.s32.totalorder %s29, 1
      %p246 = por %p244, %p245
      %p248 = scmp.ne.s32.totalorder %s231, %s247
      %p249 = scmp.eq.s32.totalorder %s29, 0
      %p250 = por %p248, %p249
      %p251 = scmp.le.s32.totalorder 1, %s23
      %p252 = scmp.lt.s32.totalorder %s23, 3
      %p253 = pnand %p251, %p252
      %p254 = pneg %p253
      // Predicated region
      $region9: #{tpu_custom_call.1} parent=5 // pred_check
        _
      $region10: #{tpu_custom_call.1} parent=5 // pred_check_branch
        %256 = sbr.rel (%p253) target = $region12
      $region11: #{tpu_custom_call.1} parent=5 // pred_region
        %s257 = ssub.s32 %s23, 1
        // Predicated region
        $region13: #{tpu_custom_call.1} parent=11 // pred_check
          %p258 = pneg %p70
        $region14: #{tpu_custom_call.1} parent=11 // pred_check_branch
          %260 = sbr.rel (%p258) target = $region16
        $region15: #{tpu_custom_call.1} parent=11 // pred_region
          %262 = vsyncadd [#allocation8], 0
          %s264 = sshll.u32 %s1, 4
          %s265 = int_to_ptr.hbm [resolvable:$true] %s264
          %s266 = sshll.u32 [#allocation7], 4
          %s267 = int_to_ptr.vmem [resolvable:$true] %s266
          %269 = dma.hbm_to_vmem [thread:$0]  %s265, 16, %s267, [#allocation8]
        $region16: #{tpu_custom_call.1} parent=11 // pred_fallthru
          _
        // Predicated region
        $region17: #{tpu_custom_call.1} parent=11 // pred_check
          %p270 = pneg %p91
        $region18: #{tpu_custom_call.1} parent=11 // pred_check_branch
          %272 = sbr.rel (%p270) target = $region20
        $region19: #{tpu_custom_call.1} parent=11 // pred_region
          _
        $region20: #{tpu_custom_call.1} parent=11 // pred_fallthru
          _
        // Predicated region
        $region21: #{tpu_custom_call.1} parent=11 // pred_check
          %p273 = pneg %p112
        $region22: #{tpu_custom_call.1} parent=11 // pred_check_branch
          %275 = sbr.rel (%p273) target = $region24
        $region23: #{tpu_custom_call.1} parent=11 // pred_region
          %277 = vsyncadd [#allocation8], 0
          %s278 = sshll.u32 %s3, 4
          %s279 = int_to_ptr.hbm [resolvable:$true] %s278
          %s280 = sshll.u32 [#allocation9], 4
          %s281 = int_to_ptr.vmem [resolvable:$true] %s280
          %286 = dma.hbm_to_vmem [thread:$0]  %s279, 9216, %s281, [#allocation8], 64, 64, 4
        $region24: #{tpu_custom_call.1} parent=11 // pred_fallthru
          _
        // Predicated region
        $region25: #{tpu_custom_call.1} parent=11 // pred_check
          %p287 = pneg %p133
        $region26: #{tpu_custom_call.1} parent=11 // pred_check_branch
          %289 = sbr.rel (%p287) target = $region28
        $region27: #{tpu_custom_call.1} parent=11 // pred_region
          _
        $region28: #{tpu_custom_call.1} parent=11 // pred_fallthru
          _
        // Predicated region
        $region29: #{tpu_custom_call.1} parent=11 // pred_check
          %p290 = pneg %p154
        $region30: #{tpu_custom_call.1} parent=11 // pred_check_branch
          %292 = sbr.rel (%p290) target = $region32
        $region31: #{tpu_custom_call.1} parent=11 // pred_region
          _
        $region32: #{tpu_custom_call.1} parent=11 // pred_fallthru
          _
        // Predicated region
        $region33: #{tpu_custom_call.1} parent=11 // pred_check
          %p293 = pneg %p175
        $region34: #{tpu_custom_call.1} parent=11 // pred_check_branch
          %295 = sbr.rel (%p293) target = $region36
        $region35: #{tpu_custom_call.1} parent=11 // pred_region
          %297 = vsyncadd [#allocation11], 0
          %s298 = sshll.u32 %s6, 4
          %s299 = int_to_ptr.hbm [resolvable:$true] %s298
          %s300 = sshll.u32 [#allocation10], 4
          %s301 = int_to_ptr.vmem [resolvable:$true] %s300
          %306 = dma.hbm_to_vmem [thread:$0]  %s299, 9216, %s301, [#allocation11], 64, 64, 4
        $region36: #{tpu_custom_call.1} parent=11 // pred_fallthru
          _
        // Predicated region
        $region37: #{tpu_custom_call.1} parent=11 // pred_check
          %p307 = pneg %p196
        $region38: #{tpu_custom_call.1} parent=11 // pred_check_branch
          %309 = sbr.rel (%p307) target = $region40
        $region39: #{tpu_custom_call.1} parent=11 // pred_region
          %311 = vsyncadd [#allocation11], 0
          %s312 = sshll.u32 %s7, 4
          %s313 = int_to_ptr.hbm [resolvable:$true] %s312
          %s314 = sshll.u32 [#allocation12], 4
          %s315 = int_to_ptr.vmem [resolvable:$true] %s314
          %320 = dma.hbm_to_vmem [thread:$0]  %s313, 1024, %s315, [#allocation11], 64, 64, 4
        $region40: #{tpu_custom_call.1} parent=11 // pred_fallthru
          _
        // Predicated region
        $region41: #{tpu_custom_call.1} parent=11 // pred_check
          %p321 = pneg %p217
        $region42: #{tpu_custom_call.1} parent=11 // pred_check_branch
          %323 = sbr.rel (%p321) target = $region44
        $region43: #{tpu_custom_call.1} parent=11 // pred_region
          _
        $region44: #{tpu_custom_call.1} parent=11 // pred_fallthru
          _
      $region12: #{tpu_custom_call.1} parent=5 // pred_fallthru
        _
      %p324 = scmp.lt.s32.totalorder %s23, 2
      // Predicated region
      $region45: #{tpu_custom_call.1} parent=5 // pred_check
        %p325 = pneg %p324
      $region46: #{tpu_custom_call.1} parent=5 // pred_check_branch
        %327 = sbr.rel (%p325) target = $region48
      $region47: #{tpu_custom_call.1} parent=5 // pred_region
        // Predicated region
        $region49: #{tpu_custom_call.1} parent=47 // pred_check
          %p328 = pneg %p43
        $region50: #{tpu_custom_call.1} parent=47 // pred_check_branch
          %330 = sbr.rel (%p328) target = $region52
        $region51: #{tpu_custom_call.1} parent=47 // pred_region
          %s331 = sand.u32 %s33, 1
          %s332 = scalar_lea.sflag [#allocation5], %s331
          %s333 = sand.u32 %s33, 1
          %s334 = smul.addr %s333, 128
          %s335 = scalar_lea.vmem [#allocation4], %s334
          %337 = vsyncadd %s332, 0
          %s338 = smul.addr %s23, 32
          %s339 = smul.addr %s338, 4
          %s340 = scalar_lea.hbm %s0, %s339
          %s341 = sshll.u32 %s340, 4
          %s342 = int_to_ptr.hbm [resolvable:$true] %s341
          %s343 = sshll.u32 %s335, 4
          %s344 = int_to_ptr.vmem [resolvable:$true] %s343
          %349 = dma.hbm_to_vmem [thread:$0]  %s342, 2048, %s344, %s332, 64, 64, 4
        $region52: #{tpu_custom_call.1} parent=47 // pred_fallthru
          _
      $region48: #{tpu_custom_call.1} parent=5 // pred_fallthru
        _
      %p350 = scmp.le.s32.totalorder 1, %s23
      %p351 = scmp.lt.s32.totalorder %s23, 3
      %p352 = pnand %p350, %p351
      %p353 = pneg %p352
      // Predicated region
      $region53: #{tpu_custom_call.1} parent=5 // pred_check
        _
      $region54: #{tpu_custom_call.1} parent=5 // pred_check_branch
        %355 = sbr.rel (%p352) target = $region56
      $region55: #{tpu_custom_call.1} parent=5 // pred_region
        %s356 = ssub.s32 %s23, 1
        %s357 = sand.u32 %s36, 1
        %s358 = scalar_lea.sflag [#allocation5], %s357
        %s359 = sand.u32 %s36, 1
        %s360 = smul.addr %s359, 128
        %s361 = scalar_lea.vmem [#allocation4], %s360
        // Predicated region
        $region57: #{tpu_custom_call.1} parent=55 // pred_check
          %p362 = pneg %p49
        $region58: #{tpu_custom_call.1} parent=55 // pred_check_branch
          %364 = sbr.rel (%p362) target = $region60
        $region59: #{tpu_custom_call.1} parent=55 // pred_region
          %366 = dma.done %s358, 2048
        $region60: #{tpu_custom_call.1} parent=55 // pred_fallthru
          _
        // Predicated region
        $region61: #{tpu_custom_call.1} parent=55 // pred_check
          %p367 = pneg %p70
        $region62: #{tpu_custom_call.1} parent=55 // pred_check_branch
          %369 = sbr.rel (%p367) target = $region64
        $region63: #{tpu_custom_call.1} parent=55 // pred_region
          %371 = dma.done [#allocation8], 16
        $region64: #{tpu_custom_call.1} parent=55 // pred_fallthru
          _
        // Predicated region
        $region65: #{tpu_custom_call.1} parent=55 // pred_check
          %p372 = pneg %p112
        $region66: #{tpu_custom_call.1} parent=55 // pred_check_branch
          %374 = sbr.rel (%p372) target = $region68
        $region67: #{tpu_custom_call.1} parent=55 // pred_region
          %376 = dma.done [#allocation8], 9216
        $region68: #{tpu_custom_call.1} parent=55 // pred_fallthru
          _
        // Predicated region
        $region69: #{tpu_custom_call.1} parent=55 // pred_check
          %p377 = pneg %p175
        $region70: #{tpu_custom_call.1} parent=55 // pred_check_branch
          %379 = sbr.rel (%p377) target = $region72
        $region71: #{tpu_custom_call.1} parent=55 // pred_region
          %381 = dma.done [#allocation11], 9216
        $region72: #{tpu_custom_call.1} parent=55 // pred_fallthru
          _
        // Predicated region
        $region73: #{tpu_custom_call.1} parent=55 // pred_check
          %p382 = pneg %p196
        $region74: #{tpu_custom_call.1} parent=55 // pred_check_branch
          %384 = sbr.rel (%p382) target = $region76
        $region75: #{tpu_custom_call.1} parent=55 // pred_region
          %386 = dma.done [#allocation11], 1024
        $region76: #{tpu_custom_call.1} parent=55 // pred_fallthru
          _
        %s387 = sand.u32 %s36, 1
        %s388 = scalar_lea.sflag [#allocation5], %s387
        %s389 = sand.u32 %s36, 1
        %s390 = smul.addr %s389, 128
        %s391 = scalar_lea.vmem [#allocation4], %s390
        %p392 = pneg %p49
        %p393 = pneg %p46
        %p394 = pneg %p70
        %p395 = pneg %p67
        %p396 = pneg %p91
        %p397 = pneg %p88
        %p398 = pneg %p112
        %p399 = pneg %p109
        %p400 = pneg %p133
        %p401 = pneg %p130
        %p402 = pneg %p154
        %p403 = pneg %p151
        %p404 = pneg %p175
        %p405 = pneg %p172
        %p406 = pneg %p196
        %p407 = pneg %p193
        %p408 = pneg %p217
        %p409 = pneg %p214
        %p410 = pneg %p243
        %p411 = pneg %p240
        %s412 = sand.u32 %s230, 1
        %s413 = scalar_lea.sflag [#allocation6], %s412
        %s414 = sand.u32 %s230, 1
        %s415 = smul.addr %s414, 256
        %s416 = scalar_lea.vmem [#allocation13], %s415
        %v417 = vld [vmem:[%s361] sm:$0xf]
        %v418 = vld [vmem:[%s361 + $0x4] sm:$0xf]
        %v419 = vld [vmem:[%s361 + $0x8] sm:$0xf]
        %v420 = vld [vmem:[%s361 + $0xc] sm:$0xf]
        %v421 = vld [vmem:[%s361 + $0x10] sm:$0xf]
        %v422 = vld [vmem:[%s361 + $0x14] sm:$0xf]
        %v423 = vld [vmem:[%s361 + $0x18] sm:$0xf]
        %v424 = vld [vmem:[%s361 + $0x1c] sm:$0xf]
        %v425 = vld [vmem:[%s361 + $0x20] sm:$0xf]
        %v426 = vld [vmem:[%s361 + $0x24] sm:$0xf]
        %v427 = vld [vmem:[%s361 + $0x28] sm:$0xf]
        %v428 = vld [vmem:[%s361 + $0x2c] sm:$0xf]
        %v429 = vld [vmem:[%s361 + $0x30] sm:$0xf]
        %v430 = vld [vmem:[%s361 + $0x34] sm:$0xf]
        %v431 = vld [vmem:[%s361 + $0x38] sm:$0xf]
        %v432 = vld [vmem:[%s361 + $0x3c] sm:$0xf]
        %v433 = vld [vmem:[%s361 + $0x40] sm:$0xf]
        %v434 = vld [vmem:[%s361 + $0x44] sm:$0xf]
        %v435 = vld [vmem:[%s361 + $0x48] sm:$0xf]
        %v436 = vld [vmem:[%s361 + $0x4c] sm:$0xf]
        %v437 = vld [vmem:[%s361 + $0x50] sm:$0xf]
        %v438 = vld [vmem:[%s361 + $0x54] sm:$0xf]
        %v439 = vld [vmem:[%s361 + $0x58] sm:$0xf]
        %v440 = vld [vmem:[%s361 + $0x5c] sm:$0xf]
        %v441 = vld [vmem:[%s361 + $0x60] sm:$0xf]
        %v442 = vld [vmem:[%s361 + $0x64] sm:$0xf]
        %v443 = vld [vmem:[%s361 + $0x68] sm:$0xf]
        %v444 = vld [vmem:[%s361 + $0x6c] sm:$0xf]
        %v445 = vld [vmem:[%s361 + $0x70] sm:$0xf]
        %v446 = vld [vmem:[%s361 + $0x74] sm:$0xf]
        %v447 = vld [vmem:[%s361 + $0x78] sm:$0xf]
        %v448 = vld [vmem:[%s361 + $0x7c] sm:$0xf]
        %v449 = vunpack.c.l.bf16 %v417
        %v450 = vunpack.c.l.bf16 %v418
        %v451 = vunpack.c.l.bf16 %v419
        %v452 = vunpack.c.l.bf16 %v420
        %v453 = vunpack.c.l.bf16 %v421
        %v454 = vunpack.c.l.bf16 %v422
        %v455 = vunpack.c.l.bf16 %v423
        %v456 = vunpack.c.l.bf16 %v424
        %v457 = vunpack.c.l.bf16 %v425
        %v458 = vunpack.c.l.bf16 %v426
        %v459 = vunpack.c.l.bf16 %v427
        %v460 = vunpack.c.l.bf16 %v428
        %v461 = vunpack.c.l.bf16 %v429
        %v462 = vunpack.c.l.bf16 %v430
        %v463 = vunpack.c.l.bf16 %v431
        %v464 = vunpack.c.l.bf16 %v432
        %v465 = vunpack.c.l.bf16 %v433
        %v466 = vunpack.c.l.bf16 %v434
        %v467 = vunpack.c.l.bf16 %v435
        %v468 = vunpack.c.l.bf16 %v436
        %v469 = vunpack.c.l.bf16 %v437
        %v470 = vunpack.c.l.bf16 %v438
        %v471 = vunpack.c.l.bf16 %v439
        %v472 = vunpack.c.l.bf16 %v440
        %v473 = vunpack.c.l.bf16 %v441
        %v474 = vunpack.c.l.bf16 %v442
        %v475 = vunpack.c.l.bf16 %v443
        %v476 = vunpack.c.l.bf16 %v444
        %v477 = vunpack.c.l.bf16 %v445
        %v478 = vunpack.c.l.bf16 %v446
        %v479 = vunpack.c.l.bf16 %v447
        %v480 = vunpack.c.l.bf16 %v448
        %v481 = vld [vmem:[#allocation7] sm:$0x1]
        %v483 = vperm.slane %v481, 0
        %v485 = vmul.f32 %v449, %v483
        %v486 = vmul.f32 %v450, %v483
        %v487 = vmul.f32 %v451, %v483
        %v488 = vmul.f32 %v452, %v483
        %v489 = vmul.f32 %v453, %v483
        %v490 = vmul.f32 %v454, %v483
        %v491 = vmul.f32 %v455, %v483
        %v492 = vmul.f32 %v456, %v483
        %v493 = vmul.f32 %v457, %v483
        %v494 = vmul.f32 %v458, %v483
        %v495 = vmul.f32 %v459, %v483
        %v496 = vmul.f32 %v460, %v483
        %v497 = vmul.f32 %v461, %v483
        %v498 = vmul.f32 %v462, %v483
        %v499 = vmul.f32 %v463, %v483
        %v500 = vmul.f32 %v464, %v483
        %v501 = vmul.f32 %v465, %v483
        %v502 = vmul.f32 %v466, %v483
        %v503 = vmul.f32 %v467, %v483
        %v504 = vmul.f32 %v468, %v483
        %v505 = vmul.f32 %v469, %v483
        %v506 = vmul.f32 %v470, %v483
        %v507 = vmul.f32 %v471, %v483
        %v508 = vmul.f32 %v472, %v483
        %v509 = vmul.f32 %v473, %v483
        %v510 = vmul.f32 %v474, %v483
        %v511 = vmul.f32 %v475, %v483
        %v512 = vmul.f32 %v476, %v483
        %v513 = vmul.f32 %v477, %v483
        %v514 = vmul.f32 %v478, %v483
        %v515 = vmul.f32 %v479, %v483
        %v516 = vmul.f32 %v480, %v483
        %v517 = vld [vmem:[%s2] sm:$0x1]
        %v519 = vperm.slane %v517, 0
        %v521 = vadd.f32 %v485, %v519
        %v522 = vadd.f32 %v486, %v519
        %v523 = vadd.f32 %v487, %v519
        %v524 = vadd.f32 %v488, %v519
        %v525 = vadd.f32 %v489, %v519
        %v526 = vadd.f32 %v490, %v519
        %v527 = vadd.f32 %v491, %v519
        %v528 = vadd.f32 %v492, %v519
        %v529 = vadd.f32 %v493, %v519
        %v530 = vadd.f32 %v494, %v519
        %v531 = vadd.f32 %v495, %v519
        %v532 = vadd.f32 %v496, %v519
        %v533 = vadd.f32 %v497, %v519
        %v534 = vadd.f32 %v498, %v519
        %v535 = vadd.f32 %v499, %v519
        %v536 = vadd.f32 %v500, %v519
        %v537 = vadd.f32 %v501, %v519
        %v538 = vadd.f32 %v502, %v519
        %v539 = vadd.f32 %v503, %v519
        %v540 = vadd.f32 %v504, %v519
        %v541 = vadd.f32 %v505, %v519
        %v542 = vadd.f32 %v506, %v519
        %v543 = vadd.f32 %v507, %v519
        %v544 = vadd.f32 %v508, %v519
        %v545 = vadd.f32 %v509, %v519
        %v546 = vadd.f32 %v510, %v519
        %v547 = vadd.f32 %v511, %v519
        %v548 = vadd.f32 %v512, %v519
        %v549 = vadd.f32 %v513, %v519
        %v550 = vadd.f32 %v514, %v519
        %v551 = vadd.f32 %v515, %v519
        %v552 = vadd.f32 %v516, %v519
        %v553 = vmax.f32 %v521, 0.0
        %v554 = vmax.f32 %v522, 0.0
        %v555 = vmax.f32 %v523, 0.0
        %v556 = vmax.f32 %v524, 0.0
        %v557 = vmax.f32 %v525, 0.0
        %v558 = vmax.f32 %v526, 0.0
        %v559 = vmax.f32 %v527, 0.0
        %v560 = vmax.f32 %v528, 0.0
        %v561 = vmax.f32 %v529, 0.0
        %v562 = vmax.f32 %v530, 0.0
        %v563 = vmax.f32 %v531, 0.0
        %v564 = vmax.f32 %v532, 0.0
        %v565 = vmax.f32 %v533, 0.0
        %v566 = vmax.f32 %v534, 0.0
        %v567 = vmax.f32 %v535, 0.0
        %v568 = vmax.f32 %v536, 0.0
        %v569 = vmax.f32 %v537, 0.0
        %v570 = vmax.f32 %v538, 0.0
        %v571 = vmax.f32 %v539, 0.0
        %v572 = vmax.f32 %v540, 0.0
        %v573 = vmax.f32 %v541, 0.0
        %v574 = vmax.f32 %v542, 0.0
        %v575 = vmax.f32 %v543, 0.0
        %v576 = vmax.f32 %v544, 0.0
        %v577 = vmax.f32 %v545, 0.0
        %v578 = vmax.f32 %v546, 0.0
        %v579 = vmax.f32 %v547, 0.0
        %v580 = vmax.f32 %v548, 0.0
        %v581 = vmax.f32 %v549, 0.0
        %v582 = vmax.f32 %v550, 0.0
        %v583 = vmax.f32 %v551, 0.0
        %v584 = vmax.f32 %v552, 0.0
        %585 = vst [vmem:[#allocation2] sm:$0xff] 0.0
        %586 = vst [vmem:[#allocation2 + $0x8] sm:$0xff] 0.0
        %587 = vst [vmem:[#allocation2 + $0x10] sm:$0x3] 0.0
        %588 = vst [vmem:[#allocation2 + $0x18] sm:$0xff] 0.0
        %589 = vst [vmem:[#allocation2 + $0x20] sm:$0xff] 0.0
        %590 = vst [vmem:[#allocation2 + $0x28] sm:$0x3] 0.0
        %591 = vst [vmem:[#allocation2 + $0x30] sm:$0xff] 0.0
        %592 = vst [vmem:[#allocation2 + $0x38] sm:$0xff] 0.0
        %593 = vst [vmem:[#allocation2 + $0x40] sm:$0x3] 0.0
        %594 = vst [vmem:[#allocation2 + $0x48] sm:$0xff] 0.0
        %595 = vst [vmem:[#allocation2 + $0x50] sm:$0xff] 0.0
        %596 = vst [vmem:[#allocation2 + $0x58] sm:$0x3] 0.0
        %597 = vst [vmem:[#allocation2 + $0x60] sm:$0xff] 0.0
        %598 = vst [vmem:[#allocation2 + $0x68] sm:$0xff] 0.0
        %599 = vst [vmem:[#allocation2 + $0x70] sm:$0x3] 0.0
        %600 = vst [vmem:[#allocation2 + $0x78] sm:$0xff] 0.0
        %601 = vst [vmem:[#allocation2 + $0x80] sm:$0xff] 0.0
        %602 = vst [vmem:[#allocation2 + $0x88] sm:$0x3] 0.0
        %603 = vst [vmem:[#allocation2 + $0x90] sm:$0xff] 0.0
        %604 = vst [vmem:[#allocation2 + $0x98] sm:$0xff] 0.0
        %605 = vst [vmem:[#allocation2 + $0xa0] sm:$0x3] 0.0
        %606 = vst [vmem:[#allocation2 + $0xa8] sm:$0xff] 0.0
        %607 = vst [vmem:[#allocation2 + $0xb0] sm:$0xff] 0.0
        %608 = vst [vmem:[#allocation2 + $0xb8] sm:$0x3] 0.0
        %609 = vst [vmem:[#allocation2 + $0xc0] sm:$0xff] 0.0
        %610 = vst [vmem:[#allocation2 + $0xc8] sm:$0xff] 0.0
        %611 = vst [vmem:[#allocation2 + $0xd0] sm:$0x3] 0.0
        %612 = vst [vmem:[#allocation2 + $0xd8] sm:$0xff] 0.0
        %613 = vst [vmem:[#allocation2 + $0xe0] sm:$0xff] 0.0
        %614 = vst [vmem:[#allocation2 + $0xe8] sm:$0x3] 0.0
        %615 = vst [vmem:[#allocation2 + $0xf0] sm:$0xff] 0.0
        %616 = vst [vmem:[#allocation2 + $0xf8] sm:$0xff] 0.0
        %617 = vst [vmem:[#allocation2 + $0x100] sm:$0x3] 0.0
        %618 = vst [vmem:[#allocation2 + $0x108] sm:$0xff] 0.0
        %619 = vst [vmem:[#allocation2 + $0x110] sm:$0xff] 0.0
        %620 = vst [vmem:[#allocation2 + $0x118] sm:$0x3] 0.0
        %621 = vst [vmem:[#allocation2 + $0x120] sm:$0xff] 0.0
        %622 = vst [vmem:[#allocation2 + $0x128] sm:$0xff] 0.0
        %623 = vst [vmem:[#allocation2 + $0x130] sm:$0x3] 0.0
        %624 = vst [vmem:[#allocation2 + $0x138] sm:$0xff] 0.0
        %625 = vst [vmem:[#allocation2 + $0x140] sm:$0xff] 0.0
        %626 = vst [vmem:[#allocation2 + $0x148] sm:$0x3] 0.0
        %627 = vst [vmem:[#allocation2 + $0x150] sm:$0xff] 0.0
        %628 = vst [vmem:[#allocation2 + $0x158] sm:$0xff] 0.0
        %629 = vst [vmem:[#allocation2 + $0x160] sm:$0x3] 0.0
        %630 = vst [vmem:[#allocation2 + $0x168] sm:$0xff] 0.0
        %631 = vst [vmem:[#allocation2 + $0x170] sm:$0xff] 0.0
        %632 = vst [vmem:[#allocation2 + $0x178] sm:$0x3] 0.0
        %633 = vst [vmem:[#allocation2 + $0x180] sm:$0xff] 0.0
        %634 = vst [vmem:[#allocation2 + $0x188] sm:$0xff] 0.0
        %635 = vst [vmem:[#allocation2 + $0x190] sm:$0x3] 0.0
        %636 = vst [vmem:[#allocation2 + $0x198] sm:$0xff] 0.0
        %637 = vst [vmem:[#allocation2 + $0x1a0] sm:$0xff] 0.0
        %638 = vst [vmem:[#allocation2 + $0x1a8] sm:$0x3] 0.0
        %s639 = scalar_lea.vmem [#allocation2], 24
        %640 = vst [vmem:[%s639 + $0x1] sm:$0xff] %v553
        %641 = vst [vmem:[%s639 + $0x9] sm:$0xff] %v554
        %642 = vst [vmem:[%s639 + $0x19] sm:$0xff] %v555
        %643 = vst [vmem:[%s639 + $0x21] sm:$0xff] %v556
        %644 = vst [vmem:[%s639 + $0x31] sm:$0xff] %v557
        %645 = vst [vmem:[%s639 + $0x39] sm:$0xff] %v558
        %646 = vst [vmem:[%s639 + $0x49] sm:$0xff] %v559
        %647 = vst [vmem:[%s639 + $0x51] sm:$0xff] %v560
        %648 = vst [vmem:[%s639 + $0x61] sm:$0xff] %v561
        %649 = vst [vmem:[%s639 + $0x69] sm:$0xff] %v562
        %650 = vst [vmem:[%s639 + $0x79] sm:$0xff] %v563
        %651 = vst [vmem:[%s639 + $0x81] sm:$0xff] %v564
        %652 = vst [vmem:[%s639 + $0x91] sm:$0xff] %v565
        %653 = vst [vmem:[%s639 + $0x99] sm:$0xff] %v566
        %654 = vst [vmem:[%s639 + $0xa9] sm:$0xff] %v567
        %655 = vst [vmem:[%s639 + $0xb1] sm:$0xff] %v568
        %656 = vst [vmem:[%s639 + $0xc1] sm:$0xff] %v569
        %657 = vst [vmem:[%s639 + $0xc9] sm:$0xff] %v570
        %658 = vst [vmem:[%s639 + $0xd9] sm:$0xff] %v571
        %659 = vst [vmem:[%s639 + $0xe1] sm:$0xff] %v572
        %660 = vst [vmem:[%s639 + $0xf1] sm:$0xff] %v573
        %661 = vst [vmem:[%s639 + $0xf9] sm:$0xff] %v574
        %662 = vst [vmem:[%s639 + $0x109] sm:$0xff] %v575
        %663 = vst [vmem:[%s639 + $0x111] sm:$0xff] %v576
        %664 = vst [vmem:[%s639 + $0x121] sm:$0xff] %v577
        %665 = vst [vmem:[%s639 + $0x129] sm:$0xff] %v578
        %666 = vst [vmem:[%s639 + $0x139] sm:$0xff] %v579
        %667 = vst [vmem:[%s639 + $0x141] sm:$0xff] %v580
        %668 = vst [vmem:[%s639 + $0x151] sm:$0xff] %v581
        %669 = vst [vmem:[%s639 + $0x159] sm:$0xff] %v582
        %670 = vst [vmem:[%s639 + $0x169] sm:$0xff] %v583
        %671 = vst [vmem:[%s639 + $0x171] sm:$0xff] %v584
        %v672 = vld [vmem:[#allocation2] sm:$0xff]
        %v673 = vld [vmem:[#allocation2 + $0x8] sm:$0xff]
        %v674 = vld [vmem:[#allocation2 + $0x18] sm:$0xff]
        %v675 = vld [vmem:[#allocation2 + $0x20] sm:$0xff]
        %v676 = vld [vmem:[#allocation2 + $0x30] sm:$0xff]
        %v677 = vld [vmem:[#allocation2 + $0x38] sm:$0xff]
        %v678 = vld [vmem:[#allocation2 + $0x48] sm:$0xff]
        %v679 = vld [vmem:[#allocation2 + $0x50] sm:$0xff]
        %v680 = vld [vmem:[#allocation2 + $0x60] sm:$0xff]
        %v681 = vld [vmem:[#allocation2 + $0x68] sm:$0xff]
        %v682 = vld [vmem:[#allocation2 + $0x78] sm:$0xff]
        %v683 = vld [vmem:[#allocation2 + $0x80] sm:$0xff]
        %v684 = vld [vmem:[#allocation2 + $0x90] sm:$0xff]
        %v685 = vld [vmem:[#allocation2 + $0x98] sm:$0xff]
        %v686 = vld [vmem:[#allocation2 + $0xa8] sm:$0xff]
        %v687 = vld [vmem:[#allocation2 + $0xb0] sm:$0xff]
        %v688 = vld [vmem:[#allocation2 + $0xc0] sm:$0xff]
        %v689 = vld [vmem:[#allocation2 + $0xc8] sm:$0xff]
        %v690 = vld [vmem:[#allocation2 + $0xd8] sm:$0xff]
        %v691 = vld [vmem:[#allocation2 + $0xe0] sm:$0xff]
        %v692 = vld [vmem:[#allocation2 + $0xf0] sm:$0xff]
        %v693 = vld [vmem:[#allocation2 + $0xf8] sm:$0xff]
        %v694 = vld [vmem:[#allocation2 + $0x108] sm:$0xff]
        %v695 = vld [vmem:[#allocation2 + $0x110] sm:$0xff]
        %v696 = vld [vmem:[#allocation2 + $0x120] sm:$0xff]
        %v697 = vld [vmem:[#allocation2 + $0x128] sm:$0xff]
        %v698 = vld [vmem:[#allocation2 + $0x138] sm:$0xff]
        %v699 = vld [vmem:[#allocation2 + $0x140] sm:$0xff]
        %v700 = vld [vmem:[#allocation2 + $0x150] sm:$0xff]
        %v701 = vld [vmem:[#allocation2 + $0x158] sm:$0xff]
        %v702 = vld [vmem:[#allocation2 + $0x168] sm:$0xff]
        %v703 = vld [vmem:[#allocation2 + $0x170] sm:$0xff]
        %v704 = vpack.c.bf16 %v672, %v672
        %v705 = vpack.c.bf16 %v673, %v673
        %v706 = vpack.c.bf16 %v674, %v674
        %v707 = vpack.c.bf16 %v675, %v675
        %v708 = vpack.c.bf16 %v676, %v676
        %v709 = vpack.c.bf16 %v677, %v677
        %v710 = vpack.c.bf16 %v678, %v678
        %v711 = vpack.c.bf16 %v679, %v679
        %v712 = vpack.c.bf16 %v680, %v680
        %v713 = vpack.c.bf16 %v681, %v681
        %v714 = vpack.c.bf16 %v682, %v682
        %v715 = vpack.c.bf16 %v683, %v683
        %v716 = vpack.c.bf16 %v684, %v684
        %v717 = vpack.c.bf16 %v685, %v685
        %v718 = vpack.c.bf16 %v686, %v686
        %v719 = vpack.c.bf16 %v687, %v687
        %v720 = vpack.c.bf16 %v688, %v688
        %v721 = vpack.c.bf16 %v689, %v689
        %v722 = vpack.c.bf16 %v690, %v690
        %v723 = vpack.c.bf16 %v691, %v691
        %v724 = vpack.c.bf16 %v692, %v692
        %v725 = vpack.c.bf16 %v693, %v693
        %v726 = vpack.c.bf16 %v694, %v694
        %v727 = vpack.c.bf16 %v695, %v695
        %v728 = vpack.c.bf16 %v696, %v696
        %v729 = vpack.c.bf16 %v697, %v697
        %v730 = vpack.c.bf16 %v698, %v698
        %v731 = vpack.c.bf16 %v699, %v699
        %v732 = vpack.c.bf16 %v700, %v700
        %v733 = vpack.c.bf16 %v701, %v701
        %v734 = vpack.c.bf16 %v702, %v702
        %v735 = vpack.c.bf16 %v703, %v703
        %736 = vst [vmem:[#allocation3] sm:$0xf] %v704
        %737 = vst [vmem:[#allocation3 + $0x24] sm:$0xf] %v705
        %738 = vst [vmem:[#allocation3 + $0x48] sm:$0xf] %v706
        %739 = vst [vmem:[#allocation3 + $0x6c] sm:$0xf] %v707
        %740 = vst [vmem:[#allocation3 + $0x90] sm:$0xf] %v708
        %741 = vst [vmem:[#allocation3 + $0xb4] sm:$0xf] %v709
        %742 = vst [vmem:[#allocation3 + $0xd8] sm:$0xf] %v710
        %743 = vst [vmem:[#allocation3 + $0xfc] sm:$0xf] %v711
        %744 = vst [vmem:[#allocation3 + $0x120] sm:$0xf] %v712
        %745 = vst [vmem:[#allocation3 + $0x144] sm:$0xf] %v713
        %746 = vst [vmem:[#allocation3 + $0x168] sm:$0xf] %v714
        %747 = vst [vmem:[#allocation3 + $0x18c] sm:$0xf] %v715
        %748 = vst [vmem:[#allocation3 + $0x1b0] sm:$0xf] %v716
        %749 = vst [vmem:[#allocation3 + $0x1d4] sm:$0xf] %v717
        %750 = vst [vmem:[#allocation3 + $0x1f8] sm:$0xf] %v718
        %751 = vst [vmem:[#allocation3 + $0x21c] sm:$0xf] %v719
        %752 = vst [vmem:[#allocation3 + $0x240] sm:$0xf] %v720
        %753 = vst [vmem:[#allocation3 + $0x264] sm:$0xf] %v721
        %754 = vst [vmem:[#allocation3 + $0x288] sm:$0xf] %v722
        %755 = vst [vmem:[#allocation3 + $0x2ac] sm:$0xf] %v723
        %756 = vst [vmem:[#allocation3 + $0x2d0] sm:$0xf] %v724
        %757 = vst [vmem:[#allocation3 + $0x2f4] sm:$0xf] %v725
        %758 = vst [vmem:[#allocation3 + $0x318] sm:$0xf] %v726
        %759 = vst [vmem:[#allocation3 + $0x33c] sm:$0xf] %v727
        %760 = vst [vmem:[#allocation3 + $0x360] sm:$0xf] %v728
        %761 = vst [vmem:[#allocation3 + $0x384] sm:$0xf] %v729
        %762 = vst [vmem:[#allocation3 + $0x3a8] sm:$0xf] %v730
        %763 = vst [vmem:[#allocation3 + $0x3cc] sm:$0xf] %v731
        %764 = vst [vmem:[#allocation3 + $0x3f0] sm:$0xf] %v732
        %765 = vst [vmem:[#allocation3 + $0x414] sm:$0xf] %v733
        %766 = vst [vmem:[#allocation3 + $0x438] sm:$0xf] %v734
        %767 = vst [vmem:[#allocation3 + $0x45c] sm:$0xf] %v735
        %v768 = vld [vmem:[#allocation2 + $0x1] sm:$0xff]
        %v769 = vld [vmem:[#allocation2 + $0x9] sm:$0xff]
        %v770 = vld [vmem:[#allocation2 + $0x19] sm:$0xff]
        %v771 = vld [vmem:[#allocation2 + $0x21] sm:$0xff]
        %v772 = vld [vmem:[#allocation2 + $0x31] sm:$0xff]
        %v773 = vld [vmem:[#allocation2 + $0x39] sm:$0xff]
        %v774 = vld [vmem:[#allocation2 + $0x49] sm:$0xff]
        %v775 = vld [vmem:[#allocation2 + $0x51] sm:$0xff]
        %v776 = vld [vmem:[#allocation2 + $0x61] sm:$0xff]
        %v777 = vld [vmem:[#allocation2 + $0x69] sm:$0xff]
        %v778 = vld [vmem:[#allocation2 + $0x79] sm:$0xff]
        %v779 = vld [vmem:[#allocation2 + $0x81] sm:$0xff]
        %v780 = vld [vmem:[#allocation2 + $0x91] sm:$0xff]
        %v781 = vld [vmem:[#allocation2 + $0x99] sm:$0xff]
        %v782 = vld [vmem:[#allocation2 + $0xa9] sm:$0xff]
        %v783 = vld [vmem:[#allocation2 + $0xb1] sm:$0xff]
        %v784 = vld [vmem:[#allocation2 + $0xc1] sm:$0xff]
        %v785 = vld [vmem:[#allocation2 + $0xc9] sm:$0xff]
        %v786 = vld [vmem:[#allocation2 + $0xd9] sm:$0xff]
        %v787 = vld [vmem:[#allocation2 + $0xe1] sm:$0xff]
        %v788 = vld [vmem:[#allocation2 + $0xf1] sm:$0xff]
        %v789 = vld [vmem:[#allocation2 + $0xf9] sm:$0xff]
        %v790 = vld [vmem:[#allocation2 + $0x109] sm:$0xff]
        %v791 = vld [vmem:[#allocation2 + $0x111] sm:$0xff]
        %v792 = vld [vmem:[#allocation2 + $0x121] sm:$0xff]
        %v793 = vld [vmem:[#allocation2 + $0x129] sm:$0xff]
        %v794 = vld [vmem:[#allocation2 + $0x139] sm:$0xff]
        %v795 = vld [vmem:[#allocation2 + $0x141] sm:$0xff]
        %v796 = vld [vmem:[#allocation2 + $0x151] sm:$0xff]
        %v797 = vld [vmem:[#allocation2 + $0x159] sm:$0xff]
        %v798 = vld [vmem:[#allocation2 + $0x169] sm:$0xff]
        %v799 = vld [vmem:[#allocation2 + $0x171] sm:$0xff]
        %v800 = vpack.c.bf16 %v768, %v768
        %v801 = vpack.c.bf16 %v769, %v769
        %v802 = vpack.c.bf16 %v770, %v770
        %v803 = vpack.c.bf16 %v771, %v771
        %v804 = vpack.c.bf16 %v772, %v772
        %v805 = vpack.c.bf16 %v773, %v773
        %v806 = vpack.c.bf16 %v774, %v774
        %v807 = vpack.c.bf16 %v775, %v775
        %v808 = vpack.c.bf16 %v776, %v776
        %v809 = vpack.c.bf16 %v777, %v777
        %v810 = vpack.c.bf16 %v778, %v778
        %v811 = vpack.c.bf16 %v779, %v779
        %v812 = vpack.c.bf16 %v780, %v780
        %v813 = vpack.c.bf16 %v781, %v781
        %v814 = vpack.c.bf16 %v782, %v782
        %v815 = vpack.c.bf16 %v783, %v783
        %v816 = vpack.c.bf16 %v784, %v784
        %v817 = vpack.c.bf16 %v785, %v785
        %v818 = vpack.c.bf16 %v786, %v786
        %v819 = vpack.c.bf16 %v787, %v787
        %v820 = vpack.c.bf16 %v788, %v788
        %v821 = vpack.c.bf16 %v789, %v789
        %v822 = vpack.c.bf16 %v790, %v790
        %v823 = vpack.c.bf16 %v791, %v791
        %v824 = vpack.c.bf16 %v792, %v792
        %v825 = vpack.c.bf16 %v793, %v793
        %v826 = vpack.c.bf16 %v794, %v794
        %v827 = vpack.c.bf16 %v795, %v795
        %v828 = vpack.c.bf16 %v796, %v796
        %v829 = vpack.c.bf16 %v797, %v797
        %v830 = vpack.c.bf16 %v798, %v798
        %v831 = vpack.c.bf16 %v799, %v799
        %832 = vst [vmem:[#allocation3 + $0x4] sm:$0xf] %v800
        %833 = vst [vmem:[#allocation3 + $0x28] sm:$0xf] %v801
        %834 = vst [vmem:[#allocation3 + $0x4c] sm:$0xf] %v802
        %835 = vst [vmem:[#allocation3 + $0x70] sm:$0xf] %v803
        %836 = vst [vmem:[#allocation3 + $0x94] sm:$0xf] %v804
        %837 = vst [vmem:[#allocation3 + $0xb8] sm:$0xf] %v805
        %838 = vst [vmem:[#allocation3 + $0xdc] sm:$0xf] %v806
        %839 = vst [vmem:[#allocation3 + $0x100] sm:$0xf] %v807
        %840 = vst [vmem:[#allocation3 + $0x124] sm:$0xf] %v808
        %841 = vst [vmem:[#allocation3 + $0x148] sm:$0xf] %v809
        %842 = vst [vmem:[#allocation3 + $0x16c] sm:$0xf] %v810
        %843 = vst [vmem:[#allocation3 + $0x190] sm:$0xf] %v811
        %844 = vst [vmem:[#allocation3 + $0x1b4] sm:$0xf] %v812
        %845 = vst [vmem:[#allocation3 + $0x1d8] sm:$0xf] %v813
        %846 = vst [vmem:[#allocation3 + $0x1fc] sm:$0xf] %v814
        %847 = vst [vmem:[#allocation3 + $0x220] sm:$0xf] %v815
        %848 = vst [vmem:[#allocation3 + $0x244] sm:$0xf] %v816
        %849 = vst [vmem:[#allocation3 + $0x268] sm:$0xf] %v817
        %850 = vst [vmem:[#allocation3 + $0x28c] sm:$0xf] %v818
        %851 = vst [vmem:[#allocation3 + $0x2b0] sm:$0xf] %v819
        %852 = vst [vmem:[#allocation3 + $0x2d4] sm:$0xf] %v820
        %853 = vst [vmem:[#allocation3 + $0x2f8] sm:$0xf] %v821
        %854 = vst [vmem:[#allocation3 + $0x31c] sm:$0xf] %v822
        %855 = vst [vmem:[#allocation3 + $0x340] sm:$0xf] %v823
        %856 = vst [vmem:[#allocation3 + $0x364] sm:$0xf] %v824
        %857 = vst [vmem:[#allocation3 + $0x388] sm:$0xf] %v825
        %858 = vst [vmem:[#allocation3 + $0x3ac] sm:$0xf] %v826
        %859 = vst [vmem:[#allocation3 + $0x3d0] sm:$0xf] %v827
        %860 = vst [vmem:[#allocation3 + $0x3f4] sm:$0xf] %v828
        %861 = vst [vmem:[#allocation3 + $0x418] sm:$0xf] %v829
        %862 = vst [vmem:[#allocation3 + $0x43c] sm:$0xf] %v830
        %863 = vst [vmem:[#allocation3 + $0x460] sm:$0xf] %v831
        %v864 = vld [vmem:[#allocation2 + $0x2] sm:$0xff]
        %v865 = vld [vmem:[#allocation2 + $0xa] sm:$0xff]
        %v866 = vld [vmem:[#allocation2 + $0x1a] sm:$0xff]
        %v867 = vld [vmem:[#allocation2 + $0x22] sm:$0xff]
        %v868 = vld [vmem:[#allocation2 + $0x32] sm:$0xff]
        %v869 = vld [vmem:[#allocation2 + $0x3a] sm:$0xff]
        %v870 = vld [vmem:[#allocation2 + $0x4a] sm:$0xff]
        %v871 = vld [vmem:[#allocation2 + $0x52] sm:$0xff]
        %v872 = vld [vmem:[#allocation2 + $0x62] sm:$0xff]
        %v873 = vld [vmem:[#allocation2 + $0x6a] sm:$0xff]
        %v874 = vld [vmem:[#allocation2 + $0x7a] sm:$0xff]
        %v875 = vld [vmem:[#allocation2 + $0x82] sm:$0xff]
        %v876 = vld [vmem:[#allocation2 + $0x92] sm:$0xff]
        %v877 = vld [vmem:[#allocation2 + $0x9a] sm:$0xff]
        %v878 = vld [vmem:[#allocation2 + $0xaa] sm:$0xff]
        %v879 = vld [vmem:[#allocation2 + $0xb2] sm:$0xff]
        %v880 = vld [vmem:[#allocation2 + $0xc2] sm:$0xff]
        %v881 = vld [vmem:[#allocation2 + $0xca] sm:$0xff]
        %v882 = vld [vmem:[#allocation2 + $0xda] sm:$0xff]
        %v883 = vld [vmem:[#allocation2 + $0xe2] sm:$0xff]
        %v884 = vld [vmem:[#allocation2 + $0xf2] sm:$0xff]
        %v885 = vld [vmem:[#allocation2 + $0xfa] sm:$0xff]
        %v886 = vld [vmem:[#allocation2 + $0x10a] sm:$0xff]
        %v887 = vld [vmem:[#allocation2 + $0x112] sm:$0xff]
        %v888 = vld [vmem:[#allocation2 + $0x122] sm:$0xff]
        %v889 = vld [vmem:[#allocation2 + $0x12a] sm:$0xff]
        %v890 = vld [vmem:[#allocation2 + $0x13a] sm:$0xff]
        %v891 = vld [vmem:[#allocation2 + $0x142] sm:$0xff]
        %v892 = vld [vmem:[#allocation2 + $0x152] sm:$0xff]
        %v893 = vld [vmem:[#allocation2 + $0x15a] sm:$0xff]
        %v894 = vld [vmem:[#allocation2 + $0x16a] sm:$0xff]
        %v895 = vld [vmem:[#allocation2 + $0x172] sm:$0xff]
        %v896 = vpack.c.bf16 %v864, %v864
        %v897 = vpack.c.bf16 %v865, %v865
        %v898 = vpack.c.bf16 %v866, %v866
        %v899 = vpack.c.bf16 %v867, %v867
        %v900 = vpack.c.bf16 %v868, %v868
        %v901 = vpack.c.bf16 %v869, %v869
        %v902 = vpack.c.bf16 %v870, %v870
        %v903 = vpack.c.bf16 %v871, %v871
        %v904 = vpack.c.bf16 %v872, %v872
        %v905 = vpack.c.bf16 %v873, %v873
        %v906 = vpack.c.bf16 %v874, %v874
        %v907 = vpack.c.bf16 %v875, %v875
        %v908 = vpack.c.bf16 %v876, %v876
        %v909 = vpack.c.bf16 %v877, %v877
        %v910 = vpack.c.bf16 %v878, %v878
        %v911 = vpack.c.bf16 %v879, %v879
        %v912 = vpack.c.bf16 %v880, %v880
        %v913 = vpack.c.bf16 %v881, %v881
        %v914 = vpack.c.bf16 %v882, %v882
        %v915 = vpack.c.bf16 %v883, %v883
        %v916 = vpack.c.bf16 %v884, %v884
        %v917 = vpack.c.bf16 %v885, %v885
        %v918 = vpack.c.bf16 %v886, %v886
        %v919 = vpack.c.bf16 %v887, %v887
        %v920 = vpack.c.bf16 %v888, %v888
        %v921 = vpack.c.bf16 %v889, %v889
        %v922 = vpack.c.bf16 %v890, %v890
        %v923 = vpack.c.bf16 %v891, %v891
        %v924 = vpack.c.bf16 %v892, %v892
        %v925 = vpack.c.bf16 %v893, %v893
        %v926 = vpack.c.bf16 %v894, %v894
        %v927 = vpack.c.bf16 %v895, %v895
        %928 = vst [vmem:[#allocation3 + $0x8] sm:$0xf] %v896
        %929 = vst [vmem:[#allocation3 + $0x2c] sm:$0xf] %v897
        %930 = vst [vmem:[#allocation3 + $0x50] sm:$0xf] %v898
        %931 = vst [vmem:[#allocation3 + $0x74] sm:$0xf] %v899
        %932 = vst [vmem:[#allocation3 + $0x98] sm:$0xf] %v900
        %933 = vst [vmem:[#allocation3 + $0xbc] sm:$0xf] %v901
        %934 = vst [vmem:[#allocation3 + $0xe0] sm:$0xf] %v902
        %935 = vst [vmem:[#allocation3 + $0x104] sm:$0xf] %v903
        %936 = vst [vmem:[#allocation3 + $0x128] sm:$0xf] %v904
        %937 = vst [vmem:[#allocation3 + $0x14c] sm:$0xf] %v905
        %938 = vst [vmem:[#allocation3 + $0x170] sm:$0xf] %v906
        %939 = vst [vmem:[#allocation3 + $0x194] sm:$0xf] %v907
        %940 = vst [vmem:[#allocation3 + $0x1b8] sm:$0xf] %v908
        %941 = vst [vmem:[#allocation3 + $0x1dc] sm:$0xf] %v909
        %942 = vst [vmem:[#allocation3 + $0x200] sm:$0xf] %v910
        %943 = vst [vmem:[#allocation3 + $0x224] sm:$0xf] %v911
        %944 = vst [vmem:[#allocation3 + $0x248] sm:$0xf] %v912
        %945 = vst [vmem:[#allocation3 + $0x26c] sm:$0xf] %v913
        %946 = vst [vmem:[#allocation3 + $0x290] sm:$0xf] %v914
        %947 = vst [vmem:[#allocation3 + $0x2b4] sm:$0xf] %v915
        %948 = vst [vmem:[#allocation3 + $0x2d8] sm:$0xf] %v916
        %949 = vst [vmem:[#allocation3 + $0x2fc] sm:$0xf] %v917
        %950 = vst [vmem:[#allocation3 + $0x320] sm:$0xf] %v918
        %951 = vst [vmem:[#allocation3 + $0x344] sm:$0xf] %v919
        %952 = vst [vmem:[#allocation3 + $0x368] sm:$0xf] %v920
        %953 = vst [vmem:[#allocation3 + $0x38c] sm:$0xf] %v921
        %954 = vst [vmem:[#allocation3 + $0x3b0] sm:$0xf] %v922
        %955 = vst [vmem:[#allocation3 + $0x3d4] sm:$0xf] %v923
        %956 = vst [vmem:[#allocation3 + $0x3f8] sm:$0xf] %v924
        %957 = vst [vmem:[#allocation3 + $0x41c] sm:$0xf] %v925
        %958 = vst [vmem:[#allocation3 + $0x440] sm:$0xf] %v926
        %959 = vst [vmem:[#allocation3 + $0x464] sm:$0xf] %v927
        %v960 = vld [vmem:[%s639] sm:$0xff]
        %v961 = vld [vmem:[%s639 + $0x8] sm:$0xff]
        %v962 = vld [vmem:[%s639 + $0x18] sm:$0xff]
        %v963 = vld [vmem:[%s639 + $0x20] sm:$0xff]
        %v964 = vld [vmem:[%s639 + $0x30] sm:$0xff]
        %v965 = vld [vmem:[%s639 + $0x38] sm:$0xff]
        %v966 = vld [vmem:[%s639 + $0x48] sm:$0xff]
        %v967 = vld [vmem:[%s639 + $0x50] sm:$0xff]
        %v968 = vld [vmem:[%s639 + $0x60] sm:$0xff]
        %v969 = vld [vmem:[%s639 + $0x68] sm:$0xff]
        %v970 = vld [vmem:[%s639 + $0x78] sm:$0xff]
        %v971 = vld [vmem:[%s639 + $0x80] sm:$0xff]
        %v972 = vld [vmem:[%s639 + $0x90] sm:$0xff]
        %v973 = vld [vmem:[%s639 + $0x98] sm:$0xff]
        %v974 = vld [vmem:[%s639 + $0xa8] sm:$0xff]
        %v975 = vld [vmem:[%s639 + $0xb0] sm:$0xff]
        %v976 = vld [vmem:[%s639 + $0xc0] sm:$0xff]
        %v977 = vld [vmem:[%s639 + $0xc8] sm:$0xff]
        %v978 = vld [vmem:[%s639 + $0xd8] sm:$0xff]
        %v979 = vld [vmem:[%s639 + $0xe0] sm:$0xff]
        %v980 = vld [vmem:[%s639 + $0xf0] sm:$0xff]
        %v981 = vld [vmem:[%s639 + $0xf8] sm:$0xff]
        %v982 = vld [vmem:[%s639 + $0x108] sm:$0xff]
        %v983 = vld [vmem:[%s639 + $0x110] sm:$0xff]
        %v984 = vld [vmem:[%s639 + $0x120] sm:$0xff]
        %v985 = vld [vmem:[%s639 + $0x128] sm:$0xff]
        %v986 = vld [vmem:[%s639 + $0x138] sm:$0xff]
        %v987 = vld [vmem:[%s639 + $0x140] sm:$0xff]
        %v988 = vld [vmem:[%s639 + $0x150] sm:$0xff]
        %v989 = vld [vmem:[%s639 + $0x158] sm:$0xff]
        %v990 = vld [vmem:[%s639 + $0x168] sm:$0xff]
        %v991 = vld [vmem:[%s639 + $0x170] sm:$0xff]
        %v992 = vpack.c.bf16 %v960, %v960
        %v993 = vpack.c.bf16 %v961, %v961
        %v994 = vpack.c.bf16 %v962, %v962
        %v995 = vpack.c.bf16 %v963, %v963
        %v996 = vpack.c.bf16 %v964, %v964
        %v997 = vpack.c.bf16 %v965, %v965
        %v998 = vpack.c.bf16 %v966, %v966
        %v999 = vpack.c.bf16 %v967, %v967
        %v1000 = vpack.c.bf16 %v968, %v968
        %v1001 = vpack.c.bf16 %v969, %v969
        %v1002 = vpack.c.bf16 %v970, %v970
        %v1003 = vpack.c.bf16 %v971, %v971
        %v1004 = vpack.c.bf16 %v972, %v972
        %v1005 = vpack.c.bf16 %v973, %v973
        %v1006 = vpack.c.bf16 %v974, %v974
        %v1007 = vpack.c.bf16 %v975, %v975
        %v1008 = vpack.c.bf16 %v976, %v976
        %v1009 = vpack.c.bf16 %v977, %v977
        %v1010 = vpack.c.bf16 %v978, %v978
        %v1011 = vpack.c.bf16 %v979, %v979
        %v1012 = vpack.c.bf16 %v980, %v980
        %v1013 = vpack.c.bf16 %v981, %v981
        %v1014 = vpack.c.bf16 %v982, %v982
        %v1015 = vpack.c.bf16 %v983, %v983
        %v1016 = vpack.c.bf16 %v984, %v984
        %v1017 = vpack.c.bf16 %v985, %v985
        %v1018 = vpack.c.bf16 %v986, %v986
        %v1019 = vpack.c.bf16 %v987, %v987
        %v1020 = vpack.c.bf16 %v988, %v988
        %v1021 = vpack.c.bf16 %v989, %v989
        %v1022 = vpack.c.bf16 %v990, %v990
        %v1023 = vpack.c.bf16 %v991, %v991
        %1024 = vst [vmem:[#allocation3 + $0xc] sm:$0xf] %v992
        %1025 = vst [vmem:[#allocation3 + $0x30] sm:$0xf] %v993
        %1026 = vst [vmem:[#allocation3 + $0x54] sm:$0xf] %v994
        %1027 = vst [vmem:[#allocation3 + $0x78] sm:$0xf] %v995
        %1028 = vst [vmem:[#allocation3 + $0x9c] sm:$0xf] %v996
        %1029 = vst [vmem:[#allocation3 + $0xc0] sm:$0xf] %v997
        %1030 = vst [vmem:[#allocation3 + $0xe4] sm:$0xf] %v998
        %1031 = vst [vmem:[#allocation3 + $0x108] sm:$0xf] %v999
        %1032 = vst [vmem:[#allocation3 + $0x12c] sm:$0xf] %v1000
        %1033 = vst [vmem:[#allocation3 + $0x150] sm:$0xf] %v1001
        %1034 = vst [vmem:[#allocation3 + $0x174] sm:$0xf] %v1002
        %1035 = vst [vmem:[#allocation3 + $0x198] sm:$0xf] %v1003
        %1036 = vst [vmem:[#allocation3 + $0x1bc] sm:$0xf] %v1004
        %1037 = vst [vmem:[#allocation3 + $0x1e0] sm:$0xf] %v1005
        %1038 = vst [vmem:[#allocation3 + $0x204] sm:$0xf] %v1006
        %1039 = vst [vmem:[#allocation3 + $0x228] sm:$0xf] %v1007
        %1040 = vst [vmem:[#allocation3 + $0x24c] sm:$0xf] %v1008
        %1041 = vst [vmem:[#allocation3 + $0x270] sm:$0xf] %v1009
        %1042 = vst [vmem:[#allocation3 + $0x294] sm:$0xf] %v1010
        %1043 = vst [vmem:[#allocation3 + $0x2b8] sm:$0xf] %v1011
        %1044 = vst [vmem:[#allocation3 + $0x2dc] sm:$0xf] %v1012
        %1045 = vst [vmem:[#allocation3 + $0x300] sm:$0xf] %v1013
        %1046 = vst [vmem:[#allocation3 + $0x324] sm:$0xf] %v1014
        %1047 = vst [vmem:[#allocation3 + $0x348] sm:$0xf] %v1015
        %1048 = vst [vmem:[#allocation3 + $0x36c] sm:$0xf] %v1016
        %1049 = vst [vmem:[#allocation3 + $0x390] sm:$0xf] %v1017
        %1050 = vst [vmem:[#allocation3 + $0x3b4] sm:$0xf] %v1018
        %1051 = vst [vmem:[#allocation3 + $0x3d8] sm:$0xf] %v1019
        %1052 = vst [vmem:[#allocation3 + $0x3fc] sm:$0xf] %v1020
        %1053 = vst [vmem:[#allocation3 + $0x420] sm:$0xf] %v1021
        %1054 = vst [vmem:[#allocation3 + $0x444] sm:$0xf] %v1022
        %1055 = vst [vmem:[#allocation3 + $0x468] sm:$0xf] %v1023
        %v1056 = vld [vmem:[%s639 + $0x1] sm:$0xff]
        %v1057 = vld [vmem:[%s639 + $0x9] sm:$0xff]
        %v1058 = vld [vmem:[%s639 + $0x19] sm:$0xff]
        %v1059 = vld [vmem:[%s639 + $0x21] sm:$0xff]
        %v1060 = vld [vmem:[%s639 + $0x31] sm:$0xff]
        %v1061 = vld [vmem:[%s639 + $0x39] sm:$0xff]
        %v1062 = vld [vmem:[%s639 + $0x49] sm:$0xff]
        %v1063 = vld [vmem:[%s639 + $0x51] sm:$0xff]
        %v1064 = vld [vmem:[%s639 + $0x61] sm:$0xff]
        %v1065 = vld [vmem:[%s639 + $0x69] sm:$0xff]
        %v1066 = vld [vmem:[%s639 + $0x79] sm:$0xff]
        %v1067 = vld [vmem:[%s639 + $0x81] sm:$0xff]
        %v1068 = vld [vmem:[%s639 + $0x91] sm:$0xff]
        %v1069 = vld [vmem:[%s639 + $0x99] sm:$0xff]
        %v1070 = vld [vmem:[%s639 + $0xa9] sm:$0xff]
        %v1071 = vld [vmem:[%s639 + $0xb1] sm:$0xff]
        %v1072 = vld [vmem:[%s639 + $0xc1] sm:$0xff]
        %v1073 = vld [vmem:[%s639 + $0xc9] sm:$0xff]
        %v1074 = vld [vmem:[%s639 + $0xd9] sm:$0xff]
        %v1075 = vld [vmem:[%s639 + $0xe1] sm:$0xff]
        %v1076 = vld [vmem:[%s639 + $0xf1] sm:$0xff]
        %v1077 = vld [vmem:[%s639 + $0xf9] sm:$0xff]
        %v1078 = vld [vmem:[%s639 + $0x109] sm:$0xff]
        %v1079 = vld [vmem:[%s639 + $0x111] sm:$0xff]
        %v1080 = vld [vmem:[%s639 + $0x121] sm:$0xff]
        %v1081 = vld [vmem:[%s639 + $0x129] sm:$0xff]
        %v1082 = vld [vmem:[%s639 + $0x139] sm:$0xff]
        %v1083 = vld [vmem:[%s639 + $0x141] sm:$0xff]
        %v1084 = vld [vmem:[%s639 + $0x151] sm:$0xff]
        %v1085 = vld [vmem:[%s639 + $0x159] sm:$0xff]
        %v1086 = vld [vmem:[%s639 + $0x169] sm:$0xff]
        %v1087 = vld [vmem:[%s639 + $0x171] sm:$0xff]
        %v1088 = vpack.c.bf16 %v1056, %v1056
        %v1089 = vpack.c.bf16 %v1057, %v1057
        %v1090 = vpack.c.bf16 %v1058, %v1058
        %v1091 = vpack.c.bf16 %v1059, %v1059
        %v1092 = vpack.c.bf16 %v1060, %v1060
        %v1093 = vpack.c.bf16 %v1061, %v1061
        %v1094 = vpack.c.bf16 %v1062, %v1062
        %v1095 = vpack.c.bf16 %v1063, %v1063
        %v1096 = vpack.c.bf16 %v1064, %v1064
        %v1097 = vpack.c.bf16 %v1065, %v1065
        %v1098 = vpack.c.bf16 %v1066, %v1066
        %v1099 = vpack.c.bf16 %v1067, %v1067
        %v1100 = vpack.c.bf16 %v1068, %v1068
        %v1101 = vpack.c.bf16 %v1069, %v1069
        %v1102 = vpack.c.bf16 %v1070, %v1070
        %v1103 = vpack.c.bf16 %v1071, %v1071
        %v1104 = vpack.c.bf16 %v1072, %v1072
        %v1105 = vpack.c.bf16 %v1073, %v1073
        %v1106 = vpack.c.bf16 %v1074, %v1074
        %v1107 = vpack.c.bf16 %v1075, %v1075
        %v1108 = vpack.c.bf16 %v1076, %v1076
        %v1109 = vpack.c.bf16 %v1077, %v1077
        %v1110 = vpack.c.bf16 %v1078, %v1078
        %v1111 = vpack.c.bf16 %v1079, %v1079
        %v1112 = vpack.c.bf16 %v1080, %v1080
        %v1113 = vpack.c.bf16 %v1081, %v1081
        %v1114 = vpack.c.bf16 %v1082, %v1082
        %v1115 = vpack.c.bf16 %v1083, %v1083
        %v1116 = vpack.c.bf16 %v1084, %v1084
        %v1117 = vpack.c.bf16 %v1085, %v1085
        %v1118 = vpack.c.bf16 %v1086, %v1086
        %v1119 = vpack.c.bf16 %v1087, %v1087
        %1120 = vst [vmem:[#allocation3 + $0x10] sm:$0xf] %v1088
        %1121 = vst [vmem:[#allocation3 + $0x34] sm:$0xf] %v1089
        %1122 = vst [vmem:[#allocation3 + $0x58] sm:$0xf] %v1090
        %1123 = vst [vmem:[#allocation3 + $0x7c] sm:$0xf] %v1091
        %1124 = vst [vmem:[#allocation3 + $0xa0] sm:$0xf] %v1092
        %1125 = vst [vmem:[#allocation3 + $0xc4] sm:$0xf] %v1093
        %1126 = vst [vmem:[#allocation3 + $0xe8] sm:$0xf] %v1094
        %1127 = vst [vmem:[#allocation3 + $0x10c] sm:$0xf] %v1095
        %1128 = vst [vmem:[#allocation3 + $0x130] sm:$0xf] %v1096
        %1129 = vst [vmem:[#allocation3 + $0x154] sm:$0xf] %v1097
        %1130 = vst [vmem:[#allocation3 + $0x178] sm:$0xf] %v1098
        %1131 = vst [vmem:[#allocation3 + $0x19c] sm:$0xf] %v1099
        %1132 = vst [vmem:[#allocation3 + $0x1c0] sm:$0xf] %v1100
        %1133 = vst [vmem:[#allocation3 + $0x1e4] sm:$0xf] %v1101
        %1134 = vst [vmem:[#allocation3 + $0x208] sm:$0xf] %v1102
        %1135 = vst [vmem:[#allocation3 + $0x22c] sm:$0xf] %v1103
        %1136 = vst [vmem:[#allocation3 + $0x250] sm:$0xf] %v1104
        %1137 = vst [vmem:[#allocation3 + $0x274] sm:$0xf] %v1105
        %1138 = vst [vmem:[#allocation3 + $0x298] sm:$0xf] %v1106
        %1139 = vst [vmem:[#allocation3 + $0x2bc] sm:$0xf] %v1107
        %1140 = vst [vmem:[#allocation3 + $0x2e0] sm:$0xf] %v1108
        %1141 = vst [vmem:[#allocation3 + $0x304] sm:$0xf] %v1109
        %1142 = vst [vmem:[#allocation3 + $0x328] sm:$0xf] %v1110
        %1143 = vst [vmem:[#allocation3 + $0x34c] sm:$0xf] %v1111
        %1144 = vst [vmem:[#allocation3 + $0x370] sm:$0xf] %v1112
        %1145 = vst [vmem:[#allocation3 + $0x394] sm:$0xf] %v1113
        %1146 = vst [vmem:[#allocation3 + $0x3b8] sm:$0xf] %v1114
        %1147 = vst [vmem:[#allocation3 + $0x3dc] sm:$0xf] %v1115
        %1148 = vst [vmem:[#allocation3 + $0x400] sm:$0xf] %v1116
        %1149 = vst [vmem:[#allocation3 + $0x424] sm:$0xf] %v1117
        %1150 = vst [vmem:[#allocation3 + $0x448] sm:$0xf] %v1118
        %1151 = vst [vmem:[#allocation3 + $0x46c] sm:$0xf] %v1119
        %v1152 = vld [vmem:[%s639 + $0x2] sm:$0xff]
        %v1153 = vld [vmem:[%s639 + $0xa] sm:$0xff]
        %v1154 = vld [vmem:[%s639 + $0x1a] sm:$0xff]
        %v1155 = vld [vmem:[%s639 + $0x22] sm:$0xff]
        %v1156 = vld [vmem:[%s639 + $0x32] sm:$0xff]
        %v1157 = vld [vmem:[%s639 + $0x3a] sm:$0xff]
        %v1158 = vld [vmem:[%s639 + $0x4a] sm:$0xff]
        %v1159 = vld [vmem:[%s639 + $0x52] sm:$0xff]
        %v1160 = vld [vmem:[%s639 + $0x62] sm:$0xff]
        %v1161 = vld [vmem:[%s639 + $0x6a] sm:$0xff]
        %v1162 = vld [vmem:[%s639 + $0x7a] sm:$0xff]
        %v1163 = vld [vmem:[%s639 + $0x82] sm:$0xff]
        %v1164 = vld [vmem:[%s639 + $0x92] sm:$0xff]
        %v1165 = vld [vmem:[%s639 + $0x9a] sm:$0xff]
        %v1166 = vld [vmem:[%s639 + $0xaa] sm:$0xff]
        %v1167 = vld [vmem:[%s639 + $0xb2] sm:$0xff]
        %v1168 = vld [vmem:[%s639 + $0xc2] sm:$0xff]
        %v1169 = vld [vmem:[%s639 + $0xca] sm:$0xff]
        %v1170 = vld [vmem:[%s639 + $0xda] sm:$0xff]
        %v1171 = vld [vmem:[%s639 + $0xe2] sm:$0xff]
        %v1172 = vld [vmem:[%s639 + $0xf2] sm:$0xff]
        %v1173 = vld [vmem:[%s639 + $0xfa] sm:$0xff]
        %v1174 = vld [vmem:[%s639 + $0x10a] sm:$0xff]
        %v1175 = vld [vmem:[%s639 + $0x112] sm:$0xff]
        %v1176 = vld [vmem:[%s639 + $0x122] sm:$0xff]
        %v1177 = vld [vmem:[%s639 + $0x12a] sm:$0xff]
        %v1178 = vld [vmem:[%s639 + $0x13a] sm:$0xff]
        %v1179 = vld [vmem:[%s639 + $0x142] sm:$0xff]
        %v1180 = vld [vmem:[%s639 + $0x152] sm:$0xff]
        %v1181 = vld [vmem:[%s639 + $0x15a] sm:$0xff]
        %v1182 = vld [vmem:[%s639 + $0x16a] sm:$0xff]
        %v1183 = vld [vmem:[%s639 + $0x172] sm:$0xff]
        %v1184 = vpack.c.bf16 %v1152, %v1152
        %v1185 = vpack.c.bf16 %v1153, %v1153
        %v1186 = vpack.c.bf16 %v1154, %v1154
        %v1187 = vpack.c.bf16 %v1155, %v1155
        %v1188 = vpack.c.bf16 %v1156, %v1156
        %v1189 = vpack.c.bf16 %v1157, %v1157
        %v1190 = vpack.c.bf16 %v1158, %v1158
        %v1191 = vpack.c.bf16 %v1159, %v1159
        %v1192 = vpack.c.bf16 %v1160, %v1160
        %v1193 = vpack.c.bf16 %v1161, %v1161
        %v1194 = vpack.c.bf16 %v1162, %v1162
        %v1195 = vpack.c.bf16 %v1163, %v1163
        %v1196 = vpack.c.bf16 %v1164, %v1164
        %v1197 = vpack.c.bf16 %v1165, %v1165
        %v1198 = vpack.c.bf16 %v1166, %v1166
        %v1199 = vpack.c.bf16 %v1167, %v1167
        %v1200 = vpack.c.bf16 %v1168, %v1168
        %v1201 = vpack.c.bf16 %v1169, %v1169
        %v1202 = vpack.c.bf16 %v1170, %v1170
        %v1203 = vpack.c.bf16 %v1171, %v1171
        %v1204 = vpack.c.bf16 %v1172, %v1172
        %v1205 = vpack.c.bf16 %v1173, %v1173
        %v1206 = vpack.c.bf16 %v1174, %v1174
        %v1207 = vpack.c.bf16 %v1175, %v1175
        %v1208 = vpack.c.bf16 %v1176, %v1176
        %v1209 = vpack.c.bf16 %v1177, %v1177
        %v1210 = vpack.c.bf16 %v1178, %v1178
        %v1211 = vpack.c.bf16 %v1179, %v1179
        %v1212 = vpack.c.bf16 %v1180, %v1180
        %v1213 = vpack.c.bf16 %v1181, %v1181
        %v1214 = vpack.c.bf16 %v1182, %v1182
        %v1215 = vpack.c.bf16 %v1183, %v1183
        %1216 = vst [vmem:[#allocation3 + $0x14] sm:$0xf] %v1184
        %1217 = vst [vmem:[#allocation3 + $0x38] sm:$0xf] %v1185
        %1218 = vst [vmem:[#allocation3 + $0x5c] sm:$0xf] %v1186
        %1219 = vst [vmem:[#allocation3 + $0x80] sm:$0xf] %v1187
        %1220 = vst [vmem:[#allocation3 + $0xa4] sm:$0xf] %v1188
        %1221 = vst [vmem:[#allocation3 + $0xc8] sm:$0xf] %v1189
        %1222 = vst [vmem:[#allocation3 + $0xec] sm:$0xf] %v1190
        %1223 = vst [vmem:[#allocation3 + $0x110] sm:$0xf] %v1191
        %1224 = vst [vmem:[#allocation3 + $0x134] sm:$0xf] %v1192
        %1225 = vst [vmem:[#allocation3 + $0x158] sm:$0xf] %v1193
        %1226 = vst [vmem:[#allocation3 + $0x17c] sm:$0xf] %v1194
        %1227 = vst [vmem:[#allocation3 + $0x1a0] sm:$0xf] %v1195
        %1228 = vst [vmem:[#allocation3 + $0x1c4] sm:$0xf] %v1196
        %1229 = vst [vmem:[#allocation3 + $0x1e8] sm:$0xf] %v1197
        %1230 = vst [vmem:[#allocation3 + $0x20c] sm:$0xf] %v1198
        %1231 = vst [vmem:[#allocation3 + $0x230] sm:$0xf] %v1199
        %1232 = vst [vmem:[#allocation3 + $0x254] sm:$0xf] %v1200
        %1233 = vst [vmem:[#allocation3 + $0x278] sm:$0xf] %v1201
        %1234 = vst [vmem:[#allocation3 + $0x29c] sm:$0xf] %v1202
        %1235 = vst [vmem:[#allocation3 + $0x2c0] sm:$0xf] %v1203
        %1236 = vst [vmem:[#allocation3 + $0x2e4] sm:$0xf] %v1204
        %1237 = vst [vmem:[#allocation3 + $0x308] sm:$0xf] %v1205
        %1238 = vst [vmem:[#allocation3 + $0x32c] sm:$0xf] %v1206
        %1239 = vst [vmem:[#allocation3 + $0x350] sm:$0xf] %v1207
        %1240 = vst [vmem:[#allocation3 + $0x374] sm:$0xf] %v1208
        %1241 = vst [vmem:[#allocation3 + $0x398] sm:$0xf] %v1209
        %1242 = vst [vmem:[#allocation3 + $0x3bc] sm:$0xf] %v1210
        %1243 = vst [vmem:[#allocation3 + $0x3e0] sm:$0xf] %v1211
        %1244 = vst [vmem:[#allocation3 + $0x404] sm:$0xf] %v1212
        %1245 = vst [vmem:[#allocation3 + $0x428] sm:$0xf] %v1213
        %1246 = vst [vmem:[#allocation3 + $0x44c] sm:$0xf] %v1214
        %1247 = vst [vmem:[#allocation3 + $0x470] sm:$0xf] %v1215
        %s1248 = scalar_lea.vmem [#allocation2], 48
        %v1249 = vld [vmem:[%s1248] sm:$0xff]
        %v1250 = vld [vmem:[%s1248 + $0x8] sm:$0xff]
        %v1251 = vld [vmem:[%s1248 + $0x18] sm:$0xff]
        %v1252 = vld [vmem:[%s1248 + $0x20] sm:$0xff]
        %v1253 = vld [vmem:[%s1248 + $0x30] sm:$0xff]
        %v1254 = vld [vmem:[%s1248 + $0x38] sm:$0xff]
        %v1255 = vld [vmem:[%s1248 + $0x48] sm:$0xff]
        %v1256 = vld [vmem:[%s1248 + $0x50] sm:$0xff]
        %v1257 = vld [vmem:[%s1248 + $0x60] sm:$0xff]
        %v1258 = vld [vmem:[%s1248 + $0x68] sm:$0xff]
        %v1259 = vld [vmem:[%s1248 + $0x78] sm:$0xff]
        %v1260 = vld [vmem:[%s1248 + $0x80] sm:$0xff]
        %v1261 = vld [vmem:[%s1248 + $0x90] sm:$0xff]
        %v1262 = vld [vmem:[%s1248 + $0x98] sm:$0xff]
        %v1263 = vld [vmem:[%s1248 + $0xa8] sm:$0xff]
        %v1264 = vld [vmem:[%s1248 + $0xb0] sm:$0xff]
        %v1265 = vld [vmem:[%s1248 + $0xc0] sm:$0xff]
        %v1266 = vld [vmem:[%s1248 + $0xc8] sm:$0xff]
        %v1267 = vld [vmem:[%s1248 + $0xd8] sm:$0xff]
        %v1268 = vld [vmem:[%s1248 + $0xe0] sm:$0xff]
        %v1269 = vld [vmem:[%s1248 + $0xf0] sm:$0xff]
        %v1270 = vld [vmem:[%s1248 + $0xf8] sm:$0xff]
        %v1271 = vld [vmem:[%s1248 + $0x108] sm:$0xff]
        %v1272 = vld [vmem:[%s1248 + $0x110] sm:$0xff]
        %v1273 = vld [vmem:[%s1248 + $0x120] sm:$0xff]
        %v1274 = vld [vmem:[%s1248 + $0x128] sm:$0xff]
        %v1275 = vld [vmem:[%s1248 + $0x138] sm:$0xff]
        %v1276 = vld [vmem:[%s1248 + $0x140] sm:$0xff]
        %v1277 = vld [vmem:[%s1248 + $0x150] sm:$0xff]
        %v1278 = vld [vmem:[%s1248 + $0x158] sm:$0xff]
        %v1279 = vld [vmem:[%s1248 + $0x168] sm:$0xff]
        %v1280 = vld [vmem:[%s1248 + $0x170] sm:$0xff]
        %v1281 = vpack.c.bf16 %v1249, %v1249
        %v1282 = vpack.c.bf16 %v1250, %v1250
        %v1283 = vpack.c.bf16 %v1251, %v1251
        %v1284 = vpack.c.bf16 %v1252, %v1252
        %v1285 = vpack.c.bf16 %v1253, %v1253
        %v1286 = vpack.c.bf16 %v1254, %v1254
        %v1287 = vpack.c.bf16 %v1255, %v1255
        %v1288 = vpack.c.bf16 %v1256, %v1256
        %v1289 = vpack.c.bf16 %v1257, %v1257
        %v1290 = vpack.c.bf16 %v1258, %v1258
        %v1291 = vpack.c.bf16 %v1259, %v1259
        %v1292 = vpack.c.bf16 %v1260, %v1260
        %v1293 = vpack.c.bf16 %v1261, %v1261
        %v1294 = vpack.c.bf16 %v1262, %v1262
        %v1295 = vpack.c.bf16 %v1263, %v1263
        %v1296 = vpack.c.bf16 %v1264, %v1264
        %v1297 = vpack.c.bf16 %v1265, %v1265
        %v1298 = vpack.c.bf16 %v1266, %v1266
        %v1299 = vpack.c.bf16 %v1267, %v1267
        %v1300 = vpack.c.bf16 %v1268, %v1268
        %v1301 = vpack.c.bf16 %v1269, %v1269
        %v1302 = vpack.c.bf16 %v1270, %v1270
        %v1303 = vpack.c.bf16 %v1271, %v1271
        %v1304 = vpack.c.bf16 %v1272, %v1272
        %v1305 = vpack.c.bf16 %v1273, %v1273
        %v1306 = vpack.c.bf16 %v1274, %v1274
        %v1307 = vpack.c.bf16 %v1275, %v1275
        %v1308 = vpack.c.bf16 %v1276, %v1276
        %v1309 = vpack.c.bf16 %v1277, %v1277
        %v1310 = vpack.c.bf16 %v1278, %v1278
        %v1311 = vpack.c.bf16 %v1279, %v1279
        %v1312 = vpack.c.bf16 %v1280, %v1280
        %1313 = vst [vmem:[#allocation3 + $0x18] sm:$0xf] %v1281
        %1314 = vst [vmem:[#allocation3 + $0x3c] sm:$0xf] %v1282
        %1315 = vst [vmem:[#allocation3 + $0x60] sm:$0xf] %v1283
        %1316 = vst [vmem:[#allocation3 + $0x84] sm:$0xf] %v1284
        %1317 = vst [vmem:[#allocation3 + $0xa8] sm:$0xf] %v1285
        %1318 = vst [vmem:[#allocation3 + $0xcc] sm:$0xf] %v1286
        %1319 = vst [vmem:[#allocation3 + $0xf0] sm:$0xf] %v1287
        %1320 = vst [vmem:[#allocation3 + $0x114] sm:$0xf] %v1288
        %1321 = vst [vmem:[#allocation3 + $0x138] sm:$0xf] %v1289
        %1322 = vst [vmem:[#allocation3 + $0x15c] sm:$0xf] %v1290
        %1323 = vst [vmem:[#allocation3 + $0x180] sm:$0xf] %v1291
        %1324 = vst [vmem:[#allocation3 + $0x1a4] sm:$0xf] %v1292
        %1325 = vst [vmem:[#allocation3 + $0x1c8] sm:$0xf] %v1293
        %1326 = vst [vmem:[#allocation3 + $0x1ec] sm:$0xf] %v1294
        %1327 = vst [vmem:[#allocation3 + $0x210] sm:$0xf] %v1295
        %1328 = vst [vmem:[#allocation3 + $0x234] sm:$0xf] %v1296
        %1329 = vst [vmem:[#allocation3 + $0x258] sm:$0xf] %v1297
        %1330 = vst [vmem:[#allocation3 + $0x27c] sm:$0xf] %v1298
        %1331 = vst [vmem:[#allocation3 + $0x2a0] sm:$0xf] %v1299
        %1332 = vst [vmem:[#allocation3 + $0x2c4] sm:$0xf] %v1300
        %1333 = vst [vmem:[#allocation3 + $0x2e8] sm:$0xf] %v1301
        %1334 = vst [vmem:[#allocation3 + $0x30c] sm:$0xf] %v1302
        %1335 = vst [vmem:[#allocation3 + $0x330] sm:$0xf] %v1303
        %1336 = vst [vmem:[#allocation3 + $0x354] sm:$0xf] %v1304
        %1337 = vst [vmem:[#allocation3 + $0x378] sm:$0xf] %v1305
        %1338 = vst [vmem:[#allocation3 + $0x39c] sm:$0xf] %v1306
        %1339 = vst [vmem:[#allocation3 + $0x3c0] sm:$0xf] %v1307
        %1340 = vst [vmem:[#allocation3 + $0x3e4] sm:$0xf] %v1308
        %1341 = vst [vmem:[#allocation3 + $0x408] sm:$0xf] %v1309
        %1342 = vst [vmem:[#allocation3 + $0x42c] sm:$0xf] %v1310
        %1343 = vst [vmem:[#allocation3 + $0x450] sm:$0xf] %v1311
        %1344 = vst [vmem:[#allocation3 + $0x474] sm:$0xf] %v1312
        %v1345 = vld [vmem:[%s1248 + $0x1] sm:$0xff]
        %v1346 = vld [vmem:[%s1248 + $0x9] sm:$0xff]
        %v1347 = vld [vmem:[%s1248 + $0x19] sm:$0xff]
        %v1348 = vld [vmem:[%s1248 + $0x21] sm:$0xff]
        %v1349 = vld [vmem:[%s1248 + $0x31] sm:$0xff]
        %v1350 = vld [vmem:[%s1248 + $0x39] sm:$0xff]
        %v1351 = vld [vmem:[%s1248 + $0x49] sm:$0xff]
        %v1352 = vld [vmem:[%s1248 + $0x51] sm:$0xff]
        %v1353 = vld [vmem:[%s1248 + $0x61] sm:$0xff]
        %v1354 = vld [vmem:[%s1248 + $0x69] sm:$0xff]
        %v1355 = vld [vmem:[%s1248 + $0x79] sm:$0xff]
        %v1356 = vld [vmem:[%s1248 + $0x81] sm:$0xff]
        %v1357 = vld [vmem:[%s1248 + $0x91] sm:$0xff]
        %v1358 = vld [vmem:[%s1248 + $0x99] sm:$0xff]
        %v1359 = vld [vmem:[%s1248 + $0xa9] sm:$0xff]
        %v1360 = vld [vmem:[%s1248 + $0xb1] sm:$0xff]
        %v1361 = vld [vmem:[%s1248 + $0xc1] sm:$0xff]
        %v1362 = vld [vmem:[%s1248 + $0xc9] sm:$0xff]
        %v1363 = vld [vmem:[%s1248 + $0xd9] sm:$0xff]
        %v1364 = vld [vmem:[%s1248 + $0xe1] sm:$0xff]
        %v1365 = vld [vmem:[%s1248 + $0xf1] sm:$0xff]
        %v1366 = vld [vmem:[%s1248 + $0xf9] sm:$0xff]
        %v1367 = vld [vmem:[%s1248 + $0x109] sm:$0xff]
        %v1368 = vld [vmem:[%s1248 + $0x111] sm:$0xff]
        %v1369 = vld [vmem:[%s1248 + $0x121] sm:$0xff]
        %v1370 = vld [vmem:[%s1248 + $0x129] sm:$0xff]
        %v1371 = vld [vmem:[%s1248 + $0x139] sm:$0xff]
        %v1372 = vld [vmem:[%s1248 + $0x141] sm:$0xff]
        %v1373 = vld [vmem:[%s1248 + $0x151] sm:$0xff]
        %v1374 = vld [vmem:[%s1248 + $0x159] sm:$0xff]
        %v1375 = vld [vmem:[%s1248 + $0x169] sm:$0xff]
        %v1376 = vld [vmem:[%s1248 + $0x171] sm:$0xff]
        %v1377 = vpack.c.bf16 %v1345, %v1345
        %v1378 = vpack.c.bf16 %v1346, %v1346
        %v1379 = vpack.c.bf16 %v1347, %v1347
        %v1380 = vpack.c.bf16 %v1348, %v1348
        %v1381 = vpack.c.bf16 %v1349, %v1349
        %v1382 = vpack.c.bf16 %v1350, %v1350
        %v1383 = vpack.c.bf16 %v1351, %v1351
        %v1384 = vpack.c.bf16 %v1352, %v1352
        %v1385 = vpack.c.bf16 %v1353, %v1353
        %v1386 = vpack.c.bf16 %v1354, %v1354
        %v1387 = vpack.c.bf16 %v1355, %v1355
        %v1388 = vpack.c.bf16 %v1356, %v1356
        %v1389 = vpack.c.bf16 %v1357, %v1357
        %v1390 = vpack.c.bf16 %v1358, %v1358
        %v1391 = vpack.c.bf16 %v1359, %v1359
        %v1392 = vpack.c.bf16 %v1360, %v1360
        %v1393 = vpack.c.bf16 %v1361, %v1361
        %v1394 = vpack.c.bf16 %v1362, %v1362
        %v1395 = vpack.c.bf16 %v1363, %v1363
        %v1396 = vpack.c.bf16 %v1364, %v1364
        %v1397 = vpack.c.bf16 %v1365, %v1365
        %v1398 = vpack.c.bf16 %v1366, %v1366
        %v1399 = vpack.c.bf16 %v1367, %v1367
        %v1400 = vpack.c.bf16 %v1368, %v1368
        %v1401 = vpack.c.bf16 %v1369, %v1369
        %v1402 = vpack.c.bf16 %v1370, %v1370
        %v1403 = vpack.c.bf16 %v1371, %v1371
        %v1404 = vpack.c.bf16 %v1372, %v1372
        %v1405 = vpack.c.bf16 %v1373, %v1373
        %v1406 = vpack.c.bf16 %v1374, %v1374
        %v1407 = vpack.c.bf16 %v1375, %v1375
        %v1408 = vpack.c.bf16 %v1376, %v1376
        %1409 = vst [vmem:[#allocation3 + $0x1c] sm:$0xf] %v1377
        %1410 = vst [vmem:[#allocation3 + $0x40] sm:$0xf] %v1378
        %1411 = vst [vmem:[#allocation3 + $0x64] sm:$0xf] %v1379
        %1412 = vst [vmem:[#allocation3 + $0x88] sm:$0xf] %v1380
        %1413 = vst [vmem:[#allocation3 + $0xac] sm:$0xf] %v1381
        %1414 = vst [vmem:[#allocation3 + $0xd0] sm:$0xf] %v1382
        %1415 = vst [vmem:[#allocation3 + $0xf4] sm:$0xf] %v1383
        %1416 = vst [vmem:[#allocation3 + $0x118] sm:$0xf] %v1384
        %1417 = vst [vmem:[#allocation3 + $0x13c] sm:$0xf] %v1385
        %1418 = vst [vmem:[#allocation3 + $0x160] sm:$0xf] %v1386
        %1419 = vst [vmem:[#allocation3 + $0x184] sm:$0xf] %v1387
        %1420 = vst [vmem:[#allocation3 + $0x1a8] sm:$0xf] %v1388
        %1421 = vst [vmem:[#allocation3 + $0x1cc] sm:$0xf] %v1389
        %1422 = vst [vmem:[#allocation3 + $0x1f0] sm:$0xf] %v1390
        %1423 = vst [vmem:[#allocation3 + $0x214] sm:$0xf] %v1391
        %1424 = vst [vmem:[#allocation3 + $0x238] sm:$0xf] %v1392
        %1425 = vst [vmem:[#allocation3 + $0x25c] sm:$0xf] %v1393
        %1426 = vst [vmem:[#allocation3 + $0x280] sm:$0xf] %v1394
        %1427 = vst [vmem:[#allocation3 + $0x2a4] sm:$0xf] %v1395
        %1428 = vst [vmem:[#allocation3 + $0x2c8] sm:$0xf] %v1396
        %1429 = vst [vmem:[#allocation3 + $0x2ec] sm:$0xf] %v1397
        %1430 = vst [vmem:[#allocation3 + $0x310] sm:$0xf] %v1398
        %1431 = vst [vmem:[#allocation3 + $0x334] sm:$0xf] %v1399
        %1432 = vst [vmem:[#allocation3 + $0x358] sm:$0xf] %v1400
        %1433 = vst [vmem:[#allocation3 + $0x37c] sm:$0xf] %v1401
        %1434 = vst [vmem:[#allocation3 + $0x3a0] sm:$0xf] %v1402
        %1435 = vst [vmem:[#allocation3 + $0x3c4] sm:$0xf] %v1403
        %1436 = vst [vmem:[#allocation3 + $0x3e8] sm:$0xf] %v1404
        %1437 = vst [vmem:[#allocation3 + $0x40c] sm:$0xf] %v1405
        %1438 = vst [vmem:[#allocation3 + $0x430] sm:$0xf] %v1406
        %1439 = vst [vmem:[#allocation3 + $0x454] sm:$0xf] %v1407
        %1440 = vst [vmem:[#allocation3 + $0x478] sm:$0xf] %v1408
        %v1441 = vld [vmem:[%s1248 + $0x2] sm:$0xff]
        %v1442 = vld [vmem:[%s1248 + $0xa] sm:$0xff]
        %v1443 = vld [vmem:[%s1248 + $0x1a] sm:$0xff]
        %v1444 = vld [vmem:[%s1248 + $0x22] sm:$0xff]
        %v1445 = vld [vmem:[%s1248 + $0x32] sm:$0xff]
        %v1446 = vld [vmem:[%s1248 + $0x3a] sm:$0xff]
        %v1447 = vld [vmem:[%s1248 + $0x4a] sm:$0xff]
        %v1448 = vld [vmem:[%s1248 + $0x52] sm:$0xff]
        %v1449 = vld [vmem:[%s1248 + $0x62] sm:$0xff]
        %v1450 = vld [vmem:[%s1248 + $0x6a] sm:$0xff]
        %v1451 = vld [vmem:[%s1248 + $0x7a] sm:$0xff]
        %v1452 = vld [vmem:[%s1248 + $0x82] sm:$0xff]
        %v1453 = vld [vmem:[%s1248 + $0x92] sm:$0xff]
        %v1454 = vld [vmem:[%s1248 + $0x9a] sm:$0xff]
        %v1455 = vld [vmem:[%s1248 + $0xaa] sm:$0xff]
        %v1456 = vld [vmem:[%s1248 + $0xb2] sm:$0xff]
        %v1457 = vld [vmem:[%s1248 + $0xc2] sm:$0xff]
        %v1458 = vld [vmem:[%s1248 + $0xca] sm:$0xff]
        %v1459 = vld [vmem:[%s1248 + $0xda] sm:$0xff]
        %v1460 = vld [vmem:[%s1248 + $0xe2] sm:$0xff]
        %v1461 = vld [vmem:[%s1248 + $0xf2] sm:$0xff]
        %v1462 = vld [vmem:[%s1248 + $0xfa] sm:$0xff]
        %v1463 = vld [vmem:[%s1248 + $0x10a] sm:$0xff]
        %v1464 = vld [vmem:[%s1248 + $0x112] sm:$0xff]
        %v1465 = vld [vmem:[%s1248 + $0x122] sm:$0xff]
        %v1466 = vld [vmem:[%s1248 + $0x12a] sm:$0xff]
        %v1467 = vld [vmem:[%s1248 + $0x13a] sm:$0xff]
        %v1468 = vld [vmem:[%s1248 + $0x142] sm:$0xff]
        %v1469 = vld [vmem:[%s1248 + $0x152] sm:$0xff]
        %v1470 = vld [vmem:[%s1248 + $0x15a] sm:$0xff]
        %v1471 = vld [vmem:[%s1248 + $0x16a] sm:$0xff]
        %v1472 = vld [vmem:[%s1248 + $0x172] sm:$0xff]
        %v1473 = vpack.c.bf16 %v1441, %v1441
        %v1474 = vpack.c.bf16 %v1442, %v1442
        %v1475 = vpack.c.bf16 %v1443, %v1443
        %v1476 = vpack.c.bf16 %v1444, %v1444
        %v1477 = vpack.c.bf16 %v1445, %v1445
        %v1478 = vpack.c.bf16 %v1446, %v1446
        %v1479 = vpack.c.bf16 %v1447, %v1447
        %v1480 = vpack.c.bf16 %v1448, %v1448
        %v1481 = vpack.c.bf16 %v1449, %v1449
        %v1482 = vpack.c.bf16 %v1450, %v1450
        %v1483 = vpack.c.bf16 %v1451, %v1451
        %v1484 = vpack.c.bf16 %v1452, %v1452
        %v1485 = vpack.c.bf16 %v1453, %v1453
        %v1486 = vpack.c.bf16 %v1454, %v1454
        %v1487 = vpack.c.bf16 %v1455, %v1455
        %v1488 = vpack.c.bf16 %v1456, %v1456
        %v1489 = vpack.c.bf16 %v1457, %v1457
        %v1490 = vpack.c.bf16 %v1458, %v1458
        %v1491 = vpack.c.bf16 %v1459, %v1459
        %v1492 = vpack.c.bf16 %v1460, %v1460
        %v1493 = vpack.c.bf16 %v1461, %v1461
        %v1494 = vpack.c.bf16 %v1462, %v1462
        %v1495 = vpack.c.bf16 %v1463, %v1463
        %v1496 = vpack.c.bf16 %v1464, %v1464
        %v1497 = vpack.c.bf16 %v1465, %v1465
        %v1498 = vpack.c.bf16 %v1466, %v1466
        %v1499 = vpack.c.bf16 %v1467, %v1467
        %v1500 = vpack.c.bf16 %v1468, %v1468
        %v1501 = vpack.c.bf16 %v1469, %v1469
        %v1502 = vpack.c.bf16 %v1470, %v1470
        %v1503 = vpack.c.bf16 %v1471, %v1471
        %v1504 = vpack.c.bf16 %v1472, %v1472
        %1505 = vst [vmem:[#allocation3 + $0x20] sm:$0xf] %v1473
        %1506 = vst [vmem:[#allocation3 + $0x44] sm:$0xf] %v1474
        %1507 = vst [vmem:[#allocation3 + $0x68] sm:$0xf] %v1475
        %1508 = vst [vmem:[#allocation3 + $0x8c] sm:$0xf] %v1476
        %1509 = vst [vmem:[#allocation3 + $0xb0] sm:$0xf] %v1477
        %1510 = vst [vmem:[#allocation3 + $0xd4] sm:$0xf] %v1478
        %1511 = vst [vmem:[#allocation3 + $0xf8] sm:$0xf] %v1479
        %1512 = vst [vmem:[#allocation3 + $0x11c] sm:$0xf] %v1480
        %1513 = vst [vmem:[#allocation3 + $0x140] sm:$0xf] %v1481
        %1514 = vst [vmem:[#allocation3 + $0x164] sm:$0xf] %v1482
        %1515 = vst [vmem:[#allocation3 + $0x188] sm:$0xf] %v1483
        %1516 = vst [vmem:[#allocation3 + $0x1ac] sm:$0xf] %v1484
        %1517 = vst [vmem:[#allocation3 + $0x1d0] sm:$0xf] %v1485
        %1518 = vst [vmem:[#allocation3 + $0x1f4] sm:$0xf] %v1486
        %1519 = vst [vmem:[#allocation3 + $0x218] sm:$0xf] %v1487
        %1520 = vst [vmem:[#allocation3 + $0x23c] sm:$0xf] %v1488
        %1521 = vst [vmem:[#allocation3 + $0x260] sm:$0xf] %v1489
        %1522 = vst [vmem:[#allocation3 + $0x284] sm:$0xf] %v1490
        %1523 = vst [vmem:[#allocation3 + $0x2a8] sm:$0xf] %v1491
        %1524 = vst [vmem:[#allocation3 + $0x2cc] sm:$0xf] %v1492
        %1525 = vst [vmem:[#allocation3 + $0x2f0] sm:$0xf] %v1493
        %1526 = vst [vmem:[#allocation3 + $0x314] sm:$0xf] %v1494
        %1527 = vst [vmem:[#allocation3 + $0x338] sm:$0xf] %v1495
        %1528 = vst [vmem:[#allocation3 + $0x35c] sm:$0xf] %v1496
        %1529 = vst [vmem:[#allocation3 + $0x380] sm:$0xf] %v1497
        %1530 = vst [vmem:[#allocation3 + $0x3a4] sm:$0xf] %v1498
        %1531 = vst [vmem:[#allocation3 + $0x3c8] sm:$0xf] %v1499
        %1532 = vst [vmem:[#allocation3 + $0x3ec] sm:$0xf] %v1500
        %1533 = vst [vmem:[#allocation3 + $0x410] sm:$0xf] %v1501
        %1534 = vst [vmem:[#allocation3 + $0x434] sm:$0xf] %v1502
        %1535 = vst [vmem:[#allocation3 + $0x458] sm:$0xf] %v1503
        %1536 = vst [vmem:[#allocation3 + $0x47c] sm:$0xf] %v1504
        %v1537 = vld [vmem:[#allocation3] sm:$0xff]
        %v1538 = vld [vmem:[#allocation3 + $0x8] sm:$0xff]
        %v1539 = vld [vmem:[#allocation3 + $0x10] sm:$0xff]
        %v1540 = vld [vmem:[#allocation3 + $0x18] sm:$0xff]
        %v1541 = vld [vmem:[#allocation3 + $0x20] sm:$0xf]
        %v1542 = vld [vmem:[#allocation3 + $0x24] sm:$0xff]
        %v1543 = vld [vmem:[#allocation3 + $0x2c] sm:$0xff]
        %v1544 = vld [vmem:[#allocation3 + $0x34] sm:$0xff]
        %v1545 = vld [vmem:[#allocation3 + $0x3c] sm:$0xff]
        %v1546 = vld [vmem:[#allocation3 + $0x44] sm:$0xf]
        %v1547 = vld [vmem:[#allocation3 + $0x48] sm:$0xff]
        %v1548 = vld [vmem:[#allocation3 + $0x50] sm:$0xff]
        %v1549 = vld [vmem:[#allocation3 + $0x58] sm:$0xff]
        %v1550 = vld [vmem:[#allocation3 + $0x60] sm:$0xff]
        %v1551 = vld [vmem:[#allocation3 + $0x68] sm:$0xf]
        %v1552 = vld [vmem:[#allocation3 + $0x6c] sm:$0xff]
        %v1553 = vld [vmem:[#allocation3 + $0x74] sm:$0xff]
        %v1554 = vld [vmem:[#allocation3 + $0x7c] sm:$0xff]
        %v1555 = vld [vmem:[#allocation3 + $0x84] sm:$0xff]
        %v1556 = vld [vmem:[#allocation3 + $0x8c] sm:$0xf]
        %v1557 = vld [vmem:[#allocation3 + $0x90] sm:$0xff]
        %v1558 = vld [vmem:[#allocation3 + $0x98] sm:$0xff]
        %v1559 = vld [vmem:[#allocation3 + $0xa0] sm:$0xff]
        %v1560 = vld [vmem:[#allocation3 + $0xa8] sm:$0xff]
        %v1561 = vld [vmem:[#allocation3 + $0xb0] sm:$0xf]
        %v1562 = vld [vmem:[#allocation3 + $0xb4] sm:$0xff]
        %v1563 = vld [vmem:[#allocation3 + $0xbc] sm:$0xff]
        %v1564 = vld [vmem:[#allocation3 + $0xc4] sm:$0xff]
        %v1565 = vld [vmem:[#allocation3 + $0xcc] sm:$0xff]
        %v1566 = vld [vmem:[#allocation3 + $0xd4] sm:$0xf]
        %v1567 = vld [vmem:[#allocation3 + $0xd8] sm:$0xff]
        %v1568 = vld [vmem:[#allocation3 + $0xe0] sm:$0xff]
        %v1569 = vld [vmem:[#allocation3 + $0xe8] sm:$0xff]
        %v1570 = vld [vmem:[#allocation3 + $0xf0] sm:$0xff]
        %v1571 = vld [vmem:[#allocation3 + $0xf8] sm:$0xf]
        %v1572 = vld [vmem:[#allocation3 + $0xfc] sm:$0xff]
        %v1573 = vld [vmem:[#allocation3 + $0x104] sm:$0xff]
        %v1574 = vld [vmem:[#allocation3 + $0x10c] sm:$0xff]
        %v1575 = vld [vmem:[#allocation3 + $0x114] sm:$0xff]
        %v1576 = vld [vmem:[#allocation3 + $0x11c] sm:$0xf]
        %v1577 = vld [vmem:[#allocation3 + $0x120] sm:$0xff]
        %v1578 = vld [vmem:[#allocation3 + $0x128] sm:$0xff]
        %v1579 = vld [vmem:[#allocation3 + $0x130] sm:$0xff]
        %v1580 = vld [vmem:[#allocation3 + $0x138] sm:$0xff]
        %v1581 = vld [vmem:[#allocation3 + $0x140] sm:$0xf]
        %v1582 = vld [vmem:[#allocation3 + $0x144] sm:$0xff]
        %v1583 = vld [vmem:[#allocation3 + $0x14c] sm:$0xff]
        %v1584 = vld [vmem:[#allocation3 + $0x154] sm:$0xff]
        %v1585 = vld [vmem:[#allocation3 + $0x15c] sm:$0xff]
        %v1586 = vld [vmem:[#allocation3 + $0x164] sm:$0xf]
        %v1587 = vld [vmem:[#allocation3 + $0x168] sm:$0xff]
        %v1588 = vld [vmem:[#allocation3 + $0x170] sm:$0xff]
        %v1589 = vld [vmem:[#allocation3 + $0x178] sm:$0xff]
        %v1590 = vld [vmem:[#allocation3 + $0x180] sm:$0xff]
        %v1591 = vld [vmem:[#allocation3 + $0x188] sm:$0xf]
        %v1592 = vld [vmem:[#allocation3 + $0x18c] sm:$0xff]
        %v1593 = vld [vmem:[#allocation3 + $0x194] sm:$0xff]
        %v1594 = vld [vmem:[#allocation3 + $0x19c] sm:$0xff]
        %v1595 = vld [vmem:[#allocation3 + $0x1a4] sm:$0xff]
        %v1596 = vld [vmem:[#allocation3 + $0x1ac] sm:$0xf]
        %v1597 = vld [vmem:[#allocation3 + $0x1b0] sm:$0xff]
        %v1598 = vld [vmem:[#allocation3 + $0x1b8] sm:$0xff]
        %v1599 = vld [vmem:[#allocation3 + $0x1c0] sm:$0xff]
        %v1600 = vld [vmem:[#allocation3 + $0x1c8] sm:$0xff]
        %v1601 = vld [vmem:[#allocation3 + $0x1d0] sm:$0xf]
        %v1602 = vld [vmem:[#allocation3 + $0x1d4] sm:$0xff]
        %v1603 = vld [vmem:[#allocation3 + $0x1dc] sm:$0xff]
        %v1604 = vld [vmem:[#allocation3 + $0x1e4] sm:$0xff]
        %v1605 = vld [vmem:[#allocation3 + $0x1ec] sm:$0xff]
        %v1606 = vld [vmem:[#allocation3 + $0x1f4] sm:$0xf]
        %v1607 = vld [vmem:[#allocation3 + $0x1f8] sm:$0xff]
        %v1608 = vld [vmem:[#allocation3 + $0x200] sm:$0xff]
        %v1609 = vld [vmem:[#allocation3 + $0x208] sm:$0xff]
        %v1610 = vld [vmem:[#allocation3 + $0x210] sm:$0xff]
        %v1611 = vld [vmem:[#allocation3 + $0x218] sm:$0xf]
        %v1612 = vld [vmem:[#allocation3 + $0x21c] sm:$0xff]
        %v1613 = vld [vmem:[#allocation3 + $0x224] sm:$0xff]
        %v1614 = vld [vmem:[#allocation3 + $0x22c] sm:$0xff]
        %v1615 = vld [vmem:[#allocation3 + $0x234] sm:$0xff]
        %v1616 = vld [vmem:[#allocation3 + $0x23c] sm:$0xf]
        %v1617 = vld [vmem:[#allocation3 + $0x240] sm:$0xff]
        %v1618 = vld [vmem:[#allocation3 + $0x248] sm:$0xff]
        %v1619 = vld [vmem:[#allocation3 + $0x250] sm:$0xff]
        %v1620 = vld [vmem:[#allocation3 + $0x258] sm:$0xff]
        %v1621 = vld [vmem:[#allocation3 + $0x260] sm:$0xf]
        %v1622 = vld [vmem:[#allocation3 + $0x264] sm:$0xff]
        %v1623 = vld [vmem:[#allocation3 + $0x26c] sm:$0xff]
        %v1624 = vld [vmem:[#allocation3 + $0x274] sm:$0xff]
        %v1625 = vld [vmem:[#allocation3 + $0x27c] sm:$0xff]
        %v1626 = vld [vmem:[#allocation3 + $0x284] sm:$0xf]
        %v1627 = vld [vmem:[#allocation3 + $0x288] sm:$0xff]
        %v1628 = vld [vmem:[#allocation3 + $0x290] sm:$0xff]
        %v1629 = vld [vmem:[#allocation3 + $0x298] sm:$0xff]
        %v1630 = vld [vmem:[#allocation3 + $0x2a0] sm:$0xff]
        %v1631 = vld [vmem:[#allocation3 + $0x2a8] sm:$0xf]
        %v1632 = vld [vmem:[#allocation3 + $0x2ac] sm:$0xff]
        %v1633 = vld [vmem:[#allocation3 + $0x2b4] sm:$0xff]
        %v1634 = vld [vmem:[#allocation3 + $0x2bc] sm:$0xff]
        %v1635 = vld [vmem:[#allocation3 + $0x2c4] sm:$0xff]
        %v1636 = vld [vmem:[#allocation3 + $0x2cc] sm:$0xf]
        %v1637 = vld [vmem:[#allocation3 + $0x2d0] sm:$0xff]
        %v1638 = vld [vmem:[#allocation3 + $0x2d8] sm:$0xff]
        %v1639 = vld [vmem:[#allocation3 + $0x2e0] sm:$0xff]
        %v1640 = vld [vmem:[#allocation3 + $0x2e8] sm:$0xff]
        %v1641 = vld [vmem:[#allocation3 + $0x2f0] sm:$0xf]
        %v1642 = vld [vmem:[#allocation3 + $0x2f4] sm:$0xff]
        %v1643 = vld [vmem:[#allocation3 + $0x2fc] sm:$0xff]
        %v1644 = vld [vmem:[#allocation3 + $0x304] sm:$0xff]
        %v1645 = vld [vmem:[#allocation3 + $0x30c] sm:$0xff]
        %v1646 = vld [vmem:[#allocation3 + $0x314] sm:$0xf]
        %v1647 = vld [vmem:[#allocation3 + $0x318] sm:$0xff]
        %v1648 = vld [vmem:[#allocation3 + $0x320] sm:$0xff]
        %v1649 = vld [vmem:[#allocation3 + $0x328] sm:$0xff]
        %v1650 = vld [vmem:[#allocation3 + $0x330] sm:$0xff]
        %v1651 = vld [vmem:[#allocation3 + $0x338] sm:$0xf]
        %v1652 = vld [vmem:[#allocation3 + $0x33c] sm:$0xff]
        %v1653 = vld [vmem:[#allocation3 + $0x344] sm:$0xff]
        %v1654 = vld [vmem:[#allocation3 + $0x34c] sm:$0xff]
        %v1655 = vld [vmem:[#allocation3 + $0x354] sm:$0xff]
        %v1656 = vld [vmem:[#allocation3 + $0x35c] sm:$0xf]
        %v1657 = vld [vmem:[#allocation3 + $0x360] sm:$0xff]
        %v1658 = vld [vmem:[#allocation3 + $0x368] sm:$0xff]
        %v1659 = vld [vmem:[#allocation3 + $0x370] sm:$0xff]
        %v1660 = vld [vmem:[#allocation3 + $0x378] sm:$0xff]
        %v1661 = vld [vmem:[#allocation3 + $0x380] sm:$0xf]
        %v1662 = vld [vmem:[#allocation3 + $0x384] sm:$0xff]
        %v1663 = vld [vmem:[#allocation3 + $0x38c] sm:$0xff]
        %v1664 = vld [vmem:[#allocation3 + $0x394] sm:$0xff]
        %v1665 = vld [vmem:[#allocation3 + $0x39c] sm:$0xff]
        %v1666 = vld [vmem:[#allocation3 + $0x3a4] sm:$0xf]
        %v1667 = vld [vmem:[#allocation3 + $0x3a8] sm:$0xff]
        %v1668 = vld [vmem:[#allocation3 + $0x3b0] sm:$0xff]
        %v1669 = vld [vmem:[#allocation3 + $0x3b8] sm:$0xff]
        %v1670 = vld [vmem:[#allocation3 + $0x3c0] sm:$0xff]
        %v1671 = vld [vmem:[#allocation3 + $0x3c8] sm:$0xf]
        %v1672 = vld [vmem:[#allocation3 + $0x3cc] sm:$0xff]
        %v1673 = vld [vmem:[#allocation3 + $0x3d4] sm:$0xff]
        %v1674 = vld [vmem:[#allocation3 + $0x3dc] sm:$0xff]
        %v1675 = vld [vmem:[#allocation3 + $0x3e4] sm:$0xff]
        %v1676 = vld [vmem:[#allocation3 + $0x3ec] sm:$0xf]
        %v1677 = vld [vmem:[#allocation3 + $0x3f0] sm:$0xff]
        %v1678 = vld [vmem:[#allocation3 + $0x3f8] sm:$0xff]
        %v1679 = vld [vmem:[#allocation3 + $0x400] sm:$0xff]
        %v1680 = vld [vmem:[#allocation3 + $0x408] sm:$0xff]
        %v1681 = vld [vmem:[#allocation3 + $0x410] sm:$0xf]
        %v1682 = vld [vmem:[#allocation3 + $0x414] sm:$0xff]
        %v1683 = vld [vmem:[#allocation3 + $0x41c] sm:$0xff]
        %v1684 = vld [vmem:[#allocation3 + $0x424] sm:$0xff]
        %v1685 = vld [vmem:[#allocation3 + $0x42c] sm:$0xff]
        %v1686 = vld [vmem:[#allocation3 + $0x434] sm:$0xf]
        %v1687 = vld [vmem:[#allocation3 + $0x438] sm:$0xff]
        %v1688 = vld [vmem:[#allocation3 + $0x440] sm:$0xff]
        %v1689 = vld [vmem:[#allocation3 + $0x448] sm:$0xff]
        %v1690 = vld [vmem:[#allocation3 + $0x450] sm:$0xff]
        %v1691 = vld [vmem:[#allocation3 + $0x458] sm:$0xf]
        %v1692 = vld [vmem:[#allocation3 + $0x45c] sm:$0xff]
        %v1693 = vld [vmem:[#allocation3 + $0x464] sm:$0xff]
        %v1694 = vld [vmem:[#allocation3 + $0x46c] sm:$0xff]
        %v1695 = vld [vmem:[#allocation3 + $0x474] sm:$0xff]
        %v1696 = vld [vmem:[#allocation3 + $0x47c] sm:$0xf]
        %v1697 = vld [vmem:[#allocation9] sm:$0xf]
        %v1698 = vld [vmem:[#allocation9 + $0x4] sm:$0xf]
        %v1699 = vld [vmem:[#allocation9 + $0x8] sm:$0xf]
        %v1700 = vld [vmem:[#allocation9 + $0xc] sm:$0xf]
        %v1701 = vld [vmem:[#allocation9 + $0x10] sm:$0xf]
        %v1702 = vld [vmem:[#allocation9 + $0x14] sm:$0xf]
        %v1703 = vld [vmem:[#allocation9 + $0x18] sm:$0xf]
        %v1704 = vld [vmem:[#allocation9 + $0x1c] sm:$0xf]
        %v1705 = vld [vmem:[#allocation9 + $0x20] sm:$0xf]
        %v1706 = vld [vmem:[#allocation9 + $0x24] sm:$0xf]
        %v1707 = vld [vmem:[#allocation9 + $0x28] sm:$0xf]
        %v1708 = vld [vmem:[#allocation9 + $0x2c] sm:$0xf]
        %v1709 = vld [vmem:[#allocation9 + $0x30] sm:$0xf]
        %v1710 = vld [vmem:[#allocation9 + $0x34] sm:$0xf]
        %v1711 = vld [vmem:[#allocation9 + $0x38] sm:$0xf]
        %v1712 = vld [vmem:[#allocation9 + $0x3c] sm:$0xf]
        %v1713 = vld [vmem:[#allocation9 + $0x40] sm:$0xf]
        %v1714 = vld [vmem:[#allocation9 + $0x44] sm:$0xf]
        %v1715 = vld [vmem:[#allocation9 + $0x48] sm:$0xf]
        %v1716 = vld [vmem:[#allocation9 + $0x4c] sm:$0xf]
        %v1717 = vld [vmem:[#allocation9 + $0x50] sm:$0xf]
        %v1718 = vld [vmem:[#allocation9 + $0x54] sm:$0xf]
        %v1719 = vld [vmem:[#allocation9 + $0x58] sm:$0xf]
        %v1720 = vld [vmem:[#allocation9 + $0x5c] sm:$0xf]
        %v1721 = vld [vmem:[#allocation9 + $0x60] sm:$0xf]
        %v1722 = vld [vmem:[#allocation9 + $0x64] sm:$0xf]
        %v1723 = vld [vmem:[#allocation9 + $0x68] sm:$0xf]
        %v1724 = vld [vmem:[#allocation9 + $0x6c] sm:$0xf]
        %v1725 = vld [vmem:[#allocation9 + $0x70] sm:$0xf]
        %v1726 = vld [vmem:[#allocation9 + $0x74] sm:$0xf]
        %v1727 = vld [vmem:[#allocation9 + $0x78] sm:$0xf]
        %v1728 = vld [vmem:[#allocation9 + $0x7c] sm:$0xf]
        %v1729 = vld [vmem:[#allocation9 + $0x80] sm:$0xf]
        %v1730 = vld [vmem:[#allocation9 + $0x84] sm:$0xf]
        %v1731 = vld [vmem:[#allocation9 + $0x88] sm:$0xf]
        %v1732 = vld [vmem:[#allocation9 + $0x8c] sm:$0xf]
        %v1733 = vld [vmem:[#allocation9 + $0x90] sm:$0xf]
        %v1734 = vld [vmem:[#allocation9 + $0x94] sm:$0xf]
        %v1735 = vld [vmem:[#allocation9 + $0x98] sm:$0xf]
        %v1736 = vld [vmem:[#allocation9 + $0x9c] sm:$0xf]
        %v1737 = vld [vmem:[#allocation9 + $0xa0] sm:$0xf]
        %v1738 = vld [vmem:[#allocation9 + $0xa4] sm:$0xf]
        %v1739 = vld [vmem:[#allocation9 + $0xa8] sm:$0xf]
        %v1740 = vld [vmem:[#allocation9 + $0xac] sm:$0xf]
        %v1741 = vld [vmem:[#allocation9 + $0xb0] sm:$0xf]
        %v1742 = vld [vmem:[#allocation9 + $0xb4] sm:$0xf]
        %v1743 = vld [vmem:[#allocation9 + $0xb8] sm:$0xf]
        %v1744 = vld [vmem:[#allocation9 + $0xbc] sm:$0xf]
        %v1745 = vld [vmem:[#allocation9 + $0xc0] sm:$0xf]
        %v1746 = vld [vmem:[#allocation9 + $0xc4] sm:$0xf]
        %v1747 = vld [vmem:[#allocation9 + $0xc8] sm:$0xf]
        %v1748 = vld [vmem:[#allocation9 + $0xcc] sm:$0xf]
        %v1749 = vld [vmem:[#allocation9 + $0xd0] sm:$0xf]
        %v1750 = vld [vmem:[#allocation9 + $0xd4] sm:$0xf]
        %v1751 = vld [vmem:[#allocation9 + $0xd8] sm:$0xf]
        %v1752 = vld [vmem:[#allocation9 + $0xdc] sm:$0xf]
        %v1753 = vld [vmem:[#allocation9 + $0xe0] sm:$0xf]
        %v1754 = vld [vmem:[#allocation9 + $0xe4] sm:$0xf]
        %v1755 = vld [vmem:[#allocation9 + $0xe8] sm:$0xf]
        %v1756 = vld [vmem:[#allocation9 + $0xec] sm:$0xf]
        %v1757 = vld [vmem:[#allocation9 + $0xf0] sm:$0xf]
        %v1758 = vld [vmem:[#allocation9 + $0xf4] sm:$0xf]
        %v1759 = vld [vmem:[#allocation9 + $0xf8] sm:$0xf]
        %v1760 = vld [vmem:[#allocation9 + $0xfc] sm:$0xf]
        %v1761 = vld [vmem:[#allocation9 + $0x100] sm:$0xf]
        %v1762 = vld [vmem:[#allocation9 + $0x104] sm:$0xf]
        %v1763 = vld [vmem:[#allocation9 + $0x108] sm:$0xf]
        %v1764 = vld [vmem:[#allocation9 + $0x10c] sm:$0xf]
        %v1765 = vld [vmem:[#allocation9 + $0x110] sm:$0xf]
        %v1766 = vld [vmem:[#allocation9 + $0x114] sm:$0xf]
        %v1767 = vld [vmem:[#allocation9 + $0x118] sm:$0xf]
        %v1768 = vld [vmem:[#allocation9 + $0x11c] sm:$0xf]
        %v1769 = vld [vmem:[#allocation9 + $0x120] sm:$0xf]
        %v1770 = vld [vmem:[#allocation9 + $0x124] sm:$0xf]
        %v1771 = vld [vmem:[#allocation9 + $0x128] sm:$0xf]
        %v1772 = vld [vmem:[#allocation9 + $0x12c] sm:$0xf]
        %v1773 = vld [vmem:[#allocation9 + $0x130] sm:$0xf]
        %v1774 = vld [vmem:[#allocation9 + $0x134] sm:$0xf]
        %v1775 = vld [vmem:[#allocation9 + $0x138] sm:$0xf]
        %v1776 = vld [vmem:[#allocation9 + $0x13c] sm:$0xf]
        %v1777 = vld [vmem:[#allocation9 + $0x140] sm:$0xf]
        %v1778 = vld [vmem:[#allocation9 + $0x144] sm:$0xf]
        %v1779 = vld [vmem:[#allocation9 + $0x148] sm:$0xf]
        %v1780 = vld [vmem:[#allocation9 + $0x14c] sm:$0xf]
        %v1781 = vld [vmem:[#allocation9 + $0x150] sm:$0xf]
        %v1782 = vld [vmem:[#allocation9 + $0x154] sm:$0xf]
        %v1783 = vld [vmem:[#allocation9 + $0x158] sm:$0xf]
        %v1784 = vld [vmem:[#allocation9 + $0x15c] sm:$0xf]
        %v1785 = vld [vmem:[#allocation9 + $0x160] sm:$0xf]
        %v1786 = vld [vmem:[#allocation9 + $0x164] sm:$0xf]
        %v1787 = vld [vmem:[#allocation9 + $0x168] sm:$0xf]
        %v1788 = vld [vmem:[#allocation9 + $0x16c] sm:$0xf]
        %v1789 = vld [vmem:[#allocation9 + $0x170] sm:$0xf]
        %v1790 = vld [vmem:[#allocation9 + $0x174] sm:$0xf]
        %v1791 = vld [vmem:[#allocation9 + $0x178] sm:$0xf]
        %v1792 = vld [vmem:[#allocation9 + $0x17c] sm:$0xf]
        %v1793 = vld [vmem:[#allocation9 + $0x180] sm:$0xf]
        %v1794 = vld [vmem:[#allocation9 + $0x184] sm:$0xf]
        %v1795 = vld [vmem:[#allocation9 + $0x188] sm:$0xf]
        %v1796 = vld [vmem:[#allocation9 + $0x18c] sm:$0xf]
        %v1797 = vld [vmem:[#allocation9 + $0x190] sm:$0xf]
        %v1798 = vld [vmem:[#allocation9 + $0x194] sm:$0xf]
        %v1799 = vld [vmem:[#allocation9 + $0x198] sm:$0xf]
        %v1800 = vld [vmem:[#allocation9 + $0x19c] sm:$0xf]
        %v1801 = vld [vmem:[#allocation9 + $0x1a0] sm:$0xf]
        %v1802 = vld [vmem:[#allocation9 + $0x1a4] sm:$0xf]
        %v1803 = vld [vmem:[#allocation9 + $0x1a8] sm:$0xf]
        %v1804 = vld [vmem:[#allocation9 + $0x1ac] sm:$0xf]
        %v1805 = vld [vmem:[#allocation9 + $0x1b0] sm:$0xf]
        %v1806 = vld [vmem:[#allocation9 + $0x1b4] sm:$0xf]
        %v1807 = vld [vmem:[#allocation9 + $0x1b8] sm:$0xf]
        %v1808 = vld [vmem:[#allocation9 + $0x1bc] sm:$0xf]
        %v1809 = vld [vmem:[#allocation9 + $0x1c0] sm:$0xf]
        %v1810 = vld [vmem:[#allocation9 + $0x1c4] sm:$0xf]
        %v1811 = vld [vmem:[#allocation9 + $0x1c8] sm:$0xf]
        %v1812 = vld [vmem:[#allocation9 + $0x1cc] sm:$0xf]
        %v1813 = vld [vmem:[#allocation9 + $0x1d0] sm:$0xf]
        %v1814 = vld [vmem:[#allocation9 + $0x1d4] sm:$0xf]
        %v1815 = vld [vmem:[#allocation9 + $0x1d8] sm:$0xf]
        %v1816 = vld [vmem:[#allocation9 + $0x1dc] sm:$0xf]
        %v1817 = vld [vmem:[#allocation9 + $0x1e0] sm:$0xf]
        %v1818 = vld [vmem:[#allocation9 + $0x1e4] sm:$0xf]
        %v1819 = vld [vmem:[#allocation9 + $0x1e8] sm:$0xf]
        %v1820 = vld [vmem:[#allocation9 + $0x1ec] sm:$0xf]
        %v1821 = vld [vmem:[#allocation9 + $0x1f0] sm:$0xf]
        %v1822 = vld [vmem:[#allocation9 + $0x1f4] sm:$0xf]
        %v1823 = vld [vmem:[#allocation9 + $0x1f8] sm:$0xf]
        %v1824 = vld [vmem:[#allocation9 + $0x1fc] sm:$0xf]
        %v1825 = vld [vmem:[#allocation9 + $0x200] sm:$0xf]
        %v1826 = vld [vmem:[#allocation9 + $0x204] sm:$0xf]
        %v1827 = vld [vmem:[#allocation9 + $0x208] sm:$0xf]
        %v1828 = vld [vmem:[#allocation9 + $0x20c] sm:$0xf]
        %v1829 = vld [vmem:[#allocation9 + $0x210] sm:$0xf]
        %v1830 = vld [vmem:[#allocation9 + $0x214] sm:$0xf]
        %v1831 = vld [vmem:[#allocation9 + $0x218] sm:$0xf]
        %v1832 = vld [vmem:[#allocation9 + $0x21c] sm:$0xf]
        %v1833 = vld [vmem:[#allocation9 + $0x220] sm:$0xf]
        %v1834 = vld [vmem:[#allocation9 + $0x224] sm:$0xf]
        %v1835 = vld [vmem:[#allocation9 + $0x228] sm:$0xf]
        %v1836 = vld [vmem:[#allocation9 + $0x22c] sm:$0xf]
        %v1837 = vld [vmem:[#allocation9 + $0x230] sm:$0xf]
        %v1838 = vld [vmem:[#allocation9 + $0x234] sm:$0xf]
        %v1839 = vld [vmem:[#allocation9 + $0x238] sm:$0xf]
        %v1840 = vld [vmem:[#allocation9 + $0x23c] sm:$0xf]
        %v2001 = vunpack.c.l.b16 %v1537
        %v2002 = vunpack.c.h.b16 %v1537
        %v2003 = vunpack.c.l.b16 %v1538
        %v2004 = vunpack.c.h.b16 %v1538
        %v2005 = vunpack.c.l.b16 %v1539
        %v2006 = vunpack.c.h.b16 %v1539
        %v2007 = vunpack.c.l.b16 %v1540
        %v2008 = vunpack.c.h.b16 %v1540
        %v2009 = vunpack.c.l.b16 %v1541
        %v2010 = vunpack.c.l.b16 %v1542
        %v2011 = vunpack.c.h.b16 %v1542
        %v2012 = vunpack.c.l.b16 %v1543
        %v2013 = vunpack.c.h.b16 %v1543
        %v2014 = vunpack.c.l.b16 %v1544
        %v2015 = vunpack.c.h.b16 %v1544
        %v2016 = vunpack.c.l.b16 %v1545
        %v2017 = vunpack.c.h.b16 %v1545
        %v2018 = vunpack.c.l.b16 %v1546
        %v2019 = vunpack.c.l.b16 %v1547
        %v2020 = vunpack.c.h.b16 %v1547
        %v2021 = vunpack.c.l.b16 %v1548
        %v2022 = vunpack.c.h.b16 %v1548
        %v2023 = vunpack.c.l.b16 %v1549
        %v2024 = vunpack.c.h.b16 %v1549
        %v2025 = vunpack.c.l.b16 %v1550
        %v2026 = vunpack.c.h.b16 %v1550
        %v2027 = vunpack.c.l.b16 %v1551
        %v2028 = vunpack.c.l.b16 %v1552
        %v2029 = vunpack.c.h.b16 %v1552
        %v2030 = vunpack.c.l.b16 %v1553
        %v2031 = vunpack.c.h.b16 %v1553
        %v2032 = vunpack.c.l.b16 %v1554
        %v2033 = vunpack.c.h.b16 %v1554
        %v2034 = vunpack.c.l.b16 %v1555
        %v2035 = vunpack.c.h.b16 %v1555
        %v2036 = vunpack.c.l.b16 %v1556
        %v2037 = vunpack.c.l.b16 %v1557
        %v2038 = vunpack.c.h.b16 %v1557
        %v2039 = vunpack.c.l.b16 %v1558
        %v2040 = vunpack.c.h.b16 %v1558
        %v2041 = vunpack.c.l.b16 %v1559
        %v2042 = vunpack.c.h.b16 %v1559
        %v2043 = vunpack.c.l.b16 %v1560
        %v2044 = vunpack.c.h.b16 %v1560
        %v2045 = vunpack.c.l.b16 %v1561
        %v2046 = vunpack.c.l.b16 %v1562
        %v2047 = vunpack.c.h.b16 %v1562
        %v2048 = vunpack.c.l.b16 %v1563
        %v2049 = vunpack.c.h.b16 %v1563
        %v2050 = vunpack.c.l.b16 %v1564
        %v2051 = vunpack.c.h.b16 %v1564
        %v2052 = vunpack.c.l.b16 %v1565
        %v2053 = vunpack.c.h.b16 %v1565
        %v2054 = vunpack.c.l.b16 %v1566
        %v2055 = vunpack.c.l.b16 %v1567
        %v2056 = vunpack.c.h.b16 %v1567
        %v2057 = vunpack.c.l.b16 %v1568
        %v2058 = vunpack.c.h.b16 %v1568
        %v2059 = vunpack.c.l.b16 %v1569
        %v2060 = vunpack.c.h.b16 %v1569
        %v2061 = vunpack.c.l.b16 %v1570
        %v2062 = vunpack.c.h.b16 %v1570
        %v2063 = vunpack.c.l.b16 %v1571
        %v2064 = vunpack.c.l.b16 %v1572
        %v2065 = vunpack.c.h.b16 %v1572
        %v2066 = vunpack.c.l.b16 %v1573
        %v2067 = vunpack.c.h.b16 %v1573
        %v2068 = vunpack.c.l.b16 %v1574
        %v2069 = vunpack.c.h.b16 %v1574
        %v2070 = vunpack.c.l.b16 %v1575
        %v2071 = vunpack.c.h.b16 %v1575
        %v2072 = vunpack.c.l.b16 %v1576
        %v2073 = vunpack.c.l.b16 %v1577
        %v2074 = vunpack.c.h.b16 %v1577
        %v2075 = vunpack.c.l.b16 %v1578
        %v2076 = vunpack.c.h.b16 %v1578
        %v2077 = vunpack.c.l.b16 %v1579
        %v2078 = vunpack.c.h.b16 %v1579
        %v2079 = vunpack.c.l.b16 %v1580
        %v2080 = vunpack.c.h.b16 %v1580
        %v2081 = vunpack.c.l.b16 %v1581
        %v2082 = vunpack.c.l.b16 %v1582
        %v2083 = vunpack.c.h.b16 %v1582
        %v2084 = vunpack.c.l.b16 %v1583
        %v2085 = vunpack.c.h.b16 %v1583
        %v2086 = vunpack.c.l.b16 %v1584
        %v2087 = vunpack.c.h.b16 %v1584
        %v2088 = vunpack.c.l.b16 %v1585
        %v2089 = vunpack.c.h.b16 %v1585
        %v2090 = vunpack.c.l.b16 %v1586
        %v2091 = vunpack.c.l.b16 %v1587
        %v2092 = vunpack.c.h.b16 %v1587
        %v2093 = vunpack.c.l.b16 %v1588
        %v2094 = vunpack.c.h.b16 %v1588
        %v2095 = vunpack.c.l.b16 %v1589
        %v2096 = vunpack.c.h.b16 %v1589
        %v2097 = vunpack.c.l.b16 %v1590
        %v2098 = vunpack.c.h.b16 %v1590
        %v2099 = vunpack.c.l.b16 %v1591
        %v2100 = vunpack.c.l.b16 %v1592
        %v2101 = vunpack.c.h.b16 %v1592
        %v2102 = vunpack.c.l.b16 %v1593
        %v2103 = vunpack.c.h.b16 %v1593
        %v2104 = vunpack.c.l.b16 %v1594
        %v2105 = vunpack.c.h.b16 %v1594
        %v2106 = vunpack.c.l.b16 %v1595
        %v2107 = vunpack.c.h.b16 %v1595
        %v2108 = vunpack.c.l.b16 %v1596
        %v2109 = vunpack.c.l.b16 %v1597
        %v2110 = vunpack.c.h.b16 %v1597
        %v2111 = vunpack.c.l.b16 %v1598
        %v2112 = vunpack.c.h.b16 %v1598
        %v2113 = vunpack.c.l.b16 %v1599
        %v2114 = vunpack.c.h.b16 %v1599
        %v2115 = vunpack.c.l.b16 %v1600
        %v2116 = vunpack.c.h.b16 %v1600
        %v2117 = vunpack.c.l.b16 %v1601
        %v2118 = vunpack.c.l.b16 %v1602
        %v2119 = vunpack.c.h.b16 %v1602
        %v2120 = vunpack.c.l.b16 %v1603
        %v2121 = vunpack.c.h.b16 %v1603
        %v2122 = vunpack.c.l.b16 %v1604
        %v2123 = vunpack.c.h.b16 %v1604
        %v2124 = vunpack.c.l.b16 %v1605
        %v2125 = vunpack.c.h.b16 %v1605
        %v2126 = vunpack.c.l.b16 %v1606
        %v2127 = vunpack.c.l.b16 %v1607
        %v2128 = vunpack.c.h.b16 %v1607
        %v2129 = vunpack.c.l.b16 %v1608
        %v2130 = vunpack.c.h.b16 %v1608
        %v2131 = vunpack.c.l.b16 %v1609
        %v2132 = vunpack.c.h.b16 %v1609
        %v2133 = vunpack.c.l.b16 %v1610
        %v2134 = vunpack.c.h.b16 %v1610
        %v2135 = vunpack.c.l.b16 %v1611
        %v2136 = vunpack.c.l.b16 %v1612
        %v2137 = vunpack.c.h.b16 %v1612
        %v2138 = vunpack.c.l.b16 %v1613
        %v2139 = vunpack.c.h.b16 %v1613
        %v2140 = vunpack.c.l.b16 %v1614
        %v2141 = vunpack.c.h.b16 %v1614
        %v2142 = vunpack.c.l.b16 %v1615
        %v2143 = vunpack.c.h.b16 %v1615
        %v2144 = vunpack.c.l.b16 %v1616
        %v2145 = vunpack.c.l.b16 %v1617
        %v2146 = vunpack.c.h.b16 %v1617
        %v2147 = vunpack.c.l.b16 %v1618
        %v2148 = vunpack.c.h.b16 %v1618
        %v2149 = vunpack.c.l.b16 %v1619
        %v2150 = vunpack.c.h.b16 %v1619
        %v2151 = vunpack.c.l.b16 %v1620
        %v2152 = vunpack.c.h.b16 %v1620
        %v2153 = vunpack.c.l.b16 %v1621
        %v2154 = vunpack.c.l.b16 %v1622
        %v2155 = vunpack.c.h.b16 %v1622
        %v2156 = vunpack.c.l.b16 %v1623
        %v2157 = vunpack.c.h.b16 %v1623
        %v2158 = vunpack.c.l.b16 %v1624
        %v2159 = vunpack.c.h.b16 %v1624
        %v2160 = vunpack.c.l.b16 %v1625
        %v2161 = vunpack.c.h.b16 %v1625
        %v2162 = vunpack.c.l.b16 %v1626
        %v2163 = vunpack.c.l.b16 %v1627
        %v2164 = vunpack.c.h.b16 %v1627
        %v2165 = vunpack.c.l.b16 %v1628
        %v2166 = vunpack.c.h.b16 %v1628
        %v2167 = vunpack.c.l.b16 %v1629
        %v2168 = vunpack.c.h.b16 %v1629
        %v2169 = vunpack.c.l.b16 %v1630
        %v2170 = vunpack.c.h.b16 %v1630
        %v2171 = vunpack.c.l.b16 %v1631
        %v2172 = vunpack.c.l.b16 %v1632
        %v2173 = vunpack.c.h.b16 %v1632
        %v2174 = vunpack.c.l.b16 %v1633
        %v2175 = vunpack.c.h.b16 %v1633
        %v2176 = vunpack.c.l.b16 %v1634
        %v2177 = vunpack.c.h.b16 %v1634
        %v2178 = vunpack.c.l.b16 %v1635
        %v2179 = vunpack.c.h.b16 %v1635
        %v2180 = vunpack.c.l.b16 %v1636
        %v2181 = vunpack.c.l.b16 %v1637
        %v2182 = vunpack.c.h.b16 %v1637
        %v2183 = vunpack.c.l.b16 %v1638
        %v2184 = vunpack.c.h.b16 %v1638
        %v2185 = vunpack.c.l.b16 %v1639
        %v2186 = vunpack.c.h.b16 %v1639
        %v2187 = vunpack.c.l.b16 %v1640
        %v2188 = vunpack.c.h.b16 %v1640
        %v2189 = vunpack.c.l.b16 %v1641
        %v2190 = vunpack.c.l.b16 %v1642
        %v2191 = vunpack.c.h.b16 %v1642
        %v2192 = vunpack.c.l.b16 %v1643
        %v2193 = vunpack.c.h.b16 %v1643
        %v2194 = vunpack.c.l.b16 %v1644
        %v2195 = vunpack.c.h.b16 %v1644
        %v2196 = vunpack.c.l.b16 %v1645
        %v2197 = vunpack.c.h.b16 %v1645
        %v2198 = vunpack.c.l.b16 %v1646
        %v2199 = vunpack.c.l.b16 %v1647
        %v2200 = vunpack.c.h.b16 %v1647
        %v2201 = vunpack.c.l.b16 %v1648
        %v2202 = vunpack.c.h.b16 %v1648
        %v2203 = vunpack.c.l.b16 %v1649
        %v2204 = vunpack.c.h.b16 %v1649
        %v2205 = vunpack.c.l.b16 %v1650
        %v2206 = vunpack.c.h.b16 %v1650
        %v2207 = vunpack.c.l.b16 %v1651
        %v2208 = vunpack.c.l.b16 %v1652
        %v2209 = vunpack.c.h.b16 %v1652
        %v2210 = vunpack.c.l.b16 %v1653
        %v2211 = vunpack.c.h.b16 %v1653
        %v2212 = vunpack.c.l.b16 %v1654
        %v2213 = vunpack.c.h.b16 %v1654
        %v2214 = vunpack.c.l.b16 %v1655
        %v2215 = vunpack.c.h.b16 %v1655
        %v2216 = vunpack.c.l.b16 %v1656
        %v2217 = vunpack.c.l.b16 %v1657
        %v2218 = vunpack.c.h.b16 %v1657
        %v2219 = vunpack.c.l.b16 %v1658
        %v2220 = vunpack.c.h.b16 %v1658
        %v2221 = vunpack.c.l.b16 %v1659
        %v2222 = vunpack.c.h.b16 %v1659
        %v2223 = vunpack.c.l.b16 %v1660
        %v2224 = vunpack.c.h.b16 %v1660
        %v2225 = vunpack.c.l.b16 %v1661
        %v2226 = vunpack.c.l.b16 %v1662
        %v2227 = vunpack.c.h.b16 %v1662
        %v2228 = vunpack.c.l.b16 %v1663
        %v2229 = vunpack.c.h.b16 %v1663
        %v2230 = vunpack.c.l.b16 %v1664
        %v2231 = vunpack.c.h.b16 %v1664
        %v2232 = vunpack.c.l.b16 %v1665
        %v2233 = vunpack.c.h.b16 %v1665
        %v2234 = vunpack.c.l.b16 %v1666
        %v2235 = vunpack.c.l.b16 %v1667
        %v2236 = vunpack.c.h.b16 %v1667
        %v2237 = vunpack.c.l.b16 %v1668
        %v2238 = vunpack.c.h.b16 %v1668
        %v2239 = vunpack.c.l.b16 %v1669
        %v2240 = vunpack.c.h.b16 %v1669
        %v2241 = vunpack.c.l.b16 %v1670
        %v2242 = vunpack.c.h.b16 %v1670
        %v2243 = vunpack.c.l.b16 %v1671
        %v2244 = vunpack.c.l.b16 %v1672
        %v2245 = vunpack.c.h.b16 %v1672
        %v2246 = vunpack.c.l.b16 %v1673
        %v2247 = vunpack.c.h.b16 %v1673
        %v2248 = vunpack.c.l.b16 %v1674
        %v2249 = vunpack.c.h.b16 %v1674
        %v2250 = vunpack.c.l.b16 %v1675
        %v2251 = vunpack.c.h.b16 %v1675
        %v2252 = vunpack.c.l.b16 %v1676
        %v2253 = vunpack.c.l.b16 %v1677
        %v2254 = vunpack.c.h.b16 %v1677
        %v2255 = vunpack.c.l.b16 %v1678
        %v2256 = vunpack.c.h.b16 %v1678
        %v2257 = vunpack.c.l.b16 %v1679
        %v2258 = vunpack.c.h.b16 %v1679
        %v2259 = vunpack.c.l.b16 %v1680
        %v2260 = vunpack.c.h.b16 %v1680
        %v2261 = vunpack.c.l.b16 %v1681
        %v2262 = vunpack.c.l.b16 %v1682
        %v2263 = vunpack.c.h.b16 %v1682
        %v2264 = vunpack.c.l.b16 %v1683
        %v2265 = vunpack.c.h.b16 %v1683
        %v2266 = vunpack.c.l.b16 %v1684
        %v2267 = vunpack.c.h.b16 %v1684
        %v2268 = vunpack.c.l.b16 %v1685
        %v2269 = vunpack.c.h.b16 %v1685
        %v2270 = vunpack.c.l.b16 %v1686
        %v2271 = vunpack.c.l.b16 %v1687
        %v2272 = vunpack.c.h.b16 %v1687
        %v2273 = vunpack.c.l.b16 %v1688
        %v2274 = vunpack.c.h.b16 %v1688
        %v2275 = vunpack.c.l.b16 %v1689
        %v2276 = vunpack.c.h.b16 %v1689
        %v2277 = vunpack.c.l.b16 %v1690
        %v2278 = vunpack.c.h.b16 %v1690
        %v2279 = vunpack.c.l.b16 %v1691
        %v2280 = vunpack.c.l.b16 %v1692
        %v2281 = vunpack.c.h.b16 %v1692
        %v2282 = vunpack.c.l.b16 %v1693
        %v2283 = vunpack.c.h.b16 %v1693
        %v2284 = vunpack.c.l.b16 %v1694
        %v2285 = vunpack.c.h.b16 %v1694
        %v2286 = vunpack.c.l.b16 %v1695
        %v2287 = vunpack.c.h.b16 %v1695
        %v2288 = vunpack.c.l.b16 %v1696
        %v2289 = vpack.c.b16 %v2010, %v2001
        %v2290 = vpack.c.b16 %v2011, %v2002
        %v2291 = vpack.c.b16 %v2012, %v2003
        %v2292 = vpack.c.b16 %v2013, %v2004
        %v2293 = vpack.c.b16 %v2014, %v2005
        %v2294 = vpack.c.b16 %v2015, %v2006
        %v2295 = vpack.c.b16 %v2016, %v2007
        %v2296 = vpack.c.b16 %v2017, %v2008
        %v2297 = vpack.c.b16 %v2018, %v2009
        %v2298 = vpack.c.b16 %v2028, %v2019
        %v2299 = vpack.c.b16 %v2029, %v2020
        %v2300 = vpack.c.b16 %v2030, %v2021
        %v2301 = vpack.c.b16 %v2031, %v2022
        %v2302 = vpack.c.b16 %v2032, %v2023
        %v2303 = vpack.c.b16 %v2033, %v2024
        %v2304 = vpack.c.b16 %v2034, %v2025
        %v2305 = vpack.c.b16 %v2035, %v2026
        %v2306 = vpack.c.b16 %v2036, %v2027
        %v2307 = vpack.c.b16 %v2046, %v2037
        %v2308 = vpack.c.b16 %v2047, %v2038
        %v2309 = vpack.c.b16 %v2048, %v2039
        %v2310 = vpack.c.b16 %v2049, %v2040
        %v2311 = vpack.c.b16 %v2050, %v2041
        %v2312 = vpack.c.b16 %v2051, %v2042
        %v2313 = vpack.c.b16 %v2052, %v2043
        %v2314 = vpack.c.b16 %v2053, %v2044
        %v2315 = vpack.c.b16 %v2054, %v2045
        %v2316 = vpack.c.b16 %v2064, %v2055
        %v2317 = vpack.c.b16 %v2065, %v2056
        %v2318 = vpack.c.b16 %v2066, %v2057
        %v2319 = vpack.c.b16 %v2067, %v2058
        %v2320 = vpack.c.b16 %v2068, %v2059
        %v2321 = vpack.c.b16 %v2069, %v2060
        %v2322 = vpack.c.b16 %v2070, %v2061
        %v2323 = vpack.c.b16 %v2071, %v2062
        %v2324 = vpack.c.b16 %v2072, %v2063
        %v2325 = vpack.c.b16 %v2082, %v2073
        %v2326 = vpack.c.b16 %v2083, %v2074
        %v2327 = vpack.c.b16 %v2084, %v2075
        %v2328 = vpack.c.b16 %v2085, %v2076
        %v2329 = vpack.c.b16 %v2086, %v2077
        %v2330 = vpack.c.b16 %v2087, %v2078
        %v2331 = vpack.c.b16 %v2088, %v2079
        %v2332 = vpack.c.b16 %v2089, %v2080
        %v2333 = vpack.c.b16 %v2090, %v2081
        %v2334 = vpack.c.b16 %v2100, %v2091
        %v2335 = vpack.c.b16 %v2101, %v2092
        %v2336 = vpack.c.b16 %v2102, %v2093
        %v2337 = vpack.c.b16 %v2103, %v2094
        %v2338 = vpack.c.b16 %v2104, %v2095
        %v2339 = vpack.c.b16 %v2105, %v2096
        %v2340 = vpack.c.b16 %v2106, %v2097
        %v2341 = vpack.c.b16 %v2107, %v2098
        %v2342 = vpack.c.b16 %v2108, %v2099
        %v2343 = vpack.c.b16 %v2118, %v2109
        %v2344 = vpack.c.b16 %v2119, %v2110
        %v2345 = vpack.c.b16 %v2120, %v2111
        %v2346 = vpack.c.b16 %v2121, %v2112
        %v2347 = vpack.c.b16 %v2122, %v2113
        %v2348 = vpack.c.b16 %v2123, %v2114
        %v2349 = vpack.c.b16 %v2124, %v2115
        %v2350 = vpack.c.b16 %v2125, %v2116
        %v2351 = vpack.c.b16 %v2126, %v2117
        %v2352 = vpack.c.b16 %v2136, %v2127
        %v2353 = vpack.c.b16 %v2137, %v2128
        %v2354 = vpack.c.b16 %v2138, %v2129
        %v2355 = vpack.c.b16 %v2139, %v2130
        %v2356 = vpack.c.b16 %v2140, %v2131
        %v2357 = vpack.c.b16 %v2141, %v2132
        %v2358 = vpack.c.b16 %v2142, %v2133
        %v2359 = vpack.c.b16 %v2143, %v2134
        %v2360 = vpack.c.b16 %v2144, %v2135
        %v2361 = vpack.c.b16 %v2154, %v2145
        %v2362 = vpack.c.b16 %v2155, %v2146
        %v2363 = vpack.c.b16 %v2156, %v2147
        %v2364 = vpack.c.b16 %v2157, %v2148
        %v2365 = vpack.c.b16 %v2158, %v2149
        %v2366 = vpack.c.b16 %v2159, %v2150
        %v2367 = vpack.c.b16 %v2160, %v2151
        %v2368 = vpack.c.b16 %v2161, %v2152
        %v2369 = vpack.c.b16 %v2162, %v2153
        %v2370 = vpack.c.b16 %v2172, %v2163
        %v2371 = vpack.c.b16 %v2173, %v2164
        %v2372 = vpack.c.b16 %v2174, %v2165
        %v2373 = vpack.c.b16 %v2175, %v2166
        %v2374 = vpack.c.b16 %v2176, %v2167
        %v2375 = vpack.c.b16 %v2177, %v2168
        %v2376 = vpack.c.b16 %v2178, %v2169
        %v2377 = vpack.c.b16 %v2179, %v2170
        %v2378 = vpack.c.b16 %v2180, %v2171
        %v2379 = vpack.c.b16 %v2190, %v2181
        %v2380 = vpack.c.b16 %v2191, %v2182
        %v2381 = vpack.c.b16 %v2192, %v2183
        %v2382 = vpack.c.b16 %v2193, %v2184
        %v2383 = vpack.c.b16 %v2194, %v2185
        %v2384 = vpack.c.b16 %v2195, %v2186
        %v2385 = vpack.c.b16 %v2196, %v2187
        %v2386 = vpack.c.b16 %v2197, %v2188
        %v2387 = vpack.c.b16 %v2198, %v2189
        %v2388 = vpack.c.b16 %v2208, %v2199
        %v2389 = vpack.c.b16 %v2209, %v2200
        %v2390 = vpack.c.b16 %v2210, %v2201
        %v2391 = vpack.c.b16 %v2211, %v2202
        %v2392 = vpack.c.b16 %v2212, %v2203
        %v2393 = vpack.c.b16 %v2213, %v2204
        %v2394 = vpack.c.b16 %v2214, %v2205
        %v2395 = vpack.c.b16 %v2215, %v2206
        %v2396 = vpack.c.b16 %v2216, %v2207
        %v2397 = vpack.c.b16 %v2226, %v2217
        %v2398 = vpack.c.b16 %v2227, %v2218
        %v2399 = vpack.c.b16 %v2228, %v2219
        %v2400 = vpack.c.b16 %v2229, %v2220
        %v2401 = vpack.c.b16 %v2230, %v2221
        %v2402 = vpack.c.b16 %v2231, %v2222
        %v2403 = vpack.c.b16 %v2232, %v2223
        %v2404 = vpack.c.b16 %v2233, %v2224
        %v2405 = vpack.c.b16 %v2234, %v2225
        %v2406 = vpack.c.b16 %v2244, %v2235
        %v2407 = vpack.c.b16 %v2245, %v2236
        %v2408 = vpack.c.b16 %v2246, %v2237
        %v2409 = vpack.c.b16 %v2247, %v2238
        %v2410 = vpack.c.b16 %v2248, %v2239
        %v2411 = vpack.c.b16 %v2249, %v2240
        %v2412 = vpack.c.b16 %v2250, %v2241
        %v2413 = vpack.c.b16 %v2251, %v2242
        %v2414 = vpack.c.b16 %v2252, %v2243
        %v2415 = vpack.c.b16 %v2262, %v2253
        %v2416 = vpack.c.b16 %v2263, %v2254
        %v2417 = vpack.c.b16 %v2264, %v2255
        %v2418 = vpack.c.b16 %v2265, %v2256
        %v2419 = vpack.c.b16 %v2266, %v2257
        %v2420 = vpack.c.b16 %v2267, %v2258
        %v2421 = vpack.c.b16 %v2268, %v2259
        %v2422 = vpack.c.b16 %v2269, %v2260
        %v2423 = vpack.c.b16 %v2270, %v2261
        %v2424 = vpack.c.b16 %v2280, %v2271
        %v2425 = vpack.c.b16 %v2281, %v2272
        %v2426 = vpack.c.b16 %v2282, %v2273
        %v2427 = vpack.c.b16 %v2283, %v2274
        %v2428 = vpack.c.b16 %v2284, %v2275
        %v2429 = vpack.c.b16 %v2285, %v2276
        %v2430 = vpack.c.b16 %v2286, %v2277
        %v2431 = vpack.c.b16 %v2287, %v2278
        %v2432 = vpack.c.b16 %v2288, %v2279
        %v2721 = vunpack.c.l.b16 %v1697
        %v2722 = vunpack.c.l.b16 %v1698
        %v2723 = vunpack.c.l.b16 %v1699
        %v2724 = vunpack.c.l.b16 %v1700
        %v2725 = vunpack.c.l.b16 %v1701
        %v2726 = vunpack.c.l.b16 %v1702
        %v2727 = vunpack.c.l.b16 %v1703
        %v2728 = vunpack.c.l.b16 %v1704
        %v2729 = vunpack.c.l.b16 %v1705
        %v2730 = vunpack.c.l.b16 %v1706
        %v2731 = vunpack.c.l.b16 %v1707
        %v2732 = vunpack.c.l.b16 %v1708
        %v2733 = vunpack.c.l.b16 %v1709
        %v2734 = vunpack.c.l.b16 %v1710
        %v2735 = vunpack.c.l.b16 %v1711
        %v2736 = vunpack.c.l.b16 %v1712
        %v2737 = vunpack.c.l.b16 %v1713
        %v2738 = vunpack.c.l.b16 %v1714
        %v2739 = vunpack.c.l.b16 %v1715
        %v2740 = vunpack.c.l.b16 %v1716
        %v2741 = vunpack.c.l.b16 %v1717
        %v2742 = vunpack.c.l.b16 %v1718
        %v2743 = vunpack.c.l.b16 %v1719
        %v2744 = vunpack.c.l.b16 %v1720
        %v2745 = vunpack.c.l.b16 %v1721
        %v2746 = vunpack.c.l.b16 %v1722
        %v2747 = vunpack.c.l.b16 %v1723
        %v2748 = vunpack.c.l.b16 %v1724
        %v2749 = vunpack.c.l.b16 %v1725
        %v2750 = vunpack.c.l.b16 %v1726
        %v2751 = vunpack.c.l.b16 %v1727
        %v2752 = vunpack.c.l.b16 %v1728
        %v2753 = vunpack.c.l.b16 %v1729
        %v2754 = vunpack.c.l.b16 %v1730
        %v2755 = vunpack.c.l.b16 %v1731
        %v2756 = vunpack.c.l.b16 %v1732
        %v2757 = vunpack.c.l.b16 %v1733
        %v2758 = vunpack.c.l.b16 %v1734
        %v2759 = vunpack.c.l.b16 %v1735
        %v2760 = vunpack.c.l.b16 %v1736
        %v2761 = vunpack.c.l.b16 %v1737
        %v2762 = vunpack.c.l.b16 %v1738
        %v2763 = vunpack.c.l.b16 %v1739
        %v2764 = vunpack.c.l.b16 %v1740
        %v2765 = vunpack.c.l.b16 %v1741
        %v2766 = vunpack.c.l.b16 %v1742
        %v2767 = vunpack.c.l.b16 %v1743
        %v2768 = vunpack.c.l.b16 %v1744
        %v2769 = vunpack.c.l.b16 %v1745
        %v2770 = vunpack.c.l.b16 %v1746
        %v2771 = vunpack.c.l.b16 %v1747
        %v2772 = vunpack.c.l.b16 %v1748
        %v2773 = vunpack.c.l.b16 %v1749
        %v2774 = vunpack.c.l.b16 %v1750
        %v2775 = vunpack.c.l.b16 %v1751
        %v2776 = vunpack.c.l.b16 %v1752
        %v2777 = vunpack.c.l.b16 %v1753
        %v2778 = vunpack.c.l.b16 %v1754
        %v2779 = vunpack.c.l.b16 %v1755
        %v2780 = vunpack.c.l.b16 %v1756
        %v2781 = vunpack.c.l.b16 %v1757
        %v2782 = vunpack.c.l.b16 %v1758
        %v2783 = vunpack.c.l.b16 %v1759
        %v2784 = vunpack.c.l.b16 %v1760
        %v2785 = vunpack.c.l.b16 %v1761
        %v2786 = vunpack.c.l.b16 %v1762
        %v2787 = vunpack.c.l.b16 %v1763
        %v2788 = vunpack.c.l.b16 %v1764
        %v2789 = vunpack.c.l.b16 %v1765
        %v2790 = vunpack.c.l.b16 %v1766
        %v2791 = vunpack.c.l.b16 %v1767
        %v2792 = vunpack.c.l.b16 %v1768
        %v2793 = vunpack.c.l.b16 %v1769
        %v2794 = vunpack.c.l.b16 %v1770
        %v2795 = vunpack.c.l.b16 %v1771
        %v2796 = vunpack.c.l.b16 %v1772
        %v2797 = vunpack.c.l.b16 %v1773
        %v2798 = vunpack.c.l.b16 %v1774
        %v2799 = vunpack.c.l.b16 %v1775
        %v2800 = vunpack.c.l.b16 %v1776
        %v2801 = vunpack.c.l.b16 %v1777
        %v2802 = vunpack.c.l.b16 %v1778
        %v2803 = vunpack.c.l.b16 %v1779
        %v2804 = vunpack.c.l.b16 %v1780
        %v2805 = vunpack.c.l.b16 %v1781
        %v2806 = vunpack.c.l.b16 %v1782
        %v2807 = vunpack.c.l.b16 %v1783
        %v2808 = vunpack.c.l.b16 %v1784
        %v2809 = vunpack.c.l.b16 %v1785
        %v2810 = vunpack.c.l.b16 %v1786
        %v2811 = vunpack.c.l.b16 %v1787
        %v2812 = vunpack.c.l.b16 %v1788
        %v2813 = vunpack.c.l.b16 %v1789
        %v2814 = vunpack.c.l.b16 %v1790
        %v2815 = vunpack.c.l.b16 %v1791
        %v2816 = vunpack.c.l.b16 %v1792
        %v2817 = vunpack.c.l.b16 %v1793
        %v2818 = vunpack.c.l.b16 %v1794
        %v2819 = vunpack.c.l.b16 %v1795
        %v2820 = vunpack.c.l.b16 %v1796
        %v2821 = vunpack.c.l.b16 %v1797
        %v2822 = vunpack.c.l.b16 %v1798
        %v2823 = vunpack.c.l.b16 %v1799
        %v2824 = vunpack.c.l.b16 %v1800
        %v2825 = vunpack.c.l.b16 %v1801
        %v2826 = vunpack.c.l.b16 %v1802
        %v2827 = vunpack.c.l.b16 %v1803
        %v2828 = vunpack.c.l.b16 %v1804
        %v2829 = vunpack.c.l.b16 %v1805
        %v2830 = vunpack.c.l.b16 %v1806
        %v2831 = vunpack.c.l.b16 %v1807
        %v2832 = vunpack.c.l.b16 %v1808
        %v2833 = vunpack.c.l.b16 %v1809
        %v2834 = vunpack.c.l.b16 %v1810
        %v2835 = vunpack.c.l.b16 %v1811
        %v2836 = vunpack.c.l.b16 %v1812
        %v2837 = vunpack.c.l.b16 %v1813
        %v2838 = vunpack.c.l.b16 %v1814
        %v2839 = vunpack.c.l.b16 %v1815
        %v2840 = vunpack.c.l.b16 %v1816
        %v2841 = vunpack.c.l.b16 %v1817
        %v2842 = vunpack.c.l.b16 %v1818
        %v2843 = vunpack.c.l.b16 %v1819
        %v2844 = vunpack.c.l.b16 %v1820
        %v2845 = vunpack.c.l.b16 %v1821
        %v2846 = vunpack.c.l.b16 %v1822
        %v2847 = vunpack.c.l.b16 %v1823
        %v2848 = vunpack.c.l.b16 %v1824
        %v2849 = vunpack.c.l.b16 %v1825
        %v2850 = vunpack.c.l.b16 %v1826
        %v2851 = vunpack.c.l.b16 %v1827
        %v2852 = vunpack.c.l.b16 %v1828
        %v2853 = vunpack.c.l.b16 %v1829
        %v2854 = vunpack.c.l.b16 %v1830
        %v2855 = vunpack.c.l.b16 %v1831
        %v2856 = vunpack.c.l.b16 %v1832
        %v2857 = vunpack.c.l.b16 %v1833
        %v2858 = vunpack.c.l.b16 %v1834
        %v2859 = vunpack.c.l.b16 %v1835
        %v2860 = vunpack.c.l.b16 %v1836
        %v2861 = vunpack.c.l.b16 %v1837
        %v2862 = vunpack.c.l.b16 %v1838
        %v2863 = vunpack.c.l.b16 %v1839
        %v2864 = vunpack.c.l.b16 %v1840
        %v2865 = vpack.c.b16 %v2722, %v2721
        %v2866 = vpack.c.b16 %v2724, %v2723
        %v2867 = vpack.c.b16 %v2726, %v2725
        %v2868 = vpack.c.b16 %v2728, %v2727
        %v2869 = vpack.c.b16 %v2730, %v2729
        %v2870 = vpack.c.b16 %v2732, %v2731
        %v2871 = vpack.c.b16 %v2734, %v2733
        %v2872 = vpack.c.b16 %v2736, %v2735
        %v2873 = vpack.c.b16 %v2738, %v2737
        %v2874 = vpack.c.b16 %v2740, %v2739
        %v2875 = vpack.c.b16 %v2742, %v2741
        %v2876 = vpack.c.b16 %v2744, %v2743
        %v2877 = vpack.c.b16 %v2746, %v2745
        %v2878 = vpack.c.b16 %v2748, %v2747
        %v2879 = vpack.c.b16 %v2750, %v2749
        %v2880 = vpack.c.b16 %v2752, %v2751
        %v2881 = vpack.c.b16 %v2754, %v2753
        %v2882 = vpack.c.b16 %v2756, %v2755
        %v2883 = vpack.c.b16 %v2758, %v2757
        %v2884 = vpack.c.b16 %v2760, %v2759
        %v2885 = vpack.c.b16 %v2762, %v2761
        %v2886 = vpack.c.b16 %v2764, %v2763
        %v2887 = vpack.c.b16 %v2766, %v2765
        %v2888 = vpack.c.b16 %v2768, %v2767
        %v2889 = vpack.c.b16 %v2770, %v2769
        %v2890 = vpack.c.b16 %v2772, %v2771
        %v2891 = vpack.c.b16 %v2774, %v2773
        %v2892 = vpack.c.b16 %v2776, %v2775
        %v2893 = vpack.c.b16 %v2778, %v2777
        %v2894 = vpack.c.b16 %v2780, %v2779
        %v2895 = vpack.c.b16 %v2782, %v2781
        %v2896 = vpack.c.b16 %v2784, %v2783
        %v2897 = vpack.c.b16 %v2786, %v2785
        %v2898 = vpack.c.b16 %v2788, %v2787
        %v2899 = vpack.c.b16 %v2790, %v2789
        %v2900 = vpack.c.b16 %v2792, %v2791
        %v2901 = vpack.c.b16 %v2794, %v2793
        %v2902 = vpack.c.b16 %v2796, %v2795
        %v2903 = vpack.c.b16 %v2798, %v2797
        %v2904 = vpack.c.b16 %v2800, %v2799
        %v2905 = vpack.c.b16 %v2802, %v2801
        %v2906 = vpack.c.b16 %v2804, %v2803
        %v2907 = vpack.c.b16 %v2806, %v2805
        %v2908 = vpack.c.b16 %v2808, %v2807
        %v2909 = vpack.c.b16 %v2810, %v2809
        %v2910 = vpack.c.b16 %v2812, %v2811
        %v2911 = vpack.c.b16 %v2814, %v2813
        %v2912 = vpack.c.b16 %v2816, %v2815
        %v2913 = vpack.c.b16 %v2818, %v2817
        %v2914 = vpack.c.b16 %v2820, %v2819
        %v2915 = vpack.c.b16 %v2822, %v2821
        %v2916 = vpack.c.b16 %v2824, %v2823
        %v2917 = vpack.c.b16 %v2826, %v2825
        %v2918 = vpack.c.b16 %v2828, %v2827
        %v2919 = vpack.c.b16 %v2830, %v2829
        %v2920 = vpack.c.b16 %v2832, %v2831
        %v2921 = vpack.c.b16 %v2834, %v2833
        %v2922 = vpack.c.b16 %v2836, %v2835
        %v2923 = vpack.c.b16 %v2838, %v2837
        %v2924 = vpack.c.b16 %v2840, %v2839
        %v2925 = vpack.c.b16 %v2842, %v2841
        %v2926 = vpack.c.b16 %v2844, %v2843
        %v2927 = vpack.c.b16 %v2846, %v2845
        %v2928 = vpack.c.b16 %v2848, %v2847
        %v2929 = vpack.c.b16 %v2850, %v2849
        %v2930 = vpack.c.b16 %v2852, %v2851
        %v2931 = vpack.c.b16 %v2854, %v2853
        %v2932 = vpack.c.b16 %v2856, %v2855
        %v2933 = vpack.c.b16 %v2858, %v2857
        %v2934 = vpack.c.b16 %v2860, %v2859
        %v2935 = vpack.c.b16 %v2862, %v2861
        %v2936 = vpack.c.b16 %v2864, %v2863
        %3009 = vmatpush.bf16.msra.mxu0 %v2872
        %3010 = vmatpush.bf16.msra.mxu0 %v2871
        %3011 = vmatpush.bf16.msra.mxu0 %v2870
        %3012 = vmatpush.bf16.msra.mxu0 %v2869
        %3013 = vmatpush.bf16.msra.mxu0 %v2868
        %3014 = vmatpush.bf16.msra.mxu0 %v2867
        %3015 = vmatpush.bf16.msra.mxu0 %v2866
        %3016 = vmatpush.bf16.msra.mxu0 %v2865
        %3017 = vmatmul.bf16.gmra.mxu0 %v2289
        %v3018 = vpop.f32.mrf.mxu0
        %v3019 = vadd.f32 0.0, %v3018
        %v3020 = vpop.f32.mrf.mxu0
        %v3021 = vadd.f32 0.0, %v3020
        %3022 = vmatmul.bf16.gmra.mxu0 %v2298
        %v3023 = vpop.f32.mrf.mxu0
        %v3024 = vadd.f32 0.0, %v3023
        %v3025 = vpop.f32.mrf.mxu0
        %v3026 = vadd.f32 0.0, %v3025
        %3027 = vmatmul.bf16.gmra.mxu0 %v2307
        %v3028 = vpop.f32.mrf.mxu0
        %v3029 = vadd.f32 0.0, %v3028
        %v3030 = vpop.f32.mrf.mxu0
        %v3031 = vadd.f32 0.0, %v3030
        %3032 = vmatmul.bf16.gmra.mxu0 %v2316
        %v3033 = vpop.f32.mrf.mxu0
        %v3034 = vadd.f32 0.0, %v3033
        %v3035 = vpop.f32.mrf.mxu0
        %v3036 = vadd.f32 0.0, %v3035
        %3037 = vmatmul.bf16.gmra.mxu0 %v2325
        %v3038 = vpop.f32.mrf.mxu0
        %v3039 = vadd.f32 0.0, %v3038
        %v3040 = vpop.f32.mrf.mxu0
        %v3041 = vadd.f32 0.0, %v3040
        %3042 = vmatmul.bf16.gmra.mxu0 %v2334
        %v3043 = vpop.f32.mrf.mxu0
        %v3044 = vadd.f32 0.0, %v3043
        %v3045 = vpop.f32.mrf.mxu0
        %v3046 = vadd.f32 0.0, %v3045
        %3047 = vmatmul.bf16.gmra.mxu0 %v2343
        %v3048 = vpop.f32.mrf.mxu0
        %v3049 = vadd.f32 0.0, %v3048
        %v3050 = vpop.f32.mrf.mxu0
        %v3051 = vadd.f32 0.0, %v3050
        %3052 = vmatmul.bf16.gmra.mxu0 %v2352
        %v3053 = vpop.f32.mrf.mxu0
        %v3054 = vadd.f32 0.0, %v3053
        %v3055 = vpop.f32.mrf.mxu0
        %v3056 = vadd.f32 0.0, %v3055
        %3057 = vmatmul.bf16.gmra.mxu0 %v2361
        %v3058 = vpop.f32.mrf.mxu0
        %v3059 = vadd.f32 0.0, %v3058
        %v3060 = vpop.f32.mrf.mxu0
        %v3061 = vadd.f32 0.0, %v3060
        %3062 = vmatmul.bf16.gmra.mxu0 %v2370
        %v3063 = vpop.f32.mrf.mxu0
        %v3064 = vadd.f32 0.0, %v3063
        %v3065 = vpop.f32.mrf.mxu0
        %v3066 = vadd.f32 0.0, %v3065
        %3067 = vmatmul.bf16.gmra.mxu0 %v2379
        %v3068 = vpop.f32.mrf.mxu0
        %v3069 = vadd.f32 0.0, %v3068
        %v3070 = vpop.f32.mrf.mxu0
        %v3071 = vadd.f32 0.0, %v3070
        %3072 = vmatmul.bf16.gmra.mxu0 %v2388
        %v3073 = vpop.f32.mrf.mxu0
        %v3074 = vadd.f32 0.0, %v3073
        %v3075 = vpop.f32.mrf.mxu0
        %v3076 = vadd.f32 0.0, %v3075
        %3077 = vmatmul.bf16.gmra.mxu0 %v2397
        %v3078 = vpop.f32.mrf.mxu0
        %v3079 = vadd.f32 0.0, %v3078
        %v3080 = vpop.f32.mrf.mxu0
        %v3081 = vadd.f32 0.0, %v3080
        %3082 = vmatmul.bf16.gmra.mxu0 %v2406
        %v3083 = vpop.f32.mrf.mxu0
        %v3084 = vadd.f32 0.0, %v3083
        %v3085 = vpop.f32.mrf.mxu0
        %v3086 = vadd.f32 0.0, %v3085
        %3087 = vmatmul.bf16.gmra.mxu0 %v2415
        %v3088 = vpop.f32.mrf.mxu0
        %v3089 = vadd.f32 0.0, %v3088
        %v3090 = vpop.f32.mrf.mxu0
        %v3091 = vadd.f32 0.0, %v3090
        %3092 = vmatmul.bf16.gmra.mxu0 %v2424
        %v3093 = vpop.f32.mrf.mxu0
        %v3094 = vadd.f32 0.0, %v3093
        %v3095 = vpop.f32.mrf.mxu0
        %v3096 = vadd.f32 0.0, %v3095
        %3097 = vdwg.mxu0
        %3098 = vmatpush.bf16.msra.mxu0 %v2880
        %3099 = vmatpush.bf16.msra.mxu0 %v2879
        %3100 = vmatpush.bf16.msra.mxu0 %v2878
        %3101 = vmatpush.bf16.msra.mxu0 %v2877
        %3102 = vmatpush.bf16.msra.mxu0 %v2876
        %3103 = vmatpush.bf16.msra.mxu0 %v2875
        %3104 = vmatpush.bf16.msra.mxu0 %v2874
        %3105 = vmatpush.bf16.msra.mxu0 %v2873
        %3106 = vmatmul.bf16.gmra.mxu0 %v2290
        %v3107 = vpop.f32.mrf.mxu0
        %v3108 = vadd.f32 %v3019, %v3107
        %v3109 = vpop.f32.mrf.mxu0
        %v3110 = vadd.f32 %v3021, %v3109
        %3111 = vmatmul.bf16.gmra.mxu0 %v2299
        %v3112 = vpop.f32.mrf.mxu0
        %v3113 = vadd.f32 %v3024, %v3112
        %v3114 = vpop.f32.mrf.mxu0
        %v3115 = vadd.f32 %v3026, %v3114
        %3116 = vmatmul.bf16.gmra.mxu0 %v2308
        %v3117 = vpop.f32.mrf.mxu0
        %v3118 = vadd.f32 %v3029, %v3117
        %v3119 = vpop.f32.mrf.mxu0
        %v3120 = vadd.f32 %v3031, %v3119
        %3121 = vmatmul.bf16.gmra.mxu0 %v2317
        %v3122 = vpop.f32.mrf.mxu0
        %v3123 = vadd.f32 %v3034, %v3122
        %v3124 = vpop.f32.mrf.mxu0
        %v3125 = vadd.f32 %v3036, %v3124
        %3126 = vmatmul.bf16.gmra.mxu0 %v2326
        %v3127 = vpop.f32.mrf.mxu0
        %v3128 = vadd.f32 %v3039, %v3127
        %v3129 = vpop.f32.mrf.mxu0
        %v3130 = vadd.f32 %v3041, %v3129
        %3131 = vmatmul.bf16.gmra.mxu0 %v2335
        %v3132 = vpop.f32.mrf.mxu0
        %v3133 = vadd.f32 %v3044, %v3132
        %v3134 = vpop.f32.mrf.mxu0
        %v3135 = vadd.f32 %v3046, %v3134
        %3136 = vmatmul.bf16.gmra.mxu0 %v2344
        %v3137 = vpop.f32.mrf.mxu0
        %v3138 = vadd.f32 %v3049, %v3137
        %v3139 = vpop.f32.mrf.mxu0
        %v3140 = vadd.f32 %v3051, %v3139
        %3141 = vmatmul.bf16.gmra.mxu0 %v2353
        %v3142 = vpop.f32.mrf.mxu0
        %v3143 = vadd.f32 %v3054, %v3142
        %v3144 = vpop.f32.mrf.mxu0
        %v3145 = vadd.f32 %v3056, %v3144
        %3146 = vmatmul.bf16.gmra.mxu0 %v2362
        %v3147 = vpop.f32.mrf.mxu0
        %v3148 = vadd.f32 %v3059, %v3147
        %v3149 = vpop.f32.mrf.mxu0
        %v3150 = vadd.f32 %v3061, %v3149
        %3151 = vmatmul.bf16.gmra.mxu0 %v2371
        %v3152 = vpop.f32.mrf.mxu0
        %v3153 = vadd.f32 %v3064, %v3152
        %v3154 = vpop.f32.mrf.mxu0
        %v3155 = vadd.f32 %v3066, %v3154
        %3156 = vmatmul.bf16.gmra.mxu0 %v2380
        %v3157 = vpop.f32.mrf.mxu0
        %v3158 = vadd.f32 %v3069, %v3157
        %v3159 = vpop.f32.mrf.mxu0
        %v3160 = vadd.f32 %v3071, %v3159
        %3161 = vmatmul.bf16.gmra.mxu0 %v2389
        %v3162 = vpop.f32.mrf.mxu0
        %v3163 = vadd.f32 %v3074, %v3162
        %v3164 = vpop.f32.mrf.mxu0
        %v3165 = vadd.f32 %v3076, %v3164
        %3166 = vmatmul.bf16.gmra.mxu0 %v2398
        %v3167 = vpop.f32.mrf.mxu0
        %v3168 = vadd.f32 %v3079, %v3167
        %v3169 = vpop.f32.mrf.mxu0
        %v3170 = vadd.f32 %v3081, %v3169
        %3171 = vmatmul.bf16.gmra.mxu0 %v2407
        %v3172 = vpop.f32.mrf.mxu0
        %v3173 = vadd.f32 %v3084, %v3172
        %v3174 = vpop.f32.mrf.mxu0
        %v3175 = vadd.f32 %v3086, %v3174
        %3176 = vmatmul.bf16.gmra.mxu0 %v2416
        %v3177 = vpop.f32.mrf.mxu0
        %v3178 = vadd.f32 %v3089, %v3177
        %v3179 = vpop.f32.mrf.mxu0
        %v3180 = vadd.f32 %v3091, %v3179
        %3181 = vmatmul.bf16.gmra.mxu0 %v2425
        %v3182 = vpop.f32.mrf.mxu0
        %v3183 = vadd.f32 %v3094, %v3182
        %v3184 = vpop.f32.mrf.mxu0
        %v3185 = vadd.f32 %v3096, %v3184
        %3186 = vdwg.mxu0
        %3187 = vmatpush.bf16.msra.mxu0 %v2888
        %3188 = vmatpush.bf16.msra.mxu0 %v2887
        %3189 = vmatpush.bf16.msra.mxu0 %v2886
        %3190 = vmatpush.bf16.msra.mxu0 %v2885
        %3191 = vmatpush.bf16.msra.mxu0 %v2884
        %3192 = vmatpush.bf16.msra.mxu0 %v2883
        %3193 = vmatpush.bf16.msra.mxu0 %v2882
        %3194 = vmatpush.bf16.msra.mxu0 %v2881
        %3195 = vmatmul.bf16.gmra.mxu0 %v2291
        %v3196 = vpop.f32.mrf.mxu0
        %v3197 = vadd.f32 %v3108, %v3196
        %v3198 = vpop.f32.mrf.mxu0
        %v3199 = vadd.f32 %v3110, %v3198
        %3200 = vmatmul.bf16.gmra.mxu0 %v2300
        %v3201 = vpop.f32.mrf.mxu0
        %v3202 = vadd.f32 %v3113, %v3201
        %v3203 = vpop.f32.mrf.mxu0
        %v3204 = vadd.f32 %v3115, %v3203
        %3205 = vmatmul.bf16.gmra.mxu0 %v2309
        %v3206 = vpop.f32.mrf.mxu0
        %v3207 = vadd.f32 %v3118, %v3206
        %v3208 = vpop.f32.mrf.mxu0
        %v3209 = vadd.f32 %v3120, %v3208
        %3210 = vmatmul.bf16.gmra.mxu0 %v2318
        %v3211 = vpop.f32.mrf.mxu0
        %v3212 = vadd.f32 %v3123, %v3211
        %v3213 = vpop.f32.mrf.mxu0
        %v3214 = vadd.f32 %v3125, %v3213
        %3215 = vmatmul.bf16.gmra.mxu0 %v2327
        %v3216 = vpop.f32.mrf.mxu0
        %v3217 = vadd.f32 %v3128, %v3216
        %v3218 = vpop.f32.mrf.mxu0
        %v3219 = vadd.f32 %v3130, %v3218
        %3220 = vmatmul.bf16.gmra.mxu0 %v2336
        %v3221 = vpop.f32.mrf.mxu0
        %v3222 = vadd.f32 %v3133, %v3221
        %v3223 = vpop.f32.mrf.mxu0
        %v3224 = vadd.f32 %v3135, %v3223
        %3225 = vmatmul.bf16.gmra.mxu0 %v2345
        %v3226 = vpop.f32.mrf.mxu0
        %v3227 = vadd.f32 %v3138, %v3226
        %v3228 = vpop.f32.mrf.mxu0
        %v3229 = vadd.f32 %v3140, %v3228
        %3230 = vmatmul.bf16.gmra.mxu0 %v2354
        %v3231 = vpop.f32.mrf.mxu0
        %v3232 = vadd.f32 %v3143, %v3231
        %v3233 = vpop.f32.mrf.mxu0
        %v3234 = vadd.f32 %v3145, %v3233
        %3235 = vmatmul.bf16.gmra.mxu0 %v2363
        %v3236 = vpop.f32.mrf.mxu0
        %v3237 = vadd.f32 %v3148, %v3236
        %v3238 = vpop.f32.mrf.mxu0
        %v3239 = vadd.f32 %v3150, %v3238
        %3240 = vmatmul.bf16.gmra.mxu0 %v2372
        %v3241 = vpop.f32.mrf.mxu0
        %v3242 = vadd.f32 %v3153, %v3241
        %v3243 = vpop.f32.mrf.mxu0
        %v3244 = vadd.f32 %v3155, %v3243
        %3245 = vmatmul.bf16.gmra.mxu0 %v2381
        %v3246 = vpop.f32.mrf.mxu0
        %v3247 = vadd.f32 %v3158, %v3246
        %v3248 = vpop.f32.mrf.mxu0
        %v3249 = vadd.f32 %v3160, %v3248
        %3250 = vmatmul.bf16.gmra.mxu0 %v2390
        %v3251 = vpop.f32.mrf.mxu0
        %v3252 = vadd.f32 %v3163, %v3251
        %v3253 = vpop.f32.mrf.mxu0
        %v3254 = vadd.f32 %v3165, %v3253
        %3255 = vmatmul.bf16.gmra.mxu0 %v2399
        %v3256 = vpop.f32.mrf.mxu0
        %v3257 = vadd.f32 %v3168, %v3256
        %v3258 = vpop.f32.mrf.mxu0
        %v3259 = vadd.f32 %v3170, %v3258
        %3260 = vmatmul.bf16.gmra.mxu0 %v2408
        %v3261 = vpop.f32.mrf.mxu0
        %v3262 = vadd.f32 %v3173, %v3261
        %v3263 = vpop.f32.mrf.mxu0
        %v3264 = vadd.f32 %v3175, %v3263
        %3265 = vmatmul.bf16.gmra.mxu0 %v2417
        %v3266 = vpop.f32.mrf.mxu0
        %v3267 = vadd.f32 %v3178, %v3266
        %v3268 = vpop.f32.mrf.mxu0
        %v3269 = vadd.f32 %v3180, %v3268
        %3270 = vmatmul.bf16.gmra.mxu0 %v2426
        %v3271 = vpop.f32.mrf.mxu0
        %v3272 = vadd.f32 %v3183, %v3271
        %v3273 = vpop.f32.mrf.mxu0
        %v3274 = vadd.f32 %v3185, %v3273
        %3275 = vdwg.mxu0
        %3276 = vmatpush.bf16.msra.mxu0 %v2896
        %3277 = vmatpush.bf16.msra.mxu0 %v2895
        %3278 = vmatpush.bf16.msra.mxu0 %v2894
        %3279 = vmatpush.bf16.msra.mxu0 %v2893
        %3280 = vmatpush.bf16.msra.mxu0 %v2892
        %3281 = vmatpush.bf16.msra.mxu0 %v2891
        %3282 = vmatpush.bf16.msra.mxu0 %v2890
        %3283 = vmatpush.bf16.msra.mxu0 %v2889
        %3284 = vmatmul.bf16.gmra.mxu0 %v2292
        %v3285 = vpop.f32.mrf.mxu0
        %v3286 = vadd.f32 %v3197, %v3285
        %v3287 = vpop.f32.mrf.mxu0
        %v3288 = vadd.f32 %v3199, %v3287
        %3289 = vmatmul.bf16.gmra.mxu0 %v2301
        %v3290 = vpop.f32.mrf.mxu0
        %v3291 = vadd.f32 %v3202, %v3290
        %v3292 = vpop.f32.mrf.mxu0
        %v3293 = vadd.f32 %v3204, %v3292
        %3294 = vmatmul.bf16.gmra.mxu0 %v2310
        %v3295 = vpop.f32.mrf.mxu0
        %v3296 = vadd.f32 %v3207, %v3295
        %v3297 = vpop.f32.mrf.mxu0
        %v3298 = vadd.f32 %v3209, %v3297
        %3299 = vmatmul.bf16.gmra.mxu0 %v2319
        %v3300 = vpop.f32.mrf.mxu0
        %v3301 = vadd.f32 %v3212, %v3300
        %v3302 = vpop.f32.mrf.mxu0
        %v3303 = vadd.f32 %v3214, %v3302
        %3304 = vmatmul.bf16.gmra.mxu0 %v2328
        %v3305 = vpop.f32.mrf.mxu0
        %v3306 = vadd.f32 %v3217, %v3305
        %v3307 = vpop.f32.mrf.mxu0
        %v3308 = vadd.f32 %v3219, %v3307
        %3309 = vmatmul.bf16.gmra.mxu0 %v2337
        %v3310 = vpop.f32.mrf.mxu0
        %v3311 = vadd.f32 %v3222, %v3310
        %v3312 = vpop.f32.mrf.mxu0
        %v3313 = vadd.f32 %v3224, %v3312
        %3314 = vmatmul.bf16.gmra.mxu0 %v2346
        %v3315 = vpop.f32.mrf.mxu0
        %v3316 = vadd.f32 %v3227, %v3315
        %v3317 = vpop.f32.mrf.mxu0
        %v3318 = vadd.f32 %v3229, %v3317
        %3319 = vmatmul.bf16.gmra.mxu0 %v2355
        %v3320 = vpop.f32.mrf.mxu0
        %v3321 = vadd.f32 %v3232, %v3320
        %v3322 = vpop.f32.mrf.mxu0
        %v3323 = vadd.f32 %v3234, %v3322
        %3324 = vmatmul.bf16.gmra.mxu0 %v2364
        %v3325 = vpop.f32.mrf.mxu0
        %v3326 = vadd.f32 %v3237, %v3325
        %v3327 = vpop.f32.mrf.mxu0
        %v3328 = vadd.f32 %v3239, %v3327
        %3329 = vmatmul.bf16.gmra.mxu0 %v2373
        %v3330 = vpop.f32.mrf.mxu0
        %v3331 = vadd.f32 %v3242, %v3330
        %v3332 = vpop.f32.mrf.mxu0
        %v3333 = vadd.f32 %v3244, %v3332
        %3334 = vmatmul.bf16.gmra.mxu0 %v2382
        %v3335 = vpop.f32.mrf.mxu0
        %v3336 = vadd.f32 %v3247, %v3335
        %v3337 = vpop.f32.mrf.mxu0
        %v3338 = vadd.f32 %v3249, %v3337
        %3339 = vmatmul.bf16.gmra.mxu0 %v2391
        %v3340 = vpop.f32.mrf.mxu0
        %v3341 = vadd.f32 %v3252, %v3340
        %v3342 = vpop.f32.mrf.mxu0
        %v3343 = vadd.f32 %v3254, %v3342
        %3344 = vmatmul.bf16.gmra.mxu0 %v2400
        %v3345 = vpop.f32.mrf.mxu0
        %v3346 = vadd.f32 %v3257, %v3345
        %v3347 = vpop.f32.mrf.mxu0
        %v3348 = vadd.f32 %v3259, %v3347
        %3349 = vmatmul.bf16.gmra.mxu0 %v2409
        %v3350 = vpop.f32.mrf.mxu0
        %v3351 = vadd.f32 %v3262, %v3350
        %v3352 = vpop.f32.mrf.mxu0
        %v3353 = vadd.f32 %v3264, %v3352
        %3354 = vmatmul.bf16.gmra.mxu0 %v2418
        %v3355 = vpop.f32.mrf.mxu0
        %v3356 = vadd.f32 %v3267, %v3355
        %v3357 = vpop.f32.mrf.mxu0
        %v3358 = vadd.f32 %v3269, %v3357
        %3359 = vmatmul.bf16.gmra.mxu0 %v2427
        %v3360 = vpop.f32.mrf.mxu0
        %v3361 = vadd.f32 %v3272, %v3360
        %v3362 = vpop.f32.mrf.mxu0
        %v3363 = vadd.f32 %v3274, %v3362
        %3364 = vdwg.mxu0
        %3365 = vmatpush.bf16.msra.mxu0 %v2904
        %3366 = vmatpush.bf16.msra.mxu0 %v2903
        %3367 = vmatpush.bf16.msra.mxu0 %v2902
        %3368 = vmatpush.bf16.msra.mxu0 %v2901
        %3369 = vmatpush.bf16.msra.mxu0 %v2900
        %3370 = vmatpush.bf16.msra.mxu0 %v2899
        %3371 = vmatpush.bf16.msra.mxu0 %v2898
        %3372 = vmatpush.bf16.msra.mxu0 %v2897
        %3373 = vmatmul.bf16.gmra.mxu0 %v2293
        %v3374 = vpop.f32.mrf.mxu0
        %v3375 = vadd.f32 %v3286, %v3374
        %v3376 = vpop.f32.mrf.mxu0
        %v3377 = vadd.f32 %v3288, %v3376
        %3378 = vmatmul.bf16.gmra.mxu0 %v2302
        %v3379 = vpop.f32.mrf.mxu0
        %v3380 = vadd.f32 %v3291, %v3379
        %v3381 = vpop.f32.mrf.mxu0
        %v3382 = vadd.f32 %v3293, %v3381
        %3383 = vmatmul.bf16.gmra.mxu0 %v2311
        %v3384 = vpop.f32.mrf.mxu0
        %v3385 = vadd.f32 %v3296, %v3384
        %v3386 = vpop.f32.mrf.mxu0
        %v3387 = vadd.f32 %v3298, %v3386
        %3388 = vmatmul.bf16.gmra.mxu0 %v2320
        %v3389 = vpop.f32.mrf.mxu0
        %v3390 = vadd.f32 %v3301, %v3389
        %v3391 = vpop.f32.mrf.mxu0
        %v3392 = vadd.f32 %v3303, %v3391
        %3393 = vmatmul.bf16.gmra.mxu0 %v2329
        %v3394 = vpop.f32.mrf.mxu0
        %v3395 = vadd.f32 %v3306, %v3394
        %v3396 = vpop.f32.mrf.mxu0
        %v3397 = vadd.f32 %v3308, %v3396
        %3398 = vmatmul.bf16.gmra.mxu0 %v2338
        %v3399 = vpop.f32.mrf.mxu0
        %v3400 = vadd.f32 %v3311, %v3399
        %v3401 = vpop.f32.mrf.mxu0
        %v3402 = vadd.f32 %v3313, %v3401
        %3403 = vmatmul.bf16.gmra.mxu0 %v2347
        %v3404 = vpop.f32.mrf.mxu0
        %v3405 = vadd.f32 %v3316, %v3404
        %v3406 = vpop.f32.mrf.mxu0
        %v3407 = vadd.f32 %v3318, %v3406
        %3408 = vmatmul.bf16.gmra.mxu0 %v2356
        %v3409 = vpop.f32.mrf.mxu0
        %v3410 = vadd.f32 %v3321, %v3409
        %v3411 = vpop.f32.mrf.mxu0
        %v3412 = vadd.f32 %v3323, %v3411
        %3413 = vmatmul.bf16.gmra.mxu0 %v2365
        %v3414 = vpop.f32.mrf.mxu0
        %v3415 = vadd.f32 %v3326, %v3414
        %v3416 = vpop.f32.mrf.mxu0
        %v3417 = vadd.f32 %v3328, %v3416
        %3418 = vmatmul.bf16.gmra.mxu0 %v2374
        %v3419 = vpop.f32.mrf.mxu0
        %v3420 = vadd.f32 %v3331, %v3419
        %v3421 = vpop.f32.mrf.mxu0
        %v3422 = vadd.f32 %v3333, %v3421
        %3423 = vmatmul.bf16.gmra.mxu0 %v2383
        %v3424 = vpop.f32.mrf.mxu0
        %v3425 = vadd.f32 %v3336, %v3424
        %v3426 = vpop.f32.mrf.mxu0
        %v3427 = vadd.f32 %v3338, %v3426
        %3428 = vmatmul.bf16.gmra.mxu0 %v2392
        %v3429 = vpop.f32.mrf.mxu0
        %v3430 = vadd.f32 %v3341, %v3429
        %v3431 = vpop.f32.mrf.mxu0
        %v3432 = vadd.f32 %v3343, %v3431
        %3433 = vmatmul.bf16.gmra.mxu0 %v2401
        %v3434 = vpop.f32.mrf.mxu0
        %v3435 = vadd.f32 %v3346, %v3434
        %v3436 = vpop.f32.mrf.mxu0
        %v3437 = vadd.f32 %v3348, %v3436
        %3438 = vmatmul.bf16.gmra.mxu0 %v2410
        %v3439 = vpop.f32.mrf.mxu0
        %v3440 = vadd.f32 %v3351, %v3439
        %v3441 = vpop.f32.mrf.mxu0
        %v3442 = vadd.f32 %v3353, %v3441
        %3443 = vmatmul.bf16.gmra.mxu0 %v2419
        %v3444 = vpop.f32.mrf.mxu0
        %v3445 = vadd.f32 %v3356, %v3444
        %v3446 = vpop.f32.mrf.mxu0
        %v3447 = vadd.f32 %v3358, %v3446
        %3448 = vmatmul.bf16.gmra.mxu0 %v2428
        %v3449 = vpop.f32.mrf.mxu0
        %v3450 = vadd.f32 %v3361, %v3449
        %v3451 = vpop.f32.mrf.mxu0
        %v3452 = vadd.f32 %v3363, %v3451
        %3453 = vdwg.mxu0
        %3454 = vmatpush.bf16.msra.mxu0 %v2912
        %3455 = vmatpush.bf16.msra.mxu0 %v2911
        %3456 = vmatpush.bf16.msra.mxu0 %v2910
        %3457 = vmatpush.bf16.msra.mxu0 %v2909
        %3458 = vmatpush.bf16.msra.mxu0 %v2908
        %3459 = vmatpush.bf16.msra.mxu0 %v2907
        %3460 = vmatpush.bf16.msra.mxu0 %v2906
        %3461 = vmatpush.bf16.msra.mxu0 %v2905
        %3462 = vmatmul.bf16.gmra.mxu0 %v2294
        %v3463 = vpop.f32.mrf.mxu0
        %v3464 = vadd.f32 %v3375, %v3463
        %v3465 = vpop.f32.mrf.mxu0
        %v3466 = vadd.f32 %v3377, %v3465
        %3467 = vmatmul.bf16.gmra.mxu0 %v2303
        %v3468 = vpop.f32.mrf.mxu0
        %v3469 = vadd.f32 %v3380, %v3468
        %v3470 = vpop.f32.mrf.mxu0
        %v3471 = vadd.f32 %v3382, %v3470
        %3472 = vmatmul.bf16.gmra.mxu0 %v2312
        %v3473 = vpop.f32.mrf.mxu0
        %v3474 = vadd.f32 %v3385, %v3473
        %v3475 = vpop.f32.mrf.mxu0
        %v3476 = vadd.f32 %v3387, %v3475
        %3477 = vmatmul.bf16.gmra.mxu0 %v2321
        %v3478 = vpop.f32.mrf.mxu0
        %v3479 = vadd.f32 %v3390, %v3478
        %v3480 = vpop.f32.mrf.mxu0
        %v3481 = vadd.f32 %v3392, %v3480
        %3482 = vmatmul.bf16.gmra.mxu0 %v2330
        %v3483 = vpop.f32.mrf.mxu0
        %v3484 = vadd.f32 %v3395, %v3483
        %v3485 = vpop.f32.mrf.mxu0
        %v3486 = vadd.f32 %v3397, %v3485
        %3487 = vmatmul.bf16.gmra.mxu0 %v2339
        %v3488 = vpop.f32.mrf.mxu0
        %v3489 = vadd.f32 %v3400, %v3488
        %v3490 = vpop.f32.mrf.mxu0
        %v3491 = vadd.f32 %v3402, %v3490
        %3492 = vmatmul.bf16.gmra.mxu0 %v2348
        %v3493 = vpop.f32.mrf.mxu0
        %v3494 = vadd.f32 %v3405, %v3493
        %v3495 = vpop.f32.mrf.mxu0
        %v3496 = vadd.f32 %v3407, %v3495
        %3497 = vmatmul.bf16.gmra.mxu0 %v2357
        %v3498 = vpop.f32.mrf.mxu0
        %v3499 = vadd.f32 %v3410, %v3498
        %v3500 = vpop.f32.mrf.mxu0
        %v3501 = vadd.f32 %v3412, %v3500
        %3502 = vmatmul.bf16.gmra.mxu0 %v2366
        %v3503 = vpop.f32.mrf.mxu0
        %v3504 = vadd.f32 %v3415, %v3503
        %v3505 = vpop.f32.mrf.mxu0
        %v3506 = vadd.f32 %v3417, %v3505
        %3507 = vmatmul.bf16.gmra.mxu0 %v2375
        %v3508 = vpop.f32.mrf.mxu0
        %v3509 = vadd.f32 %v3420, %v3508
        %v3510 = vpop.f32.mrf.mxu0
        %v3511 = vadd.f32 %v3422, %v3510
        %3512 = vmatmul.bf16.gmra.mxu0 %v2384
        %v3513 = vpop.f32.mrf.mxu0
        %v3514 = vadd.f32 %v3425, %v3513
        %v3515 = vpop.f32.mrf.mxu0
        %v3516 = vadd.f32 %v3427, %v3515
        %3517 = vmatmul.bf16.gmra.mxu0 %v2393
        %v3518 = vpop.f32.mrf.mxu0
        %v3519 = vadd.f32 %v3430, %v3518
        %v3520 = vpop.f32.mrf.mxu0
        %v3521 = vadd.f32 %v3432, %v3520
        %3522 = vmatmul.bf16.gmra.mxu0 %v2402
        %v3523 = vpop.f32.mrf.mxu0
        %v3524 = vadd.f32 %v3435, %v3523
        %v3525 = vpop.f32.mrf.mxu0
        %v3526 = vadd.f32 %v3437, %v3525
        %3527 = vmatmul.bf16.gmra.mxu0 %v2411
        %v3528 = vpop.f32.mrf.mxu0
        %v3529 = vadd.f32 %v3440, %v3528
        %v3530 = vpop.f32.mrf.mxu0
        %v3531 = vadd.f32 %v3442, %v3530
        %3532 = vmatmul.bf16.gmra.mxu0 %v2420
        %v3533 = vpop.f32.mrf.mxu0
        %v3534 = vadd.f32 %v3445, %v3533
        %v3535 = vpop.f32.mrf.mxu0
        %v3536 = vadd.f32 %v3447, %v3535
        %3537 = vmatmul.bf16.gmra.mxu0 %v2429
        %v3538 = vpop.f32.mrf.mxu0
        %v3539 = vadd.f32 %v3450, %v3538
        %v3540 = vpop.f32.mrf.mxu0
        %v3541 = vadd.f32 %v3452, %v3540
        %3542 = vdwg.mxu0
        %3543 = vmatpush.bf16.msra.mxu0 %v2920
        %3544 = vmatpush.bf16.msra.mxu0 %v2919
        %3545 = vmatpush.bf16.msra.mxu0 %v2918
        %3546 = vmatpush.bf16.msra.mxu0 %v2917
        %3547 = vmatpush.bf16.msra.mxu0 %v2916
        %3548 = vmatpush.bf16.msra.mxu0 %v2915
        %3549 = vmatpush.bf16.msra.mxu0 %v2914
        %3550 = vmatpush.bf16.msra.mxu0 %v2913
        %3551 = vmatmul.bf16.gmra.mxu0 %v2295
        %v3552 = vpop.f32.mrf.mxu0
        %v3553 = vadd.f32 %v3464, %v3552
        %v3554 = vpop.f32.mrf.mxu0
        %v3555 = vadd.f32 %v3466, %v3554
        %3556 = vmatmul.bf16.gmra.mxu0 %v2304
        %v3557 = vpop.f32.mrf.mxu0
        %v3558 = vadd.f32 %v3469, %v3557
        %v3559 = vpop.f32.mrf.mxu0
        %v3560 = vadd.f32 %v3471, %v3559
        %3561 = vmatmul.bf16.gmra.mxu0 %v2313
        %v3562 = vpop.f32.mrf.mxu0
        %v3563 = vadd.f32 %v3474, %v3562
        %v3564 = vpop.f32.mrf.mxu0
        %v3565 = vadd.f32 %v3476, %v3564
        %3566 = vmatmul.bf16.gmra.mxu0 %v2322
        %v3567 = vpop.f32.mrf.mxu0
        %v3568 = vadd.f32 %v3479, %v3567
        %v3569 = vpop.f32.mrf.mxu0
        %v3570 = vadd.f32 %v3481, %v3569
        %3571 = vmatmul.bf16.gmra.mxu0 %v2331
        %v3572 = vpop.f32.mrf.mxu0
        %v3573 = vadd.f32 %v3484, %v3572
        %v3574 = vpop.f32.mrf.mxu0
        %v3575 = vadd.f32 %v3486, %v3574
        %3576 = vmatmul.bf16.gmra.mxu0 %v2340
        %v3577 = vpop.f32.mrf.mxu0
        %v3578 = vadd.f32 %v3489, %v3577
        %v3579 = vpop.f32.mrf.mxu0
        %v3580 = vadd.f32 %v3491, %v3579
        %3581 = vmatmul.bf16.gmra.mxu0 %v2349
        %v3582 = vpop.f32.mrf.mxu0
        %v3583 = vadd.f32 %v3494, %v3582
        %v3584 = vpop.f32.mrf.mxu0
        %v3585 = vadd.f32 %v3496, %v3584
        %3586 = vmatmul.bf16.gmra.mxu0 %v2358
        %v3587 = vpop.f32.mrf.mxu0
        %v3588 = vadd.f32 %v3499, %v3587
        %v3589 = vpop.f32.mrf.mxu0
        %v3590 = vadd.f32 %v3501, %v3589
        %3591 = vmatmul.bf16.gmra.mxu0 %v2367
        %v3592 = vpop.f32.mrf.mxu0
        %v3593 = vadd.f32 %v3504, %v3592
        %v3594 = vpop.f32.mrf.mxu0
        %v3595 = vadd.f32 %v3506, %v3594
        %3596 = vmatmul.bf16.gmra.mxu0 %v2376
        %v3597 = vpop.f32.mrf.mxu0
        %v3598 = vadd.f32 %v3509, %v3597
        %v3599 = vpop.f32.mrf.mxu0
        %v3600 = vadd.f32 %v3511, %v3599
        %3601 = vmatmul.bf16.gmra.mxu0 %v2385
        %v3602 = vpop.f32.mrf.mxu0
        %v3603 = vadd.f32 %v3514, %v3602
        %v3604 = vpop.f32.mrf.mxu0
        %v3605 = vadd.f32 %v3516, %v3604
        %3606 = vmatmul.bf16.gmra.mxu0 %v2394
        %v3607 = vpop.f32.mrf.mxu0
        %v3608 = vadd.f32 %v3519, %v3607
        %v3609 = vpop.f32.mrf.mxu0
        %v3610 = vadd.f32 %v3521, %v3609
        %3611 = vmatmul.bf16.gmra.mxu0 %v2403
        %v3612 = vpop.f32.mrf.mxu0
        %v3613 = vadd.f32 %v3524, %v3612
        %v3614 = vpop.f32.mrf.mxu0
        %v3615 = vadd.f32 %v3526, %v3614
        %3616 = vmatmul.bf16.gmra.mxu0 %v2412
        %v3617 = vpop.f32.mrf.mxu0
        %v3618 = vadd.f32 %v3529, %v3617
        %v3619 = vpop.f32.mrf.mxu0
        %v3620 = vadd.f32 %v3531, %v3619
        %3621 = vmatmul.bf16.gmra.mxu0 %v2421
        %v3622 = vpop.f32.mrf.mxu0
        %v3623 = vadd.f32 %v3534, %v3622
        %v3624 = vpop.f32.mrf.mxu0
        %v3625 = vadd.f32 %v3536, %v3624
        %3626 = vmatmul.bf16.gmra.mxu0 %v2430
        %v3627 = vpop.f32.mrf.mxu0
        %v3628 = vadd.f32 %v3539, %v3627
        %v3629 = vpop.f32.mrf.mxu0
        %v3630 = vadd.f32 %v3541, %v3629
        %3631 = vdwg.mxu0
        %3632 = vmatpush.bf16.msra.mxu0 %v2928
        %3633 = vmatpush.bf16.msra.mxu0 %v2927
        %3634 = vmatpush.bf16.msra.mxu0 %v2926
        %3635 = vmatpush.bf16.msra.mxu0 %v2925
        %3636 = vmatpush.bf16.msra.mxu0 %v2924
        %3637 = vmatpush.bf16.msra.mxu0 %v2923
        %3638 = vmatpush.bf16.msra.mxu0 %v2922
        %3639 = vmatpush.bf16.msra.mxu0 %v2921
        %3640 = vmatmul.bf16.gmra.mxu0 %v2296
        %v3641 = vpop.f32.mrf.mxu0
        %v3642 = vadd.f32 %v3553, %v3641
        %v3643 = vpop.f32.mrf.mxu0
        %v3644 = vadd.f32 %v3555, %v3643
        %3645 = vmatmul.bf16.gmra.mxu0 %v2305
        %v3646 = vpop.f32.mrf.mxu0
        %v3647 = vadd.f32 %v3558, %v3646
        %v3648 = vpop.f32.mrf.mxu0
        %v3649 = vadd.f32 %v3560, %v3648
        %3650 = vmatmul.bf16.gmra.mxu0 %v2314
        %v3651 = vpop.f32.mrf.mxu0
        %v3652 = vadd.f32 %v3563, %v3651
        %v3653 = vpop.f32.mrf.mxu0
        %v3654 = vadd.f32 %v3565, %v3653
        %3655 = vmatmul.bf16.gmra.mxu0 %v2323
        %v3656 = vpop.f32.mrf.mxu0
        %v3657 = vadd.f32 %v3568, %v3656
        %v3658 = vpop.f32.mrf.mxu0
        %v3659 = vadd.f32 %v3570, %v3658
        %3660 = vmatmul.bf16.gmra.mxu0 %v2332
        %v3661 = vpop.f32.mrf.mxu0
        %v3662 = vadd.f32 %v3573, %v3661
        %v3663 = vpop.f32.mrf.mxu0
        %v3664 = vadd.f32 %v3575, %v3663
        %3665 = vmatmul.bf16.gmra.mxu0 %v2341
        %v3666 = vpop.f32.mrf.mxu0
        %v3667 = vadd.f32 %v3578, %v3666
        %v3668 = vpop.f32.mrf.mxu0
        %v3669 = vadd.f32 %v3580, %v3668
        %3670 = vmatmul.bf16.gmra.mxu0 %v2350
        %v3671 = vpop.f32.mrf.mxu0
        %v3672 = vadd.f32 %v3583, %v3671
        %v3673 = vpop.f32.mrf.mxu0
        %v3674 = vadd.f32 %v3585, %v3673
        %3675 = vmatmul.bf16.gmra.mxu0 %v2359
        %v3676 = vpop.f32.mrf.mxu0
        %v3677 = vadd.f32 %v3588, %v3676
        %v3678 = vpop.f32.mrf.mxu0
        %v3679 = vadd.f32 %v3590, %v3678
        %3680 = vmatmul.bf16.gmra.mxu0 %v2368
        %v3681 = vpop.f32.mrf.mxu0
        %v3682 = vadd.f32 %v3593, %v3681
        %v3683 = vpop.f32.mrf.mxu0
        %v3684 = vadd.f32 %v3595, %v3683
        %3685 = vmatmul.bf16.gmra.mxu0 %v2377
        %v3686 = vpop.f32.mrf.mxu0
        %v3687 = vadd.f32 %v3598, %v3686
        %v3688 = vpop.f32.mrf.mxu0
        %v3689 = vadd.f32 %v3600, %v3688
        %3690 = vmatmul.bf16.gmra.mxu0 %v2386
        %v3691 = vpop.f32.mrf.mxu0
        %v3692 = vadd.f32 %v3603, %v3691
        %v3693 = vpop.f32.mrf.mxu0
        %v3694 = vadd.f32 %v3605, %v3693
        %3695 = vmatmul.bf16.gmra.mxu0 %v2395
        %v3696 = vpop.f32.mrf.mxu0
        %v3697 = vadd.f32 %v3608, %v3696
        %v3698 = vpop.f32.mrf.mxu0
        %v3699 = vadd.f32 %v3610, %v3698
        %3700 = vmatmul.bf16.gmra.mxu0 %v2404
        %v3701 = vpop.f32.mrf.mxu0
        %v3702 = vadd.f32 %v3613, %v3701
        %v3703 = vpop.f32.mrf.mxu0
        %v3704 = vadd.f32 %v3615, %v3703
        %3705 = vmatmul.bf16.gmra.mxu0 %v2413
        %v3706 = vpop.f32.mrf.mxu0
        %v3707 = vadd.f32 %v3618, %v3706
        %v3708 = vpop.f32.mrf.mxu0
        %v3709 = vadd.f32 %v3620, %v3708
        %3710 = vmatmul.bf16.gmra.mxu0 %v2422
        %v3711 = vpop.f32.mrf.mxu0
        %v3712 = vadd.f32 %v3623, %v3711
        %v3713 = vpop.f32.mrf.mxu0
        %v3714 = vadd.f32 %v3625, %v3713
        %3715 = vmatmul.bf16.gmra.mxu0 %v2431
        %v3716 = vpop.f32.mrf.mxu0
        %v3717 = vadd.f32 %v3628, %v3716
        %v3718 = vpop.f32.mrf.mxu0
        %v3719 = vadd.f32 %v3630, %v3718
        %3720 = vdwg.mxu0
        %3721 = vmatpush.bf16.msra.mxu0 %v2936
        %3722 = vmatpush.bf16.msra.mxu0 %v2935
        %3723 = vmatpush.bf16.msra.mxu0 %v2934
        %3724 = vmatpush.bf16.msra.mxu0 %v2933
        %3725 = vmatpush.bf16.msra.mxu0 %v2932
        %3726 = vmatpush.bf16.msra.mxu0 %v2931
        %3727 = vmatpush.bf16.msra.mxu0 %v2930
        %3728 = vmatpush.bf16.msra.mxu0 %v2929
        %3729 = vmatmul.bf16.gmra.mxu0 %v2297
        %v3730 = vpop.f32.mrf.mxu0
        %v3731 = vadd.f32 %v3642, %v3730
        %v3732 = vpop.f32.mrf.mxu0
        %v3733 = vadd.f32 %v3644, %v3732
        %3734 = vmatmul.bf16.gmra.mxu0 %v2306
        %v3735 = vpop.f32.mrf.mxu0
        %v3736 = vadd.f32 %v3647, %v3735
        %v3737 = vpop.f32.mrf.mxu0
        %v3738 = vadd.f32 %v3649, %v3737
        %3739 = vmatmul.bf16.gmra.mxu0 %v2315
        %v3740 = vpop.f32.mrf.mxu0
        %v3741 = vadd.f32 %v3652, %v3740
        %v3742 = vpop.f32.mrf.mxu0
        %v3743 = vadd.f32 %v3654, %v3742
        %3744 = vmatmul.bf16.gmra.mxu0 %v2324
        %v3745 = vpop.f32.mrf.mxu0
        %v3746 = vadd.f32 %v3657, %v3745
        %v3747 = vpop.f32.mrf.mxu0
        %v3748 = vadd.f32 %v3659, %v3747
        %3749 = vmatmul.bf16.gmra.mxu0 %v2333
        %v3750 = vpop.f32.mrf.mxu0
        %v3751 = vadd.f32 %v3662, %v3750
        %v3752 = vpop.f32.mrf.mxu0
        %v3753 = vadd.f32 %v3664, %v3752
        %3754 = vmatmul.bf16.gmra.mxu0 %v2342
        %v3755 = vpop.f32.mrf.mxu0
        %v3756 = vadd.f32 %v3667, %v3755
        %v3757 = vpop.f32.mrf.mxu0
        %v3758 = vadd.f32 %v3669, %v3757
        %3759 = vmatmul.bf16.gmra.mxu0 %v2351
        %v3760 = vpop.f32.mrf.mxu0
        %v3761 = vadd.f32 %v3672, %v3760
        %v3762 = vpop.f32.mrf.mxu0
        %v3763 = vadd.f32 %v3674, %v3762
        %3764 = vmatmul.bf16.gmra.mxu0 %v2360
        %v3765 = vpop.f32.mrf.mxu0
        %v3766 = vadd.f32 %v3677, %v3765
        %v3767 = vpop.f32.mrf.mxu0
        %v3768 = vadd.f32 %v3679, %v3767
        %3769 = vmatmul.bf16.gmra.mxu0 %v2369
        %v3770 = vpop.f32.mrf.mxu0
        %v3771 = vadd.f32 %v3682, %v3770
        %v3772 = vpop.f32.mrf.mxu0
        %v3773 = vadd.f32 %v3684, %v3772
        %3774 = vmatmul.bf16.gmra.mxu0 %v2378
        %v3775 = vpop.f32.mrf.mxu0
        %v3776 = vadd.f32 %v3687, %v3775
        %v3777 = vpop.f32.mrf.mxu0
        %v3778 = vadd.f32 %v3689, %v3777
        %3779 = vmatmul.bf16.gmra.mxu0 %v2387
        %v3780 = vpop.f32.mrf.mxu0
        %v3781 = vadd.f32 %v3692, %v3780
        %v3782 = vpop.f32.mrf.mxu0
        %v3783 = vadd.f32 %v3694, %v3782
        %3784 = vmatmul.bf16.gmra.mxu0 %v2396
        %v3785 = vpop.f32.mrf.mxu0
        %v3786 = vadd.f32 %v3697, %v3785
        %v3787 = vpop.f32.mrf.mxu0
        %v3788 = vadd.f32 %v3699, %v3787
        %3789 = vmatmul.bf16.gmra.mxu0 %v2405
        %v3790 = vpop.f32.mrf.mxu0
        %v3791 = vadd.f32 %v3702, %v3790
        %v3792 = vpop.f32.mrf.mxu0
        %v3793 = vadd.f32 %v3704, %v3792
        %3794 = vmatmul.bf16.gmra.mxu0 %v2414
        %v3795 = vpop.f32.mrf.mxu0
        %v3796 = vadd.f32 %v3707, %v3795
        %v3797 = vpop.f32.mrf.mxu0
        %v3798 = vadd.f32 %v3709, %v3797
        %3799 = vmatmul.bf16.gmra.mxu0 %v2423
        %v3800 = vpop.f32.mrf.mxu0
        %v3801 = vadd.f32 %v3712, %v3800
        %v3802 = vpop.f32.mrf.mxu0
        %v3803 = vadd.f32 %v3714, %v3802
        %3804 = vmatmul.bf16.gmra.mxu0 %v2432
        %v3805 = vpop.f32.mrf.mxu0
        %v3806 = vadd.f32 %v3717, %v3805
        %v3807 = vpop.f32.mrf.mxu0
        %v3808 = vadd.f32 %v3719, %v3807
        %3809 = vdwg.mxu0
        %v3810 = vld [vmem:[%s4] sm:$0x1]
        %v3812 = vperm.slane %v3810, 0
        %v3814 = vmul.f32 %v3731, %v3812
        %v3815 = vmul.f32 %v3733, %v3812
        %v3816 = vmul.f32 %v3736, %v3812
        %v3817 = vmul.f32 %v3738, %v3812
        %v3818 = vmul.f32 %v3741, %v3812
        %v3819 = vmul.f32 %v3743, %v3812
        %v3820 = vmul.f32 %v3746, %v3812
        %v3821 = vmul.f32 %v3748, %v3812
        %v3822 = vmul.f32 %v3751, %v3812
        %v3823 = vmul.f32 %v3753, %v3812
        %v3824 = vmul.f32 %v3756, %v3812
        %v3825 = vmul.f32 %v3758, %v3812
        %v3826 = vmul.f32 %v3761, %v3812
        %v3827 = vmul.f32 %v3763, %v3812
        %v3828 = vmul.f32 %v3766, %v3812
        %v3829 = vmul.f32 %v3768, %v3812
        %v3830 = vmul.f32 %v3771, %v3812
        %v3831 = vmul.f32 %v3773, %v3812
        %v3832 = vmul.f32 %v3776, %v3812
        %v3833 = vmul.f32 %v3778, %v3812
        %v3834 = vmul.f32 %v3781, %v3812
        %v3835 = vmul.f32 %v3783, %v3812
        %v3836 = vmul.f32 %v3786, %v3812
        %v3837 = vmul.f32 %v3788, %v3812
        %v3838 = vmul.f32 %v3791, %v3812
        %v3839 = vmul.f32 %v3793, %v3812
        %v3840 = vmul.f32 %v3796, %v3812
        %v3841 = vmul.f32 %v3798, %v3812
        %v3842 = vmul.f32 %v3801, %v3812
        %v3843 = vmul.f32 %v3803, %v3812
        %v3844 = vmul.f32 %v3806, %v3812
        %v3845 = vmul.f32 %v3808, %v3812
        %v3846 = vld [vmem:[%s5] sm:$0x1]
        %v3848 = vperm.slane %v3846, 0
        %v3850 = vadd.f32 %v3814, %v3848
        %v3851 = vadd.f32 %v3815, %v3848
        %v3852 = vadd.f32 %v3816, %v3848
        %v3853 = vadd.f32 %v3817, %v3848
        %v3854 = vadd.f32 %v3818, %v3848
        %v3855 = vadd.f32 %v3819, %v3848
        %v3856 = vadd.f32 %v3820, %v3848
        %v3857 = vadd.f32 %v3821, %v3848
        %v3858 = vadd.f32 %v3822, %v3848
        %v3859 = vadd.f32 %v3823, %v3848
        %v3860 = vadd.f32 %v3824, %v3848
        %v3861 = vadd.f32 %v3825, %v3848
        %v3862 = vadd.f32 %v3826, %v3848
        %v3863 = vadd.f32 %v3827, %v3848
        %v3864 = vadd.f32 %v3828, %v3848
        %v3865 = vadd.f32 %v3829, %v3848
        %v3866 = vadd.f32 %v3830, %v3848
        %v3867 = vadd.f32 %v3831, %v3848
        %v3868 = vadd.f32 %v3832, %v3848
        %v3869 = vadd.f32 %v3833, %v3848
        %v3870 = vadd.f32 %v3834, %v3848
        %v3871 = vadd.f32 %v3835, %v3848
        %v3872 = vadd.f32 %v3836, %v3848
        %v3873 = vadd.f32 %v3837, %v3848
        %v3874 = vadd.f32 %v3838, %v3848
        %v3875 = vadd.f32 %v3839, %v3848
        %v3876 = vadd.f32 %v3840, %v3848
        %v3877 = vadd.f32 %v3841, %v3848
        %v3878 = vadd.f32 %v3842, %v3848
        %v3879 = vadd.f32 %v3843, %v3848
        %v3880 = vadd.f32 %v3844, %v3848
        %v3881 = vadd.f32 %v3845, %v3848
        %v3882 = vmax.f32 %v3850, 0.0
        %v3883 = vmax.f32 %v3851, 0.0
        %v3884 = vmax.f32 %v3852, 0.0
        %v3885 = vmax.f32 %v3853, 0.0
        %v3886 = vmax.f32 %v3854, 0.0
        %v3887 = vmax.f32 %v3855, 0.0
        %v3888 = vmax.f32 %v3856, 0.0
        %v3889 = vmax.f32 %v3857, 0.0
        %v3890 = vmax.f32 %v3858, 0.0
        %v3891 = vmax.f32 %v3859, 0.0
        %v3892 = vmax.f32 %v3860, 0.0
        %v3893 = vmax.f32 %v3861, 0.0
        %v3894 = vmax.f32 %v3862, 0.0
        %v3895 = vmax.f32 %v3863, 0.0
        %v3896 = vmax.f32 %v3864, 0.0
        %v3897 = vmax.f32 %v3865, 0.0
        %v3898 = vmax.f32 %v3866, 0.0
        %v3899 = vmax.f32 %v3867, 0.0
        %v3900 = vmax.f32 %v3868, 0.0
        %v3901 = vmax.f32 %v3869, 0.0
        %v3902 = vmax.f32 %v3870, 0.0
        %v3903 = vmax.f32 %v3871, 0.0
        %v3904 = vmax.f32 %v3872, 0.0
        %v3905 = vmax.f32 %v3873, 0.0
        %v3906 = vmax.f32 %v3874, 0.0
        %v3907 = vmax.f32 %v3875, 0.0
        %v3908 = vmax.f32 %v3876, 0.0
        %v3909 = vmax.f32 %v3877, 0.0
        %v3910 = vmax.f32 %v3878, 0.0
        %v3911 = vmax.f32 %v3879, 0.0
        %v3912 = vmax.f32 %v3880, 0.0
        %v3913 = vmax.f32 %v3881, 0.0
        %3914 = vst [vmem:[%s639 + $0x1] sm:$0xff] %v3882
        %3915 = vst [vmem:[%s639 + $0x9] sm:$0xff] %v3883
        %3916 = vst [vmem:[%s639 + $0x19] sm:$0xff] %v3884
        %3917 = vst [vmem:[%s639 + $0x21] sm:$0xff] %v3885
        %3918 = vst [vmem:[%s639 + $0x31] sm:$0xff] %v3886
        %3919 = vst [vmem:[%s639 + $0x39] sm:$0xff] %v3887
        %3920 = vst [vmem:[%s639 + $0x49] sm:$0xff] %v3888
        %3921 = vst [vmem:[%s639 + $0x51] sm:$0xff] %v3889
        %3922 = vst [vmem:[%s639 + $0x61] sm:$0xff] %v3890
        %3923 = vst [vmem:[%s639 + $0x69] sm:$0xff] %v3891
        %3924 = vst [vmem:[%s639 + $0x79] sm:$0xff] %v3892
        %3925 = vst [vmem:[%s639 + $0x81] sm:$0xff] %v3893
        %3926 = vst [vmem:[%s639 + $0x91] sm:$0xff] %v3894
        %3927 = vst [vmem:[%s639 + $0x99] sm:$0xff] %v3895
        %3928 = vst [vmem:[%s639 + $0xa9] sm:$0xff] %v3896
        %3929 = vst [vmem:[%s639 + $0xb1] sm:$0xff] %v3897
        %3930 = vst [vmem:[%s639 + $0xc1] sm:$0xff] %v3898
        %3931 = vst [vmem:[%s639 + $0xc9] sm:$0xff] %v3899
        %3932 = vst [vmem:[%s639 + $0xd9] sm:$0xff] %v3900
        %3933 = vst [vmem:[%s639 + $0xe1] sm:$0xff] %v3901
        %3934 = vst [vmem:[%s639 + $0xf1] sm:$0xff] %v3902
        %3935 = vst [vmem:[%s639 + $0xf9] sm:$0xff] %v3903
        %3936 = vst [vmem:[%s639 + $0x109] sm:$0xff] %v3904
        %3937 = vst [vmem:[%s639 + $0x111] sm:$0xff] %v3905
        %3938 = vst [vmem:[%s639 + $0x121] sm:$0xff] %v3906
        %3939 = vst [vmem:[%s639 + $0x129] sm:$0xff] %v3907
        %3940 = vst [vmem:[%s639 + $0x139] sm:$0xff] %v3908
        %3941 = vst [vmem:[%s639 + $0x141] sm:$0xff] %v3909
        %3942 = vst [vmem:[%s639 + $0x151] sm:$0xff] %v3910
        %3943 = vst [vmem:[%s639 + $0x159] sm:$0xff] %v3911
        %3944 = vst [vmem:[%s639 + $0x169] sm:$0xff] %v3912
        %3945 = vst [vmem:[%s639 + $0x171] sm:$0xff] %v3913
        %v3946 = vld [vmem:[#allocation2] sm:$0xff]
        %v3947 = vld [vmem:[#allocation2 + $0x8] sm:$0xff]
        %v3948 = vld [vmem:[#allocation2 + $0x18] sm:$0xff]
        %v3949 = vld [vmem:[#allocation2 + $0x20] sm:$0xff]
        %v3950 = vld [vmem:[#allocation2 + $0x30] sm:$0xff]
        %v3951 = vld [vmem:[#allocation2 + $0x38] sm:$0xff]
        %v3952 = vld [vmem:[#allocation2 + $0x48] sm:$0xff]
        %v3953 = vld [vmem:[#allocation2 + $0x50] sm:$0xff]
        %v3954 = vld [vmem:[#allocation2 + $0x60] sm:$0xff]
        %v3955 = vld [vmem:[#allocation2 + $0x68] sm:$0xff]
        %v3956 = vld [vmem:[#allocation2 + $0x78] sm:$0xff]
        %v3957 = vld [vmem:[#allocation2 + $0x80] sm:$0xff]
        %v3958 = vld [vmem:[#allocation2 + $0x90] sm:$0xff]
        %v3959 = vld [vmem:[#allocation2 + $0x98] sm:$0xff]
        %v3960 = vld [vmem:[#allocation2 + $0xa8] sm:$0xff]
        %v3961 = vld [vmem:[#allocation2 + $0xb0] sm:$0xff]
        %v3962 = vld [vmem:[#allocation2 + $0xc0] sm:$0xff]
        %v3963 = vld [vmem:[#allocation2 + $0xc8] sm:$0xff]
        %v3964 = vld [vmem:[#allocation2 + $0xd8] sm:$0xff]
        %v3965 = vld [vmem:[#allocation2 + $0xe0] sm:$0xff]
        %v3966 = vld [vmem:[#allocation2 + $0xf0] sm:$0xff]
        %v3967 = vld [vmem:[#allocation2 + $0xf8] sm:$0xff]
        %v3968 = vld [vmem:[#allocation2 + $0x108] sm:$0xff]
        %v3969 = vld [vmem:[#allocation2 + $0x110] sm:$0xff]
        %v3970 = vld [vmem:[#allocation2 + $0x120] sm:$0xff]
        %v3971 = vld [vmem:[#allocation2 + $0x128] sm:$0xff]
        %v3972 = vld [vmem:[#allocation2 + $0x138] sm:$0xff]
        %v3973 = vld [vmem:[#allocation2 + $0x140] sm:$0xff]
        %v3974 = vld [vmem:[#allocation2 + $0x150] sm:$0xff]
        %v3975 = vld [vmem:[#allocation2 + $0x158] sm:$0xff]
        %v3976 = vld [vmem:[#allocation2 + $0x168] sm:$0xff]
        %v3977 = vld [vmem:[#allocation2 + $0x170] sm:$0xff]
        %v3978 = vpack.c.bf16 %v3946, %v3946
        %v3979 = vpack.c.bf16 %v3947, %v3947
        %v3980 = vpack.c.bf16 %v3948, %v3948
        %v3981 = vpack.c.bf16 %v3949, %v3949
        %v3982 = vpack.c.bf16 %v3950, %v3950
        %v3983 = vpack.c.bf16 %v3951, %v3951
        %v3984 = vpack.c.bf16 %v3952, %v3952
        %v3985 = vpack.c.bf16 %v3953, %v3953
        %v3986 = vpack.c.bf16 %v3954, %v3954
        %v3987 = vpack.c.bf16 %v3955, %v3955
        %v3988 = vpack.c.bf16 %v3956, %v3956
        %v3989 = vpack.c.bf16 %v3957, %v3957
        %v3990 = vpack.c.bf16 %v3958, %v3958
        %v3991 = vpack.c.bf16 %v3959, %v3959
        %v3992 = vpack.c.bf16 %v3960, %v3960
        %v3993 = vpack.c.bf16 %v3961, %v3961
        %v3994 = vpack.c.bf16 %v3962, %v3962
        %v3995 = vpack.c.bf16 %v3963, %v3963
        %v3996 = vpack.c.bf16 %v3964, %v3964
        %v3997 = vpack.c.bf16 %v3965, %v3965
        %v3998 = vpack.c.bf16 %v3966, %v3966
        %v3999 = vpack.c.bf16 %v3967, %v3967
        %v4000 = vpack.c.bf16 %v3968, %v3968
        %v4001 = vpack.c.bf16 %v3969, %v3969
        %v4002 = vpack.c.bf16 %v3970, %v3970
        %v4003 = vpack.c.bf16 %v3971, %v3971
        %v4004 = vpack.c.bf16 %v3972, %v3972
        %v4005 = vpack.c.bf16 %v3973, %v3973
        %v4006 = vpack.c.bf16 %v3974, %v3974
        %v4007 = vpack.c.bf16 %v3975, %v3975
        %v4008 = vpack.c.bf16 %v3976, %v3976
        %v4009 = vpack.c.bf16 %v3977, %v3977
        %4010 = vst [vmem:[#allocation3] sm:$0xf] %v3978
        %4011 = vst [vmem:[#allocation3 + $0x24] sm:$0xf] %v3979
        %4012 = vst [vmem:[#allocation3 + $0x48] sm:$0xf] %v3980
        %4013 = vst [vmem:[#allocation3 + $0x6c] sm:$0xf] %v3981
        %4014 = vst [vmem:[#allocation3 + $0x90] sm:$0xf] %v3982
        %4015 = vst [vmem:[#allocation3 + $0xb4] sm:$0xf] %v3983
        %4016 = vst [vmem:[#allocation3 + $0xd8] sm:$0xf] %v3984
        %4017 = vst [vmem:[#allocation3 + $0xfc] sm:$0xf] %v3985
        %4018 = vst [vmem:[#allocation3 + $0x120] sm:$0xf] %v3986
        %4019 = vst [vmem:[#allocation3 + $0x144] sm:$0xf] %v3987
        %4020 = vst [vmem:[#allocation3 + $0x168] sm:$0xf] %v3988
        %4021 = vst [vmem:[#allocation3 + $0x18c] sm:$0xf] %v3989
        %4022 = vst [vmem:[#allocation3 + $0x1b0] sm:$0xf] %v3990
        %4023 = vst [vmem:[#allocation3 + $0x1d4] sm:$0xf] %v3991
        %4024 = vst [vmem:[#allocation3 + $0x1f8] sm:$0xf] %v3992
        %4025 = vst [vmem:[#allocation3 + $0x21c] sm:$0xf] %v3993
        %4026 = vst [vmem:[#allocation3 + $0x240] sm:$0xf] %v3994
        %4027 = vst [vmem:[#allocation3 + $0x264] sm:$0xf] %v3995
        %4028 = vst [vmem:[#allocation3 + $0x288] sm:$0xf] %v3996
        %4029 = vst [vmem:[#allocation3 + $0x2ac] sm:$0xf] %v3997
        %4030 = vst [vmem:[#allocation3 + $0x2d0] sm:$0xf] %v3998
        %4031 = vst [vmem:[#allocation3 + $0x2f4] sm:$0xf] %v3999
        %4032 = vst [vmem:[#allocation3 + $0x318] sm:$0xf] %v4000
        %4033 = vst [vmem:[#allocation3 + $0x33c] sm:$0xf] %v4001
        %4034 = vst [vmem:[#allocation3 + $0x360] sm:$0xf] %v4002
        %4035 = vst [vmem:[#allocation3 + $0x384] sm:$0xf] %v4003
        %4036 = vst [vmem:[#allocation3 + $0x3a8] sm:$0xf] %v4004
        %4037 = vst [vmem:[#allocation3 + $0x3cc] sm:$0xf] %v4005
        %4038 = vst [vmem:[#allocation3 + $0x3f0] sm:$0xf] %v4006
        %4039 = vst [vmem:[#allocation3 + $0x414] sm:$0xf] %v4007
        %4040 = vst [vmem:[#allocation3 + $0x438] sm:$0xf] %v4008
        %4041 = vst [vmem:[#allocation3 + $0x45c] sm:$0xf] %v4009
        %v4042 = vld [vmem:[#allocation2 + $0x1] sm:$0xff]
        %v4043 = vld [vmem:[#allocation2 + $0x9] sm:$0xff]
        %v4044 = vld [vmem:[#allocation2 + $0x19] sm:$0xff]
        %v4045 = vld [vmem:[#allocation2 + $0x21] sm:$0xff]
        %v4046 = vld [vmem:[#allocation2 + $0x31] sm:$0xff]
        %v4047 = vld [vmem:[#allocation2 + $0x39] sm:$0xff]
        %v4048 = vld [vmem:[#allocation2 + $0x49] sm:$0xff]
        %v4049 = vld [vmem:[#allocation2 + $0x51] sm:$0xff]
        %v4050 = vld [vmem:[#allocation2 + $0x61] sm:$0xff]
        %v4051 = vld [vmem:[#allocation2 + $0x69] sm:$0xff]
        %v4052 = vld [vmem:[#allocation2 + $0x79] sm:$0xff]
        %v4053 = vld [vmem:[#allocation2 + $0x81] sm:$0xff]
        %v4054 = vld [vmem:[#allocation2 + $0x91] sm:$0xff]
        %v4055 = vld [vmem:[#allocation2 + $0x99] sm:$0xff]
        %v4056 = vld [vmem:[#allocation2 + $0xa9] sm:$0xff]
        %v4057 = vld [vmem:[#allocation2 + $0xb1] sm:$0xff]
        %v4058 = vld [vmem:[#allocation2 + $0xc1] sm:$0xff]
        %v4059 = vld [vmem:[#allocation2 + $0xc9] sm:$0xff]
        %v4060 = vld [vmem:[#allocation2 + $0xd9] sm:$0xff]
        %v4061 = vld [vmem:[#allocation2 + $0xe1] sm:$0xff]
        %v4062 = vld [vmem:[#allocation2 + $0xf1] sm:$0xff]
        %v4063 = vld [vmem:[#allocation2 + $0xf9] sm:$0xff]
        %v4064 = vld [vmem:[#allocation2 + $0x109] sm:$0xff]
        %v4065 = vld [vmem:[#allocation2 + $0x111] sm:$0xff]
        %v4066 = vld [vmem:[#allocation2 + $0x121] sm:$0xff]
        %v4067 = vld [vmem:[#allocation2 + $0x129] sm:$0xff]
        %v4068 = vld [vmem:[#allocation2 + $0x139] sm:$0xff]
        %v4069 = vld [vmem:[#allocation2 + $0x141] sm:$0xff]
        %v4070 = vld [vmem:[#allocation2 + $0x151] sm:$0xff]
        %v4071 = vld [vmem:[#allocation2 + $0x159] sm:$0xff]
        %v4072 = vld [vmem:[#allocation2 + $0x169] sm:$0xff]
        %v4073 = vld [vmem:[#allocation2 + $0x171] sm:$0xff]
        %v4074 = vpack.c.bf16 %v4042, %v4042
        %v4075 = vpack.c.bf16 %v4043, %v4043
        %v4076 = vpack.c.bf16 %v4044, %v4044
        %v4077 = vpack.c.bf16 %v4045, %v4045
        %v4078 = vpack.c.bf16 %v4046, %v4046
        %v4079 = vpack.c.bf16 %v4047, %v4047
        %v4080 = vpack.c.bf16 %v4048, %v4048
        %v4081 = vpack.c.bf16 %v4049, %v4049
        %v4082 = vpack.c.bf16 %v4050, %v4050
        %v4083 = vpack.c.bf16 %v4051, %v4051
        %v4084 = vpack.c.bf16 %v4052, %v4052
        %v4085 = vpack.c.bf16 %v4053, %v4053
        %v4086 = vpack.c.bf16 %v4054, %v4054
        %v4087 = vpack.c.bf16 %v4055, %v4055
        %v4088 = vpack.c.bf16 %v4056, %v4056
        %v4089 = vpack.c.bf16 %v4057, %v4057
        %v4090 = vpack.c.bf16 %v4058, %v4058
        %v4091 = vpack.c.bf16 %v4059, %v4059
        %v4092 = vpack.c.bf16 %v4060, %v4060
        %v4093 = vpack.c.bf16 %v4061, %v4061
        %v4094 = vpack.c.bf16 %v4062, %v4062
        %v4095 = vpack.c.bf16 %v4063, %v4063
        %v4096 = vpack.c.bf16 %v4064, %v4064
        %v4097 = vpack.c.bf16 %v4065, %v4065
        %v4098 = vpack.c.bf16 %v4066, %v4066
        %v4099 = vpack.c.bf16 %v4067, %v4067
        %v4100 = vpack.c.bf16 %v4068, %v4068
        %v4101 = vpack.c.bf16 %v4069, %v4069
        %v4102 = vpack.c.bf16 %v4070, %v4070
        %v4103 = vpack.c.bf16 %v4071, %v4071
        %v4104 = vpack.c.bf16 %v4072, %v4072
        %v4105 = vpack.c.bf16 %v4073, %v4073
        %4106 = vst [vmem:[#allocation3 + $0x4] sm:$0xf] %v4074
        %4107 = vst [vmem:[#allocation3 + $0x28] sm:$0xf] %v4075
        %4108 = vst [vmem:[#allocation3 + $0x4c] sm:$0xf] %v4076
        %4109 = vst [vmem:[#allocation3 + $0x70] sm:$0xf] %v4077
        %4110 = vst [vmem:[#allocation3 + $0x94] sm:$0xf] %v4078
        %4111 = vst [vmem:[#allocation3 + $0xb8] sm:$0xf] %v4079
        %4112 = vst [vmem:[#allocation3 + $0xdc] sm:$0xf] %v4080
        %4113 = vst [vmem:[#allocation3 + $0x100] sm:$0xf] %v4081
        %4114 = vst [vmem:[#allocation3 + $0x124] sm:$0xf] %v4082
        %4115 = vst [vmem:[#allocation3 + $0x148] sm:$0xf] %v4083
        %4116 = vst [vmem:[#allocation3 + $0x16c] sm:$0xf] %v4084
        %4117 = vst [vmem:[#allocation3 + $0x190] sm:$0xf] %v4085
        %4118 = vst [vmem:[#allocation3 + $0x1b4] sm:$0xf] %v4086
        %4119 = vst [vmem:[#allocation3 + $0x1d8] sm:$0xf] %v4087
        %4120 = vst [vmem:[#allocation3 + $0x1fc] sm:$0xf] %v4088
        %4121 = vst [vmem:[#allocation3 + $0x220] sm:$0xf] %v4089
        %4122 = vst [vmem:[#allocation3 + $0x244] sm:$0xf] %v4090
        %4123 = vst [vmem:[#allocation3 + $0x268] sm:$0xf] %v4091
        %4124 = vst [vmem:[#allocation3 + $0x28c] sm:$0xf] %v4092
        %4125 = vst [vmem:[#allocation3 + $0x2b0] sm:$0xf] %v4093
        %4126 = vst [vmem:[#allocation3 + $0x2d4] sm:$0xf] %v4094
        %4127 = vst [vmem:[#allocation3 + $0x2f8] sm:$0xf] %v4095
        %4128 = vst [vmem:[#allocation3 + $0x31c] sm:$0xf] %v4096
        %4129 = vst [vmem:[#allocation3 + $0x340] sm:$0xf] %v4097
        %4130 = vst [vmem:[#allocation3 + $0x364] sm:$0xf] %v4098
        %4131 = vst [vmem:[#allocation3 + $0x388] sm:$0xf] %v4099
        %4132 = vst [vmem:[#allocation3 + $0x3ac] sm:$0xf] %v4100
        %4133 = vst [vmem:[#allocation3 + $0x3d0] sm:$0xf] %v4101
        %4134 = vst [vmem:[#allocation3 + $0x3f4] sm:$0xf] %v4102
        %4135 = vst [vmem:[#allocation3 + $0x418] sm:$0xf] %v4103
        %4136 = vst [vmem:[#allocation3 + $0x43c] sm:$0xf] %v4104
        %4137 = vst [vmem:[#allocation3 + $0x460] sm:$0xf] %v4105
        %v4138 = vld [vmem:[#allocation2 + $0x2] sm:$0xff]
        %v4139 = vld [vmem:[#allocation2 + $0xa] sm:$0xff]
        %v4140 = vld [vmem:[#allocation2 + $0x1a] sm:$0xff]
        %v4141 = vld [vmem:[#allocation2 + $0x22] sm:$0xff]
        %v4142 = vld [vmem:[#allocation2 + $0x32] sm:$0xff]
        %v4143 = vld [vmem:[#allocation2 + $0x3a] sm:$0xff]
        %v4144 = vld [vmem:[#allocation2 + $0x4a] sm:$0xff]
        %v4145 = vld [vmem:[#allocation2 + $0x52] sm:$0xff]
        %v4146 = vld [vmem:[#allocation2 + $0x62] sm:$0xff]
        %v4147 = vld [vmem:[#allocation2 + $0x6a] sm:$0xff]
        %v4148 = vld [vmem:[#allocation2 + $0x7a] sm:$0xff]
        %v4149 = vld [vmem:[#allocation2 + $0x82] sm:$0xff]
        %v4150 = vld [vmem:[#allocation2 + $0x92] sm:$0xff]
        %v4151 = vld [vmem:[#allocation2 + $0x9a] sm:$0xff]
        %v4152 = vld [vmem:[#allocation2 + $0xaa] sm:$0xff]
        %v4153 = vld [vmem:[#allocation2 + $0xb2] sm:$0xff]
        %v4154 = vld [vmem:[#allocation2 + $0xc2] sm:$0xff]
        %v4155 = vld [vmem:[#allocation2 + $0xca] sm:$0xff]
        %v4156 = vld [vmem:[#allocation2 + $0xda] sm:$0xff]
        %v4157 = vld [vmem:[#allocation2 + $0xe2] sm:$0xff]
        %v4158 = vld [vmem:[#allocation2 + $0xf2] sm:$0xff]
        %v4159 = vld [vmem:[#allocation2 + $0xfa] sm:$0xff]
        %v4160 = vld [vmem:[#allocation2 + $0x10a] sm:$0xff]
        %v4161 = vld [vmem:[#allocation2 + $0x112] sm:$0xff]
        %v4162 = vld [vmem:[#allocation2 + $0x122] sm:$0xff]
        %v4163 = vld [vmem:[#allocation2 + $0x12a] sm:$0xff]
        %v4164 = vld [vmem:[#allocation2 + $0x13a] sm:$0xff]
        %v4165 = vld [vmem:[#allocation2 + $0x142] sm:$0xff]
        %v4166 = vld [vmem:[#allocation2 + $0x152] sm:$0xff]
        %v4167 = vld [vmem:[#allocation2 + $0x15a] sm:$0xff]
        %v4168 = vld [vmem:[#allocation2 + $0x16a] sm:$0xff]
        %v4169 = vld [vmem:[#allocation2 + $0x172] sm:$0xff]
        %v4170 = vpack.c.bf16 %v4138, %v4138
        %v4171 = vpack.c.bf16 %v4139, %v4139
        %v4172 = vpack.c.bf16 %v4140, %v4140
        %v4173 = vpack.c.bf16 %v4141, %v4141
        %v4174 = vpack.c.bf16 %v4142, %v4142
        %v4175 = vpack.c.bf16 %v4143, %v4143
        %v4176 = vpack.c.bf16 %v4144, %v4144
        %v4177 = vpack.c.bf16 %v4145, %v4145
        %v4178 = vpack.c.bf16 %v4146, %v4146
        %v4179 = vpack.c.bf16 %v4147, %v4147
        %v4180 = vpack.c.bf16 %v4148, %v4148
        %v4181 = vpack.c.bf16 %v4149, %v4149
        %v4182 = vpack.c.bf16 %v4150, %v4150
        %v4183 = vpack.c.bf16 %v4151, %v4151
        %v4184 = vpack.c.bf16 %v4152, %v4152
        %v4185 = vpack.c.bf16 %v4153, %v4153
        %v4186 = vpack.c.bf16 %v4154, %v4154
        %v4187 = vpack.c.bf16 %v4155, %v4155
        %v4188 = vpack.c.bf16 %v4156, %v4156
        %v4189 = vpack.c.bf16 %v4157, %v4157
        %v4190 = vpack.c.bf16 %v4158, %v4158
        %v4191 = vpack.c.bf16 %v4159, %v4159
        %v4192 = vpack.c.bf16 %v4160, %v4160
        %v4193 = vpack.c.bf16 %v4161, %v4161
        %v4194 = vpack.c.bf16 %v4162, %v4162
        %v4195 = vpack.c.bf16 %v4163, %v4163
        %v4196 = vpack.c.bf16 %v4164, %v4164
        %v4197 = vpack.c.bf16 %v4165, %v4165
        %v4198 = vpack.c.bf16 %v4166, %v4166
        %v4199 = vpack.c.bf16 %v4167, %v4167
        %v4200 = vpack.c.bf16 %v4168, %v4168
        %v4201 = vpack.c.bf16 %v4169, %v4169
        %4202 = vst [vmem:[#allocation3 + $0x8] sm:$0xf] %v4170
        %4203 = vst [vmem:[#allocation3 + $0x2c] sm:$0xf] %v4171
        %4204 = vst [vmem:[#allocation3 + $0x50] sm:$0xf] %v4172
        %4205 = vst [vmem:[#allocation3 + $0x74] sm:$0xf] %v4173
        %4206 = vst [vmem:[#allocation3 + $0x98] sm:$0xf] %v4174
        %4207 = vst [vmem:[#allocation3 + $0xbc] sm:$0xf] %v4175
        %4208 = vst [vmem:[#allocation3 + $0xe0] sm:$0xf] %v4176
        %4209 = vst [vmem:[#allocation3 + $0x104] sm:$0xf] %v4177
        %4210 = vst [vmem:[#allocation3 + $0x128] sm:$0xf] %v4178
        %4211 = vst [vmem:[#allocation3 + $0x14c] sm:$0xf] %v4179
        %4212 = vst [vmem:[#allocation3 + $0x170] sm:$0xf] %v4180
        %4213 = vst [vmem:[#allocation3 + $0x194] sm:$0xf] %v4181
        %4214 = vst [vmem:[#allocation3 + $0x1b8] sm:$0xf] %v4182
        %4215 = vst [vmem:[#allocation3 + $0x1dc] sm:$0xf] %v4183
        %4216 = vst [vmem:[#allocation3 + $0x200] sm:$0xf] %v4184
        %4217 = vst [vmem:[#allocation3 + $0x224] sm:$0xf] %v4185
        %4218 = vst [vmem:[#allocation3 + $0x248] sm:$0xf] %v4186
        %4219 = vst [vmem:[#allocation3 + $0x26c] sm:$0xf] %v4187
        %4220 = vst [vmem:[#allocation3 + $0x290] sm:$0xf] %v4188
        %4221 = vst [vmem:[#allocation3 + $0x2b4] sm:$0xf] %v4189
        %4222 = vst [vmem:[#allocation3 + $0x2d8] sm:$0xf] %v4190
        %4223 = vst [vmem:[#allocation3 + $0x2fc] sm:$0xf] %v4191
        %4224 = vst [vmem:[#allocation3 + $0x320] sm:$0xf] %v4192
        %4225 = vst [vmem:[#allocation3 + $0x344] sm:$0xf] %v4193
        %4226 = vst [vmem:[#allocation3 + $0x368] sm:$0xf] %v4194
        %4227 = vst [vmem:[#allocation3 + $0x38c] sm:$0xf] %v4195
        %4228 = vst [vmem:[#allocation3 + $0x3b0] sm:$0xf] %v4196
        %4229 = vst [vmem:[#allocation3 + $0x3d4] sm:$0xf] %v4197
        %4230 = vst [vmem:[#allocation3 + $0x3f8] sm:$0xf] %v4198
        %4231 = vst [vmem:[#allocation3 + $0x41c] sm:$0xf] %v4199
        %4232 = vst [vmem:[#allocation3 + $0x440] sm:$0xf] %v4200
        %4233 = vst [vmem:[#allocation3 + $0x464] sm:$0xf] %v4201
        %v4234 = vld [vmem:[%s639] sm:$0xff]
        %v4235 = vld [vmem:[%s639 + $0x8] sm:$0xff]
        %v4236 = vld [vmem:[%s639 + $0x18] sm:$0xff]
        %v4237 = vld [vmem:[%s639 + $0x20] sm:$0xff]
        %v4238 = vld [vmem:[%s639 + $0x30] sm:$0xff]
        %v4239 = vld [vmem:[%s639 + $0x38] sm:$0xff]
        %v4240 = vld [vmem:[%s639 + $0x48] sm:$0xff]
        %v4241 = vld [vmem:[%s639 + $0x50] sm:$0xff]
        %v4242 = vld [vmem:[%s639 + $0x60] sm:$0xff]
        %v4243 = vld [vmem:[%s639 + $0x68] sm:$0xff]
        %v4244 = vld [vmem:[%s639 + $0x78] sm:$0xff]
        %v4245 = vld [vmem:[%s639 + $0x80] sm:$0xff]
        %v4246 = vld [vmem:[%s639 + $0x90] sm:$0xff]
        %v4247 = vld [vmem:[%s639 + $0x98] sm:$0xff]
        %v4248 = vld [vmem:[%s639 + $0xa8] sm:$0xff]
        %v4249 = vld [vmem:[%s639 + $0xb0] sm:$0xff]
        %v4250 = vld [vmem:[%s639 + $0xc0] sm:$0xff]
        %v4251 = vld [vmem:[%s639 + $0xc8] sm:$0xff]
        %v4252 = vld [vmem:[%s639 + $0xd8] sm:$0xff]
        %v4253 = vld [vmem:[%s639 + $0xe0] sm:$0xff]
        %v4254 = vld [vmem:[%s639 + $0xf0] sm:$0xff]
        %v4255 = vld [vmem:[%s639 + $0xf8] sm:$0xff]
        %v4256 = vld [vmem:[%s639 + $0x108] sm:$0xff]
        %v4257 = vld [vmem:[%s639 + $0x110] sm:$0xff]
        %v4258 = vld [vmem:[%s639 + $0x120] sm:$0xff]
        %v4259 = vld [vmem:[%s639 + $0x128] sm:$0xff]
        %v4260 = vld [vmem:[%s639 + $0x138] sm:$0xff]
        %v4261 = vld [vmem:[%s639 + $0x140] sm:$0xff]
        %v4262 = vld [vmem:[%s639 + $0x150] sm:$0xff]
        %v4263 = vld [vmem:[%s639 + $0x158] sm:$0xff]
        %v4264 = vld [vmem:[%s639 + $0x168] sm:$0xff]
        %v4265 = vld [vmem:[%s639 + $0x170] sm:$0xff]
        %v4266 = vpack.c.bf16 %v4234, %v4234
        %v4267 = vpack.c.bf16 %v4235, %v4235
        %v4268 = vpack.c.bf16 %v4236, %v4236
        %v4269 = vpack.c.bf16 %v4237, %v4237
        %v4270 = vpack.c.bf16 %v4238, %v4238
        %v4271 = vpack.c.bf16 %v4239, %v4239
        %v4272 = vpack.c.bf16 %v4240, %v4240
        %v4273 = vpack.c.bf16 %v4241, %v4241
        %v4274 = vpack.c.bf16 %v4242, %v4242
        %v4275 = vpack.c.bf16 %v4243, %v4243
        %v4276 = vpack.c.bf16 %v4244, %v4244
        %v4277 = vpack.c.bf16 %v4245, %v4245
        %v4278 = vpack.c.bf16 %v4246, %v4246
        %v4279 = vpack.c.bf16 %v4247, %v4247
        %v4280 = vpack.c.bf16 %v4248, %v4248
        %v4281 = vpack.c.bf16 %v4249, %v4249
        %v4282 = vpack.c.bf16 %v4250, %v4250
        %v4283 = vpack.c.bf16 %v4251, %v4251
        %v4284 = vpack.c.bf16 %v4252, %v4252
        %v4285 = vpack.c.bf16 %v4253, %v4253
        %v4286 = vpack.c.bf16 %v4254, %v4254
        %v4287 = vpack.c.bf16 %v4255, %v4255
        %v4288 = vpack.c.bf16 %v4256, %v4256
        %v4289 = vpack.c.bf16 %v4257, %v4257
        %v4290 = vpack.c.bf16 %v4258, %v4258
        %v4291 = vpack.c.bf16 %v4259, %v4259
        %v4292 = vpack.c.bf16 %v4260, %v4260
        %v4293 = vpack.c.bf16 %v4261, %v4261
        %v4294 = vpack.c.bf16 %v4262, %v4262
        %v4295 = vpack.c.bf16 %v4263, %v4263
        %v4296 = vpack.c.bf16 %v4264, %v4264
        %v4297 = vpack.c.bf16 %v4265, %v4265
        %4298 = vst [vmem:[#allocation3 + $0xc] sm:$0xf] %v4266
        %4299 = vst [vmem:[#allocation3 + $0x30] sm:$0xf] %v4267
        %4300 = vst [vmem:[#allocation3 + $0x54] sm:$0xf] %v4268
        %4301 = vst [vmem:[#allocation3 + $0x78] sm:$0xf] %v4269
        %4302 = vst [vmem:[#allocation3 + $0x9c] sm:$0xf] %v4270
        %4303 = vst [vmem:[#allocation3 + $0xc0] sm:$0xf] %v4271
        %4304 = vst [vmem:[#allocation3 + $0xe4] sm:$0xf] %v4272
        %4305 = vst [vmem:[#allocation3 + $0x108] sm:$0xf] %v4273
        %4306 = vst [vmem:[#allocation3 + $0x12c] sm:$0xf] %v4274
        %4307 = vst [vmem:[#allocation3 + $0x150] sm:$0xf] %v4275
        %4308 = vst [vmem:[#allocation3 + $0x174] sm:$0xf] %v4276
        %4309 = vst [vmem:[#allocation3 + $0x198] sm:$0xf] %v4277
        %4310 = vst [vmem:[#allocation3 + $0x1bc] sm:$0xf] %v4278
        %4311 = vst [vmem:[#allocation3 + $0x1e0] sm:$0xf] %v4279
        %4312 = vst [vmem:[#allocation3 + $0x204] sm:$0xf] %v4280
        %4313 = vst [vmem:[#allocation3 + $0x228] sm:$0xf] %v4281
        %4314 = vst [vmem:[#allocation3 + $0x24c] sm:$0xf] %v4282
        %4315 = vst [vmem:[#allocation3 + $0x270] sm:$0xf] %v4283
        %4316 = vst [vmem:[#allocation3 + $0x294] sm:$0xf] %v4284
        %4317 = vst [vmem:[#allocation3 + $0x2b8] sm:$0xf] %v4285
        %4318 = vst [vmem:[#allocation3 + $0x2dc] sm:$0xf] %v4286
        %4319 = vst [vmem:[#allocation3 + $0x300] sm:$0xf] %v4287
        %4320 = vst [vmem:[#allocation3 + $0x324] sm:$0xf] %v4288
        %4321 = vst [vmem:[#allocation3 + $0x348] sm:$0xf] %v4289
        %4322 = vst [vmem:[#allocation3 + $0x36c] sm:$0xf] %v4290
        %4323 = vst [vmem:[#allocation3 + $0x390] sm:$0xf] %v4291
        %4324 = vst [vmem:[#allocation3 + $0x3b4] sm:$0xf] %v4292
        %4325 = vst [vmem:[#allocation3 + $0x3d8] sm:$0xf] %v4293
        %4326 = vst [vmem:[#allocation3 + $0x3fc] sm:$0xf] %v4294
        %4327 = vst [vmem:[#allocation3 + $0x420] sm:$0xf] %v4295
        %4328 = vst [vmem:[#allocation3 + $0x444] sm:$0xf] %v4296
        %4329 = vst [vmem:[#allocation3 + $0x468] sm:$0xf] %v4297
        %v4330 = vld [vmem:[%s639 + $0x1] sm:$0xff]
        %v4331 = vld [vmem:[%s639 + $0x9] sm:$0xff]
        %v4332 = vld [vmem:[%s639 + $0x19] sm:$0xff]
        %v4333 = vld [vmem:[%s639 + $0x21] sm:$0xff]
        %v4334 = vld [vmem:[%s639 + $0x31] sm:$0xff]
        %v4335 = vld [vmem:[%s639 + $0x39] sm:$0xff]
        %v4336 = vld [vmem:[%s639 + $0x49] sm:$0xff]
        %v4337 = vld [vmem:[%s639 + $0x51] sm:$0xff]
        %v4338 = vld [vmem:[%s639 + $0x61] sm:$0xff]
        %v4339 = vld [vmem:[%s639 + $0x69] sm:$0xff]
        %v4340 = vld [vmem:[%s639 + $0x79] sm:$0xff]
        %v4341 = vld [vmem:[%s639 + $0x81] sm:$0xff]
        %v4342 = vld [vmem:[%s639 + $0x91] sm:$0xff]
        %v4343 = vld [vmem:[%s639 + $0x99] sm:$0xff]
        %v4344 = vld [vmem:[%s639 + $0xa9] sm:$0xff]
        %v4345 = vld [vmem:[%s639 + $0xb1] sm:$0xff]
        %v4346 = vld [vmem:[%s639 + $0xc1] sm:$0xff]
        %v4347 = vld [vmem:[%s639 + $0xc9] sm:$0xff]
        %v4348 = vld [vmem:[%s639 + $0xd9] sm:$0xff]
        %v4349 = vld [vmem:[%s639 + $0xe1] sm:$0xff]
        %v4350 = vld [vmem:[%s639 + $0xf1] sm:$0xff]
        %v4351 = vld [vmem:[%s639 + $0xf9] sm:$0xff]
        %v4352 = vld [vmem:[%s639 + $0x109] sm:$0xff]
        %v4353 = vld [vmem:[%s639 + $0x111] sm:$0xff]
        %v4354 = vld [vmem:[%s639 + $0x121] sm:$0xff]
        %v4355 = vld [vmem:[%s639 + $0x129] sm:$0xff]
        %v4356 = vld [vmem:[%s639 + $0x139] sm:$0xff]
        %v4357 = vld [vmem:[%s639 + $0x141] sm:$0xff]
        %v4358 = vld [vmem:[%s639 + $0x151] sm:$0xff]
        %v4359 = vld [vmem:[%s639 + $0x159] sm:$0xff]
        %v4360 = vld [vmem:[%s639 + $0x169] sm:$0xff]
        %v4361 = vld [vmem:[%s639 + $0x171] sm:$0xff]
        %v4362 = vpack.c.bf16 %v4330, %v4330
        %v4363 = vpack.c.bf16 %v4331, %v4331
        %v4364 = vpack.c.bf16 %v4332, %v4332
        %v4365 = vpack.c.bf16 %v4333, %v4333
        %v4366 = vpack.c.bf16 %v4334, %v4334
        %v4367 = vpack.c.bf16 %v4335, %v4335
        %v4368 = vpack.c.bf16 %v4336, %v4336
        %v4369 = vpack.c.bf16 %v4337, %v4337
        %v4370 = vpack.c.bf16 %v4338, %v4338
        %v4371 = vpack.c.bf16 %v4339, %v4339
        %v4372 = vpack.c.bf16 %v4340, %v4340
        %v4373 = vpack.c.bf16 %v4341, %v4341
        %v4374 = vpack.c.bf16 %v4342, %v4342
        %v4375 = vpack.c.bf16 %v4343, %v4343
        %v4376 = vpack.c.bf16 %v4344, %v4344
        %v4377 = vpack.c.bf16 %v4345, %v4345
        %v4378 = vpack.c.bf16 %v4346, %v4346
        %v4379 = vpack.c.bf16 %v4347, %v4347
        %v4380 = vpack.c.bf16 %v4348, %v4348
        %v4381 = vpack.c.bf16 %v4349, %v4349
        %v4382 = vpack.c.bf16 %v4350, %v4350
        %v4383 = vpack.c.bf16 %v4351, %v4351
        %v4384 = vpack.c.bf16 %v4352, %v4352
        %v4385 = vpack.c.bf16 %v4353, %v4353
        %v4386 = vpack.c.bf16 %v4354, %v4354
        %v4387 = vpack.c.bf16 %v4355, %v4355
        %v4388 = vpack.c.bf16 %v4356, %v4356
        %v4389 = vpack.c.bf16 %v4357, %v4357
        %v4390 = vpack.c.bf16 %v4358, %v4358
        %v4391 = vpack.c.bf16 %v4359, %v4359
        %v4392 = vpack.c.bf16 %v4360, %v4360
        %v4393 = vpack.c.bf16 %v4361, %v4361
        %4394 = vst [vmem:[#allocation3 + $0x10] sm:$0xf] %v4362
        %4395 = vst [vmem:[#allocation3 + $0x34] sm:$0xf] %v4363
        %4396 = vst [vmem:[#allocation3 + $0x58] sm:$0xf] %v4364
        %4397 = vst [vmem:[#allocation3 + $0x7c] sm:$0xf] %v4365
        %4398 = vst [vmem:[#allocation3 + $0xa0] sm:$0xf] %v4366
        %4399 = vst [vmem:[#allocation3 + $0xc4] sm:$0xf] %v4367
        %4400 = vst [vmem:[#allocation3 + $0xe8] sm:$0xf] %v4368
        %4401 = vst [vmem:[#allocation3 + $0x10c] sm:$0xf] %v4369
        %4402 = vst [vmem:[#allocation3 + $0x130] sm:$0xf] %v4370
        %4403 = vst [vmem:[#allocation3 + $0x154] sm:$0xf] %v4371
        %4404 = vst [vmem:[#allocation3 + $0x178] sm:$0xf] %v4372
        %4405 = vst [vmem:[#allocation3 + $0x19c] sm:$0xf] %v4373
        %4406 = vst [vmem:[#allocation3 + $0x1c0] sm:$0xf] %v4374
        %4407 = vst [vmem:[#allocation3 + $0x1e4] sm:$0xf] %v4375
        %4408 = vst [vmem:[#allocation3 + $0x208] sm:$0xf] %v4376
        %4409 = vst [vmem:[#allocation3 + $0x22c] sm:$0xf] %v4377
        %4410 = vst [vmem:[#allocation3 + $0x250] sm:$0xf] %v4378
        %4411 = vst [vmem:[#allocation3 + $0x274] sm:$0xf] %v4379
        %4412 = vst [vmem:[#allocation3 + $0x298] sm:$0xf] %v4380
        %4413 = vst [vmem:[#allocation3 + $0x2bc] sm:$0xf] %v4381
        %4414 = vst [vmem:[#allocation3 + $0x2e0] sm:$0xf] %v4382
        %4415 = vst [vmem:[#allocation3 + $0x304] sm:$0xf] %v4383
        %4416 = vst [vmem:[#allocation3 + $0x328] sm:$0xf] %v4384
        %4417 = vst [vmem:[#allocation3 + $0x34c] sm:$0xf] %v4385
        %4418 = vst [vmem:[#allocation3 + $0x370] sm:$0xf] %v4386
        %4419 = vst [vmem:[#allocation3 + $0x394] sm:$0xf] %v4387
        %4420 = vst [vmem:[#allocation3 + $0x3b8] sm:$0xf] %v4388
        %4421 = vst [vmem:[#allocation3 + $0x3dc] sm:$0xf] %v4389
        %4422 = vst [vmem:[#allocation3 + $0x400] sm:$0xf] %v4390
        %4423 = vst [vmem:[#allocation3 + $0x424] sm:$0xf] %v4391
        %4424 = vst [vmem:[#allocation3 + $0x448] sm:$0xf] %v4392
        %4425 = vst [vmem:[#allocation3 + $0x46c] sm:$0xf] %v4393
        %v4426 = vld [vmem:[%s639 + $0x2] sm:$0xff]
        %v4427 = vld [vmem:[%s639 + $0xa] sm:$0xff]
        %v4428 = vld [vmem:[%s639 + $0x1a] sm:$0xff]
        %v4429 = vld [vmem:[%s639 + $0x22] sm:$0xff]
        %v4430 = vld [vmem:[%s639 + $0x32] sm:$0xff]
        %v4431 = vld [vmem:[%s639 + $0x3a] sm:$0xff]
        %v4432 = vld [vmem:[%s639 + $0x4a] sm:$0xff]
        %v4433 = vld [vmem:[%s639 + $0x52] sm:$0xff]
        %v4434 = vld [vmem:[%s639 + $0x62] sm:$0xff]
        %v4435 = vld [vmem:[%s639 + $0x6a] sm:$0xff]
        %v4436 = vld [vmem:[%s639 + $0x7a] sm:$0xff]
        %v4437 = vld [vmem:[%s639 + $0x82] sm:$0xff]
        %v4438 = vld [vmem:[%s639 + $0x92] sm:$0xff]
        %v4439 = vld [vmem:[%s639 + $0x9a] sm:$0xff]
        %v4440 = vld [vmem:[%s639 + $0xaa] sm:$0xff]
        %v4441 = vld [vmem:[%s639 + $0xb2] sm:$0xff]
        %v4442 = vld [vmem:[%s639 + $0xc2] sm:$0xff]
        %v4443 = vld [vmem:[%s639 + $0xca] sm:$0xff]
        %v4444 = vld [vmem:[%s639 + $0xda] sm:$0xff]
        %v4445 = vld [vmem:[%s639 + $0xe2] sm:$0xff]
        %v4446 = vld [vmem:[%s639 + $0xf2] sm:$0xff]
        %v4447 = vld [vmem:[%s639 + $0xfa] sm:$0xff]
        %v4448 = vld [vmem:[%s639 + $0x10a] sm:$0xff]
        %v4449 = vld [vmem:[%s639 + $0x112] sm:$0xff]
        %v4450 = vld [vmem:[%s639 + $0x122] sm:$0xff]
        %v4451 = vld [vmem:[%s639 + $0x12a] sm:$0xff]
        %v4452 = vld [vmem:[%s639 + $0x13a] sm:$0xff]
        %v4453 = vld [vmem:[%s639 + $0x142] sm:$0xff]
        %v4454 = vld [vmem:[%s639 + $0x152] sm:$0xff]
        %v4455 = vld [vmem:[%s639 + $0x15a] sm:$0xff]
        %v4456 = vld [vmem:[%s639 + $0x16a] sm:$0xff]
        %v4457 = vld [vmem:[%s639 + $0x172] sm:$0xff]
        %v4458 = vpack.c.bf16 %v4426, %v4426
        %v4459 = vpack.c.bf16 %v4427, %v4427
        %v4460 = vpack.c.bf16 %v4428, %v4428
        %v4461 = vpack.c.bf16 %v4429, %v4429
        %v4462 = vpack.c.bf16 %v4430, %v4430
        %v4463 = vpack.c.bf16 %v4431, %v4431
        %v4464 = vpack.c.bf16 %v4432, %v4432
        %v4465 = vpack.c.bf16 %v4433, %v4433
        %v4466 = vpack.c.bf16 %v4434, %v4434
        %v4467 = vpack.c.bf16 %v4435, %v4435
        %v4468 = vpack.c.bf16 %v4436, %v4436
        %v4469 = vpack.c.bf16 %v4437, %v4437
        %v4470 = vpack.c.bf16 %v4438, %v4438
        %v4471 = vpack.c.bf16 %v4439, %v4439
        %v4472 = vpack.c.bf16 %v4440, %v4440
        %v4473 = vpack.c.bf16 %v4441, %v4441
        %v4474 = vpack.c.bf16 %v4442, %v4442
        %v4475 = vpack.c.bf16 %v4443, %v4443
        %v4476 = vpack.c.bf16 %v4444, %v4444
        %v4477 = vpack.c.bf16 %v4445, %v4445
        %v4478 = vpack.c.bf16 %v4446, %v4446
        %v4479 = vpack.c.bf16 %v4447, %v4447
        %v4480 = vpack.c.bf16 %v4448, %v4448
        %v4481 = vpack.c.bf16 %v4449, %v4449
        %v4482 = vpack.c.bf16 %v4450, %v4450
        %v4483 = vpack.c.bf16 %v4451, %v4451
        %v4484 = vpack.c.bf16 %v4452, %v4452
        %v4485 = vpack.c.bf16 %v4453, %v4453
        %v4486 = vpack.c.bf16 %v4454, %v4454
        %v4487 = vpack.c.bf16 %v4455, %v4455
        %v4488 = vpack.c.bf16 %v4456, %v4456
        %v4489 = vpack.c.bf16 %v4457, %v4457
        %4490 = vst [vmem:[#allocation3 + $0x14] sm:$0xf] %v4458
        %4491 = vst [vmem:[#allocation3 + $0x38] sm:$0xf] %v4459
        %4492 = vst [vmem:[#allocation3 + $0x5c] sm:$0xf] %v4460
        %4493 = vst [vmem:[#allocation3 + $0x80] sm:$0xf] %v4461
        %4494 = vst [vmem:[#allocation3 + $0xa4] sm:$0xf] %v4462
        %4495 = vst [vmem:[#allocation3 + $0xc8] sm:$0xf] %v4463
        %4496 = vst [vmem:[#allocation3 + $0xec] sm:$0xf] %v4464
        %4497 = vst [vmem:[#allocation3 + $0x110] sm:$0xf] %v4465
        %4498 = vst [vmem:[#allocation3 + $0x134] sm:$0xf] %v4466
        %4499 = vst [vmem:[#allocation3 + $0x158] sm:$0xf] %v4467
        %4500 = vst [vmem:[#allocation3 + $0x17c] sm:$0xf] %v4468
        %4501 = vst [vmem:[#allocation3 + $0x1a0] sm:$0xf] %v4469
        %4502 = vst [vmem:[#allocation3 + $0x1c4] sm:$0xf] %v4470
        %4503 = vst [vmem:[#allocation3 + $0x1e8] sm:$0xf] %v4471
        %4504 = vst [vmem:[#allocation3 + $0x20c] sm:$0xf] %v4472
        %4505 = vst [vmem:[#allocation3 + $0x230] sm:$0xf] %v4473
        %4506 = vst [vmem:[#allocation3 + $0x254] sm:$0xf] %v4474
        %4507 = vst [vmem:[#allocation3 + $0x278] sm:$0xf] %v4475
        %4508 = vst [vmem:[#allocation3 + $0x29c] sm:$0xf] %v4476
        %4509 = vst [vmem:[#allocation3 + $0x2c0] sm:$0xf] %v4477
        %4510 = vst [vmem:[#allocation3 + $0x2e4] sm:$0xf] %v4478
        %4511 = vst [vmem:[#allocation3 + $0x308] sm:$0xf] %v4479
        %4512 = vst [vmem:[#allocation3 + $0x32c] sm:$0xf] %v4480
        %4513 = vst [vmem:[#allocation3 + $0x350] sm:$0xf] %v4481
        %4514 = vst [vmem:[#allocation3 + $0x374] sm:$0xf] %v4482
        %4515 = vst [vmem:[#allocation3 + $0x398] sm:$0xf] %v4483
        %4516 = vst [vmem:[#allocation3 + $0x3bc] sm:$0xf] %v4484
        %4517 = vst [vmem:[#allocation3 + $0x3e0] sm:$0xf] %v4485
        %4518 = vst [vmem:[#allocation3 + $0x404] sm:$0xf] %v4486
        %4519 = vst [vmem:[#allocation3 + $0x428] sm:$0xf] %v4487
        %4520 = vst [vmem:[#allocation3 + $0x44c] sm:$0xf] %v4488
        %4521 = vst [vmem:[#allocation3 + $0x470] sm:$0xf] %v4489
        %v4522 = vld [vmem:[%s1248] sm:$0xff]
        %v4523 = vld [vmem:[%s1248 + $0x8] sm:$0xff]
        %v4524 = vld [vmem:[%s1248 + $0x18] sm:$0xff]
        %v4525 = vld [vmem:[%s1248 + $0x20] sm:$0xff]
        %v4526 = vld [vmem:[%s1248 + $0x30] sm:$0xff]
        %v4527 = vld [vmem:[%s1248 + $0x38] sm:$0xff]
        %v4528 = vld [vmem:[%s1248 + $0x48] sm:$0xff]
        %v4529 = vld [vmem:[%s1248 + $0x50] sm:$0xff]
        %v4530 = vld [vmem:[%s1248 + $0x60] sm:$0xff]
        %v4531 = vld [vmem:[%s1248 + $0x68] sm:$0xff]
        %v4532 = vld [vmem:[%s1248 + $0x78] sm:$0xff]
        %v4533 = vld [vmem:[%s1248 + $0x80] sm:$0xff]
        %v4534 = vld [vmem:[%s1248 + $0x90] sm:$0xff]
        %v4535 = vld [vmem:[%s1248 + $0x98] sm:$0xff]
        %v4536 = vld [vmem:[%s1248 + $0xa8] sm:$0xff]
        %v4537 = vld [vmem:[%s1248 + $0xb0] sm:$0xff]
        %v4538 = vld [vmem:[%s1248 + $0xc0] sm:$0xff]
        %v4539 = vld [vmem:[%s1248 + $0xc8] sm:$0xff]
        %v4540 = vld [vmem:[%s1248 + $0xd8] sm:$0xff]
        %v4541 = vld [vmem:[%s1248 + $0xe0] sm:$0xff]
        %v4542 = vld [vmem:[%s1248 + $0xf0] sm:$0xff]
        %v4543 = vld [vmem:[%s1248 + $0xf8] sm:$0xff]
        %v4544 = vld [vmem:[%s1248 + $0x108] sm:$0xff]
        %v4545 = vld [vmem:[%s1248 + $0x110] sm:$0xff]
        %v4546 = vld [vmem:[%s1248 + $0x120] sm:$0xff]
        %v4547 = vld [vmem:[%s1248 + $0x128] sm:$0xff]
        %v4548 = vld [vmem:[%s1248 + $0x138] sm:$0xff]
        %v4549 = vld [vmem:[%s1248 + $0x140] sm:$0xff]
        %v4550 = vld [vmem:[%s1248 + $0x150] sm:$0xff]
        %v4551 = vld [vmem:[%s1248 + $0x158] sm:$0xff]
        %v4552 = vld [vmem:[%s1248 + $0x168] sm:$0xff]
        %v4553 = vld [vmem:[%s1248 + $0x170] sm:$0xff]
        %v4554 = vpack.c.bf16 %v4522, %v4522
        %v4555 = vpack.c.bf16 %v4523, %v4523
        %v4556 = vpack.c.bf16 %v4524, %v4524
        %v4557 = vpack.c.bf16 %v4525, %v4525
        %v4558 = vpack.c.bf16 %v4526, %v4526
        %v4559 = vpack.c.bf16 %v4527, %v4527
        %v4560 = vpack.c.bf16 %v4528, %v4528
        %v4561 = vpack.c.bf16 %v4529, %v4529
        %v4562 = vpack.c.bf16 %v4530, %v4530
        %v4563 = vpack.c.bf16 %v4531, %v4531
        %v4564 = vpack.c.bf16 %v4532, %v4532
        %v4565 = vpack.c.bf16 %v4533, %v4533
        %v4566 = vpack.c.bf16 %v4534, %v4534
        %v4567 = vpack.c.bf16 %v4535, %v4535
        %v4568 = vpack.c.bf16 %v4536, %v4536
        %v4569 = vpack.c.bf16 %v4537, %v4537
        %v4570 = vpack.c.bf16 %v4538, %v4538
        %v4571 = vpack.c.bf16 %v4539, %v4539
        %v4572 = vpack.c.bf16 %v4540, %v4540
        %v4573 = vpack.c.bf16 %v4541, %v4541
        %v4574 = vpack.c.bf16 %v4542, %v4542
        %v4575 = vpack.c.bf16 %v4543, %v4543
        %v4576 = vpack.c.bf16 %v4544, %v4544
        %v4577 = vpack.c.bf16 %v4545, %v4545
        %v4578 = vpack.c.bf16 %v4546, %v4546
        %v4579 = vpack.c.bf16 %v4547, %v4547
        %v4580 = vpack.c.bf16 %v4548, %v4548
        %v4581 = vpack.c.bf16 %v4549, %v4549
        %v4582 = vpack.c.bf16 %v4550, %v4550
        %v4583 = vpack.c.bf16 %v4551, %v4551
        %v4584 = vpack.c.bf16 %v4552, %v4552
        %v4585 = vpack.c.bf16 %v4553, %v4553
        %4586 = vst [vmem:[#allocation3 + $0x18] sm:$0xf] %v4554
        %4587 = vst [vmem:[#allocation3 + $0x3c] sm:$0xf] %v4555
        %4588 = vst [vmem:[#allocation3 + $0x60] sm:$0xf] %v4556
        %4589 = vst [vmem:[#allocation3 + $0x84] sm:$0xf] %v4557
        %4590 = vst [vmem:[#allocation3 + $0xa8] sm:$0xf] %v4558
        %4591 = vst [vmem:[#allocation3 + $0xcc] sm:$0xf] %v4559
        %4592 = vst [vmem:[#allocation3 + $0xf0] sm:$0xf] %v4560
        %4593 = vst [vmem:[#allocation3 + $0x114] sm:$0xf] %v4561
        %4594 = vst [vmem:[#allocation3 + $0x138] sm:$0xf] %v4562
        %4595 = vst [vmem:[#allocation3 + $0x15c] sm:$0xf] %v4563
        %4596 = vst [vmem:[#allocation3 + $0x180] sm:$0xf] %v4564
        %4597 = vst [vmem:[#allocation3 + $0x1a4] sm:$0xf] %v4565
        %4598 = vst [vmem:[#allocation3 + $0x1c8] sm:$0xf] %v4566
        %4599 = vst [vmem:[#allocation3 + $0x1ec] sm:$0xf] %v4567
        %4600 = vst [vmem:[#allocation3 + $0x210] sm:$0xf] %v4568
        %4601 = vst [vmem:[#allocation3 + $0x234] sm:$0xf] %v4569
        %4602 = vst [vmem:[#allocation3 + $0x258] sm:$0xf] %v4570
        %4603 = vst [vmem:[#allocation3 + $0x27c] sm:$0xf] %v4571
        %4604 = vst [vmem:[#allocation3 + $0x2a0] sm:$0xf] %v4572
        %4605 = vst [vmem:[#allocation3 + $0x2c4] sm:$0xf] %v4573
        %4606 = vst [vmem:[#allocation3 + $0x2e8] sm:$0xf] %v4574
        %4607 = vst [vmem:[#allocation3 + $0x30c] sm:$0xf] %v4575
        %4608 = vst [vmem:[#allocation3 + $0x330] sm:$0xf] %v4576
        %4609 = vst [vmem:[#allocation3 + $0x354] sm:$0xf] %v4577
        %4610 = vst [vmem:[#allocation3 + $0x378] sm:$0xf] %v4578
        %4611 = vst [vmem:[#allocation3 + $0x39c] sm:$0xf] %v4579
        %4612 = vst [vmem:[#allocation3 + $0x3c0] sm:$0xf] %v4580
        %4613 = vst [vmem:[#allocation3 + $0x3e4] sm:$0xf] %v4581
        %4614 = vst [vmem:[#allocation3 + $0x408] sm:$0xf] %v4582
        %4615 = vst [vmem:[#allocation3 + $0x42c] sm:$0xf] %v4583
        %4616 = vst [vmem:[#allocation3 + $0x450] sm:$0xf] %v4584
        %4617 = vst [vmem:[#allocation3 + $0x474] sm:$0xf] %v4585
        %v4618 = vld [vmem:[%s1248 + $0x1] sm:$0xff]
        %v4619 = vld [vmem:[%s1248 + $0x9] sm:$0xff]
        %v4620 = vld [vmem:[%s1248 + $0x19] sm:$0xff]
        %v4621 = vld [vmem:[%s1248 + $0x21] sm:$0xff]
        %v4622 = vld [vmem:[%s1248 + $0x31] sm:$0xff]
        %v4623 = vld [vmem:[%s1248 + $0x39] sm:$0xff]
        %v4624 = vld [vmem:[%s1248 + $0x49] sm:$0xff]
        %v4625 = vld [vmem:[%s1248 + $0x51] sm:$0xff]
        %v4626 = vld [vmem:[%s1248 + $0x61] sm:$0xff]
        %v4627 = vld [vmem:[%s1248 + $0x69] sm:$0xff]
        %v4628 = vld [vmem:[%s1248 + $0x79] sm:$0xff]
        %v4629 = vld [vmem:[%s1248 + $0x81] sm:$0xff]
        %v4630 = vld [vmem:[%s1248 + $0x91] sm:$0xff]
        %v4631 = vld [vmem:[%s1248 + $0x99] sm:$0xff]
        %v4632 = vld [vmem:[%s1248 + $0xa9] sm:$0xff]
        %v4633 = vld [vmem:[%s1248 + $0xb1] sm:$0xff]
        %v4634 = vld [vmem:[%s1248 + $0xc1] sm:$0xff]
        %v4635 = vld [vmem:[%s1248 + $0xc9] sm:$0xff]
        %v4636 = vld [vmem:[%s1248 + $0xd9] sm:$0xff]
        %v4637 = vld [vmem:[%s1248 + $0xe1] sm:$0xff]
        %v4638 = vld [vmem:[%s1248 + $0xf1] sm:$0xff]
        %v4639 = vld [vmem:[%s1248 + $0xf9] sm:$0xff]
        %v4640 = vld [vmem:[%s1248 + $0x109] sm:$0xff]
        %v4641 = vld [vmem:[%s1248 + $0x111] sm:$0xff]
        %v4642 = vld [vmem:[%s1248 + $0x121] sm:$0xff]
        %v4643 = vld [vmem:[%s1248 + $0x129] sm:$0xff]
        %v4644 = vld [vmem:[%s1248 + $0x139] sm:$0xff]
        %v4645 = vld [vmem:[%s1248 + $0x141] sm:$0xff]
        %v4646 = vld [vmem:[%s1248 + $0x151] sm:$0xff]
        %v4647 = vld [vmem:[%s1248 + $0x159] sm:$0xff]
        %v4648 = vld [vmem:[%s1248 + $0x169] sm:$0xff]
        %v4649 = vld [vmem:[%s1248 + $0x171] sm:$0xff]
        %v4650 = vpack.c.bf16 %v4618, %v4618
        %v4651 = vpack.c.bf16 %v4619, %v4619
        %v4652 = vpack.c.bf16 %v4620, %v4620
        %v4653 = vpack.c.bf16 %v4621, %v4621
        %v4654 = vpack.c.bf16 %v4622, %v4622
        %v4655 = vpack.c.bf16 %v4623, %v4623
        %v4656 = vpack.c.bf16 %v4624, %v4624
        %v4657 = vpack.c.bf16 %v4625, %v4625
        %v4658 = vpack.c.bf16 %v4626, %v4626
        %v4659 = vpack.c.bf16 %v4627, %v4627
        %v4660 = vpack.c.bf16 %v4628, %v4628
        %v4661 = vpack.c.bf16 %v4629, %v4629
        %v4662 = vpack.c.bf16 %v4630, %v4630
        %v4663 = vpack.c.bf16 %v4631, %v4631
        %v4664 = vpack.c.bf16 %v4632, %v4632
        %v4665 = vpack.c.bf16 %v4633, %v4633
        %v4666 = vpack.c.bf16 %v4634, %v4634
        %v4667 = vpack.c.bf16 %v4635, %v4635
        %v4668 = vpack.c.bf16 %v4636, %v4636
        %v4669 = vpack.c.bf16 %v4637, %v4637
        %v4670 = vpack.c.bf16 %v4638, %v4638
        %v4671 = vpack.c.bf16 %v4639, %v4639
        %v4672 = vpack.c.bf16 %v4640, %v4640
        %v4673 = vpack.c.bf16 %v4641, %v4641
        %v4674 = vpack.c.bf16 %v4642, %v4642
        %v4675 = vpack.c.bf16 %v4643, %v4643
        %v4676 = vpack.c.bf16 %v4644, %v4644
        %v4677 = vpack.c.bf16 %v4645, %v4645
        %v4678 = vpack.c.bf16 %v4646, %v4646
        %v4679 = vpack.c.bf16 %v4647, %v4647
        %v4680 = vpack.c.bf16 %v4648, %v4648
        %v4681 = vpack.c.bf16 %v4649, %v4649
        %4682 = vst [vmem:[#allocation3 + $0x1c] sm:$0xf] %v4650
        %4683 = vst [vmem:[#allocation3 + $0x40] sm:$0xf] %v4651
        %4684 = vst [vmem:[#allocation3 + $0x64] sm:$0xf] %v4652
        %4685 = vst [vmem:[#allocation3 + $0x88] sm:$0xf] %v4653
        %4686 = vst [vmem:[#allocation3 + $0xac] sm:$0xf] %v4654
        %4687 = vst [vmem:[#allocation3 + $0xd0] sm:$0xf] %v4655
        %4688 = vst [vmem:[#allocation3 + $0xf4] sm:$0xf] %v4656
        %4689 = vst [vmem:[#allocation3 + $0x118] sm:$0xf] %v4657
        %4690 = vst [vmem:[#allocation3 + $0x13c] sm:$0xf] %v4658
        %4691 = vst [vmem:[#allocation3 + $0x160] sm:$0xf] %v4659
        %4692 = vst [vmem:[#allocation3 + $0x184] sm:$0xf] %v4660
        %4693 = vst [vmem:[#allocation3 + $0x1a8] sm:$0xf] %v4661
        %4694 = vst [vmem:[#allocation3 + $0x1cc] sm:$0xf] %v4662
        %4695 = vst [vmem:[#allocation3 + $0x1f0] sm:$0xf] %v4663
        %4696 = vst [vmem:[#allocation3 + $0x214] sm:$0xf] %v4664
        %4697 = vst [vmem:[#allocation3 + $0x238] sm:$0xf] %v4665
        %4698 = vst [vmem:[#allocation3 + $0x25c] sm:$0xf] %v4666
        %4699 = vst [vmem:[#allocation3 + $0x280] sm:$0xf] %v4667
        %4700 = vst [vmem:[#allocation3 + $0x2a4] sm:$0xf] %v4668
        %4701 = vst [vmem:[#allocation3 + $0x2c8] sm:$0xf] %v4669
        %4702 = vst [vmem:[#allocation3 + $0x2ec] sm:$0xf] %v4670
        %4703 = vst [vmem:[#allocation3 + $0x310] sm:$0xf] %v4671
        %4704 = vst [vmem:[#allocation3 + $0x334] sm:$0xf] %v4672
        %4705 = vst [vmem:[#allocation3 + $0x358] sm:$0xf] %v4673
        %4706 = vst [vmem:[#allocation3 + $0x37c] sm:$0xf] %v4674
        %4707 = vst [vmem:[#allocation3 + $0x3a0] sm:$0xf] %v4675
        %4708 = vst [vmem:[#allocation3 + $0x3c4] sm:$0xf] %v4676
        %4709 = vst [vmem:[#allocation3 + $0x3e8] sm:$0xf] %v4677
        %4710 = vst [vmem:[#allocation3 + $0x40c] sm:$0xf] %v4678
        %4711 = vst [vmem:[#allocation3 + $0x430] sm:$0xf] %v4679
        %4712 = vst [vmem:[#allocation3 + $0x454] sm:$0xf] %v4680
        %4713 = vst [vmem:[#allocation3 + $0x478] sm:$0xf] %v4681
        %v4714 = vld [vmem:[%s1248 + $0x2] sm:$0xff]
        %v4715 = vld [vmem:[%s1248 + $0xa] sm:$0xff]
        %v4716 = vld [vmem:[%s1248 + $0x1a] sm:$0xff]
        %v4717 = vld [vmem:[%s1248 + $0x22] sm:$0xff]
        %v4718 = vld [vmem:[%s1248 + $0x32] sm:$0xff]
        %v4719 = vld [vmem:[%s1248 + $0x3a] sm:$0xff]
        %v4720 = vld [vmem:[%s1248 + $0x4a] sm:$0xff]
        %v4721 = vld [vmem:[%s1248 + $0x52] sm:$0xff]
        %v4722 = vld [vmem:[%s1248 + $0x62] sm:$0xff]
        %v4723 = vld [vmem:[%s1248 + $0x6a] sm:$0xff]
        %v4724 = vld [vmem:[%s1248 + $0x7a] sm:$0xff]
        %v4725 = vld [vmem:[%s1248 + $0x82] sm:$0xff]
        %v4726 = vld [vmem:[%s1248 + $0x92] sm:$0xff]
        %v4727 = vld [vmem:[%s1248 + $0x9a] sm:$0xff]
        %v4728 = vld [vmem:[%s1248 + $0xaa] sm:$0xff]
        %v4729 = vld [vmem:[%s1248 + $0xb2] sm:$0xff]
        %v4730 = vld [vmem:[%s1248 + $0xc2] sm:$0xff]
        %v4731 = vld [vmem:[%s1248 + $0xca] sm:$0xff]
        %v4732 = vld [vmem:[%s1248 + $0xda] sm:$0xff]
        %v4733 = vld [vmem:[%s1248 + $0xe2] sm:$0xff]
        %v4734 = vld [vmem:[%s1248 + $0xf2] sm:$0xff]
        %v4735 = vld [vmem:[%s1248 + $0xfa] sm:$0xff]
        %v4736 = vld [vmem:[%s1248 + $0x10a] sm:$0xff]
        %v4737 = vld [vmem:[%s1248 + $0x112] sm:$0xff]
        %v4738 = vld [vmem:[%s1248 + $0x122] sm:$0xff]
        %v4739 = vld [vmem:[%s1248 + $0x12a] sm:$0xff]
        %v4740 = vld [vmem:[%s1248 + $0x13a] sm:$0xff]
        %v4741 = vld [vmem:[%s1248 + $0x142] sm:$0xff]
        %v4742 = vld [vmem:[%s1248 + $0x152] sm:$0xff]
        %v4743 = vld [vmem:[%s1248 + $0x15a] sm:$0xff]
        %v4744 = vld [vmem:[%s1248 + $0x16a] sm:$0xff]
        %v4745 = vld [vmem:[%s1248 + $0x172] sm:$0xff]
        %v4746 = vpack.c.bf16 %v4714, %v4714
        %v4747 = vpack.c.bf16 %v4715, %v4715
        %v4748 = vpack.c.bf16 %v4716, %v4716
        %v4749 = vpack.c.bf16 %v4717, %v4717
        %v4750 = vpack.c.bf16 %v4718, %v4718
        %v4751 = vpack.c.bf16 %v4719, %v4719
        %v4752 = vpack.c.bf16 %v4720, %v4720
        %v4753 = vpack.c.bf16 %v4721, %v4721
        %v4754 = vpack.c.bf16 %v4722, %v4722
        %v4755 = vpack.c.bf16 %v4723, %v4723
        %v4756 = vpack.c.bf16 %v4724, %v4724
        %v4757 = vpack.c.bf16 %v4725, %v4725
        %v4758 = vpack.c.bf16 %v4726, %v4726
        %v4759 = vpack.c.bf16 %v4727, %v4727
        %v4760 = vpack.c.bf16 %v4728, %v4728
        %v4761 = vpack.c.bf16 %v4729, %v4729
        %v4762 = vpack.c.bf16 %v4730, %v4730
        %v4763 = vpack.c.bf16 %v4731, %v4731
        %v4764 = vpack.c.bf16 %v4732, %v4732
        %v4765 = vpack.c.bf16 %v4733, %v4733
        %v4766 = vpack.c.bf16 %v4734, %v4734
        %v4767 = vpack.c.bf16 %v4735, %v4735
        %v4768 = vpack.c.bf16 %v4736, %v4736
        %v4769 = vpack.c.bf16 %v4737, %v4737
        %v4770 = vpack.c.bf16 %v4738, %v4738
        %v4771 = vpack.c.bf16 %v4739, %v4739
        %v4772 = vpack.c.bf16 %v4740, %v4740
        %v4773 = vpack.c.bf16 %v4741, %v4741
        %v4774 = vpack.c.bf16 %v4742, %v4742
        %v4775 = vpack.c.bf16 %v4743, %v4743
        %v4776 = vpack.c.bf16 %v4744, %v4744
        %v4777 = vpack.c.bf16 %v4745, %v4745
        %4778 = vst [vmem:[#allocation3 + $0x20] sm:$0xf] %v4746
        %4779 = vst [vmem:[#allocation3 + $0x44] sm:$0xf] %v4747
        %4780 = vst [vmem:[#allocation3 + $0x68] sm:$0xf] %v4748
        %4781 = vst [vmem:[#allocation3 + $0x8c] sm:$0xf] %v4749
        %4782 = vst [vmem:[#allocation3 + $0xb0] sm:$0xf] %v4750
        %4783 = vst [vmem:[#allocation3 + $0xd4] sm:$0xf] %v4751
        %4784 = vst [vmem:[#allocation3 + $0xf8] sm:$0xf] %v4752
        %4785 = vst [vmem:[#allocation3 + $0x11c] sm:$0xf] %v4753
        %4786 = vst [vmem:[#allocation3 + $0x140] sm:$0xf] %v4754
        %4787 = vst [vmem:[#allocation3 + $0x164] sm:$0xf] %v4755
        %4788 = vst [vmem:[#allocation3 + $0x188] sm:$0xf] %v4756
        %4789 = vst [vmem:[#allocation3 + $0x1ac] sm:$0xf] %v4757
        %4790 = vst [vmem:[#allocation3 + $0x1d0] sm:$0xf] %v4758
        %4791 = vst [vmem:[#allocation3 + $0x1f4] sm:$0xf] %v4759
        %4792 = vst [vmem:[#allocation3 + $0x218] sm:$0xf] %v4760
        %4793 = vst [vmem:[#allocation3 + $0x23c] sm:$0xf] %v4761
        %4794 = vst [vmem:[#allocation3 + $0x260] sm:$0xf] %v4762
        %4795 = vst [vmem:[#allocation3 + $0x284] sm:$0xf] %v4763
        %4796 = vst [vmem:[#allocation3 + $0x2a8] sm:$0xf] %v4764
        %4797 = vst [vmem:[#allocation3 + $0x2cc] sm:$0xf] %v4765
        %4798 = vst [vmem:[#allocation3 + $0x2f0] sm:$0xf] %v4766
        %4799 = vst [vmem:[#allocation3 + $0x314] sm:$0xf] %v4767
        %4800 = vst [vmem:[#allocation3 + $0x338] sm:$0xf] %v4768
        %4801 = vst [vmem:[#allocation3 + $0x35c] sm:$0xf] %v4769
        %4802 = vst [vmem:[#allocation3 + $0x380] sm:$0xf] %v4770
        %4803 = vst [vmem:[#allocation3 + $0x3a4] sm:$0xf] %v4771
        %4804 = vst [vmem:[#allocation3 + $0x3c8] sm:$0xf] %v4772
        %4805 = vst [vmem:[#allocation3 + $0x3ec] sm:$0xf] %v4773
        %4806 = vst [vmem:[#allocation3 + $0x410] sm:$0xf] %v4774
        %4807 = vst [vmem:[#allocation3 + $0x434] sm:$0xf] %v4775
        %4808 = vst [vmem:[#allocation3 + $0x458] sm:$0xf] %v4776
        %4809 = vst [vmem:[#allocation3 + $0x47c] sm:$0xf] %v4777
        %v4810 = vld [vmem:[#allocation3] sm:$0xff]
        %v4811 = vld [vmem:[#allocation3 + $0x8] sm:$0xff]
        %v4812 = vld [vmem:[#allocation3 + $0x10] sm:$0xff]
        %v4813 = vld [vmem:[#allocation3 + $0x18] sm:$0xff]
        %v4814 = vld [vmem:[#allocation3 + $0x20] sm:$0xf]
        %v4815 = vld [vmem:[#allocation3 + $0x24] sm:$0xff]
        %v4816 = vld [vmem:[#allocation3 + $0x2c] sm:$0xff]
        %v4817 = vld [vmem:[#allocation3 + $0x34] sm:$0xff]
        %v4818 = vld [vmem:[#allocation3 + $0x3c] sm:$0xff]
        %v4819 = vld [vmem:[#allocation3 + $0x44] sm:$0xf]
        %v4820 = vld [vmem:[#allocation3 + $0x48] sm:$0xff]
        %v4821 = vld [vmem:[#allocation3 + $0x50] sm:$0xff]
        %v4822 = vld [vmem:[#allocation3 + $0x58] sm:$0xff]
        %v4823 = vld [vmem:[#allocation3 + $0x60] sm:$0xff]
        %v4824 = vld [vmem:[#allocation3 + $0x68] sm:$0xf]
        %v4825 = vld [vmem:[#allocation3 + $0x6c] sm:$0xff]
        %v4826 = vld [vmem:[#allocation3 + $0x74] sm:$0xff]
        %v4827 = vld [vmem:[#allocation3 + $0x7c] sm:$0xff]
        %v4828 = vld [vmem:[#allocation3 + $0x84] sm:$0xff]
        %v4829 = vld [vmem:[#allocation3 + $0x8c] sm:$0xf]
        %v4830 = vld [vmem:[#allocation3 + $0x90] sm:$0xff]
        %v4831 = vld [vmem:[#allocation3 + $0x98] sm:$0xff]
        %v4832 = vld [vmem:[#allocation3 + $0xa0] sm:$0xff]
        %v4833 = vld [vmem:[#allocation3 + $0xa8] sm:$0xff]
        %v4834 = vld [vmem:[#allocation3 + $0xb0] sm:$0xf]
        %v4835 = vld [vmem:[#allocation3 + $0xb4] sm:$0xff]
        %v4836 = vld [vmem:[#allocation3 + $0xbc] sm:$0xff]
        %v4837 = vld [vmem:[#allocation3 + $0xc4] sm:$0xff]
        %v4838 = vld [vmem:[#allocation3 + $0xcc] sm:$0xff]
        %v4839 = vld [vmem:[#allocation3 + $0xd4] sm:$0xf]
        %v4840 = vld [vmem:[#allocation3 + $0xd8] sm:$0xff]
        %v4841 = vld [vmem:[#allocation3 + $0xe0] sm:$0xff]
        %v4842 = vld [vmem:[#allocation3 + $0xe8] sm:$0xff]
        %v4843 = vld [vmem:[#allocation3 + $0xf0] sm:$0xff]
        %v4844 = vld [vmem:[#allocation3 + $0xf8] sm:$0xf]
        %v4845 = vld [vmem:[#allocation3 + $0xfc] sm:$0xff]
        %v4846 = vld [vmem:[#allocation3 + $0x104] sm:$0xff]
        %v4847 = vld [vmem:[#allocation3 + $0x10c] sm:$0xff]
        %v4848 = vld [vmem:[#allocation3 + $0x114] sm:$0xff]
        %v4849 = vld [vmem:[#allocation3 + $0x11c] sm:$0xf]
        %v4850 = vld [vmem:[#allocation3 + $0x120] sm:$0xff]
        %v4851 = vld [vmem:[#allocation3 + $0x128] sm:$0xff]
        %v4852 = vld [vmem:[#allocation3 + $0x130] sm:$0xff]
        %v4853 = vld [vmem:[#allocation3 + $0x138] sm:$0xff]
        %v4854 = vld [vmem:[#allocation3 + $0x140] sm:$0xf]
        %v4855 = vld [vmem:[#allocation3 + $0x144] sm:$0xff]
        %v4856 = vld [vmem:[#allocation3 + $0x14c] sm:$0xff]
        %v4857 = vld [vmem:[#allocation3 + $0x154] sm:$0xff]
        %v4858 = vld [vmem:[#allocation3 + $0x15c] sm:$0xff]
        %v4859 = vld [vmem:[#allocation3 + $0x164] sm:$0xf]
        %v4860 = vld [vmem:[#allocation3 + $0x168] sm:$0xff]
        %v4861 = vld [vmem:[#allocation3 + $0x170] sm:$0xff]
        %v4862 = vld [vmem:[#allocation3 + $0x178] sm:$0xff]
        %v4863 = vld [vmem:[#allocation3 + $0x180] sm:$0xff]
        %v4864 = vld [vmem:[#allocation3 + $0x188] sm:$0xf]
        %v4865 = vld [vmem:[#allocation3 + $0x18c] sm:$0xff]
        %v4866 = vld [vmem:[#allocation3 + $0x194] sm:$0xff]
        %v4867 = vld [vmem:[#allocation3 + $0x19c] sm:$0xff]
        %v4868 = vld [vmem:[#allocation3 + $0x1a4] sm:$0xff]
        %v4869 = vld [vmem:[#allocation3 + $0x1ac] sm:$0xf]
        %v4870 = vld [vmem:[#allocation3 + $0x1b0] sm:$0xff]
        %v4871 = vld [vmem:[#allocation3 + $0x1b8] sm:$0xff]
        %v4872 = vld [vmem:[#allocation3 + $0x1c0] sm:$0xff]
        %v4873 = vld [vmem:[#allocation3 + $0x1c8] sm:$0xff]
        %v4874 = vld [vmem:[#allocation3 + $0x1d0] sm:$0xf]
        %v4875 = vld [vmem:[#allocation3 + $0x1d4] sm:$0xff]
        %v4876 = vld [vmem:[#allocation3 + $0x1dc] sm:$0xff]
        %v4877 = vld [vmem:[#allocation3 + $0x1e4] sm:$0xff]
        %v4878 = vld [vmem:[#allocation3 + $0x1ec] sm:$0xff]
        %v4879 = vld [vmem:[#allocation3 + $0x1f4] sm:$0xf]
        %v4880 = vld [vmem:[#allocation3 + $0x1f8] sm:$0xff]
        %v4881 = vld [vmem:[#allocation3 + $0x200] sm:$0xff]
        %v4882 = vld [vmem:[#allocation3 + $0x208] sm:$0xff]
        %v4883 = vld [vmem:[#allocation3 + $0x210] sm:$0xff]
        %v4884 = vld [vmem:[#allocation3 + $0x218] sm:$0xf]
        %v4885 = vld [vmem:[#allocation3 + $0x21c] sm:$0xff]
        %v4886 = vld [vmem:[#allocation3 + $0x224] sm:$0xff]
        %v4887 = vld [vmem:[#allocation3 + $0x22c] sm:$0xff]
        %v4888 = vld [vmem:[#allocation3 + $0x234] sm:$0xff]
        %v4889 = vld [vmem:[#allocation3 + $0x23c] sm:$0xf]
        %v4890 = vld [vmem:[#allocation3 + $0x240] sm:$0xff]
        %v4891 = vld [vmem:[#allocation3 + $0x248] sm:$0xff]
        %v4892 = vld [vmem:[#allocation3 + $0x250] sm:$0xff]
        %v4893 = vld [vmem:[#allocation3 + $0x258] sm:$0xff]
        %v4894 = vld [vmem:[#allocation3 + $0x260] sm:$0xf]
        %v4895 = vld [vmem:[#allocation3 + $0x264] sm:$0xff]
        %v4896 = vld [vmem:[#allocation3 + $0x26c] sm:$0xff]
        %v4897 = vld [vmem:[#allocation3 + $0x274] sm:$0xff]
        %v4898 = vld [vmem:[#allocation3 + $0x27c] sm:$0xff]
        %v4899 = vld [vmem:[#allocation3 + $0x284] sm:$0xf]
        %v4900 = vld [vmem:[#allocation3 + $0x288] sm:$0xff]
        %v4901 = vld [vmem:[#allocation3 + $0x290] sm:$0xff]
        %v4902 = vld [vmem:[#allocation3 + $0x298] sm:$0xff]
        %v4903 = vld [vmem:[#allocation3 + $0x2a0] sm:$0xff]
        %v4904 = vld [vmem:[#allocation3 + $0x2a8] sm:$0xf]
        %v4905 = vld [vmem:[#allocation3 + $0x2ac] sm:$0xff]
        %v4906 = vld [vmem:[#allocation3 + $0x2b4] sm:$0xff]
        %v4907 = vld [vmem:[#allocation3 + $0x2bc] sm:$0xff]
        %v4908 = vld [vmem:[#allocation3 + $0x2c4] sm:$0xff]
        %v4909 = vld [vmem:[#allocation3 + $0x2cc] sm:$0xf]
        %v4910 = vld [vmem:[#allocation3 + $0x2d0] sm:$0xff]
        %v4911 = vld [vmem:[#allocation3 + $0x2d8] sm:$0xff]
        %v4912 = vld [vmem:[#allocation3 + $0x2e0] sm:$0xff]
        %v4913 = vld [vmem:[#allocation3 + $0x2e8] sm:$0xff]
        %v4914 = vld [vmem:[#allocation3 + $0x2f0] sm:$0xf]
        %v4915 = vld [vmem:[#allocation3 + $0x2f4] sm:$0xff]
        %v4916 = vld [vmem:[#allocation3 + $0x2fc] sm:$0xff]
        %v4917 = vld [vmem:[#allocation3 + $0x304] sm:$0xff]
        %v4918 = vld [vmem:[#allocation3 + $0x30c] sm:$0xff]
        %v4919 = vld [vmem:[#allocation3 + $0x314] sm:$0xf]
        %v4920 = vld [vmem:[#allocation3 + $0x318] sm:$0xff]
        %v4921 = vld [vmem:[#allocation3 + $0x320] sm:$0xff]
        %v4922 = vld [vmem:[#allocation3 + $0x328] sm:$0xff]
        %v4923 = vld [vmem:[#allocation3 + $0x330] sm:$0xff]
        %v4924 = vld [vmem:[#allocation3 + $0x338] sm:$0xf]
        %v4925 = vld [vmem:[#allocation3 + $0x33c] sm:$0xff]
        %v4926 = vld [vmem:[#allocation3 + $0x344] sm:$0xff]
        %v4927 = vld [vmem:[#allocation3 + $0x34c] sm:$0xff]
        %v4928 = vld [vmem:[#allocation3 + $0x354] sm:$0xff]
        %v4929 = vld [vmem:[#allocation3 + $0x35c] sm:$0xf]
        %v4930 = vld [vmem:[#allocation3 + $0x360] sm:$0xff]
        %v4931 = vld [vmem:[#allocation3 + $0x368] sm:$0xff]
        %v4932 = vld [vmem:[#allocation3 + $0x370] sm:$0xff]
        %v4933 = vld [vmem:[#allocation3 + $0x378] sm:$0xff]
        %v4934 = vld [vmem:[#allocation3 + $0x380] sm:$0xf]
        %v4935 = vld [vmem:[#allocation3 + $0x384] sm:$0xff]
        %v4936 = vld [vmem:[#allocation3 + $0x38c] sm:$0xff]
        %v4937 = vld [vmem:[#allocation3 + $0x394] sm:$0xff]
        %v4938 = vld [vmem:[#allocation3 + $0x39c] sm:$0xff]
        %v4939 = vld [vmem:[#allocation3 + $0x3a4] sm:$0xf]
        %v4940 = vld [vmem:[#allocation3 + $0x3a8] sm:$0xff]
        %v4941 = vld [vmem:[#allocation3 + $0x3b0] sm:$0xff]
        %v4942 = vld [vmem:[#allocation3 + $0x3b8] sm:$0xff]
        %v4943 = vld [vmem:[#allocation3 + $0x3c0] sm:$0xff]
        %v4944 = vld [vmem:[#allocation3 + $0x3c8] sm:$0xf]
        %v4945 = vld [vmem:[#allocation3 + $0x3cc] sm:$0xff]
        %v4946 = vld [vmem:[#allocation3 + $0x3d4] sm:$0xff]
        %v4947 = vld [vmem:[#allocation3 + $0x3dc] sm:$0xff]
        %v4948 = vld [vmem:[#allocation3 + $0x3e4] sm:$0xff]
        %v4949 = vld [vmem:[#allocation3 + $0x3ec] sm:$0xf]
        %v4950 = vld [vmem:[#allocation3 + $0x3f0] sm:$0xff]
        %v4951 = vld [vmem:[#allocation3 + $0x3f8] sm:$0xff]
        %v4952 = vld [vmem:[#allocation3 + $0x400] sm:$0xff]
        %v4953 = vld [vmem:[#allocation3 + $0x408] sm:$0xff]
        %v4954 = vld [vmem:[#allocation3 + $0x410] sm:$0xf]
        %v4955 = vld [vmem:[#allocation3 + $0x414] sm:$0xff]
        %v4956 = vld [vmem:[#allocation3 + $0x41c] sm:$0xff]
        %v4957 = vld [vmem:[#allocation3 + $0x424] sm:$0xff]
        %v4958 = vld [vmem:[#allocation3 + $0x42c] sm:$0xff]
        %v4959 = vld [vmem:[#allocation3 + $0x434] sm:$0xf]
        %v4960 = vld [vmem:[#allocation3 + $0x438] sm:$0xff]
        %v4961 = vld [vmem:[#allocation3 + $0x440] sm:$0xff]
        %v4962 = vld [vmem:[#allocation3 + $0x448] sm:$0xff]
        %v4963 = vld [vmem:[#allocation3 + $0x450] sm:$0xff]
        %v4964 = vld [vmem:[#allocation3 + $0x458] sm:$0xf]
        %v4965 = vld [vmem:[#allocation3 + $0x45c] sm:$0xff]
        %v4966 = vld [vmem:[#allocation3 + $0x464] sm:$0xff]
        %v4967 = vld [vmem:[#allocation3 + $0x46c] sm:$0xff]
        %v4968 = vld [vmem:[#allocation3 + $0x474] sm:$0xff]
        %v4969 = vld [vmem:[#allocation3 + $0x47c] sm:$0xf]
        %v4970 = vld [vmem:[#allocation10] sm:$0xf]
        %v4971 = vld [vmem:[#allocation10 + $0x4] sm:$0xf]
        %v4972 = vld [vmem:[#allocation10 + $0x8] sm:$0xf]
        %v4973 = vld [vmem:[#allocation10 + $0xc] sm:$0xf]
        %v4974 = vld [vmem:[#allocation10 + $0x10] sm:$0xf]
        %v4975 = vld [vmem:[#allocation10 + $0x14] sm:$0xf]
        %v4976 = vld [vmem:[#allocation10 + $0x18] sm:$0xf]
        %v4977 = vld [vmem:[#allocation10 + $0x1c] sm:$0xf]
        %v4978 = vld [vmem:[#allocation10 + $0x20] sm:$0xf]
        %v4979 = vld [vmem:[#allocation10 + $0x24] sm:$0xf]
        %v4980 = vld [vmem:[#allocation10 + $0x28] sm:$0xf]
        %v4981 = vld [vmem:[#allocation10 + $0x2c] sm:$0xf]
        %v4982 = vld [vmem:[#allocation10 + $0x30] sm:$0xf]
        %v4983 = vld [vmem:[#allocation10 + $0x34] sm:$0xf]
        %v4984 = vld [vmem:[#allocation10 + $0x38] sm:$0xf]
        %v4985 = vld [vmem:[#allocation10 + $0x3c] sm:$0xf]
        %v4986 = vld [vmem:[#allocation10 + $0x40] sm:$0xf]
        %v4987 = vld [vmem:[#allocation10 + $0x44] sm:$0xf]
        %v4988 = vld [vmem:[#allocation10 + $0x48] sm:$0xf]
        %v4989 = vld [vmem:[#allocation10 + $0x4c] sm:$0xf]
        %v4990 = vld [vmem:[#allocation10 + $0x50] sm:$0xf]
        %v4991 = vld [vmem:[#allocation10 + $0x54] sm:$0xf]
        %v4992 = vld [vmem:[#allocation10 + $0x58] sm:$0xf]
        %v4993 = vld [vmem:[#allocation10 + $0x5c] sm:$0xf]
        %v4994 = vld [vmem:[#allocation10 + $0x60] sm:$0xf]
        %v4995 = vld [vmem:[#allocation10 + $0x64] sm:$0xf]
        %v4996 = vld [vmem:[#allocation10 + $0x68] sm:$0xf]
        %v4997 = vld [vmem:[#allocation10 + $0x6c] sm:$0xf]
        %v4998 = vld [vmem:[#allocation10 + $0x70] sm:$0xf]
        %v4999 = vld [vmem:[#allocation10 + $0x74] sm:$0xf]
        %v5000 = vld [vmem:[#allocation10 + $0x78] sm:$0xf]
        %v5001 = vld [vmem:[#allocation10 + $0x7c] sm:$0xf]
        %v5002 = vld [vmem:[#allocation10 + $0x80] sm:$0xf]
        %v5003 = vld [vmem:[#allocation10 + $0x84] sm:$0xf]
        %v5004 = vld [vmem:[#allocation10 + $0x88] sm:$0xf]
        %v5005 = vld [vmem:[#allocation10 + $0x8c] sm:$0xf]
        %v5006 = vld [vmem:[#allocation10 + $0x90] sm:$0xf]
        %v5007 = vld [vmem:[#allocation10 + $0x94] sm:$0xf]
        %v5008 = vld [vmem:[#allocation10 + $0x98] sm:$0xf]
        %v5009 = vld [vmem:[#allocation10 + $0x9c] sm:$0xf]
        %v5010 = vld [vmem:[#allocation10 + $0xa0] sm:$0xf]
        %v5011 = vld [vmem:[#allocation10 + $0xa4] sm:$0xf]
        %v5012 = vld [vmem:[#allocation10 + $0xa8] sm:$0xf]
        %v5013 = vld [vmem:[#allocation10 + $0xac] sm:$0xf]
        %v5014 = vld [vmem:[#allocation10 + $0xb0] sm:$0xf]
        %v5015 = vld [vmem:[#allocation10 + $0xb4] sm:$0xf]
        %v5016 = vld [vmem:[#allocation10 + $0xb8] sm:$0xf]
        %v5017 = vld [vmem:[#allocation10 + $0xbc] sm:$0xf]
        %v5018 = vld [vmem:[#allocation10 + $0xc0] sm:$0xf]
        %v5019 = vld [vmem:[#allocation10 + $0xc4] sm:$0xf]
        %v5020 = vld [vmem:[#allocation10 + $0xc8] sm:$0xf]
        %v5021 = vld [vmem:[#allocation10 + $0xcc] sm:$0xf]
        %v5022 = vld [vmem:[#allocation10 + $0xd0] sm:$0xf]
        %v5023 = vld [vmem:[#allocation10 + $0xd4] sm:$0xf]
        %v5024 = vld [vmem:[#allocation10 + $0xd8] sm:$0xf]
        %v5025 = vld [vmem:[#allocation10 + $0xdc] sm:$0xf]
        %v5026 = vld [vmem:[#allocation10 + $0xe0] sm:$0xf]
        %v5027 = vld [vmem:[#allocation10 + $0xe4] sm:$0xf]
        %v5028 = vld [vmem:[#allocation10 + $0xe8] sm:$0xf]
        %v5029 = vld [vmem:[#allocation10 + $0xec] sm:$0xf]
        %v5030 = vld [vmem:[#allocation10 + $0xf0] sm:$0xf]
        %v5031 = vld [vmem:[#allocation10 + $0xf4] sm:$0xf]
        %v5032 = vld [vmem:[#allocation10 + $0xf8] sm:$0xf]
        %v5033 = vld [vmem:[#allocation10 + $0xfc] sm:$0xf]
        %v5034 = vld [vmem:[#allocation10 + $0x100] sm:$0xf]
        %v5035 = vld [vmem:[#allocation10 + $0x104] sm:$0xf]
        %v5036 = vld [vmem:[#allocation10 + $0x108] sm:$0xf]
        %v5037 = vld [vmem:[#allocation10 + $0x10c] sm:$0xf]
        %v5038 = vld [vmem:[#allocation10 + $0x110] sm:$0xf]
        %v5039 = vld [vmem:[#allocation10 + $0x114] sm:$0xf]
        %v5040 = vld [vmem:[#allocation10 + $0x118] sm:$0xf]
        %v5041 = vld [vmem:[#allocation10 + $0x11c] sm:$0xf]
        %v5042 = vld [vmem:[#allocation10 + $0x120] sm:$0xf]
        %v5043 = vld [vmem:[#allocation10 + $0x124] sm:$0xf]
        %v5044 = vld [vmem:[#allocation10 + $0x128] sm:$0xf]
        %v5045 = vld [vmem:[#allocation10 + $0x12c] sm:$0xf]
        %v5046 = vld [vmem:[#allocation10 + $0x130] sm:$0xf]
        %v5047 = vld [vmem:[#allocation10 + $0x134] sm:$0xf]
        %v5048 = vld [vmem:[#allocation10 + $0x138] sm:$0xf]
        %v5049 = vld [vmem:[#allocation10 + $0x13c] sm:$0xf]
        %v5050 = vld [vmem:[#allocation10 + $0x140] sm:$0xf]
        %v5051 = vld [vmem:[#allocation10 + $0x144] sm:$0xf]
        %v5052 = vld [vmem:[#allocation10 + $0x148] sm:$0xf]
        %v5053 = vld [vmem:[#allocation10 + $0x14c] sm:$0xf]
        %v5054 = vld [vmem:[#allocation10 + $0x150] sm:$0xf]
        %v5055 = vld [vmem:[#allocation10 + $0x154] sm:$0xf]
        %v5056 = vld [vmem:[#allocation10 + $0x158] sm:$0xf]
        %v5057 = vld [vmem:[#allocation10 + $0x15c] sm:$0xf]
        %v5058 = vld [vmem:[#allocation10 + $0x160] sm:$0xf]
        %v5059 = vld [vmem:[#allocation10 + $0x164] sm:$0xf]
        %v5060 = vld [vmem:[#allocation10 + $0x168] sm:$0xf]
        %v5061 = vld [vmem:[#allocation10 + $0x16c] sm:$0xf]
        %v5062 = vld [vmem:[#allocation10 + $0x170] sm:$0xf]
        %v5063 = vld [vmem:[#allocation10 + $0x174] sm:$0xf]
        %v5064 = vld [vmem:[#allocation10 + $0x178] sm:$0xf]
        %v5065 = vld [vmem:[#allocation10 + $0x17c] sm:$0xf]
        %v5066 = vld [vmem:[#allocation10 + $0x180] sm:$0xf]
        %v5067 = vld [vmem:[#allocation10 + $0x184] sm:$0xf]
        %v5068 = vld [vmem:[#allocation10 + $0x188] sm:$0xf]
        %v5069 = vld [vmem:[#allocation10 + $0x18c] sm:$0xf]
        %v5070 = vld [vmem:[#allocation10 + $0x190] sm:$0xf]
        %v5071 = vld [vmem:[#allocation10 + $0x194] sm:$0xf]
        %v5072 = vld [vmem:[#allocation10 + $0x198] sm:$0xf]
        %v5073 = vld [vmem:[#allocation10 + $0x19c] sm:$0xf]
        %v5074 = vld [vmem:[#allocation10 + $0x1a0] sm:$0xf]
        %v5075 = vld [vmem:[#allocation10 + $0x1a4] sm:$0xf]
        %v5076 = vld [vmem:[#allocation10 + $0x1a8] sm:$0xf]
        %v5077 = vld [vmem:[#allocation10 + $0x1ac] sm:$0xf]
        %v5078 = vld [vmem:[#allocation10 + $0x1b0] sm:$0xf]
        %v5079 = vld [vmem:[#allocation10 + $0x1b4] sm:$0xf]
        %v5080 = vld [vmem:[#allocation10 + $0x1b8] sm:$0xf]
        %v5081 = vld [vmem:[#allocation10 + $0x1bc] sm:$0xf]
        %v5082 = vld [vmem:[#allocation10 + $0x1c0] sm:$0xf]
        %v5083 = vld [vmem:[#allocation10 + $0x1c4] sm:$0xf]
        %v5084 = vld [vmem:[#allocation10 + $0x1c8] sm:$0xf]
        %v5085 = vld [vmem:[#allocation10 + $0x1cc] sm:$0xf]
        %v5086 = vld [vmem:[#allocation10 + $0x1d0] sm:$0xf]
        %v5087 = vld [vmem:[#allocation10 + $0x1d4] sm:$0xf]
        %v5088 = vld [vmem:[#allocation10 + $0x1d8] sm:$0xf]
        %v5089 = vld [vmem:[#allocation10 + $0x1dc] sm:$0xf]
        %v5090 = vld [vmem:[#allocation10 + $0x1e0] sm:$0xf]
        %v5091 = vld [vmem:[#allocation10 + $0x1e4] sm:$0xf]
        %v5092 = vld [vmem:[#allocation10 + $0x1e8] sm:$0xf]
        %v5093 = vld [vmem:[#allocation10 + $0x1ec] sm:$0xf]
        %v5094 = vld [vmem:[#allocation10 + $0x1f0] sm:$0xf]
        %v5095 = vld [vmem:[#allocation10 + $0x1f4] sm:$0xf]
        %v5096 = vld [vmem:[#allocation10 + $0x1f8] sm:$0xf]
        %v5097 = vld [vmem:[#allocation10 + $0x1fc] sm:$0xf]
        %v5098 = vld [vmem:[#allocation10 + $0x200] sm:$0xf]
        %v5099 = vld [vmem:[#allocation10 + $0x204] sm:$0xf]
        %v5100 = vld [vmem:[#allocation10 + $0x208] sm:$0xf]
        %v5101 = vld [vmem:[#allocation10 + $0x20c] sm:$0xf]
        %v5102 = vld [vmem:[#allocation10 + $0x210] sm:$0xf]
        %v5103 = vld [vmem:[#allocation10 + $0x214] sm:$0xf]
        %v5104 = vld [vmem:[#allocation10 + $0x218] sm:$0xf]
        %v5105 = vld [vmem:[#allocation10 + $0x21c] sm:$0xf]
        %v5106 = vld [vmem:[#allocation10 + $0x220] sm:$0xf]
        %v5107 = vld [vmem:[#allocation10 + $0x224] sm:$0xf]
        %v5108 = vld [vmem:[#allocation10 + $0x228] sm:$0xf]
        %v5109 = vld [vmem:[#allocation10 + $0x22c] sm:$0xf]
        %v5110 = vld [vmem:[#allocation10 + $0x230] sm:$0xf]
        %v5111 = vld [vmem:[#allocation10 + $0x234] sm:$0xf]
        %v5112 = vld [vmem:[#allocation10 + $0x238] sm:$0xf]
        %v5113 = vld [vmem:[#allocation10 + $0x23c] sm:$0xf]
        %v5114 = vld [vmem:[#allocation12] sm:$0xf]
        %v5115 = vld [vmem:[#allocation12 + $0x4] sm:$0xf]
        %v5116 = vld [vmem:[#allocation12 + $0x8] sm:$0xf]
        %v5117 = vld [vmem:[#allocation12 + $0xc] sm:$0xf]
        %v5118 = vld [vmem:[#allocation12 + $0x10] sm:$0xf]
        %v5119 = vld [vmem:[#allocation12 + $0x14] sm:$0xf]
        %v5120 = vld [vmem:[#allocation12 + $0x18] sm:$0xf]
        %v5121 = vld [vmem:[#allocation12 + $0x1c] sm:$0xf]
        %v5122 = vld [vmem:[#allocation12 + $0x20] sm:$0xf]
        %v5123 = vld [vmem:[#allocation12 + $0x24] sm:$0xf]
        %v5124 = vld [vmem:[#allocation12 + $0x28] sm:$0xf]
        %v5125 = vld [vmem:[#allocation12 + $0x2c] sm:$0xf]
        %v5126 = vld [vmem:[#allocation12 + $0x30] sm:$0xf]
        %v5127 = vld [vmem:[#allocation12 + $0x34] sm:$0xf]
        %v5128 = vld [vmem:[#allocation12 + $0x38] sm:$0xf]
        %v5129 = vld [vmem:[#allocation12 + $0x3c] sm:$0xf]
        %v5162 = vunpack.c.l.b16 %v417
        %v5163 = vunpack.c.l.b16 %v418
        %v5164 = vunpack.c.l.b16 %v419
        %v5165 = vunpack.c.l.b16 %v420
        %v5166 = vunpack.c.l.b16 %v421
        %v5167 = vunpack.c.l.b16 %v422
        %v5168 = vunpack.c.l.b16 %v423
        %v5169 = vunpack.c.l.b16 %v424
        %v5170 = vunpack.c.l.b16 %v425
        %v5171 = vunpack.c.l.b16 %v426
        %v5172 = vunpack.c.l.b16 %v427
        %v5173 = vunpack.c.l.b16 %v428
        %v5174 = vunpack.c.l.b16 %v429
        %v5175 = vunpack.c.l.b16 %v430
        %v5176 = vunpack.c.l.b16 %v431
        %v5177 = vunpack.c.l.b16 %v432
        %v5178 = vunpack.c.l.b16 %v433
        %v5179 = vunpack.c.l.b16 %v434
        %v5180 = vunpack.c.l.b16 %v435
        %v5181 = vunpack.c.l.b16 %v436
        %v5182 = vunpack.c.l.b16 %v437
        %v5183 = vunpack.c.l.b16 %v438
        %v5184 = vunpack.c.l.b16 %v439
        %v5185 = vunpack.c.l.b16 %v440
        %v5186 = vunpack.c.l.b16 %v441
        %v5187 = vunpack.c.l.b16 %v442
        %v5188 = vunpack.c.l.b16 %v443
        %v5189 = vunpack.c.l.b16 %v444
        %v5190 = vunpack.c.l.b16 %v445
        %v5191 = vunpack.c.l.b16 %v446
        %v5192 = vunpack.c.l.b16 %v447
        %v5193 = vunpack.c.l.b16 %v448
        %v5194 = vpack.c.b16 %v5163, %v5162
        %v5195 = vpack.c.b16 %v5165, %v5164
        %v5196 = vpack.c.b16 %v5167, %v5166
        %v5197 = vpack.c.b16 %v5169, %v5168
        %v5198 = vpack.c.b16 %v5171, %v5170
        %v5199 = vpack.c.b16 %v5173, %v5172
        %v5200 = vpack.c.b16 %v5175, %v5174
        %v5201 = vpack.c.b16 %v5177, %v5176
        %v5202 = vpack.c.b16 %v5179, %v5178
        %v5203 = vpack.c.b16 %v5181, %v5180
        %v5204 = vpack.c.b16 %v5183, %v5182
        %v5205 = vpack.c.b16 %v5185, %v5184
        %v5206 = vpack.c.b16 %v5187, %v5186
        %v5207 = vpack.c.b16 %v5189, %v5188
        %v5208 = vpack.c.b16 %v5191, %v5190
        %v5209 = vpack.c.b16 %v5193, %v5192
        %v5242 = vunpack.c.l.b16 %v5114
        %v5243 = vunpack.c.l.b16 %v5115
        %v5244 = vunpack.c.l.b16 %v5116
        %v5245 = vunpack.c.l.b16 %v5117
        %v5246 = vunpack.c.l.b16 %v5118
        %v5247 = vunpack.c.l.b16 %v5119
        %v5248 = vunpack.c.l.b16 %v5120
        %v5249 = vunpack.c.l.b16 %v5121
        %v5250 = vunpack.c.l.b16 %v5122
        %v5251 = vunpack.c.l.b16 %v5123
        %v5252 = vunpack.c.l.b16 %v5124
        %v5253 = vunpack.c.l.b16 %v5125
        %v5254 = vunpack.c.l.b16 %v5126
        %v5255 = vunpack.c.l.b16 %v5127
        %v5256 = vunpack.c.l.b16 %v5128
        %v5257 = vunpack.c.l.b16 %v5129
        %v5258 = vpack.c.b16 %v5243, %v5242
        %v5259 = vpack.c.b16 %v5245, %v5244
        %v5260 = vpack.c.b16 %v5247, %v5246
        %v5261 = vpack.c.b16 %v5249, %v5248
        %v5262 = vpack.c.b16 %v5251, %v5250
        %v5263 = vpack.c.b16 %v5253, %v5252
        %v5264 = vpack.c.b16 %v5255, %v5254
        %v5265 = vpack.c.b16 %v5257, %v5256
        %5274 = vmatpush.bf16.msra.mxu0 %v5265
        %5275 = vmatpush.bf16.msra.mxu0 %v5264
        %5276 = vmatpush.bf16.msra.mxu0 %v5263
        %5277 = vmatpush.bf16.msra.mxu0 %v5262
        %5278 = vmatpush.bf16.msra.mxu0 %v5261
        %5279 = vmatpush.bf16.msra.mxu0 %v5260
        %5280 = vmatpush.bf16.msra.mxu0 %v5259
        %5281 = vmatpush.bf16.msra.mxu0 %v5258
        %5282 = vmatmul.bf16.gmra.mxu0 %v5194
        %v5283 = vpop.f32.mrf.mxu0
        %v5284 = vadd.f32 0.0, %v5283
        %v5285 = vpop.f32.mrf.mxu0
        %v5286 = vadd.f32 0.0, %v5285
        %5287 = vmatmul.bf16.gmra.mxu0 %v5195
        %v5288 = vpop.f32.mrf.mxu0
        %v5289 = vadd.f32 0.0, %v5288
        %v5290 = vpop.f32.mrf.mxu0
        %v5291 = vadd.f32 0.0, %v5290
        %5292 = vmatmul.bf16.gmra.mxu0 %v5196
        %v5293 = vpop.f32.mrf.mxu0
        %v5294 = vadd.f32 0.0, %v5293
        %v5295 = vpop.f32.mrf.mxu0
        %v5296 = vadd.f32 0.0, %v5295
        %5297 = vmatmul.bf16.gmra.mxu0 %v5197
        %v5298 = vpop.f32.mrf.mxu0
        %v5299 = vadd.f32 0.0, %v5298
        %v5300 = vpop.f32.mrf.mxu0
        %v5301 = vadd.f32 0.0, %v5300
        %5302 = vmatmul.bf16.gmra.mxu0 %v5198
        %v5303 = vpop.f32.mrf.mxu0
        %v5304 = vadd.f32 0.0, %v5303
        %v5305 = vpop.f32.mrf.mxu0
        %v5306 = vadd.f32 0.0, %v5305
        %5307 = vmatmul.bf16.gmra.mxu0 %v5199
        %v5308 = vpop.f32.mrf.mxu0
        %v5309 = vadd.f32 0.0, %v5308
        %v5310 = vpop.f32.mrf.mxu0
        %v5311 = vadd.f32 0.0, %v5310
        %5312 = vmatmul.bf16.gmra.mxu0 %v5200
        %v5313 = vpop.f32.mrf.mxu0
        %v5314 = vadd.f32 0.0, %v5313
        %v5315 = vpop.f32.mrf.mxu0
        %v5316 = vadd.f32 0.0, %v5315
        %5317 = vmatmul.bf16.gmra.mxu0 %v5201
        %v5318 = vpop.f32.mrf.mxu0
        %v5319 = vadd.f32 0.0, %v5318
        %v5320 = vpop.f32.mrf.mxu0
        %v5321 = vadd.f32 0.0, %v5320
        %5322 = vmatmul.bf16.gmra.mxu0 %v5202
        %v5323 = vpop.f32.mrf.mxu0
        %v5324 = vadd.f32 0.0, %v5323
        %v5325 = vpop.f32.mrf.mxu0
        %v5326 = vadd.f32 0.0, %v5325
        %5327 = vmatmul.bf16.gmra.mxu0 %v5203
        %v5328 = vpop.f32.mrf.mxu0
        %v5329 = vadd.f32 0.0, %v5328
        %v5330 = vpop.f32.mrf.mxu0
        %v5331 = vadd.f32 0.0, %v5330
        %5332 = vmatmul.bf16.gmra.mxu0 %v5204
        %v5333 = vpop.f32.mrf.mxu0
        %v5334 = vadd.f32 0.0, %v5333
        %v5335 = vpop.f32.mrf.mxu0
        %v5336 = vadd.f32 0.0, %v5335
        %5337 = vmatmul.bf16.gmra.mxu0 %v5205
        %v5338 = vpop.f32.mrf.mxu0
        %v5339 = vadd.f32 0.0, %v5338
        %v5340 = vpop.f32.mrf.mxu0
        %v5341 = vadd.f32 0.0, %v5340
        %5342 = vmatmul.bf16.gmra.mxu0 %v5206
        %v5343 = vpop.f32.mrf.mxu0
        %v5344 = vadd.f32 0.0, %v5343
        %v5345 = vpop.f32.mrf.mxu0
        %v5346 = vadd.f32 0.0, %v5345
        %5347 = vmatmul.bf16.gmra.mxu0 %v5207
        %v5348 = vpop.f32.mrf.mxu0
        %v5349 = vadd.f32 0.0, %v5348
        %v5350 = vpop.f32.mrf.mxu0
        %v5351 = vadd.f32 0.0, %v5350
        %5352 = vmatmul.bf16.gmra.mxu0 %v5208
        %v5353 = vpop.f32.mrf.mxu0
        %v5354 = vadd.f32 0.0, %v5353
        %v5355 = vpop.f32.mrf.mxu0
        %v5356 = vadd.f32 0.0, %v5355
        %5357 = vmatmul.bf16.gmra.mxu0 %v5209
        %v5358 = vpop.f32.mrf.mxu0
        %v5359 = vadd.f32 0.0, %v5358
        %v5360 = vpop.f32.mrf.mxu0
        %v5361 = vadd.f32 0.0, %v5360
        %5362 = vdwg.mxu0
        %v5523 = vunpack.c.l.b16 %v4810
        %v5524 = vunpack.c.h.b16 %v4810
        %v5525 = vunpack.c.l.b16 %v4811
        %v5526 = vunpack.c.h.b16 %v4811
        %v5527 = vunpack.c.l.b16 %v4812
        %v5528 = vunpack.c.h.b16 %v4812
        %v5529 = vunpack.c.l.b16 %v4813
        %v5530 = vunpack.c.h.b16 %v4813
        %v5531 = vunpack.c.l.b16 %v4814
        %v5532 = vunpack.c.l.b16 %v4815
        %v5533 = vunpack.c.h.b16 %v4815
        %v5534 = vunpack.c.l.b16 %v4816
        %v5535 = vunpack.c.h.b16 %v4816
        %v5536 = vunpack.c.l.b16 %v4817
        %v5537 = vunpack.c.h.b16 %v4817
        %v5538 = vunpack.c.l.b16 %v4818
        %v5539 = vunpack.c.h.b16 %v4818
        %v5540 = vunpack.c.l.b16 %v4819
        %v5541 = vunpack.c.l.b16 %v4820
        %v5542 = vunpack.c.h.b16 %v4820
        %v5543 = vunpack.c.l.b16 %v4821
        %v5544 = vunpack.c.h.b16 %v4821
        %v5545 = vunpack.c.l.b16 %v4822
        %v5546 = vunpack.c.h.b16 %v4822
        %v5547 = vunpack.c.l.b16 %v4823
        %v5548 = vunpack.c.h.b16 %v4823
        %v5549 = vunpack.c.l.b16 %v4824
        %v5550 = vunpack.c.l.b16 %v4825
        %v5551 = vunpack.c.h.b16 %v4825
        %v5552 = vunpack.c.l.b16 %v4826
        %v5553 = vunpack.c.h.b16 %v4826
        %v5554 = vunpack.c.l.b16 %v4827
        %v5555 = vunpack.c.h.b16 %v4827
        %v5556 = vunpack.c.l.b16 %v4828
        %v5557 = vunpack.c.h.b16 %v4828
        %v5558 = vunpack.c.l.b16 %v4829
        %v5559 = vunpack.c.l.b16 %v4830
        %v5560 = vunpack.c.h.b16 %v4830
        %v5561 = vunpack.c.l.b16 %v4831
        %v5562 = vunpack.c.h.b16 %v4831
        %v5563 = vunpack.c.l.b16 %v4832
        %v5564 = vunpack.c.h.b16 %v4832
        %v5565 = vunpack.c.l.b16 %v4833
        %v5566 = vunpack.c.h.b16 %v4833
        %v5567 = vunpack.c.l.b16 %v4834
        %v5568 = vunpack.c.l.b16 %v4835
        %v5569 = vunpack.c.h.b16 %v4835
        %v5570 = vunpack.c.l.b16 %v4836
        %v5571 = vunpack.c.h.b16 %v4836
        %v5572 = vunpack.c.l.b16 %v4837
        %v5573 = vunpack.c.h.b16 %v4837
        %v5574 = vunpack.c.l.b16 %v4838
        %v5575 = vunpack.c.h.b16 %v4838
        %v5576 = vunpack.c.l.b16 %v4839
        %v5577 = vunpack.c.l.b16 %v4840
        %v5578 = vunpack.c.h.b16 %v4840
        %v5579 = vunpack.c.l.b16 %v4841
        %v5580 = vunpack.c.h.b16 %v4841
        %v5581 = vunpack.c.l.b16 %v4842
        %v5582 = vunpack.c.h.b16 %v4842
        %v5583 = vunpack.c.l.b16 %v4843
        %v5584 = vunpack.c.h.b16 %v4843
        %v5585 = vunpack.c.l.b16 %v4844
        %v5586 = vunpack.c.l.b16 %v4845
        %v5587 = vunpack.c.h.b16 %v4845
        %v5588 = vunpack.c.l.b16 %v4846
        %v5589 = vunpack.c.h.b16 %v4846
        %v5590 = vunpack.c.l.b16 %v4847
        %v5591 = vunpack.c.h.b16 %v4847
        %v5592 = vunpack.c.l.b16 %v4848
        %v5593 = vunpack.c.h.b16 %v4848
        %v5594 = vunpack.c.l.b16 %v4849
        %v5595 = vunpack.c.l.b16 %v4850
        %v5596 = vunpack.c.h.b16 %v4850
        %v5597 = vunpack.c.l.b16 %v4851
        %v5598 = vunpack.c.h.b16 %v4851
        %v5599 = vunpack.c.l.b16 %v4852
        %v5600 = vunpack.c.h.b16 %v4852
        %v5601 = vunpack.c.l.b16 %v4853
        %v5602 = vunpack.c.h.b16 %v4853
        %v5603 = vunpack.c.l.b16 %v4854
        %v5604 = vunpack.c.l.b16 %v4855
        %v5605 = vunpack.c.h.b16 %v4855
        %v5606 = vunpack.c.l.b16 %v4856
        %v5607 = vunpack.c.h.b16 %v4856
        %v5608 = vunpack.c.l.b16 %v4857
        %v5609 = vunpack.c.h.b16 %v4857
        %v5610 = vunpack.c.l.b16 %v4858
        %v5611 = vunpack.c.h.b16 %v4858
        %v5612 = vunpack.c.l.b16 %v4859
        %v5613 = vunpack.c.l.b16 %v4860
        %v5614 = vunpack.c.h.b16 %v4860
        %v5615 = vunpack.c.l.b16 %v4861
        %v5616 = vunpack.c.h.b16 %v4861
        %v5617 = vunpack.c.l.b16 %v4862
        %v5618 = vunpack.c.h.b16 %v4862
        %v5619 = vunpack.c.l.b16 %v4863
        %v5620 = vunpack.c.h.b16 %v4863
        %v5621 = vunpack.c.l.b16 %v4864
        %v5622 = vunpack.c.l.b16 %v4865
        %v5623 = vunpack.c.h.b16 %v4865
        %v5624 = vunpack.c.l.b16 %v4866
        %v5625 = vunpack.c.h.b16 %v4866
        %v5626 = vunpack.c.l.b16 %v4867
        %v5627 = vunpack.c.h.b16 %v4867
        %v5628 = vunpack.c.l.b16 %v4868
        %v5629 = vunpack.c.h.b16 %v4868
        %v5630 = vunpack.c.l.b16 %v4869
        %v5631 = vunpack.c.l.b16 %v4870
        %v5632 = vunpack.c.h.b16 %v4870
        %v5633 = vunpack.c.l.b16 %v4871
        %v5634 = vunpack.c.h.b16 %v4871
        %v5635 = vunpack.c.l.b16 %v4872
        %v5636 = vunpack.c.h.b16 %v4872
        %v5637 = vunpack.c.l.b16 %v4873
        %v5638 = vunpack.c.h.b16 %v4873
        %v5639 = vunpack.c.l.b16 %v4874
        %v5640 = vunpack.c.l.b16 %v4875
        %v5641 = vunpack.c.h.b16 %v4875
        %v5642 = vunpack.c.l.b16 %v4876
        %v5643 = vunpack.c.h.b16 %v4876
        %v5644 = vunpack.c.l.b16 %v4877
        %v5645 = vunpack.c.h.b16 %v4877
        %v5646 = vunpack.c.l.b16 %v4878
        %v5647 = vunpack.c.h.b16 %v4878
        %v5648 = vunpack.c.l.b16 %v4879
        %v5649 = vunpack.c.l.b16 %v4880
        %v5650 = vunpack.c.h.b16 %v4880
        %v5651 = vunpack.c.l.b16 %v4881
        %v5652 = vunpack.c.h.b16 %v4881
        %v5653 = vunpack.c.l.b16 %v4882
        %v5654 = vunpack.c.h.b16 %v4882
        %v5655 = vunpack.c.l.b16 %v4883
        %v5656 = vunpack.c.h.b16 %v4883
        %v5657 = vunpack.c.l.b16 %v4884
        %v5658 = vunpack.c.l.b16 %v4885
        %v5659 = vunpack.c.h.b16 %v4885
        %v5660 = vunpack.c.l.b16 %v4886
        %v5661 = vunpack.c.h.b16 %v4886
        %v5662 = vunpack.c.l.b16 %v4887
        %v5663 = vunpack.c.h.b16 %v4887
        %v5664 = vunpack.c.l.b16 %v4888
        %v5665 = vunpack.c.h.b16 %v4888
        %v5666 = vunpack.c.l.b16 %v4889
        %v5667 = vunpack.c.l.b16 %v4890
        %v5668 = vunpack.c.h.b16 %v4890
        %v5669 = vunpack.c.l.b16 %v4891
        %v5670 = vunpack.c.h.b16 %v4891
        %v5671 = vunpack.c.l.b16 %v4892
        %v5672 = vunpack.c.h.b16 %v4892
        %v5673 = vunpack.c.l.b16 %v4893
        %v5674 = vunpack.c.h.b16 %v4893
        %v5675 = vunpack.c.l.b16 %v4894
        %v5676 = vunpack.c.l.b16 %v4895
        %v5677 = vunpack.c.h.b16 %v4895
        %v5678 = vunpack.c.l.b16 %v4896
        %v5679 = vunpack.c.h.b16 %v4896
        %v5680 = vunpack.c.l.b16 %v4897
        %v5681 = vunpack.c.h.b16 %v4897
        %v5682 = vunpack.c.l.b16 %v4898
        %v5683 = vunpack.c.h.b16 %v4898
        %v5684 = vunpack.c.l.b16 %v4899
        %v5685 = vunpack.c.l.b16 %v4900
        %v5686 = vunpack.c.h.b16 %v4900
        %v5687 = vunpack.c.l.b16 %v4901
        %v5688 = vunpack.c.h.b16 %v4901
        %v5689 = vunpack.c.l.b16 %v4902
        %v5690 = vunpack.c.h.b16 %v4902
        %v5691 = vunpack.c.l.b16 %v4903
        %v5692 = vunpack.c.h.b16 %v4903
        %v5693 = vunpack.c.l.b16 %v4904
        %v5694 = vunpack.c.l.b16 %v4905
        %v5695 = vunpack.c.h.b16 %v4905
        %v5696 = vunpack.c.l.b16 %v4906
        %v5697 = vunpack.c.h.b16 %v4906
        %v5698 = vunpack.c.l.b16 %v4907
        %v5699 = vunpack.c.h.b16 %v4907
        %v5700 = vunpack.c.l.b16 %v4908
        %v5701 = vunpack.c.h.b16 %v4908
        %v5702 = vunpack.c.l.b16 %v4909
        %v5703 = vunpack.c.l.b16 %v4910
        %v5704 = vunpack.c.h.b16 %v4910
        %v5705 = vunpack.c.l.b16 %v4911
        %v5706 = vunpack.c.h.b16 %v4911
        %v5707 = vunpack.c.l.b16 %v4912
        %v5708 = vunpack.c.h.b16 %v4912
        %v5709 = vunpack.c.l.b16 %v4913
        %v5710 = vunpack.c.h.b16 %v4913
        %v5711 = vunpack.c.l.b16 %v4914
        %v5712 = vunpack.c.l.b16 %v4915
        %v5713 = vunpack.c.h.b16 %v4915
        %v5714 = vunpack.c.l.b16 %v4916
        %v5715 = vunpack.c.h.b16 %v4916
        %v5716 = vunpack.c.l.b16 %v4917
        %v5717 = vunpack.c.h.b16 %v4917
        %v5718 = vunpack.c.l.b16 %v4918
        %v5719 = vunpack.c.h.b16 %v4918
        %v5720 = vunpack.c.l.b16 %v4919
        %v5721 = vunpack.c.l.b16 %v4920
        %v5722 = vunpack.c.h.b16 %v4920
        %v5723 = vunpack.c.l.b16 %v4921
        %v5724 = vunpack.c.h.b16 %v4921
        %v5725 = vunpack.c.l.b16 %v4922
        %v5726 = vunpack.c.h.b16 %v4922
        %v5727 = vunpack.c.l.b16 %v4923
        %v5728 = vunpack.c.h.b16 %v4923
        %v5729 = vunpack.c.l.b16 %v4924
        %v5730 = vunpack.c.l.b16 %v4925
        %v5731 = vunpack.c.h.b16 %v4925
        %v5732 = vunpack.c.l.b16 %v4926
        %v5733 = vunpack.c.h.b16 %v4926
        %v5734 = vunpack.c.l.b16 %v4927
        %v5735 = vunpack.c.h.b16 %v4927
        %v5736 = vunpack.c.l.b16 %v4928
        %v5737 = vunpack.c.h.b16 %v4928
        %v5738 = vunpack.c.l.b16 %v4929
        %v5739 = vunpack.c.l.b16 %v4930
        %v5740 = vunpack.c.h.b16 %v4930
        %v5741 = vunpack.c.l.b16 %v4931
        %v5742 = vunpack.c.h.b16 %v4931
        %v5743 = vunpack.c.l.b16 %v4932
        %v5744 = vunpack.c.h.b16 %v4932
        %v5745 = vunpack.c.l.b16 %v4933
        %v5746 = vunpack.c.h.b16 %v4933
        %v5747 = vunpack.c.l.b16 %v4934
        %v5748 = vunpack.c.l.b16 %v4935
        %v5749 = vunpack.c.h.b16 %v4935
        %v5750 = vunpack.c.l.b16 %v4936
        %v5751 = vunpack.c.h.b16 %v4936
        %v5752 = vunpack.c.l.b16 %v4937
        %v5753 = vunpack.c.h.b16 %v4937
        %v5754 = vunpack.c.l.b16 %v4938
        %v5755 = vunpack.c.h.b16 %v4938
        %v5756 = vunpack.c.l.b16 %v4939
        %v5757 = vunpack.c.l.b16 %v4940
        %v5758 = vunpack.c.h.b16 %v4940
        %v5759 = vunpack.c.l.b16 %v4941
        %v5760 = vunpack.c.h.b16 %v4941
        %v5761 = vunpack.c.l.b16 %v4942
        %v5762 = vunpack.c.h.b16 %v4942
        %v5763 = vunpack.c.l.b16 %v4943
        %v5764 = vunpack.c.h.b16 %v4943
        %v5765 = vunpack.c.l.b16 %v4944
        %v5766 = vunpack.c.l.b16 %v4945
        %v5767 = vunpack.c.h.b16 %v4945
        %v5768 = vunpack.c.l.b16 %v4946
        %v5769 = vunpack.c.h.b16 %v4946
        %v5770 = vunpack.c.l.b16 %v4947
        %v5771 = vunpack.c.h.b16 %v4947
        %v5772 = vunpack.c.l.b16 %v4948
        %v5773 = vunpack.c.h.b16 %v4948
        %v5774 = vunpack.c.l.b16 %v4949
        %v5775 = vunpack.c.l.b16 %v4950
        %v5776 = vunpack.c.h.b16 %v4950
        %v5777 = vunpack.c.l.b16 %v4951
        %v5778 = vunpack.c.h.b16 %v4951
        %v5779 = vunpack.c.l.b16 %v4952
        %v5780 = vunpack.c.h.b16 %v4952
        %v5781 = vunpack.c.l.b16 %v4953
        %v5782 = vunpack.c.h.b16 %v4953
        %v5783 = vunpack.c.l.b16 %v4954
        %v5784 = vunpack.c.l.b16 %v4955
        %v5785 = vunpack.c.h.b16 %v4955
        %v5786 = vunpack.c.l.b16 %v4956
        %v5787 = vunpack.c.h.b16 %v4956
        %v5788 = vunpack.c.l.b16 %v4957
        %v5789 = vunpack.c.h.b16 %v4957
        %v5790 = vunpack.c.l.b16 %v4958
        %v5791 = vunpack.c.h.b16 %v4958
        %v5792 = vunpack.c.l.b16 %v4959
        %v5793 = vunpack.c.l.b16 %v4960
        %v5794 = vunpack.c.h.b16 %v4960
        %v5795 = vunpack.c.l.b16 %v4961
        %v5796 = vunpack.c.h.b16 %v4961
        %v5797 = vunpack.c.l.b16 %v4962
        %v5798 = vunpack.c.h.b16 %v4962
        %v5799 = vunpack.c.l.b16 %v4963
        %v5800 = vunpack.c.h.b16 %v4963
        %v5801 = vunpack.c.l.b16 %v4964
        %v5802 = vunpack.c.l.b16 %v4965
        %v5803 = vunpack.c.h.b16 %v4965
        %v5804 = vunpack.c.l.b16 %v4966
        %v5805 = vunpack.c.h.b16 %v4966
        %v5806 = vunpack.c.l.b16 %v4967
        %v5807 = vunpack.c.h.b16 %v4967
        %v5808 = vunpack.c.l.b16 %v4968
        %v5809 = vunpack.c.h.b16 %v4968
        %v5810 = vunpack.c.l.b16 %v4969
        %v5811 = vpack.c.b16 %v5532, %v5523
        %v5812 = vpack.c.b16 %v5533, %v5524
        %v5813 = vpack.c.b16 %v5534, %v5525
        %v5814 = vpack.c.b16 %v5535, %v5526
        %v5815 = vpack.c.b16 %v5536, %v5527
        %v5816 = vpack.c.b16 %v5537, %v5528
        %v5817 = vpack.c.b16 %v5538, %v5529
        %v5818 = vpack.c.b16 %v5539, %v5530
        %v5819 = vpack.c.b16 %v5540, %v5531
        %v5820 = vpack.c.b16 %v5550, %v5541
        %v5821 = vpack.c.b16 %v5551, %v5542
        %v5822 = vpack.c.b16 %v5552, %v5543
        %v5823 = vpack.c.b16 %v5553, %v5544
        %v5824 = vpack.c.b16 %v5554, %v5545
        %v5825 = vpack.c.b16 %v5555, %v5546
        %v5826 = vpack.c.b16 %v5556, %v5547
        %v5827 = vpack.c.b16 %v5557, %v5548
        %v5828 = vpack.c.b16 %v5558, %v5549
        %v5829 = vpack.c.b16 %v5568, %v5559
        %v5830 = vpack.c.b16 %v5569, %v5560
        %v5831 = vpack.c.b16 %v5570, %v5561
        %v5832 = vpack.c.b16 %v5571, %v5562
        %v5833 = vpack.c.b16 %v5572, %v5563
        %v5834 = vpack.c.b16 %v5573, %v5564
        %v5835 = vpack.c.b16 %v5574, %v5565
        %v5836 = vpack.c.b16 %v5575, %v5566
        %v5837 = vpack.c.b16 %v5576, %v5567
        %v5838 = vpack.c.b16 %v5586, %v5577
        %v5839 = vpack.c.b16 %v5587, %v5578
        %v5840 = vpack.c.b16 %v5588, %v5579
        %v5841 = vpack.c.b16 %v5589, %v5580
        %v5842 = vpack.c.b16 %v5590, %v5581
        %v5843 = vpack.c.b16 %v5591, %v5582
        %v5844 = vpack.c.b16 %v5592, %v5583
        %v5845 = vpack.c.b16 %v5593, %v5584
        %v5846 = vpack.c.b16 %v5594, %v5585
        %v5847 = vpack.c.b16 %v5604, %v5595
        %v5848 = vpack.c.b16 %v5605, %v5596
        %v5849 = vpack.c.b16 %v5606, %v5597
        %v5850 = vpack.c.b16 %v5607, %v5598
        %v5851 = vpack.c.b16 %v5608, %v5599
        %v5852 = vpack.c.b16 %v5609, %v5600
        %v5853 = vpack.c.b16 %v5610, %v5601
        %v5854 = vpack.c.b16 %v5611, %v5602
        %v5855 = vpack.c.b16 %v5612, %v5603
        %v5856 = vpack.c.b16 %v5622, %v5613
        %v5857 = vpack.c.b16 %v5623, %v5614
        %v5858 = vpack.c.b16 %v5624, %v5615
        %v5859 = vpack.c.b16 %v5625, %v5616
        %v5860 = vpack.c.b16 %v5626, %v5617
        %v5861 = vpack.c.b16 %v5627, %v5618
        %v5862 = vpack.c.b16 %v5628, %v5619
        %v5863 = vpack.c.b16 %v5629, %v5620
        %v5864 = vpack.c.b16 %v5630, %v5621
        %v5865 = vpack.c.b16 %v5640, %v5631
        %v5866 = vpack.c.b16 %v5641, %v5632
        %v5867 = vpack.c.b16 %v5642, %v5633
        %v5868 = vpack.c.b16 %v5643, %v5634
        %v5869 = vpack.c.b16 %v5644, %v5635
        %v5870 = vpack.c.b16 %v5645, %v5636
        %v5871 = vpack.c.b16 %v5646, %v5637
        %v5872 = vpack.c.b16 %v5647, %v5638
        %v5873 = vpack.c.b16 %v5648, %v5639
        %v5874 = vpack.c.b16 %v5658, %v5649
        %v5875 = vpack.c.b16 %v5659, %v5650
        %v5876 = vpack.c.b16 %v5660, %v5651
        %v5877 = vpack.c.b16 %v5661, %v5652
        %v5878 = vpack.c.b16 %v5662, %v5653
        %v5879 = vpack.c.b16 %v5663, %v5654
        %v5880 = vpack.c.b16 %v5664, %v5655
        %v5881 = vpack.c.b16 %v5665, %v5656
        %v5882 = vpack.c.b16 %v5666, %v5657
        %v5883 = vpack.c.b16 %v5676, %v5667
        %v5884 = vpack.c.b16 %v5677, %v5668
        %v5885 = vpack.c.b16 %v5678, %v5669
        %v5886 = vpack.c.b16 %v5679, %v5670
        %v5887 = vpack.c.b16 %v5680, %v5671
        %v5888 = vpack.c.b16 %v5681, %v5672
        %v5889 = vpack.c.b16 %v5682, %v5673
        %v5890 = vpack.c.b16 %v5683, %v5674
        %v5891 = vpack.c.b16 %v5684, %v5675
        %v5892 = vpack.c.b16 %v5694, %v5685
        %v5893 = vpack.c.b16 %v5695, %v5686
        %v5894 = vpack.c.b16 %v5696, %v5687
        %v5895 = vpack.c.b16 %v5697, %v5688
        %v5896 = vpack.c.b16 %v5698, %v5689
        %v5897 = vpack.c.b16 %v5699, %v5690
        %v5898 = vpack.c.b16 %v5700, %v5691
        %v5899 = vpack.c.b16 %v5701, %v5692
        %v5900 = vpack.c.b16 %v5702, %v5693
        %v5901 = vpack.c.b16 %v5712, %v5703
        %v5902 = vpack.c.b16 %v5713, %v5704
        %v5903 = vpack.c.b16 %v5714, %v5705
        %v5904 = vpack.c.b16 %v5715, %v5706
        %v5905 = vpack.c.b16 %v5716, %v5707
        %v5906 = vpack.c.b16 %v5717, %v5708
        %v5907 = vpack.c.b16 %v5718, %v5709
        %v5908 = vpack.c.b16 %v5719, %v5710
        %v5909 = vpack.c.b16 %v5720, %v5711
        %v5910 = vpack.c.b16 %v5730, %v5721
        %v5911 = vpack.c.b16 %v5731, %v5722
        %v5912 = vpack.c.b16 %v5732, %v5723
        %v5913 = vpack.c.b16 %v5733, %v5724
        %v5914 = vpack.c.b16 %v5734, %v5725
        %v5915 = vpack.c.b16 %v5735, %v5726
        %v5916 = vpack.c.b16 %v5736, %v5727
        %v5917 = vpack.c.b16 %v5737, %v5728
        %v5918 = vpack.c.b16 %v5738, %v5729
        %v5919 = vpack.c.b16 %v5748, %v5739
        %v5920 = vpack.c.b16 %v5749, %v5740
        %v5921 = vpack.c.b16 %v5750, %v5741
        %v5922 = vpack.c.b16 %v5751, %v5742
        %v5923 = vpack.c.b16 %v5752, %v5743
        %v5924 = vpack.c.b16 %v5753, %v5744
        %v5925 = vpack.c.b16 %v5754, %v5745
        %v5926 = vpack.c.b16 %v5755, %v5746
        %v5927 = vpack.c.b16 %v5756, %v5747
        %v5928 = vpack.c.b16 %v5766, %v5757
        %v5929 = vpack.c.b16 %v5767, %v5758
        %v5930 = vpack.c.b16 %v5768, %v5759
        %v5931 = vpack.c.b16 %v5769, %v5760
        %v5932 = vpack.c.b16 %v5770, %v5761
        %v5933 = vpack.c.b16 %v5771, %v5762
        %v5934 = vpack.c.b16 %v5772, %v5763
        %v5935 = vpack.c.b16 %v5773, %v5764
        %v5936 = vpack.c.b16 %v5774, %v5765
        %v5937 = vpack.c.b16 %v5784, %v5775
        %v5938 = vpack.c.b16 %v5785, %v5776
        %v5939 = vpack.c.b16 %v5786, %v5777
        %v5940 = vpack.c.b16 %v5787, %v5778
        %v5941 = vpack.c.b16 %v5788, %v5779
        %v5942 = vpack.c.b16 %v5789, %v5780
        %v5943 = vpack.c.b16 %v5790, %v5781
        %v5944 = vpack.c.b16 %v5791, %v5782
        %v5945 = vpack.c.b16 %v5792, %v5783
        %v5946 = vpack.c.b16 %v5802, %v5793
        %v5947 = vpack.c.b16 %v5803, %v5794
        %v5948 = vpack.c.b16 %v5804, %v5795
        %v5949 = vpack.c.b16 %v5805, %v5796
        %v5950 = vpack.c.b16 %v5806, %v5797
        %v5951 = vpack.c.b16 %v5807, %v5798
        %v5952 = vpack.c.b16 %v5808, %v5799
        %v5953 = vpack.c.b16 %v5809, %v5800
        %v5954 = vpack.c.b16 %v5810, %v5801
        %v6243 = vunpack.c.l.b16 %v4970
        %v6244 = vunpack.c.l.b16 %v4971
        %v6245 = vunpack.c.l.b16 %v4972
        %v6246 = vunpack.c.l.b16 %v4973
        %v6247 = vunpack.c.l.b16 %v4974
        %v6248 = vunpack.c.l.b16 %v4975
        %v6249 = vunpack.c.l.b16 %v4976
        %v6250 = vunpack.c.l.b16 %v4977
        %v6251 = vunpack.c.l.b16 %v4978
        %v6252 = vunpack.c.l.b16 %v4979
        %v6253 = vunpack.c.l.b16 %v4980
        %v6254 = vunpack.c.l.b16 %v4981
        %v6255 = vunpack.c.l.b16 %v4982
        %v6256 = vunpack.c.l.b16 %v4983
        %v6257 = vunpack.c.l.b16 %v4984
        %v6258 = vunpack.c.l.b16 %v4985
        %v6259 = vunpack.c.l.b16 %v4986
        %v6260 = vunpack.c.l.b16 %v4987
        %v6261 = vunpack.c.l.b16 %v4988
        %v6262 = vunpack.c.l.b16 %v4989
        %v6263 = vunpack.c.l.b16 %v4990
        %v6264 = vunpack.c.l.b16 %v4991
        %v6265 = vunpack.c.l.b16 %v4992
        %v6266 = vunpack.c.l.b16 %v4993
        %v6267 = vunpack.c.l.b16 %v4994
        %v6268 = vunpack.c.l.b16 %v4995
        %v6269 = vunpack.c.l.b16 %v4996
        %v6270 = vunpack.c.l.b16 %v4997
        %v6271 = vunpack.c.l.b16 %v4998
        %v6272 = vunpack.c.l.b16 %v4999
        %v6273 = vunpack.c.l.b16 %v5000
        %v6274 = vunpack.c.l.b16 %v5001
        %v6275 = vunpack.c.l.b16 %v5002
        %v6276 = vunpack.c.l.b16 %v5003
        %v6277 = vunpack.c.l.b16 %v5004
        %v6278 = vunpack.c.l.b16 %v5005
        %v6279 = vunpack.c.l.b16 %v5006
        %v6280 = vunpack.c.l.b16 %v5007
        %v6281 = vunpack.c.l.b16 %v5008
        %v6282 = vunpack.c.l.b16 %v5009
        %v6283 = vunpack.c.l.b16 %v5010
        %v6284 = vunpack.c.l.b16 %v5011
        %v6285 = vunpack.c.l.b16 %v5012
        %v6286 = vunpack.c.l.b16 %v5013
        %v6287 = vunpack.c.l.b16 %v5014
        %v6288 = vunpack.c.l.b16 %v5015
        %v6289 = vunpack.c.l.b16 %v5016
        %v6290 = vunpack.c.l.b16 %v5017
        %v6291 = vunpack.c.l.b16 %v5018
        %v6292 = vunpack.c.l.b16 %v5019
        %v6293 = vunpack.c.l.b16 %v5020
        %v6294 = vunpack.c.l.b16 %v5021
        %v6295 = vunpack.c.l.b16 %v5022
        %v6296 = vunpack.c.l.b16 %v5023
        %v6297 = vunpack.c.l.b16 %v5024
        %v6298 = vunpack.c.l.b16 %v5025
        %v6299 = vunpack.c.l.b16 %v5026
        %v6300 = vunpack.c.l.b16 %v5027
        %v6301 = vunpack.c.l.b16 %v5028
        %v6302 = vunpack.c.l.b16 %v5029
        %v6303 = vunpack.c.l.b16 %v5030
        %v6304 = vunpack.c.l.b16 %v5031
        %v6305 = vunpack.c.l.b16 %v5032
        %v6306 = vunpack.c.l.b16 %v5033
        %v6307 = vunpack.c.l.b16 %v5034
        %v6308 = vunpack.c.l.b16 %v5035
        %v6309 = vunpack.c.l.b16 %v5036
        %v6310 = vunpack.c.l.b16 %v5037
        %v6311 = vunpack.c.l.b16 %v5038
        %v6312 = vunpack.c.l.b16 %v5039
        %v6313 = vunpack.c.l.b16 %v5040
        %v6314 = vunpack.c.l.b16 %v5041
        %v6315 = vunpack.c.l.b16 %v5042
        %v6316 = vunpack.c.l.b16 %v5043
        %v6317 = vunpack.c.l.b16 %v5044
        %v6318 = vunpack.c.l.b16 %v5045
        %v6319 = vunpack.c.l.b16 %v5046
        %v6320 = vunpack.c.l.b16 %v5047
        %v6321 = vunpack.c.l.b16 %v5048
        %v6322 = vunpack.c.l.b16 %v5049
        %v6323 = vunpack.c.l.b16 %v5050
        %v6324 = vunpack.c.l.b16 %v5051
        %v6325 = vunpack.c.l.b16 %v5052
        %v6326 = vunpack.c.l.b16 %v5053
        %v6327 = vunpack.c.l.b16 %v5054
        %v6328 = vunpack.c.l.b16 %v5055
        %v6329 = vunpack.c.l.b16 %v5056
        %v6330 = vunpack.c.l.b16 %v5057
        %v6331 = vunpack.c.l.b16 %v5058
        %v6332 = vunpack.c.l.b16 %v5059
        %v6333 = vunpack.c.l.b16 %v5060
        %v6334 = vunpack.c.l.b16 %v5061
        %v6335 = vunpack.c.l.b16 %v5062
        %v6336 = vunpack.c.l.b16 %v5063
        %v6337 = vunpack.c.l.b16 %v5064
        %v6338 = vunpack.c.l.b16 %v5065
        %v6339 = vunpack.c.l.b16 %v5066
        %v6340 = vunpack.c.l.b16 %v5067
        %v6341 = vunpack.c.l.b16 %v5068
        %v6342 = vunpack.c.l.b16 %v5069
        %v6343 = vunpack.c.l.b16 %v5070
        %v6344 = vunpack.c.l.b16 %v5071
        %v6345 = vunpack.c.l.b16 %v5072
        %v6346 = vunpack.c.l.b16 %v5073
        %v6347 = vunpack.c.l.b16 %v5074
        %v6348 = vunpack.c.l.b16 %v5075
        %v6349 = vunpack.c.l.b16 %v5076
        %v6350 = vunpack.c.l.b16 %v5077
        %v6351 = vunpack.c.l.b16 %v5078
        %v6352 = vunpack.c.l.b16 %v5079
        %v6353 = vunpack.c.l.b16 %v5080
        %v6354 = vunpack.c.l.b16 %v5081
        %v6355 = vunpack.c.l.b16 %v5082
        %v6356 = vunpack.c.l.b16 %v5083
        %v6357 = vunpack.c.l.b16 %v5084
        %v6358 = vunpack.c.l.b16 %v5085
        %v6359 = vunpack.c.l.b16 %v5086
        %v6360 = vunpack.c.l.b16 %v5087
        %v6361 = vunpack.c.l.b16 %v5088
        %v6362 = vunpack.c.l.b16 %v5089
        %v6363 = vunpack.c.l.b16 %v5090
        %v6364 = vunpack.c.l.b16 %v5091
        %v6365 = vunpack.c.l.b16 %v5092
        %v6366 = vunpack.c.l.b16 %v5093
        %v6367 = vunpack.c.l.b16 %v5094
        %v6368 = vunpack.c.l.b16 %v5095
        %v6369 = vunpack.c.l.b16 %v5096
        %v6370 = vunpack.c.l.b16 %v5097
        %v6371 = vunpack.c.l.b16 %v5098
        %v6372 = vunpack.c.l.b16 %v5099
        %v6373 = vunpack.c.l.b16 %v5100
        %v6374 = vunpack.c.l.b16 %v5101
        %v6375 = vunpack.c.l.b16 %v5102
        %v6376 = vunpack.c.l.b16 %v5103
        %v6377 = vunpack.c.l.b16 %v5104
        %v6378 = vunpack.c.l.b16 %v5105
        %v6379 = vunpack.c.l.b16 %v5106
        %v6380 = vunpack.c.l.b16 %v5107
        %v6381 = vunpack.c.l.b16 %v5108
        %v6382 = vunpack.c.l.b16 %v5109
        %v6383 = vunpack.c.l.b16 %v5110
        %v6384 = vunpack.c.l.b16 %v5111
        %v6385 = vunpack.c.l.b16 %v5112
        %v6386 = vunpack.c.l.b16 %v5113
        %v6387 = vpack.c.b16 %v6244, %v6243
        %v6388 = vpack.c.b16 %v6246, %v6245
        %v6389 = vpack.c.b16 %v6248, %v6247
        %v6390 = vpack.c.b16 %v6250, %v6249
        %v6391 = vpack.c.b16 %v6252, %v6251
        %v6392 = vpack.c.b16 %v6254, %v6253
        %v6393 = vpack.c.b16 %v6256, %v6255
        %v6394 = vpack.c.b16 %v6258, %v6257
        %v6395 = vpack.c.b16 %v6260, %v6259
        %v6396 = vpack.c.b16 %v6262, %v6261
        %v6397 = vpack.c.b16 %v6264, %v6263
        %v6398 = vpack.c.b16 %v6266, %v6265
        %v6399 = vpack.c.b16 %v6268, %v6267
        %v6400 = vpack.c.b16 %v6270, %v6269
        %v6401 = vpack.c.b16 %v6272, %v6271
        %v6402 = vpack.c.b16 %v6274, %v6273
        %v6403 = vpack.c.b16 %v6276, %v6275
        %v6404 = vpack.c.b16 %v6278, %v6277
        %v6405 = vpack.c.b16 %v6280, %v6279
        %v6406 = vpack.c.b16 %v6282, %v6281
        %v6407 = vpack.c.b16 %v6284, %v6283
        %v6408 = vpack.c.b16 %v6286, %v6285
        %v6409 = vpack.c.b16 %v6288, %v6287
        %v6410 = vpack.c.b16 %v6290, %v6289
        %v6411 = vpack.c.b16 %v6292, %v6291
        %v6412 = vpack.c.b16 %v6294, %v6293
        %v6413 = vpack.c.b16 %v6296, %v6295
        %v6414 = vpack.c.b16 %v6298, %v6297
        %v6415 = vpack.c.b16 %v6300, %v6299
        %v6416 = vpack.c.b16 %v6302, %v6301
        %v6417 = vpack.c.b16 %v6304, %v6303
        %v6418 = vpack.c.b16 %v6306, %v6305
        %v6419 = vpack.c.b16 %v6308, %v6307
        %v6420 = vpack.c.b16 %v6310, %v6309
        %v6421 = vpack.c.b16 %v6312, %v6311
        %v6422 = vpack.c.b16 %v6314, %v6313
        %v6423 = vpack.c.b16 %v6316, %v6315
        %v6424 = vpack.c.b16 %v6318, %v6317
        %v6425 = vpack.c.b16 %v6320, %v6319
        %v6426 = vpack.c.b16 %v6322, %v6321
        %v6427 = vpack.c.b16 %v6324, %v6323
        %v6428 = vpack.c.b16 %v6326, %v6325
        %v6429 = vpack.c.b16 %v6328, %v6327
        %v6430 = vpack.c.b16 %v6330, %v6329
        %v6431 = vpack.c.b16 %v6332, %v6331
        %v6432 = vpack.c.b16 %v6334, %v6333
        %v6433 = vpack.c.b16 %v6336, %v6335
        %v6434 = vpack.c.b16 %v6338, %v6337
        %v6435 = vpack.c.b16 %v6340, %v6339
        %v6436 = vpack.c.b16 %v6342, %v6341
        %v6437 = vpack.c.b16 %v6344, %v6343
        %v6438 = vpack.c.b16 %v6346, %v6345
        %v6439 = vpack.c.b16 %v6348, %v6347
        %v6440 = vpack.c.b16 %v6350, %v6349
        %v6441 = vpack.c.b16 %v6352, %v6351
        %v6442 = vpack.c.b16 %v6354, %v6353
        %v6443 = vpack.c.b16 %v6356, %v6355
        %v6444 = vpack.c.b16 %v6358, %v6357
        %v6445 = vpack.c.b16 %v6360, %v6359
        %v6446 = vpack.c.b16 %v6362, %v6361
        %v6447 = vpack.c.b16 %v6364, %v6363
        %v6448 = vpack.c.b16 %v6366, %v6365
        %v6449 = vpack.c.b16 %v6368, %v6367
        %v6450 = vpack.c.b16 %v6370, %v6369
        %v6451 = vpack.c.b16 %v6372, %v6371
        %v6452 = vpack.c.b16 %v6374, %v6373
        %v6453 = vpack.c.b16 %v6376, %v6375
        %v6454 = vpack.c.b16 %v6378, %v6377
        %v6455 = vpack.c.b16 %v6380, %v6379
        %v6456 = vpack.c.b16 %v6382, %v6381
        %v6457 = vpack.c.b16 %v6384, %v6383
        %v6458 = vpack.c.b16 %v6386, %v6385
        %6531 = vmatpush.bf16.msra.mxu0 %v6394
        %6532 = vmatpush.bf16.msra.mxu0 %v6393
        %6533 = vmatpush.bf16.msra.mxu0 %v6392
        %6534 = vmatpush.bf16.msra.mxu0 %v6391
        %6535 = vmatpush.bf16.msra.mxu0 %v6390
        %6536 = vmatpush.bf16.msra.mxu0 %v6389
        %6537 = vmatpush.bf16.msra.mxu0 %v6388
        %6538 = vmatpush.bf16.msra.mxu0 %v6387
        %6539 = vmatmul.bf16.gmra.mxu0 %v5811
        %v6540 = vpop.f32.mrf.mxu0
        %v6541 = vadd.f32 %v5284, %v6540
        %v6542 = vpop.f32.mrf.mxu0
        %v6543 = vadd.f32 %v5286, %v6542
        %6544 = vmatmul.bf16.gmra.mxu0 %v5820
        %v6545 = vpop.f32.mrf.mxu0
        %v6546 = vadd.f32 %v5289, %v6545
        %v6547 = vpop.f32.mrf.mxu0
        %v6548 = vadd.f32 %v5291, %v6547
        %6549 = vmatmul.bf16.gmra.mxu0 %v5829
        %v6550 = vpop.f32.mrf.mxu0
        %v6551 = vadd.f32 %v5294, %v6550
        %v6552 = vpop.f32.mrf.mxu0
        %v6553 = vadd.f32 %v5296, %v6552
        %6554 = vmatmul.bf16.gmra.mxu0 %v5838
        %v6555 = vpop.f32.mrf.mxu0
        %v6556 = vadd.f32 %v5299, %v6555
        %v6557 = vpop.f32.mrf.mxu0
        %v6558 = vadd.f32 %v5301, %v6557
        %6559 = vmatmul.bf16.gmra.mxu0 %v5847
        %v6560 = vpop.f32.mrf.mxu0
        %v6561 = vadd.f32 %v5304, %v6560
        %v6562 = vpop.f32.mrf.mxu0
        %v6563 = vadd.f32 %v5306, %v6562
        %6564 = vmatmul.bf16.gmra.mxu0 %v5856
        %v6565 = vpop.f32.mrf.mxu0
        %v6566 = vadd.f32 %v5309, %v6565
        %v6567 = vpop.f32.mrf.mxu0
        %v6568 = vadd.f32 %v5311, %v6567
        %6569 = vmatmul.bf16.gmra.mxu0 %v5865
        %v6570 = vpop.f32.mrf.mxu0
        %v6571 = vadd.f32 %v5314, %v6570
        %v6572 = vpop.f32.mrf.mxu0
        %v6573 = vadd.f32 %v5316, %v6572
        %6574 = vmatmul.bf16.gmra.mxu0 %v5874
        %v6575 = vpop.f32.mrf.mxu0
        %v6576 = vadd.f32 %v5319, %v6575
        %v6577 = vpop.f32.mrf.mxu0
        %v6578 = vadd.f32 %v5321, %v6577
        %6579 = vmatmul.bf16.gmra.mxu0 %v5883
        %v6580 = vpop.f32.mrf.mxu0
        %v6581 = vadd.f32 %v5324, %v6580
        %v6582 = vpop.f32.mrf.mxu0
        %v6583 = vadd.f32 %v5326, %v6582
        %6584 = vmatmul.bf16.gmra.mxu0 %v5892
        %v6585 = vpop.f32.mrf.mxu0
        %v6586 = vadd.f32 %v5329, %v6585
        %v6587 = vpop.f32.mrf.mxu0
        %v6588 = vadd.f32 %v5331, %v6587
        %6589 = vmatmul.bf16.gmra.mxu0 %v5901
        %v6590 = vpop.f32.mrf.mxu0
        %v6591 = vadd.f32 %v5334, %v6590
        %v6592 = vpop.f32.mrf.mxu0
        %v6593 = vadd.f32 %v5336, %v6592
        %6594 = vmatmul.bf16.gmra.mxu0 %v5910
        %v6595 = vpop.f32.mrf.mxu0
        %v6596 = vadd.f32 %v5339, %v6595
        %v6597 = vpop.f32.mrf.mxu0
        %v6598 = vadd.f32 %v5341, %v6597
        %6599 = vmatmul.bf16.gmra.mxu0 %v5919
        %v6600 = vpop.f32.mrf.mxu0
        %v6601 = vadd.f32 %v5344, %v6600
        %v6602 = vpop.f32.mrf.mxu0
        %v6603 = vadd.f32 %v5346, %v6602
        %6604 = vmatmul.bf16.gmra.mxu0 %v5928
        %v6605 = vpop.f32.mrf.mxu0
        %v6606 = vadd.f32 %v5349, %v6605
        %v6607 = vpop.f32.mrf.mxu0
        %v6608 = vadd.f32 %v5351, %v6607
        %6609 = vmatmul.bf16.gmra.mxu0 %v5937
        %v6610 = vpop.f32.mrf.mxu0
        %v6611 = vadd.f32 %v5354, %v6610
        %v6612 = vpop.f32.mrf.mxu0
        %v6613 = vadd.f32 %v5356, %v6612
        %6614 = vmatmul.bf16.gmra.mxu0 %v5946
        %v6615 = vpop.f32.mrf.mxu0
        %v6616 = vadd.f32 %v5359, %v6615
        %v6617 = vpop.f32.mrf.mxu0
        %v6618 = vadd.f32 %v5361, %v6617
        %6619 = vdwg.mxu0
        %6620 = vmatpush.bf16.msra.mxu0 %v6402
        %6621 = vmatpush.bf16.msra.mxu0 %v6401
        %6622 = vmatpush.bf16.msra.mxu0 %v6400
        %6623 = vmatpush.bf16.msra.mxu0 %v6399
        %6624 = vmatpush.bf16.msra.mxu0 %v6398
        %6625 = vmatpush.bf16.msra.mxu0 %v6397
        %6626 = vmatpush.bf16.msra.mxu0 %v6396
        %6627 = vmatpush.bf16.msra.mxu0 %v6395
        %6628 = vmatmul.bf16.gmra.mxu0 %v5812
        %v6629 = vpop.f32.mrf.mxu0
        %v6630 = vadd.f32 %v6541, %v6629
        %v6631 = vpop.f32.mrf.mxu0
        %v6632 = vadd.f32 %v6543, %v6631
        %6633 = vmatmul.bf16.gmra.mxu0 %v5821
        %v6634 = vpop.f32.mrf.mxu0
        %v6635 = vadd.f32 %v6546, %v6634
        %v6636 = vpop.f32.mrf.mxu0
        %v6637 = vadd.f32 %v6548, %v6636
        %6638 = vmatmul.bf16.gmra.mxu0 %v5830
        %v6639 = vpop.f32.mrf.mxu0
        %v6640 = vadd.f32 %v6551, %v6639
        %v6641 = vpop.f32.mrf.mxu0
        %v6642 = vadd.f32 %v6553, %v6641
        %6643 = vmatmul.bf16.gmra.mxu0 %v5839
        %v6644 = vpop.f32.mrf.mxu0
        %v6645 = vadd.f32 %v6556, %v6644
        %v6646 = vpop.f32.mrf.mxu0
        %v6647 = vadd.f32 %v6558, %v6646
        %6648 = vmatmul.bf16.gmra.mxu0 %v5848
        %v6649 = vpop.f32.mrf.mxu0
        %v6650 = vadd.f32 %v6561, %v6649
        %v6651 = vpop.f32.mrf.mxu0
        %v6652 = vadd.f32 %v6563, %v6651
        %6653 = vmatmul.bf16.gmra.mxu0 %v5857
        %v6654 = vpop.f32.mrf.mxu0
        %v6655 = vadd.f32 %v6566, %v6654
        %v6656 = vpop.f32.mrf.mxu0
        %v6657 = vadd.f32 %v6568, %v6656
        %6658 = vmatmul.bf16.gmra.mxu0 %v5866
        %v6659 = vpop.f32.mrf.mxu0
        %v6660 = vadd.f32 %v6571, %v6659
        %v6661 = vpop.f32.mrf.mxu0
        %v6662 = vadd.f32 %v6573, %v6661
        %6663 = vmatmul.bf16.gmra.mxu0 %v5875
        %v6664 = vpop.f32.mrf.mxu0
        %v6665 = vadd.f32 %v6576, %v6664
        %v6666 = vpop.f32.mrf.mxu0
        %v6667 = vadd.f32 %v6578, %v6666
        %6668 = vmatmul.bf16.gmra.mxu0 %v5884
        %v6669 = vpop.f32.mrf.mxu0
        %v6670 = vadd.f32 %v6581, %v6669
        %v6671 = vpop.f32.mrf.mxu0
        %v6672 = vadd.f32 %v6583, %v6671
        %6673 = vmatmul.bf16.gmra.mxu0 %v5893
        %v6674 = vpop.f32.mrf.mxu0
        %v6675 = vadd.f32 %v6586, %v6674
        %v6676 = vpop.f32.mrf.mxu0
        %v6677 = vadd.f32 %v6588, %v6676
        %6678 = vmatmul.bf16.gmra.mxu0 %v5902
        %v6679 = vpop.f32.mrf.mxu0
        %v6680 = vadd.f32 %v6591, %v6679
        %v6681 = vpop.f32.mrf.mxu0
        %v6682 = vadd.f32 %v6593, %v6681
        %6683 = vmatmul.bf16.gmra.mxu0 %v5911
        %v6684 = vpop.f32.mrf.mxu0
        %v6685 = vadd.f32 %v6596, %v6684
        %v6686 = vpop.f32.mrf.mxu0
        %v6687 = vadd.f32 %v6598, %v6686
        %6688 = vmatmul.bf16.gmra.mxu0 %v5920
        %v6689 = vpop.f32.mrf.mxu0
        %v6690 = vadd.f32 %v6601, %v6689
        %v6691 = vpop.f32.mrf.mxu0
        %v6692 = vadd.f32 %v6603, %v6691
        %6693 = vmatmul.bf16.gmra.mxu0 %v5929
        %v6694 = vpop.f32.mrf.mxu0
        %v6695 = vadd.f32 %v6606, %v6694
        %v6696 = vpop.f32.mrf.mxu0
        %v6697 = vadd.f32 %v6608, %v6696
        %6698 = vmatmul.bf16.gmra.mxu0 %v5938
        %v6699 = vpop.f32.mrf.mxu0
        %v6700 = vadd.f32 %v6611, %v6699
        %v6701 = vpop.f32.mrf.mxu0
        %v6702 = vadd.f32 %v6613, %v6701
        %6703 = vmatmul.bf16.gmra.mxu0 %v5947
        %v6704 = vpop.f32.mrf.mxu0
        %v6705 = vadd.f32 %v6616, %v6704
        %v6706 = vpop.f32.mrf.mxu0
        %v6707 = vadd.f32 %v6618, %v6706
        %6708 = vdwg.mxu0
        %6709 = vmatpush.bf16.msra.mxu0 %v6410
        %6710 = vmatpush.bf16.msra.mxu0 %v6409
        %6711 = vmatpush.bf16.msra.mxu0 %v6408
        %6712 = vmatpush.bf16.msra.mxu0 %v6407
        %6713 = vmatpush.bf16.msra.mxu0 %v6406
        %6714 = vmatpush.bf16.msra.mxu0 %v6405
        %6715 = vmatpush.bf16.msra.mxu0 %v6404
        %6716 = vmatpush.bf16.msra.mxu0 %v6403
        %6717 = vmatmul.bf16.gmra.mxu0 %v5813
        %v6718 = vpop.f32.mrf.mxu0
        %v6719 = vadd.f32 %v6630, %v6718
        %v6720 = vpop.f32.mrf.mxu0
        %v6721 = vadd.f32 %v6632, %v6720
        %6722 = vmatmul.bf16.gmra.mxu0 %v5822
        %v6723 = vpop.f32.mrf.mxu0
        %v6724 = vadd.f32 %v6635, %v6723
        %v6725 = vpop.f32.mrf.mxu0
        %v6726 = vadd.f32 %v6637, %v6725
        %6727 = vmatmul.bf16.gmra.mxu0 %v5831
        %v6728 = vpop.f32.mrf.mxu0
        %v6729 = vadd.f32 %v6640, %v6728
        %v6730 = vpop.f32.mrf.mxu0
        %v6731 = vadd.f32 %v6642, %v6730
        %6732 = vmatmul.bf16.gmra.mxu0 %v5840
        %v6733 = vpop.f32.mrf.mxu0
        %v6734 = vadd.f32 %v6645, %v6733
        %v6735 = vpop.f32.mrf.mxu0
        %v6736 = vadd.f32 %v6647, %v6735
        %6737 = vmatmul.bf16.gmra.mxu0 %v5849
        %v6738 = vpop.f32.mrf.mxu0
        %v6739 = vadd.f32 %v6650, %v6738
        %v6740 = vpop.f32.mrf.mxu0
        %v6741 = vadd.f32 %v6652, %v6740
        %6742 = vmatmul.bf16.gmra.mxu0 %v5858
        %v6743 = vpop.f32.mrf.mxu0
        %v6744 = vadd.f32 %v6655, %v6743
        %v6745 = vpop.f32.mrf.mxu0
        %v6746 = vadd.f32 %v6657, %v6745
        %6747 = vmatmul.bf16.gmra.mxu0 %v5867
        %v6748 = vpop.f32.mrf.mxu0
        %v6749 = vadd.f32 %v6660, %v6748
        %v6750 = vpop.f32.mrf.mxu0
        %v6751 = vadd.f32 %v6662, %v6750
        %6752 = vmatmul.bf16.gmra.mxu0 %v5876
        %v6753 = vpop.f32.mrf.mxu0
        %v6754 = vadd.f32 %v6665, %v6753
        %v6755 = vpop.f32.mrf.mxu0
        %v6756 = vadd.f32 %v6667, %v6755
        %6757 = vmatmul.bf16.gmra.mxu0 %v5885
        %v6758 = vpop.f32.mrf.mxu0
        %v6759 = vadd.f32 %v6670, %v6758
        %v6760 = vpop.f32.mrf.mxu0
        %v6761 = vadd.f32 %v6672, %v6760
        %6762 = vmatmul.bf16.gmra.mxu0 %v5894
        %v6763 = vpop.f32.mrf.mxu0
        %v6764 = vadd.f32 %v6675, %v6763
        %v6765 = vpop.f32.mrf.mxu0
        %v6766 = vadd.f32 %v6677, %v6765
        %6767 = vmatmul.bf16.gmra.mxu0 %v5903
        %v6768 = vpop.f32.mrf.mxu0
        %v6769 = vadd.f32 %v6680, %v6768
        %v6770 = vpop.f32.mrf.mxu0
        %v6771 = vadd.f32 %v6682, %v6770
        %6772 = vmatmul.bf16.gmra.mxu0 %v5912
        %v6773 = vpop.f32.mrf.mxu0
        %v6774 = vadd.f32 %v6685, %v6773
        %v6775 = vpop.f32.mrf.mxu0
        %v6776 = vadd.f32 %v6687, %v6775
        %6777 = vmatmul.bf16.gmra.mxu0 %v5921
        %v6778 = vpop.f32.mrf.mxu0
        %v6779 = vadd.f32 %v6690, %v6778
        %v6780 = vpop.f32.mrf.mxu0
        %v6781 = vadd.f32 %v6692, %v6780
        %6782 = vmatmul.bf16.gmra.mxu0 %v5930
        %v6783 = vpop.f32.mrf.mxu0
        %v6784 = vadd.f32 %v6695, %v6783
        %v6785 = vpop.f32.mrf.mxu0
        %v6786 = vadd.f32 %v6697, %v6785
        %6787 = vmatmul.bf16.gmra.mxu0 %v5939
        %v6788 = vpop.f32.mrf.mxu0
        %v6789 = vadd.f32 %v6700, %v6788
        %v6790 = vpop.f32.mrf.mxu0
        %v6791 = vadd.f32 %v6702, %v6790
        %6792 = vmatmul.bf16.gmra.mxu0 %v5948
        %v6793 = vpop.f32.mrf.mxu0
        %v6794 = vadd.f32 %v6705, %v6793
        %v6795 = vpop.f32.mrf.mxu0
        %v6796 = vadd.f32 %v6707, %v6795
        %6797 = vdwg.mxu0
        %6798 = vmatpush.bf16.msra.mxu0 %v6418
        %6799 = vmatpush.bf16.msra.mxu0 %v6417
        %6800 = vmatpush.bf16.msra.mxu0 %v6416
        %6801 = vmatpush.bf16.msra.mxu0 %v6415
        %6802 = vmatpush.bf16.msra.mxu0 %v6414
        %6803 = vmatpush.bf16.msra.mxu0 %v6413
        %6804 = vmatpush.bf16.msra.mxu0 %v6412
        %6805 = vmatpush.bf16.msra.mxu0 %v6411
        %6806 = vmatmul.bf16.gmra.mxu0 %v5814
        %v6807 = vpop.f32.mrf.mxu0
        %v6808 = vadd.f32 %v6719, %v6807
        %v6809 = vpop.f32.mrf.mxu0
        %v6810 = vadd.f32 %v6721, %v6809
        %6811 = vmatmul.bf16.gmra.mxu0 %v5823
        %v6812 = vpop.f32.mrf.mxu0
        %v6813 = vadd.f32 %v6724, %v6812
        %v6814 = vpop.f32.mrf.mxu0
        %v6815 = vadd.f32 %v6726, %v6814
        %6816 = vmatmul.bf16.gmra.mxu0 %v5832
        %v6817 = vpop.f32.mrf.mxu0
        %v6818 = vadd.f32 %v6729, %v6817
        %v6819 = vpop.f32.mrf.mxu0
        %v6820 = vadd.f32 %v6731, %v6819
        %6821 = vmatmul.bf16.gmra.mxu0 %v5841
        %v6822 = vpop.f32.mrf.mxu0
        %v6823 = vadd.f32 %v6734, %v6822
        %v6824 = vpop.f32.mrf.mxu0
        %v6825 = vadd.f32 %v6736, %v6824
        %6826 = vmatmul.bf16.gmra.mxu0 %v5850
        %v6827 = vpop.f32.mrf.mxu0
        %v6828 = vadd.f32 %v6739, %v6827
        %v6829 = vpop.f32.mrf.mxu0
        %v6830 = vadd.f32 %v6741, %v6829
        %6831 = vmatmul.bf16.gmra.mxu0 %v5859
        %v6832 = vpop.f32.mrf.mxu0
        %v6833 = vadd.f32 %v6744, %v6832
        %v6834 = vpop.f32.mrf.mxu0
        %v6835 = vadd.f32 %v6746, %v6834
        %6836 = vmatmul.bf16.gmra.mxu0 %v5868
        %v6837 = vpop.f32.mrf.mxu0
        %v6838 = vadd.f32 %v6749, %v6837
        %v6839 = vpop.f32.mrf.mxu0
        %v6840 = vadd.f32 %v6751, %v6839
        %6841 = vmatmul.bf16.gmra.mxu0 %v5877
        %v6842 = vpop.f32.mrf.mxu0
        %v6843 = vadd.f32 %v6754, %v6842
        %v6844 = vpop.f32.mrf.mxu0
        %v6845 = vadd.f32 %v6756, %v6844
        %6846 = vmatmul.bf16.gmra.mxu0 %v5886
        %v6847 = vpop.f32.mrf.mxu0
        %v6848 = vadd.f32 %v6759, %v6847
        %v6849 = vpop.f32.mrf.mxu0
        %v6850 = vadd.f32 %v6761, %v6849
        %6851 = vmatmul.bf16.gmra.mxu0 %v5895
        %v6852 = vpop.f32.mrf.mxu0
        %v6853 = vadd.f32 %v6764, %v6852
        %v6854 = vpop.f32.mrf.mxu0
        %v6855 = vadd.f32 %v6766, %v6854
        %6856 = vmatmul.bf16.gmra.mxu0 %v5904
        %v6857 = vpop.f32.mrf.mxu0
        %v6858 = vadd.f32 %v6769, %v6857
        %v6859 = vpop.f32.mrf.mxu0
        %v6860 = vadd.f32 %v6771, %v6859
        %6861 = vmatmul.bf16.gmra.mxu0 %v5913
        %v6862 = vpop.f32.mrf.mxu0
        %v6863 = vadd.f32 %v6774, %v6862
        %v6864 = vpop.f32.mrf.mxu0
        %v6865 = vadd.f32 %v6776, %v6864
        %6866 = vmatmul.bf16.gmra.mxu0 %v5922
        %v6867 = vpop.f32.mrf.mxu0
        %v6868 = vadd.f32 %v6779, %v6867
        %v6869 = vpop.f32.mrf.mxu0
        %v6870 = vadd.f32 %v6781, %v6869
        %6871 = vmatmul.bf16.gmra.mxu0 %v5931
        %v6872 = vpop.f32.mrf.mxu0
        %v6873 = vadd.f32 %v6784, %v6872
        %v6874 = vpop.f32.mrf.mxu0
        %v6875 = vadd.f32 %v6786, %v6874
        %6876 = vmatmul.bf16.gmra.mxu0 %v5940
        %v6877 = vpop.f32.mrf.mxu0
        %v6878 = vadd.f32 %v6789, %v6877
        %v6879 = vpop.f32.mrf.mxu0
        %v6880 = vadd.f32 %v6791, %v6879
        %6881 = vmatmul.bf16.gmra.mxu0 %v5949
        %v6882 = vpop.f32.mrf.mxu0
        %v6883 = vadd.f32 %v6794, %v6882
        %v6884 = vpop.f32.mrf.mxu0
        %v6885 = vadd.f32 %v6796, %v6884
        %6886 = vdwg.mxu0
        %6887 = vmatpush.bf16.msra.mxu0 %v6426
        %6888 = vmatpush.bf16.msra.mxu0 %v6425
        %6889 = vmatpush.bf16.msra.mxu0 %v6424
        %6890 = vmatpush.bf16.msra.mxu0 %v6423
        %6891 = vmatpush.bf16.msra.mxu0 %v6422
        %6892 = vmatpush.bf16.msra.mxu0 %v6421
        %6893 = vmatpush.bf16.msra.mxu0 %v6420
        %6894 = vmatpush.bf16.msra.mxu0 %v6419
        %6895 = vmatmul.bf16.gmra.mxu0 %v5815
        %v6896 = vpop.f32.mrf.mxu0
        %v6897 = vadd.f32 %v6808, %v6896
        %v6898 = vpop.f32.mrf.mxu0
        %v6899 = vadd.f32 %v6810, %v6898
        %6900 = vmatmul.bf16.gmra.mxu0 %v5824
        %v6901 = vpop.f32.mrf.mxu0
        %v6902 = vadd.f32 %v6813, %v6901
        %v6903 = vpop.f32.mrf.mxu0
        %v6904 = vadd.f32 %v6815, %v6903
        %6905 = vmatmul.bf16.gmra.mxu0 %v5833
        %v6906 = vpop.f32.mrf.mxu0
        %v6907 = vadd.f32 %v6818, %v6906
        %v6908 = vpop.f32.mrf.mxu0
        %v6909 = vadd.f32 %v6820, %v6908
        %6910 = vmatmul.bf16.gmra.mxu0 %v5842
        %v6911 = vpop.f32.mrf.mxu0
        %v6912 = vadd.f32 %v6823, %v6911
        %v6913 = vpop.f32.mrf.mxu0
        %v6914 = vadd.f32 %v6825, %v6913
        %6915 = vmatmul.bf16.gmra.mxu0 %v5851
        %v6916 = vpop.f32.mrf.mxu0
        %v6917 = vadd.f32 %v6828, %v6916
        %v6918 = vpop.f32.mrf.mxu0
        %v6919 = vadd.f32 %v6830, %v6918
        %6920 = vmatmul.bf16.gmra.mxu0 %v5860
        %v6921 = vpop.f32.mrf.mxu0
        %v6922 = vadd.f32 %v6833, %v6921
        %v6923 = vpop.f32.mrf.mxu0
        %v6924 = vadd.f32 %v6835, %v6923
        %6925 = vmatmul.bf16.gmra.mxu0 %v5869
        %v6926 = vpop.f32.mrf.mxu0
        %v6927 = vadd.f32 %v6838, %v6926
        %v6928 = vpop.f32.mrf.mxu0
        %v6929 = vadd.f32 %v6840, %v6928
        %6930 = vmatmul.bf16.gmra.mxu0 %v5878
        %v6931 = vpop.f32.mrf.mxu0
        %v6932 = vadd.f32 %v6843, %v6931
        %v6933 = vpop.f32.mrf.mxu0
        %v6934 = vadd.f32 %v6845, %v6933
        %6935 = vmatmul.bf16.gmra.mxu0 %v5887
        %v6936 = vpop.f32.mrf.mxu0
        %v6937 = vadd.f32 %v6848, %v6936
        %v6938 = vpop.f32.mrf.mxu0
        %v6939 = vadd.f32 %v6850, %v6938
        %6940 = vmatmul.bf16.gmra.mxu0 %v5896
        %v6941 = vpop.f32.mrf.mxu0
        %v6942 = vadd.f32 %v6853, %v6941
        %v6943 = vpop.f32.mrf.mxu0
        %v6944 = vadd.f32 %v6855, %v6943
        %6945 = vmatmul.bf16.gmra.mxu0 %v5905
        %v6946 = vpop.f32.mrf.mxu0
        %v6947 = vadd.f32 %v6858, %v6946
        %v6948 = vpop.f32.mrf.mxu0
        %v6949 = vadd.f32 %v6860, %v6948
        %6950 = vmatmul.bf16.gmra.mxu0 %v5914
        %v6951 = vpop.f32.mrf.mxu0
        %v6952 = vadd.f32 %v6863, %v6951
        %v6953 = vpop.f32.mrf.mxu0
        %v6954 = vadd.f32 %v6865, %v6953
        %6955 = vmatmul.bf16.gmra.mxu0 %v5923
        %v6956 = vpop.f32.mrf.mxu0
        %v6957 = vadd.f32 %v6868, %v6956
        %v6958 = vpop.f32.mrf.mxu0
        %v6959 = vadd.f32 %v6870, %v6958
        %6960 = vmatmul.bf16.gmra.mxu0 %v5932
        %v6961 = vpop.f32.mrf.mxu0
        %v6962 = vadd.f32 %v6873, %v6961
        %v6963 = vpop.f32.mrf.mxu0
        %v6964 = vadd.f32 %v6875, %v6963
        %6965 = vmatmul.bf16.gmra.mxu0 %v5941
        %v6966 = vpop.f32.mrf.mxu0
        %v6967 = vadd.f32 %v6878, %v6966
        %v6968 = vpop.f32.mrf.mxu0
        %v6969 = vadd.f32 %v6880, %v6968
        %6970 = vmatmul.bf16.gmra.mxu0 %v5950
        %v6971 = vpop.f32.mrf.mxu0
        %v6972 = vadd.f32 %v6883, %v6971
        %v6973 = vpop.f32.mrf.mxu0
        %v6974 = vadd.f32 %v6885, %v6973
        %6975 = vdwg.mxu0
        %6976 = vmatpush.bf16.msra.mxu0 %v6434
        %6977 = vmatpush.bf16.msra.mxu0 %v6433
        %6978 = vmatpush.bf16.msra.mxu0 %v6432
        %6979 = vmatpush.bf16.msra.mxu0 %v6431
        %6980 = vmatpush.bf16.msra.mxu0 %v6430
        %6981 = vmatpush.bf16.msra.mxu0 %v6429
        %6982 = vmatpush.bf16.msra.mxu0 %v6428
        %6983 = vmatpush.bf16.msra.mxu0 %v6427
        %6984 = vmatmul.bf16.gmra.mxu0 %v5816
        %v6985 = vpop.f32.mrf.mxu0
        %v6986 = vadd.f32 %v6897, %v6985
        %v6987 = vpop.f32.mrf.mxu0
        %v6988 = vadd.f32 %v6899, %v6987
        %6989 = vmatmul.bf16.gmra.mxu0 %v5825
        %v6990 = vpop.f32.mrf.mxu0
        %v6991 = vadd.f32 %v6902, %v6990
        %v6992 = vpop.f32.mrf.mxu0
        %v6993 = vadd.f32 %v6904, %v6992
        %6994 = vmatmul.bf16.gmra.mxu0 %v5834
        %v6995 = vpop.f32.mrf.mxu0
        %v6996 = vadd.f32 %v6907, %v6995
        %v6997 = vpop.f32.mrf.mxu0
        %v6998 = vadd.f32 %v6909, %v6997
        %6999 = vmatmul.bf16.gmra.mxu0 %v5843
        %v7000 = vpop.f32.mrf.mxu0
        %v7001 = vadd.f32 %v6912, %v7000
        %v7002 = vpop.f32.mrf.mxu0
        %v7003 = vadd.f32 %v6914, %v7002
        %7004 = vmatmul.bf16.gmra.mxu0 %v5852
        %v7005 = vpop.f32.mrf.mxu0
        %v7006 = vadd.f32 %v6917, %v7005
        %v7007 = vpop.f32.mrf.mxu0
        %v7008 = vadd.f32 %v6919, %v7007
        %7009 = vmatmul.bf16.gmra.mxu0 %v5861
        %v7010 = vpop.f32.mrf.mxu0
        %v7011 = vadd.f32 %v6922, %v7010
        %v7012 = vpop.f32.mrf.mxu0
        %v7013 = vadd.f32 %v6924, %v7012
        %7014 = vmatmul.bf16.gmra.mxu0 %v5870
        %v7015 = vpop.f32.mrf.mxu0
        %v7016 = vadd.f32 %v6927, %v7015
        %v7017 = vpop.f32.mrf.mxu0
        %v7018 = vadd.f32 %v6929, %v7017
        %7019 = vmatmul.bf16.gmra.mxu0 %v5879
        %v7020 = vpop.f32.mrf.mxu0
        %v7021 = vadd.f32 %v6932, %v7020
        %v7022 = vpop.f32.mrf.mxu0
        %v7023 = vadd.f32 %v6934, %v7022
        %7024 = vmatmul.bf16.gmra.mxu0 %v5888
        %v7025 = vpop.f32.mrf.mxu0
        %v7026 = vadd.f32 %v6937, %v7025
        %v7027 = vpop.f32.mrf.mxu0
        %v7028 = vadd.f32 %v6939, %v7027
        %7029 = vmatmul.bf16.gmra.mxu0 %v5897
        %v7030 = vpop.f32.mrf.mxu0
        %v7031 = vadd.f32 %v6942, %v7030
        %v7032 = vpop.f32.mrf.mxu0
        %v7033 = vadd.f32 %v6944, %v7032
        %7034 = vmatmul.bf16.gmra.mxu0 %v5906
        %v7035 = vpop.f32.mrf.mxu0
        %v7036 = vadd.f32 %v6947, %v7035
        %v7037 = vpop.f32.mrf.mxu0
        %v7038 = vadd.f32 %v6949, %v7037
        %7039 = vmatmul.bf16.gmra.mxu0 %v5915
        %v7040 = vpop.f32.mrf.mxu0
        %v7041 = vadd.f32 %v6952, %v7040
        %v7042 = vpop.f32.mrf.mxu0
        %v7043 = vadd.f32 %v6954, %v7042
        %7044 = vmatmul.bf16.gmra.mxu0 %v5924
        %v7045 = vpop.f32.mrf.mxu0
        %v7046 = vadd.f32 %v6957, %v7045
        %v7047 = vpop.f32.mrf.mxu0
        %v7048 = vadd.f32 %v6959, %v7047
        %7049 = vmatmul.bf16.gmra.mxu0 %v5933
        %v7050 = vpop.f32.mrf.mxu0
        %v7051 = vadd.f32 %v6962, %v7050
        %v7052 = vpop.f32.mrf.mxu0
        %v7053 = vadd.f32 %v6964, %v7052
        %7054 = vmatmul.bf16.gmra.mxu0 %v5942
        %v7055 = vpop.f32.mrf.mxu0
        %v7056 = vadd.f32 %v6967, %v7055
        %v7057 = vpop.f32.mrf.mxu0
        %v7058 = vadd.f32 %v6969, %v7057
        %7059 = vmatmul.bf16.gmra.mxu0 %v5951
        %v7060 = vpop.f32.mrf.mxu0
        %v7061 = vadd.f32 %v6972, %v7060
        %v7062 = vpop.f32.mrf.mxu0
        %v7063 = vadd.f32 %v6974, %v7062
        %7064 = vdwg.mxu0
        %7065 = vmatpush.bf16.msra.mxu0 %v6442
        %7066 = vmatpush.bf16.msra.mxu0 %v6441
        %7067 = vmatpush.bf16.msra.mxu0 %v6440
        %7068 = vmatpush.bf16.msra.mxu0 %v6439
        %7069 = vmatpush.bf16.msra.mxu0 %v6438
        %7070 = vmatpush.bf16.msra.mxu0 %v6437
        %7071 = vmatpush.bf16.msra.mxu0 %v6436
        %7072 = vmatpush.bf16.msra.mxu0 %v6435
        %7073 = vmatmul.bf16.gmra.mxu0 %v5817
        %v7074 = vpop.f32.mrf.mxu0
        %v7075 = vadd.f32 %v6986, %v7074
        %v7076 = vpop.f32.mrf.mxu0
        %v7077 = vadd.f32 %v6988, %v7076
        %7078 = vmatmul.bf16.gmra.mxu0 %v5826
        %v7079 = vpop.f32.mrf.mxu0
        %v7080 = vadd.f32 %v6991, %v7079
        %v7081 = vpop.f32.mrf.mxu0
        %v7082 = vadd.f32 %v6993, %v7081
        %7083 = vmatmul.bf16.gmra.mxu0 %v5835
        %v7084 = vpop.f32.mrf.mxu0
        %v7085 = vadd.f32 %v6996, %v7084
        %v7086 = vpop.f32.mrf.mxu0
        %v7087 = vadd.f32 %v6998, %v7086
        %7088 = vmatmul.bf16.gmra.mxu0 %v5844
        %v7089 = vpop.f32.mrf.mxu0
        %v7090 = vadd.f32 %v7001, %v7089
        %v7091 = vpop.f32.mrf.mxu0
        %v7092 = vadd.f32 %v7003, %v7091
        %7093 = vmatmul.bf16.gmra.mxu0 %v5853
        %v7094 = vpop.f32.mrf.mxu0
        %v7095 = vadd.f32 %v7006, %v7094
        %v7096 = vpop.f32.mrf.mxu0
        %v7097 = vadd.f32 %v7008, %v7096
        %7098 = vmatmul.bf16.gmra.mxu0 %v5862
        %v7099 = vpop.f32.mrf.mxu0
        %v7100 = vadd.f32 %v7011, %v7099
        %v7101 = vpop.f32.mrf.mxu0
        %v7102 = vadd.f32 %v7013, %v7101
        %7103 = vmatmul.bf16.gmra.mxu0 %v5871
        %v7104 = vpop.f32.mrf.mxu0
        %v7105 = vadd.f32 %v7016, %v7104
        %v7106 = vpop.f32.mrf.mxu0
        %v7107 = vadd.f32 %v7018, %v7106
        %7108 = vmatmul.bf16.gmra.mxu0 %v5880
        %v7109 = vpop.f32.mrf.mxu0
        %v7110 = vadd.f32 %v7021, %v7109
        %v7111 = vpop.f32.mrf.mxu0
        %v7112 = vadd.f32 %v7023, %v7111
        %7113 = vmatmul.bf16.gmra.mxu0 %v5889
        %v7114 = vpop.f32.mrf.mxu0
        %v7115 = vadd.f32 %v7026, %v7114
        %v7116 = vpop.f32.mrf.mxu0
        %v7117 = vadd.f32 %v7028, %v7116
        %7118 = vmatmul.bf16.gmra.mxu0 %v5898
        %v7119 = vpop.f32.mrf.mxu0
        %v7120 = vadd.f32 %v7031, %v7119
        %v7121 = vpop.f32.mrf.mxu0
        %v7122 = vadd.f32 %v7033, %v7121
        %7123 = vmatmul.bf16.gmra.mxu0 %v5907
        %v7124 = vpop.f32.mrf.mxu0
        %v7125 = vadd.f32 %v7036, %v7124
        %v7126 = vpop.f32.mrf.mxu0
        %v7127 = vadd.f32 %v7038, %v7126
        %7128 = vmatmul.bf16.gmra.mxu0 %v5916
        %v7129 = vpop.f32.mrf.mxu0
        %v7130 = vadd.f32 %v7041, %v7129
        %v7131 = vpop.f32.mrf.mxu0
        %v7132 = vadd.f32 %v7043, %v7131
        %7133 = vmatmul.bf16.gmra.mxu0 %v5925
        %v7134 = vpop.f32.mrf.mxu0
        %v7135 = vadd.f32 %v7046, %v7134
        %v7136 = vpop.f32.mrf.mxu0
        %v7137 = vadd.f32 %v7048, %v7136
        %7138 = vmatmul.bf16.gmra.mxu0 %v5934
        %v7139 = vpop.f32.mrf.mxu0
        %v7140 = vadd.f32 %v7051, %v7139
        %v7141 = vpop.f32.mrf.mxu0
        %v7142 = vadd.f32 %v7053, %v7141
        %7143 = vmatmul.bf16.gmra.mxu0 %v5943
        %v7144 = vpop.f32.mrf.mxu0
        %v7145 = vadd.f32 %v7056, %v7144
        %v7146 = vpop.f32.mrf.mxu0
        %v7147 = vadd.f32 %v7058, %v7146
        %7148 = vmatmul.bf16.gmra.mxu0 %v5952
        %v7149 = vpop.f32.mrf.mxu0
        %v7150 = vadd.f32 %v7061, %v7149
        %v7151 = vpop.f32.mrf.mxu0
        %v7152 = vadd.f32 %v7063, %v7151
        %7153 = vdwg.mxu0
        %7154 = vmatpush.bf16.msra.mxu0 %v6450
        %7155 = vmatpush.bf16.msra.mxu0 %v6449
        %7156 = vmatpush.bf16.msra.mxu0 %v6448
        %7157 = vmatpush.bf16.msra.mxu0 %v6447
        %7158 = vmatpush.bf16.msra.mxu0 %v6446
        %7159 = vmatpush.bf16.msra.mxu0 %v6445
        %7160 = vmatpush.bf16.msra.mxu0 %v6444
        %7161 = vmatpush.bf16.msra.mxu0 %v6443
        %7162 = vmatmul.bf16.gmra.mxu0 %v5818
        %v7163 = vpop.f32.mrf.mxu0
        %v7164 = vadd.f32 %v7075, %v7163
        %v7165 = vpop.f32.mrf.mxu0
        %v7166 = vadd.f32 %v7077, %v7165
        %7167 = vmatmul.bf16.gmra.mxu0 %v5827
        %v7168 = vpop.f32.mrf.mxu0
        %v7169 = vadd.f32 %v7080, %v7168
        %v7170 = vpop.f32.mrf.mxu0
        %v7171 = vadd.f32 %v7082, %v7170
        %7172 = vmatmul.bf16.gmra.mxu0 %v5836
        %v7173 = vpop.f32.mrf.mxu0
        %v7174 = vadd.f32 %v7085, %v7173
        %v7175 = vpop.f32.mrf.mxu0
        %v7176 = vadd.f32 %v7087, %v7175
        %7177 = vmatmul.bf16.gmra.mxu0 %v5845
        %v7178 = vpop.f32.mrf.mxu0
        %v7179 = vadd.f32 %v7090, %v7178
        %v7180 = vpop.f32.mrf.mxu0
        %v7181 = vadd.f32 %v7092, %v7180
        %7182 = vmatmul.bf16.gmra.mxu0 %v5854
        %v7183 = vpop.f32.mrf.mxu0
        %v7184 = vadd.f32 %v7095, %v7183
        %v7185 = vpop.f32.mrf.mxu0
        %v7186 = vadd.f32 %v7097, %v7185
        %7187 = vmatmul.bf16.gmra.mxu0 %v5863
        %v7188 = vpop.f32.mrf.mxu0
        %v7189 = vadd.f32 %v7100, %v7188
        %v7190 = vpop.f32.mrf.mxu0
        %v7191 = vadd.f32 %v7102, %v7190
        %7192 = vmatmul.bf16.gmra.mxu0 %v5872
        %v7193 = vpop.f32.mrf.mxu0
        %v7194 = vadd.f32 %v7105, %v7193
        %v7195 = vpop.f32.mrf.mxu0
        %v7196 = vadd.f32 %v7107, %v7195
        %7197 = vmatmul.bf16.gmra.mxu0 %v5881
        %v7198 = vpop.f32.mrf.mxu0
        %v7199 = vadd.f32 %v7110, %v7198
        %v7200 = vpop.f32.mrf.mxu0
        %v7201 = vadd.f32 %v7112, %v7200
        %7202 = vmatmul.bf16.gmra.mxu0 %v5890
        %v7203 = vpop.f32.mrf.mxu0
        %v7204 = vadd.f32 %v7115, %v7203
        %v7205 = vpop.f32.mrf.mxu0
        %v7206 = vadd.f32 %v7117, %v7205
        %7207 = vmatmul.bf16.gmra.mxu0 %v5899
        %v7208 = vpop.f32.mrf.mxu0
        %v7209 = vadd.f32 %v7120, %v7208
        %v7210 = vpop.f32.mrf.mxu0
        %v7211 = vadd.f32 %v7122, %v7210
        %7212 = vmatmul.bf16.gmra.mxu0 %v5908
        %v7213 = vpop.f32.mrf.mxu0
        %v7214 = vadd.f32 %v7125, %v7213
        %v7215 = vpop.f32.mrf.mxu0
        %v7216 = vadd.f32 %v7127, %v7215
        %7217 = vmatmul.bf16.gmra.mxu0 %v5917
        %v7218 = vpop.f32.mrf.mxu0
        %v7219 = vadd.f32 %v7130, %v7218
        %v7220 = vpop.f32.mrf.mxu0
        %v7221 = vadd.f32 %v7132, %v7220
        %7222 = vmatmul.bf16.gmra.mxu0 %v5926
        %v7223 = vpop.f32.mrf.mxu0
        %v7224 = vadd.f32 %v7135, %v7223
        %v7225 = vpop.f32.mrf.mxu0
        %v7226 = vadd.f32 %v7137, %v7225
        %7227 = vmatmul.bf16.gmra.mxu0 %v5935
        %v7228 = vpop.f32.mrf.mxu0
        %v7229 = vadd.f32 %v7140, %v7228
        %v7230 = vpop.f32.mrf.mxu0
        %v7231 = vadd.f32 %v7142, %v7230
        %7232 = vmatmul.bf16.gmra.mxu0 %v5944
        %v7233 = vpop.f32.mrf.mxu0
        %v7234 = vadd.f32 %v7145, %v7233
        %v7235 = vpop.f32.mrf.mxu0
        %v7236 = vadd.f32 %v7147, %v7235
        %7237 = vmatmul.bf16.gmra.mxu0 %v5953
        %v7238 = vpop.f32.mrf.mxu0
        %v7239 = vadd.f32 %v7150, %v7238
        %v7240 = vpop.f32.mrf.mxu0
        %v7241 = vadd.f32 %v7152, %v7240
        %7242 = vdwg.mxu0
        %7243 = vmatpush.bf16.msra.mxu0 %v6458
        %7244 = vmatpush.bf16.msra.mxu0 %v6457
        %7245 = vmatpush.bf16.msra.mxu0 %v6456
        %7246 = vmatpush.bf16.msra.mxu0 %v6455
        %7247 = vmatpush.bf16.msra.mxu0 %v6454
        %7248 = vmatpush.bf16.msra.mxu0 %v6453
        %7249 = vmatpush.bf16.msra.mxu0 %v6452
        %7250 = vmatpush.bf16.msra.mxu0 %v6451
        %7251 = vmatmul.bf16.gmra.mxu0 %v5819
        %v7252 = vpop.f32.mrf.mxu0
        %v7253 = vadd.f32 %v7164, %v7252
        %v7254 = vpop.f32.mrf.mxu0
        %v7255 = vadd.f32 %v7166, %v7254
        %7256 = vmatmul.bf16.gmra.mxu0 %v5828
        %v7257 = vpop.f32.mrf.mxu0
        %v7258 = vadd.f32 %v7169, %v7257
        %v7259 = vpop.f32.mrf.mxu0
        %v7260 = vadd.f32 %v7171, %v7259
        %7261 = vmatmul.bf16.gmra.mxu0 %v5837
        %v7262 = vpop.f32.mrf.mxu0
        %v7263 = vadd.f32 %v7174, %v7262
        %v7264 = vpop.f32.mrf.mxu0
        %v7265 = vadd.f32 %v7176, %v7264
        %7266 = vmatmul.bf16.gmra.mxu0 %v5846
        %v7267 = vpop.f32.mrf.mxu0
        %v7268 = vadd.f32 %v7179, %v7267
        %v7269 = vpop.f32.mrf.mxu0
        %v7270 = vadd.f32 %v7181, %v7269
        %7271 = vmatmul.bf16.gmra.mxu0 %v5855
        %v7272 = vpop.f32.mrf.mxu0
        %v7273 = vadd.f32 %v7184, %v7272
        %v7274 = vpop.f32.mrf.mxu0
        %v7275 = vadd.f32 %v7186, %v7274
        %7276 = vmatmul.bf16.gmra.mxu0 %v5864
        %v7277 = vpop.f32.mrf.mxu0
        %v7278 = vadd.f32 %v7189, %v7277
        %v7279 = vpop.f32.mrf.mxu0
        %v7280 = vadd.f32 %v7191, %v7279
        %7281 = vmatmul.bf16.gmra.mxu0 %v5873
        %v7282 = vpop.f32.mrf.mxu0
        %v7283 = vadd.f32 %v7194, %v7282
        %v7284 = vpop.f32.mrf.mxu0
        %v7285 = vadd.f32 %v7196, %v7284
        %7286 = vmatmul.bf16.gmra.mxu0 %v5882
        %v7287 = vpop.f32.mrf.mxu0
        %v7288 = vadd.f32 %v7199, %v7287
        %v7289 = vpop.f32.mrf.mxu0
        %v7290 = vadd.f32 %v7201, %v7289
        %7291 = vmatmul.bf16.gmra.mxu0 %v5891
        %v7292 = vpop.f32.mrf.mxu0
        %v7293 = vadd.f32 %v7204, %v7292
        %v7294 = vpop.f32.mrf.mxu0
        %v7295 = vadd.f32 %v7206, %v7294
        %7296 = vmatmul.bf16.gmra.mxu0 %v5900
        %v7297 = vpop.f32.mrf.mxu0
        %v7298 = vadd.f32 %v7209, %v7297
        %v7299 = vpop.f32.mrf.mxu0
        %v7300 = vadd.f32 %v7211, %v7299
        %7301 = vmatmul.bf16.gmra.mxu0 %v5909
        %v7302 = vpop.f32.mrf.mxu0
        %v7303 = vadd.f32 %v7214, %v7302
        %v7304 = vpop.f32.mrf.mxu0
        %v7305 = vadd.f32 %v7216, %v7304
        %7306 = vmatmul.bf16.gmra.mxu0 %v5918
        %v7307 = vpop.f32.mrf.mxu0
        %v7308 = vadd.f32 %v7219, %v7307
        %v7309 = vpop.f32.mrf.mxu0
        %v7310 = vadd.f32 %v7221, %v7309
        %7311 = vmatmul.bf16.gmra.mxu0 %v5927
        %v7312 = vpop.f32.mrf.mxu0
        %v7313 = vadd.f32 %v7224, %v7312
        %v7314 = vpop.f32.mrf.mxu0
        %v7315 = vadd.f32 %v7226, %v7314
        %7316 = vmatmul.bf16.gmra.mxu0 %v5936
        %v7317 = vpop.f32.mrf.mxu0
        %v7318 = vadd.f32 %v7229, %v7317
        %v7319 = vpop.f32.mrf.mxu0
        %v7320 = vadd.f32 %v7231, %v7319
        %7321 = vmatmul.bf16.gmra.mxu0 %v5945
        %v7322 = vpop.f32.mrf.mxu0
        %v7323 = vadd.f32 %v7234, %v7322
        %v7324 = vpop.f32.mrf.mxu0
        %v7325 = vadd.f32 %v7236, %v7324
        %7326 = vmatmul.bf16.gmra.mxu0 %v5954
        %v7327 = vpop.f32.mrf.mxu0
        %v7328 = vadd.f32 %v7239, %v7327
        %v7329 = vpop.f32.mrf.mxu0
        %v7330 = vadd.f32 %v7241, %v7329
        %7331 = vdwg.mxu0
        %v7332 = vld [vmem:[%s8] sm:$0x1]
        %v7334 = vperm.slane %v7332, 0
        %v7336 = vadd.f32 %v7253, %v7334
        %v7337 = vadd.f32 %v7255, %v7334
        %v7338 = vadd.f32 %v7258, %v7334
        %v7339 = vadd.f32 %v7260, %v7334
        %v7340 = vadd.f32 %v7263, %v7334
        %v7341 = vadd.f32 %v7265, %v7334
        %v7342 = vadd.f32 %v7268, %v7334
        %v7343 = vadd.f32 %v7270, %v7334
        %v7344 = vadd.f32 %v7273, %v7334
        %v7345 = vadd.f32 %v7275, %v7334
        %v7346 = vadd.f32 %v7278, %v7334
        %v7347 = vadd.f32 %v7280, %v7334
        %v7348 = vadd.f32 %v7283, %v7334
        %v7349 = vadd.f32 %v7285, %v7334
        %v7350 = vadd.f32 %v7288, %v7334
        %v7351 = vadd.f32 %v7290, %v7334
        %v7352 = vadd.f32 %v7293, %v7334
        %v7353 = vadd.f32 %v7295, %v7334
        %v7354 = vadd.f32 %v7298, %v7334
        %v7355 = vadd.f32 %v7300, %v7334
        %v7356 = vadd.f32 %v7303, %v7334
        %v7357 = vadd.f32 %v7305, %v7334
        %v7358 = vadd.f32 %v7308, %v7334
        %v7359 = vadd.f32 %v7310, %v7334
        %v7360 = vadd.f32 %v7313, %v7334
        %v7361 = vadd.f32 %v7315, %v7334
        %v7362 = vadd.f32 %v7318, %v7334
        %v7363 = vadd.f32 %v7320, %v7334
        %v7364 = vadd.f32 %v7323, %v7334
        %v7365 = vadd.f32 %v7325, %v7334
        %v7366 = vadd.f32 %v7328, %v7334
        %v7367 = vadd.f32 %v7330, %v7334
        %7368 = vst [vmem:[%s416] sm:$0xff] %v7336
        %7369 = vst [vmem:[%s416 + $0x8] sm:$0xff] %v7337
        %7370 = vst [vmem:[%s416 + $0x10] sm:$0xff] %v7338
        %7371 = vst [vmem:[%s416 + $0x18] sm:$0xff] %v7339
        %7372 = vst [vmem:[%s416 + $0x20] sm:$0xff] %v7340
        %7373 = vst [vmem:[%s416 + $0x28] sm:$0xff] %v7341
        %7374 = vst [vmem:[%s416 + $0x30] sm:$0xff] %v7342
        %7375 = vst [vmem:[%s416 + $0x38] sm:$0xff] %v7343
        %7376 = vst [vmem:[%s416 + $0x40] sm:$0xff] %v7344
        %7377 = vst [vmem:[%s416 + $0x48] sm:$0xff] %v7345
        %7378 = vst [vmem:[%s416 + $0x50] sm:$0xff] %v7346
        %7379 = vst [vmem:[%s416 + $0x58] sm:$0xff] %v7347
        %7380 = vst [vmem:[%s416 + $0x60] sm:$0xff] %v7348
        %7381 = vst [vmem:[%s416 + $0x68] sm:$0xff] %v7349
        %7382 = vst [vmem:[%s416 + $0x70] sm:$0xff] %v7350
        %7383 = vst [vmem:[%s416 + $0x78] sm:$0xff] %v7351
        %7384 = vst [vmem:[%s416 + $0x80] sm:$0xff] %v7352
        %7385 = vst [vmem:[%s416 + $0x88] sm:$0xff] %v7353
        %7386 = vst [vmem:[%s416 + $0x90] sm:$0xff] %v7354
        %7387 = vst [vmem:[%s416 + $0x98] sm:$0xff] %v7355
        %7388 = vst [vmem:[%s416 + $0xa0] sm:$0xff] %v7356
        %7389 = vst [vmem:[%s416 + $0xa8] sm:$0xff] %v7357
        %7390 = vst [vmem:[%s416 + $0xb0] sm:$0xff] %v7358
        %7391 = vst [vmem:[%s416 + $0xb8] sm:$0xff] %v7359
        %7392 = vst [vmem:[%s416 + $0xc0] sm:$0xff] %v7360
        %7393 = vst [vmem:[%s416 + $0xc8] sm:$0xff] %v7361
        %7394 = vst [vmem:[%s416 + $0xd0] sm:$0xff] %v7362
        %7395 = vst [vmem:[%s416 + $0xd8] sm:$0xff] %v7363
        %7396 = vst [vmem:[%s416 + $0xe0] sm:$0xff] %v7364
        %7397 = vst [vmem:[%s416 + $0xe8] sm:$0xff] %v7365
        %7398 = vst [vmem:[%s416 + $0xf0] sm:$0xff] %v7366
        %7399 = vst [vmem:[%s416 + $0xf8] sm:$0xff] %v7367
        %s7400 = sand.u32 %s230, 1
        %s7401 = scalar_lea.sflag [#allocation6], %s7400
        %s7402 = sand.u32 %s230, 1
        %s7403 = smul.addr %s7402, 256
        %s7404 = scalar_lea.vmem [#allocation13], %s7403
        // Predicated region
        $region77: #{tpu_custom_call.1} parent=55 // pred_check
          %p7405 = pneg %p240
        $region78: #{tpu_custom_call.1} parent=55 // pred_check_branch
          %7407 = sbr.rel (%p7405) target = $region80
        $region79: #{tpu_custom_call.1} parent=55 // pred_region
          %7409 = vsyncadd %s7401, 0
          %s7410 = smul.addr %s28, 32
          %s7411 = smul.addr %s7410, 8
          %s7412 = scalar_lea.hbm %s9, %s7411
          %s7413 = sshll.u32 %s7404, 4
          %s7414 = int_to_ptr.vmem [resolvable:$true] %s7413
          %s7415 = sshll.u32 %s7412, 4
          %s7416 = int_to_ptr.hbm [resolvable:$true] %s7415
          %7421 = dma.vmem_to_hbm [thread:$0]  %s7414, 4096, %s7416, %s7401, 128, 128, 8
        $region80: #{tpu_custom_call.1} parent=55 // pred_fallthru
          _
      $region56: #{tpu_custom_call.1} parent=5 // pred_fallthru
        _
      %p7422 = scmp.le.s32.totalorder 2, %s23
      // Predicated region
      $region81: #{tpu_custom_call.1} parent=5 // pred_check
        %p7423 = pneg %p7422
      $region82: #{tpu_custom_call.1} parent=5 // pred_check_branch
        %7425 = sbr.rel (%p7423) target = $region84
      $region83: #{tpu_custom_call.1} parent=5 // pred_region
        %s7426 = ssub.s32 %s23, 2
        // Predicated region
        $region85: #{tpu_custom_call.1} parent=83 // pred_check
          %p7427 = pneg %p246
        $region86: #{tpu_custom_call.1} parent=83 // pred_check_branch
          %7429 = sbr.rel (%p7427) target = $region88
        $region87: #{tpu_custom_call.1} parent=83 // pred_region
          %s7430 = sand.u32 %s231, 1
          %s7431 = scalar_lea.sflag [#allocation6], %s7430
          %s7432 = sand.u32 %s231, 1
          %s7433 = smul.addr %s7432, 256
          %s7434 = scalar_lea.vmem [#allocation13], %s7433
          %7436 = dma.done %s7431, 4096
        $region88: #{tpu_custom_call.1} parent=83 // pred_fallthru
          _
      $region84: #{tpu_custom_call.1} parent=5 // pred_fallthru
        _
    $region6: #{tpu_custom_call.1} parent=1 // loop_footer
      %s27 = sadd.s32 1, %s23
    $region7: #{tpu_custom_call.1} parent=1 // loop_footer_branch
      %22 = sbr.rel target = $region3
    $region8: #{tpu_custom_call.1} parent=1 // loop_exit
      _
    %7437 = vsyncpa [#allocation5], 1
    %s7438 = scalar_lea.sflag [#allocation5], 1
    %7439 = vsyncpa %s7438, 1
    %7440 = vsyncpa [#allocation8], 1
    %7441 = vsyncpa [#allocation11], 1
    %7442 = vsyncpa [#allocation6], 1
    %s7443 = scalar_lea.sflag [#allocation6], 1
    %7444 = vsyncpa %s7443, 1

</llo_original>
